<compile_context>
chip_gen: v7x
topology: tpu7x:2x2x1
jax: 0.10.0
libtpu: 0.0.40
codegen_flags: <defaults>
</compile_context>

<pallas_src>
import jax
import jax.numpy as jnp
from jax.experimental import pallas as pl
from jax.experimental.pallas import tpu as pltpu

LANE = 128


def _round_up(v, m):
    return ((v + m - 1) // m) * m


# ---------------------------------------------------------------------------
# parameter packing helpers (glue)
# ---------------------------------------------------------------------------
def fold_conv_weight(w_hwio, cin_pad, cout_pad):
    """(3,3,Cin,Cout) HWIO -> zero-padded, tap-folded (9*cin_pad, cout_pad) bf16."""
    kh, kw, cin, cout = w_hwio.shape
    wp = jnp.zeros((kh, kw, cin_pad, cout_pad), jnp.float32)
    wp = wp.at[:, :, :cin, :cout].set(w_hwio.astype(jnp.float32))
    return wp.reshape(kh * kw * cin_pad, cout_pad).astype(jnp.bfloat16)


def pad_row(v, n_pad):
    """(C,) -> (1, n_pad) f32, zero-padded on the right."""
    out = jnp.zeros((1, n_pad), jnp.float32)
    return out.at[0, : v.shape[0]].set(v.astype(jnp.float32))


# ---------------------------------------------------------------------------
# kernel 1: fused conv3x3 (single K=9*Cin matmul) + BatchNorm(eval) + ReLU
# ---------------------------------------------------------------------------
def conv3x3_bn_relu(x_nhwc, w_folded, scale_p, bias_p, cout_pad, *, compute_pool=False):
    """Returns (N, H*W, cout_pad) bf16 [and optionally the spatial mean (N,1,cout_pad) f32].

    Output channels are zero-padded to `cout_pad` (multiple of 128) -> lane-dense stores.
    """
    N, H, W, Cin = x_nhwc.shape
    HW = H * W
    K = 9 * Cin
    assert w_folded.shape == (K, cout_pad)

    # Pad spatially once; the 9 shifted taps are built inside the kernel
    # (eliminates the 9x im2col materialization in HBM).
    xp = jnp.pad(x_nhwc, ((0, 0), (1, 1), (1, 1), (0, 0))).astype(jnp.bfloat16)

    def kernel(x_ref, w_ref, s_ref, b_ref, o_ref, *rest):
        xv = x_ref[0].astype(jnp.float32)                         # (H+2, W+2, Cin)
        taps = [xv[dy:dy + H, dx:dx + W, :] for dy in range(3) for dx in range(3)]
        cols = jnp.concatenate(taps, axis=-1)                     # (H, W, 9*Cin)
        cols = cols.reshape(HW, K).astype(jnp.bfloat16)           # folded contraction dim
        acc = jnp.dot(cols, w_ref[...], preferred_element_type=jnp.float32)  # (HW, Cp)
        y = jnp.maximum(acc * s_ref[...] + b_ref[...], 0.0)       # fused BN(eval) + ReLU, f32
        o_ref[0] = y.astype(o_ref.dtype)
        if compute_pool:
            # spatial mean feeding the batched (out-of-kernel) SE MLP
            rest[0][0] = jnp.mean(y, axis=0, keepdims=True)       # (1, Cp)

    in_specs = [
        pl.BlockSpec((1, H + 2, W + 2, Cin), lambda b: (b, 0, 0, 0)),
        # Resident weight block (constant index map).  TODO(synk): on v7x with very
        # large Cin*Cout request single buffering for this spec.
        pl.BlockSpec((K, cout_pad), lambda b: (0, 0)),
        pl.BlockSpec((1, cout_pad), lambda b: (0, 0)),
        pl.BlockSpec((1, cout_pad), lambda b: (0, 0)),
    ]
    if compute_pool:
        out_shape = (jax.ShapeDtypeStruct((N, HW, cout_pad), jnp.bfloat16),
                     jax.ShapeDtypeStruct((N, 1, cout_pad), jnp.float32))
        out_specs = (pl.BlockSpec((1, HW, cout_pad), lambda b: (b, 0, 0)),
                     pl.BlockSpec((1, 1, cout_pad), lambda b: (b, 0, 0)))
    else:
        out_shape = jax.ShapeDtypeStruct((N, HW, cout_pad), jnp.bfloat16)
        out_specs = pl.BlockSpec((1, HW, cout_pad), lambda b: (b, 0, 0))

    return pl.pallas_call(
        kernel,
        out_shape=out_shape,
        grid=(N,),
        in_specs=in_specs,
        out_specs=out_specs,
        compiler_params=pltpu.CompilerParams(dimension_semantics=("parallel",)),
    )(xp, w_folded, scale_p, bias_p)


# ---------------------------------------------------------------------------
# kernel 2: CBAM (given per-batch SE scales): x <- x*se; 7x7 spatial attention
# ---------------------------------------------------------------------------
def cbam_kernel_call(x_nhwc_p, y_se, sp_w, c_real):
    N, H, W, Cp = x_nhwc_p.shape
    Wp = _round_up(W + 6, LANE)          # lane-aligned padded width for attention maps
    inv_c = 1.0 / float(c_real)          # channel mean uses the REAL channel count

    def kernel(x_ref, y_ref, wsp_ref, o_ref, abuf, mbuf):
        xv = x_ref[0].astype(jnp.float32)                 # (H, W, Cp)
        xs = xv * y_ref[0]                                # SE-scaled features

        # Channel avg / max maps.  Padded channels are zero; since xs >= 0 (post-ReLU,
        # post-sigmoid scale) the extra zeros cannot change the max, and the mean
        # divides by the real channel count.
        amap = jnp.sum(xs, axis=-1) * inv_c               # (H, W)
        mmap = jnp.max(xs, axis=-1)                       # (H, W)

        # Zero-padded, lane-aligned buffers: map lives at rows [3, 3+H), cols [0, W).
        zeros = jnp.zeros((H + 6, Wp), jnp.float32)
        abuf[...] = zeros
        mbuf[...] = zeros
        abuf[3:3 + H, 0:W] = amap
        mbuf[3:3 + H, 0:W] = mmap

        # 7x7 conv: dy via 7 sublane slices per map, dx via pltpu.roll (XLU slot).
        # Wrap-around lanes only touch the zero-padded columns (Wp >= W + 6).
        acc = jnp.zeros((H, Wp), jnp.float32)
        for dy in range(7):
            ar = abuf[dy:dy + H, :]
            mr = mbuf[dy:dy + H, :]
            for dx in range(7):
                sh = (3 - dx) % Wp
                acc = acc + pltpu.roll(ar, sh, 1) * wsp_ref[0, dy * 7 + dx]
                acc = acc + pltpu.roll(mr, sh, 1) * wsp_ref[1, dy * 7 + dx]
        attn = jax.nn.sigmoid(acc[:, 0:W])                # (H, W)

        o_ref[0] = (xs * attn[:, :, None]).astype(o_ref.dtype)

    return pl.pallas_call(
        kernel,
        out_shape=jax.ShapeDtypeStruct((N, H, W, Cp), jnp.float32),
        grid=(N,),
        in_specs=[
            pl.BlockSpec((1, H, W, Cp), lambda b: (b, 0, 0, 0)),
            pl.BlockSpec((1, 1, Cp), lambda b: (b, 0, 0)),
            pl.BlockSpec(memory_space=pltpu.MemorySpace.SMEM),    # (2, 49) 7x7 taps
        ],
        out_specs=pl.BlockSpec((1, H, W, Cp), lambda b: (b, 0, 0, 0)),
        scratch_shapes=[pltpu.VMEM((H + 6, Wp), jnp.float32),
                        pltpu.VMEM((H + 6, Wp), jnp.float32)],
        compiler_params=pltpu.CompilerParams(dimension_semantics=("parallel",)),
    )(x_nhwc_p, y_se, sp_w)


# ---------------------------------------------------------------------------
# full DoubleConv forward
# ---------------------------------------------------------------------------
def double_conv(x_nchw, params):
    N, Cin, H, W = x_nchw.shape
    w1, w2 = params["w1"], params["w2"]            # (3,3,Cin,Cmid), (3,3,Cmid,Cout) HWIO
    Cmid, Cout = w1.shape[-1], w2.shape[-1]
    Cmid_p = _round_up(Cmid, LANE)
    Cout_p = _round_up(Cout, LANE)

    x = jnp.transpose(x_nchw, (0, 2, 3, 1))                        # NCHW -> NHWC

    # conv1 + BN1 + ReLU (output channel-padded to Cmid_p, stored lane-dense in bf16)
    h1 = conv3x3_bn_relu(
        x, fold_conv_weight(w1, Cin, Cmid_p),
        pad_row(params["bn1_scale"], Cmid_p), pad_row(params["bn1_bias"], Cmid_p),
        Cmid_p)
    h1 = h1.reshape(N, H, W, Cmid_p)

    # conv2 + BN2 + ReLU; also emits the per-batch spatial mean for the SE branch
    h2, pooled = conv3x3_bn_relu(
        h1, fold_conv_weight(w2, Cmid_p, Cout_p),
        pad_row(params["bn2_scale"], Cout_p), pad_row(params["bn2_bias"], Cout_p),
        Cout_p, compute_pool=True)
    h2 = h2.reshape(N, H, W, Cout_p)

    # SE MLP, batched over N (tiny matmuls, done in glue per perf review)
    cr = params["se_w1"].shape[1]
    w_se1_p = jnp.zeros((Cout_p, cr), jnp.float32).at[:Cout, :].set(params["se_w1"])
    w_se2_p = jnp.zeros((cr, Cout_p), jnp.float32).at[:, :Cout].set(params["se_w2"])
    pooled = pooled[:, 0, :]                                       # (N, Cout_p) f32
    hid = jnp.maximum(pooled @ w_se1_p, 0.0)
    y_se = jax.nn.sigmoid(hid @ w_se2_p).reshape(N, 1, Cout_p)

    # CBAM: SE scaling + 7x7 spatial attention
    out_p = cbam_kernel_call(h2, y_se, params["sp_w"], Cout)       # (N, H, W, Cout_p) f32

    out = out_p[..., :Cout]                                        # strip channel padding
    return jnp.transpose(out, (0, 3, 1, 2)).astype(x_nchw.dtype)   # NHWC -> NCHW


# ---------------------------------------------------------------------------
# deterministic parameters (BN folded to eval-mode scale/bias)
# ---------------------------------------------------------------------------
def make_params(key, in_channels, out_channels, reduction=16):
    mid_channels = out_channels
    ks = jax.random.split(key, 10)
    eps = 1e-5

    def bn_params(k, c):
        k1, k2, k3, k4 = jax.random.split(k, 4)
        gamma = jax.random.uniform(k1, (c,), minval=0.5, maxval=1.5)
        beta = 0.1 * jax.random.normal(k2, (c,))
        rmean = 0.1 * jax.random.normal(k3, (c,))
        rvar = jax.random.uniform(k4, (c,), minval=0.5, maxval=1.5)
        scale = gamma / jnp.sqrt(rvar + eps)
        bias = beta - rmean * scale
        return scale, bias

    w1 = jax.random.normal(ks[0], (3, 3, in_channels, mid_channels)) * (
        1.0 / (3.0 * (in_channels ** 0.5)))
    w2 = jax.random.normal(ks[1], (3, 3, mid_channels, out_channels)) * (
        1.0 / (3.0 * (mid_channels ** 0.5)))
    bn1_scale, bn1_bias = bn_params(ks[2], mid_channels)
    bn2_scale, bn2_bias = bn_params(ks[3], out_channels)

    cr = max(out_channels // reduction, 1)
    se_w1 = jax.random.normal(ks[4], (out_channels, cr)) * (1.0 / (out_channels ** 0.5))
    se_w2 = jax.random.normal(ks[5], (cr, out_channels)) * (1.0 / (cr ** 0.5))
    sp_w = jax.random.normal(ks[6], (2, 7, 7)) * (1.0 / ((2 * 49) ** 0.5))

    return {
        "w1": w1.astype(jnp.float32),
        "w2": w2.astype(jnp.float32),
        "bn1_scale": bn1_scale.astype(jnp.float32),
        "bn1_bias": bn1_bias.astype(jnp.float32),
        "bn2_scale": bn2_scale.astype(jnp.float32),
        "bn2_bias": bn2_bias.astype(jnp.float32),
        "se_w1": se_w1.astype(jnp.float32),
        "se_w2": se_w2.astype(jnp.float32),
        "sp_w": sp_w.reshape(2, 49).astype(jnp.float32),
    }


if __name__ == "__main__":
    key = jax.random.PRNGKey(0)
    k_x, k_p = jax.random.split(key)

    N, Cin, Cout, H, W = 2, 4, 16, 16, 16
    x = jax.random.normal(k_x, (N, Cin, H, W), dtype=jnp.float32)
    params = make_params(k_p, Cin, Cout)

    fwd = jax.jit(lambda xx: double_conv(xx, params))
    out = jax.block_until_ready(fwd(x))
    assert out.shape == (N, Cout, H, W), out.shape
    assert bool(jnp.all(jnp.isfinite(out)))
    print("KERNEL_OK")
</pallas_src>

<mosaic_0001>
module attributes {stable_mosaic.version = 11 : i64} {
  func.func @kernel(%arg0: i32, %arg1: memref<1x18x18x4xbf16, #tpu.memory_space<vmem>>, %arg2: memref<36x128xbf16, #tpu.memory_space<vmem>>, %arg3: memref<1x128xf32, #tpu.memory_space<vmem>>, %arg4: memref<1x128xf32, #tpu.memory_space<vmem>>, %arg5: memref<1x256x128xbf16, #tpu.memory_space<vmem>>) attributes {dimension_semantics = [#tpu.dimension_semantics<parallel>], iteration_bounds = array<i64: 2>, scalar_prefetch = 0 : i64, scratch_operands = 0 : i64, tpu.core_type = #tpu.core_type<tc>, window_params = [{transform_indices = @transform_0, window_bounds = array<i64: 1, 18, 18, 4>}, {pipeline_mode = #tpu.pipeline_mode<synchronous>, transform_indices = @transform_1, window_bounds = array<i64: 36, 128>}, {pipeline_mode = #tpu.pipeline_mode<synchronous>, transform_indices = @transform_2, window_bounds = array<i64: 1, 128>}, {pipeline_mode = #tpu.pipeline_mode<synchronous>, transform_indices = @transform_3, window_bounds = array<i64: 1, 128>}, {transform_indices = @transform_4, window_bounds = array<i64: 1, 256, 128>}]} {
    %c0 = arith.constant 0 : index
    %c0_0 = arith.constant 0 : index
    %c0_1 = arith.constant 0 : index
    %c0_2 = arith.constant 0 : index
    %0 = vector.load %arg1[%c0, %c0_0, %c0_1, %c0_2] : memref<1x18x18x4xbf16, #tpu.memory_space<vmem>>, vector<1x18x18x4xbf16>
    %1 = vector.shape_cast %0 : vector<1x18x18x4xbf16> to vector<18x18x4xbf16>
    %2 = arith.extf %1 : vector<18x18x4xbf16> to vector<18x18x4xf32>
    %3 = vector.extract_strided_slice %2 {offsets = [0, 0, 0], sizes = [16, 16, 4], strides = [1, 1, 1]} : vector<18x18x4xf32> to vector<16x16x4xf32>
    %4 = vector.extract_strided_slice %2 {offsets = [0, 1, 0], sizes = [16, 16, 4], strides = [1, 1, 1]} : vector<18x18x4xf32> to vector<16x16x4xf32>
    %5 = vector.extract_strided_slice %2 {offsets = [0, 2, 0], sizes = [16, 16, 4], strides = [1, 1, 1]} : vector<18x18x4xf32> to vector<16x16x4xf32>
    %6 = vector.extract_strided_slice %2 {offsets = [1, 0, 0], sizes = [16, 16, 4], strides = [1, 1, 1]} : vector<18x18x4xf32> to vector<16x16x4xf32>
    %7 = vector.extract_strided_slice %2 {offsets = [1, 1, 0], sizes = [16, 16, 4], strides = [1, 1, 1]} : vector<18x18x4xf32> to vector<16x16x4xf32>
    %8 = vector.extract_strided_slice %2 {offsets = [1, 2, 0], sizes = [16, 16, 4], strides = [1, 1, 1]} : vector<18x18x4xf32> to vector<16x16x4xf32>
    %9 = vector.extract_strided_slice %2 {offsets = [2, 0, 0], sizes = [16, 16, 4], strides = [1, 1, 1]} : vector<18x18x4xf32> to vector<16x16x4xf32>
    %10 = vector.extract_strided_slice %2 {offsets = [2, 1, 0], sizes = [16, 16, 4], strides = [1, 1, 1]} : vector<18x18x4xf32> to vector<16x16x4xf32>
    %11 = vector.extract_strided_slice %2 {offsets = [2, 2, 0], sizes = [16, 16, 4], strides = [1, 1, 1]} : vector<18x18x4xf32> to vector<16x16x4xf32>
    %12 = tpu.concatenate %3, %4, %5, %6, %7, %8, %9, %10, %11 in 2 : vector<16x16x4xf32>, vector<16x16x4xf32>, vector<16x16x4xf32>, vector<16x16x4xf32>, vector<16x16x4xf32>, vector<16x16x4xf32>, vector<16x16x4xf32>, vector<16x16x4xf32>, vector<16x16x4xf32> -> vector<16x16x36xf32>
    %13 = vector.shape_cast %12 : vector<16x16x36xf32> to vector<256x36xf32>
    %14 = arith.truncf %13 : vector<256x36xf32> to vector<256x36xbf16>
    %c0_3 = arith.constant 0 : index
    %c0_4 = arith.constant 0 : index
    %15 = vector.load %arg2[%c0_3, %c0_4] : memref<36x128xbf16, #tpu.memory_space<vmem>>, vector<36x128xbf16>
    %cst = arith.constant dense<0.000000e+00> : vector<256x128xf32>
    %16 = tpu.matmul %14, %15, %cst {dimension_numbers = #tpu.dot_dimension_numbers<[1], [0], [0], [1], [0, 0, 1, 1], [], []>} : vector<256x36xbf16>, vector<36x128xbf16>, vector<256x128xf32> -> vector<256x128xf32>
    %c0_5 = arith.constant 0 : index
    %c0_6 = arith.constant 0 : index
    %17 = vector.load %arg3[%c0_5, %c0_6] : memref<1x128xf32, #tpu.memory_space<vmem>>, vector<1x128xf32>
    %18 = vector.broadcast %17 : vector<1x128xf32> to vector<256x128xf32>
    %19 = arith.mulf %16, %18 : vector<256x128xf32>
    %c0_7 = arith.constant 0 : index
    %c0_8 = arith.constant 0 : index
    %20 = vector.load %arg4[%c0_7, %c0_8] : memref<1x128xf32, #tpu.memory_space<vmem>>, vector<1x128xf32>
    %21 = vector.broadcast %20 : vector<1x128xf32> to vector<256x128xf32>
    %22 = arith.addf %19, %21 : vector<256x128xf32>
    %cst_9 = arith.constant 0.000000e+00 : f32
    %23 = vector.broadcast %cst_9 : f32 to vector<256x128xf32>
    %24 = arith.maximumf %22, %23 : vector<256x128xf32>
    %25 = arith.truncf %24 : vector<256x128xf32> to vector<256x128xbf16>
    %c0_10 = arith.constant 0 : index
    %c0_11 = arith.constant 0 : index
    %c0_12 = arith.constant 0 : index
    %26 = vector.load %arg5[%c0_10, %c0_11, %c0_12] : memref<1x256x128xbf16, #tpu.memory_space<vmem>>, vector<1x256x128xbf16>
    %27 = vector.shape_cast %26 : vector<1x256x128xbf16> to vector<256x128xbf16>
    %28 = vector.shape_cast %25 : vector<256x128xbf16> to vector<1x256x128xbf16>
    tpu.vector_store %arg5[%c0_10, %c0_11, %c0_12], %28 {strides = array<i32>} : memref<1x256x128xbf16, #tpu.memory_space<vmem>>, vector<1x256x128xbf16>,
    return
  }
  func.func @transform_0(%arg0: i32) -> (i32, i32, i32, i32) {
    %c0_i32 = arith.constant 0 : i32
    %c0_i32_0 = arith.constant 0 : i32
    %c0_i32_1 = arith.constant 0 : i32
    %c0_i32_2 = arith.constant 0 : i32
    return %arg0, %c0_i32, %c0_i32_0, %c0_i32_1 : i32, i32, i32, i32
  }
  func.func @transform_1(%arg0: i32) -> (i32, i32) {
    %c0_i32 = arith.constant 0 : i32
    %c0_i32_0 = arith.constant 0 : i32
    %c0_i32_1 = arith.constant 0 : i32
    return %c0_i32, %c0_i32_0 : i32, i32
  }
  func.func @transform_2(%arg0: i32) -> (i32, i32) {
    %c0_i32 = arith.constant 0 : i32
    %c0_i32_0 = arith.constant 0 : i32
    %c0_i32_1 = arith.constant 0 : i32
    return %c0_i32, %c0_i32_0 : i32, i32
  }
  func.func @transform_3(%arg0: i32) -> (i32, i32) {
    %c0_i32 = arith.constant 0 : i32
    %c0_i32_0 = arith.constant 0 : i32
    %c0_i32_1 = arith.constant 0 : i32
    return %c0_i32, %c0_i32_0 : i32, i32
  }
  func.func @transform_4(%arg0: i32) -> (i32, i32, i32) {
    %c0_i32 = arith.constant 0 : i32
    %c0_i32_0 = arith.constant 0 : i32
    %c0_i32_1 = arith.constant 0 : i32
    return %arg0, %c0_i32, %c0_i32_0 : i32, i32, i32
  }
}

module attributes {stable_mosaic.version = 11 : i64} {
  func.func @kernel(%arg0: i32, %arg1: memref<1x18x18x128xbf16, #tpu.memory_space<vmem>>, %arg2: memref<1152x128xbf16, #tpu.memory_space<vmem>>, %arg3: memref<1x128xf32, #tpu.memory_space<vmem>>, %arg4: memref<1x128xf32, #tpu.memory_space<vmem>>, %arg5: memref<1x256x128xbf16, #tpu.memory_space<vmem>>, %arg6: memref<1x1x128xf32, #tpu.memory_space<vmem>>) attributes {dimension_semantics = [#tpu.dimension_semantics<parallel>], iteration_bounds = array<i64: 2>, scalar_prefetch = 0 : i64, scratch_operands = 0 : i64, tpu.core_type = #tpu.core_type<tc>, window_params = [{transform_indices = @transform_0, window_bounds = array<i64: 1, 18, 18, 128>}, {pipeline_mode = #tpu.pipeline_mode<synchronous>, transform_indices = @transform_1, window_bounds = array<i64: 1152, 128>}, {pipeline_mode = #tpu.pipeline_mode<synchronous>, transform_indices = @transform_2, window_bounds = array<i64: 1, 128>}, {pipeline_mode = #tpu.pipeline_mode<synchronous>, transform_indices = @transform_3, window_bounds = array<i64: 1, 128>}, {transform_indices = @transform_4, window_bounds = array<i64: 1, 256, 128>}, {transform_indices = @transform_5, window_bounds = array<i64: 1, 1, 128>}]} {
    %c0 = arith.constant 0 : index
    %c0_0 = arith.constant 0 : index
    %c0_1 = arith.constant 0 : index
    %c0_2 = arith.constant 0 : index
    %0 = vector.load %arg1[%c0, %c0_0, %c0_1, %c0_2] : memref<1x18x18x128xbf16, #tpu.memory_space<vmem>>, vector<1x18x18x128xbf16>
    %1 = vector.shape_cast %0 : vector<1x18x18x128xbf16> to vector<18x18x128xbf16>
    %2 = arith.extf %1 : vector<18x18x128xbf16> to vector<18x18x128xf32>
    %3 = vector.extract_strided_slice %2 {offsets = [0, 0, 0], sizes = [16, 16, 128], strides = [1, 1, 1]} : vector<18x18x128xf32> to vector<16x16x128xf32>
    %4 = vector.extract_strided_slice %2 {offsets = [0, 1, 0], sizes = [16, 16, 128], strides = [1, 1, 1]} : vector<18x18x128xf32> to vector<16x16x128xf32>
    %5 = vector.extract_strided_slice %2 {offsets = [0, 2, 0], sizes = [16, 16, 128], strides = [1, 1, 1]} : vector<18x18x128xf32> to vector<16x16x128xf32>
    %6 = vector.extract_strided_slice %2 {offsets = [1, 0, 0], sizes = [16, 16, 128], strides = [1, 1, 1]} : vector<18x18x128xf32> to vector<16x16x128xf32>
    %7 = vector.extract_strided_slice %2 {offsets = [1, 1, 0], sizes = [16, 16, 128], strides = [1, 1, 1]} : vector<18x18x128xf32> to vector<16x16x128xf32>
    %8 = vector.extract_strided_slice %2 {offsets = [1, 2, 0], sizes = [16, 16, 128], strides = [1, 1, 1]} : vector<18x18x128xf32> to vector<16x16x128xf32>
    %9 = vector.extract_strided_slice %2 {offsets = [2, 0, 0], sizes = [16, 16, 128], strides = [1, 1, 1]} : vector<18x18x128xf32> to vector<16x16x128xf32>
    %10 = vector.extract_strided_slice %2 {offsets = [2, 1, 0], sizes = [16, 16, 128], strides = [1, 1, 1]} : vector<18x18x128xf32> to vector<16x16x128xf32>
    %11 = vector.extract_strided_slice %2 {offsets = [2, 2, 0], sizes = [16, 16, 128], strides = [1, 1, 1]} : vector<18x18x128xf32> to vector<16x16x128xf32>
    %12 = tpu.concatenate %3, %4, %5, %6, %7, %8, %9, %10, %11 in 2 : vector<16x16x128xf32>, vector<16x16x128xf32>, vector<16x16x128xf32>, vector<16x16x128xf32>, vector<16x16x128xf32>, vector<16x16x128xf32>, vector<16x16x128xf32>, vector<16x16x128xf32>, vector<16x16x128xf32> -> vector<16x16x1152xf32>
    %13 = vector.shape_cast %12 : vector<16x16x1152xf32> to vector<256x1152xf32>
    %14 = arith.truncf %13 : vector<256x1152xf32> to vector<256x1152xbf16>
    %c0_3 = arith.constant 0 : index
    %c0_4 = arith.constant 0 : index
    %15 = vector.load %arg2[%c0_3, %c0_4] : memref<1152x128xbf16, #tpu.memory_space<vmem>>, vector<1152x128xbf16>
    %cst = arith.constant dense<0.000000e+00> : vector<256x128xf32>
    %16 = tpu.matmul %14, %15, %cst {dimension_numbers = #tpu.dot_dimension_numbers<[1], [0], [0], [1], [0, 0, 1, 1], [], []>} : vector<256x1152xbf16>, vector<1152x128xbf16>, vector<256x128xf32> -> vector<256x128xf32>
    %c0_5 = arith.constant 0 : index
    %c0_6 = arith.constant 0 : index
    %17 = vector.load %arg3[%c0_5, %c0_6] : memref<1x128xf32, #tpu.memory_space<vmem>>, vector<1x128xf32>
    %18 = vector.broadcast %17 : vector<1x128xf32> to vector<256x128xf32>
    %19 = arith.mulf %16, %18 : vector<256x128xf32>
    %c0_7 = arith.constant 0 : index
    %c0_8 = arith.constant 0 : index
    %20 = vector.load %arg4[%c0_7, %c0_8] : memref<1x128xf32, #tpu.memory_space<vmem>>, vector<1x128xf32>
    %21 = vector.broadcast %20 : vector<1x128xf32> to vector<256x128xf32>
    %22 = arith.addf %19, %21 : vector<256x128xf32>
    %cst_9 = arith.constant 0.000000e+00 : f32
    %23 = vector.broadcast %cst_9 : f32 to vector<256x128xf32>
    %24 = arith.maximumf %22, %23 : vector<256x128xf32>
    %25 = arith.truncf %24 : vector<256x128xf32> to vector<256x128xbf16>
    %c0_10 = arith.constant 0 : index
    %c0_11 = arith.constant 0 : index
    %c0_12 = arith.constant 0 : index
    %26 = vector.load %arg5[%c0_10, %c0_11, %c0_12] : memref<1x256x128xbf16, #tpu.memory_space<vmem>>, vector<1x256x128xbf16>
    %27 = vector.shape_cast %26 : vector<1x256x128xbf16> to vector<256x128xbf16>
    %28 = vector.shape_cast %25 : vector<256x128xbf16> to vector<1x256x128xbf16>
    tpu.vector_store %arg5[%c0_10, %c0_11, %c0_12], %28 {strides = array<i32>} : memref<1x256x128xbf16, #tpu.memory_space<vmem>>, vector<1x256x128xbf16>,
    %cst_13 = arith.constant dense<0.000000e+00> : vector<128xf32>
    %29 = vector.multi_reduction <add>, %24, %cst_13 [0] : vector<256x128xf32> to vector<128xf32>
    %30 = vector.shape_cast %29 : vector<128xf32> to vector<1x128xf32>
    %cst_14 = arith.constant 2.560000e+02 : f32
    %31 = vector.broadcast %cst_14 : f32 to vector<1x128xf32>
    %32 = arith.divf %30, %31 : vector<1x128xf32>
    %c0_15 = arith.constant 0 : index
    %c0_16 = arith.constant 0 : index
    %c0_17 = arith.constant 0 : index
    %33 = vector.load %arg6[%c0_15, %c0_16, %c0_17] : memref<1x1x128xf32, #tpu.memory_space<vmem>>, vector<1x1x128xf32>
    %34 = vector.shape_cast %33 : vector<1x1x128xf32> to vector<1x128xf32>
    %35 = vector.shape_cast %32 : vector<1x128xf32> to vector<1x1x128xf32>
    tpu.vector_store %arg6[%c0_15, %c0_16, %c0_17], %35 {strides = array<i32>} : memref<1x1x128xf32, #tpu.memory_space<vmem>>, vector<1x1x128xf32>,
    return
  }
  func.func @transform_0(%arg0: i32) -> (i32, i32, i32, i32) {
    %c0_i32 = arith.constant 0 : i32
    %c0_i32_0 = arith.constant 0 : i32
    %c0_i32_1 = arith.constant 0 : i32
    %c0_i32_2 = arith.constant 0 : i32
    return %arg0, %c0_i32, %c0_i32_0, %c0_i32_1 : i32, i32, i32, i32
  }
  func.func @transform_1(%arg0: i32) -> (i32, i32) {
    %c0_i32 = arith.constant 0 : i32
    %c0_i32_0 = arith.constant 0 : i32
    %c0_i32_1 = arith.constant 0 : i32
    return %c0_i32, %c0_i32_0 : i32, i32
  }
  func.func @transform_2(%arg0: i32) -> (i32, i32) {
    %c0_i32 = arith.constant 0 : i32
    %c0_i32_0 = arith.constant 0 : i32
    %c0_i32_1 = arith.constant 0 : i32
    return %c0_i32, %c0_i32_0 : i32, i32
  }
  func.func @transform_3(%arg0: i32) -> (i32, i32) {
    %c0_i32 = arith.constant 0 : i32
    %c0_i32_0 = arith.constant 0 : i32
    %c0_i32_1 = arith.constant 0 : i32
    return %c0_i32, %c0_i32_0 : i32, i32
  }
  func.func @transform_4(%arg0: i32) -> (i32, i32, i32) {
    %c0_i32 = arith.constant 0 : i32
    %c0_i32_0 = arith.constant 0 : i32
    %c0_i32_1 = arith.constant 0 : i32
    return %arg0, %c0_i32, %c0_i32_0 : i32, i32, i32
  }
  func.func @transform_5(%arg0: i32) -> (i32, i32, i32) {
    %c0_i32 = arith.constant 0 : i32
    %c0_i32_0 = arith.constant 0 : i32
    %c0_i32_1 = arith.constant 0 : i32
    return %arg0, %c0_i32, %c0_i32_0 : i32, i32, i32
  }
}

module attributes {stable_mosaic.version = 11 : i64} {
  func.func @kernel(%arg0: i32, %arg1: memref<1x16x16x128xbf16, #tpu.memory_space<vmem>>, %arg2: memref<1x1x128xf32, #tpu.memory_space<vmem>>, %arg3: memref<2x49xf32, #tpu.memory_space<smem>>, %arg4: memref<1x16x16x128xf32, #tpu.memory_space<vmem>>, %arg5: memref<22x128xf32, #tpu.memory_space<vmem>>, %arg6: memref<22x128xf32, #tpu.memory_space<vmem>>) attributes {dimension_semantics = [#tpu.dimension_semantics<parallel>], iteration_bounds = array<i64: 2>, scalar_prefetch = 0 : i64, scratch_operands = 2 : i64, tpu.core_type = #tpu.core_type<tc>, window_params = [{transform_indices = @transform_0, window_bounds = array<i64: 1, 16, 16, 128>}, {transform_indices = @transform_1, window_bounds = array<i64: 1, 1, 128>}, {transform_indices = @transform_2, window_bounds = array<i64: 2, 49>}, {transform_indices = @transform_3, window_bounds = array<i64: 1, 16, 16, 128>}]} {
    %c0 = arith.constant 0 : index
    %c0_0 = arith.constant 0 : index
    %c0_1 = arith.constant 0 : index
    %c0_2 = arith.constant 0 : index
    %0 = vector.load %arg1[%c0, %c0_0, %c0_1, %c0_2] : memref<1x16x16x128xbf16, #tpu.memory_space<vmem>>, vector<1x16x16x128xbf16>
    %1 = vector.shape_cast %0 : vector<1x16x16x128xbf16> to vector<16x16x128xbf16>
    %2 = arith.extf %1 : vector<16x16x128xbf16> to vector<16x16x128xf32>
    %c0_3 = arith.constant 0 : index
    %c0_4 = arith.constant 0 : index
    %c0_5 = arith.constant 0 : index
    %3 = vector.load %arg2[%c0_3, %c0_4, %c0_5] : memref<1x1x128xf32, #tpu.memory_space<vmem>>, vector<1x1x128xf32>
    %4 = vector.shape_cast %3 : vector<1x1x128xf32> to vector<1x128xf32>
    %5 = vector.shape_cast %4 : vector<1x128xf32> to vector<1x1x128xf32>
    %6 = vector.broadcast %5 : vector<1x1x128xf32> to vector<16x16x128xf32>
    %7 = arith.mulf %2, %6 : vector<16x16x128xf32>
    %cst = arith.constant dense<0.000000e+00> : vector<16x16xf32>
    %8 = vector.multi_reduction <add>, %7, %cst [2] : vector<16x16x128xf32> to vector<16x16xf32>
    %cst_6 = arith.constant 6.250000e-02 : f32
    %9 = vector.broadcast %cst_6 : f32 to vector<16x16xf32>
    %10 = arith.mulf %8, %9 : vector<16x16xf32>
    %cst_7 = arith.constant dense<0xFF800000> : vector<16x16xf32>
    %11 = vector.multi_reduction <maximumf>, %7, %cst_7 [2] : vector<16x16x128xf32> to vector<16x16xf32>
    %cst_8 = arith.constant 0.000000e+00 : f32
    %12 = vector.broadcast %cst_8 : f32 to vector<22x128xf32>
    %c0_9 = arith.constant 0 : index
    %c0_10 = arith.constant 0 : index
    %13 = vector.load %arg5[%c0_9, %c0_10] : memref<22x128xf32, #tpu.memory_space<vmem>>, vector<22x128xf32>
    tpu.vector_store %arg5[%c0_9, %c0_10], %12 {strides = array<i32>} : memref<22x128xf32, #tpu.memory_space<vmem>>, vector<22x128xf32>,
    %c0_11 = arith.constant 0 : index
    %c0_12 = arith.constant 0 : index
    %14 = vector.load %arg6[%c0_11, %c0_12] : memref<22x128xf32, #tpu.memory_space<vmem>>, vector<22x128xf32>
    tpu.vector_store %arg6[%c0_11, %c0_12], %12 {strides = array<i32>} : memref<22x128xf32, #tpu.memory_space<vmem>>, vector<22x128xf32>,
    %c3 = arith.constant 3 : index
    %c0_13 = arith.constant 0 : index
    %15 = vector.load %arg5[%c3, %c0_13] : memref<22x128xf32, #tpu.memory_space<vmem>>, vector<16x16xf32>
    tpu.vector_store %arg5[%c3, %c0_13], %10 {strides = array<i32>} : memref<22x128xf32, #tpu.memory_space<vmem>>, vector<16x16xf32>,
    %c3_14 = arith.constant 3 : index
    %c0_15 = arith.constant 0 : index
    %16 = vector.load %arg6[%c3_14, %c0_15] : memref<22x128xf32, #tpu.memory_space<vmem>>, vector<16x16xf32>
    tpu.vector_store %arg6[%c3_14, %c0_15], %11 {strides = array<i32>} : memref<22x128xf32, #tpu.memory_space<vmem>>, vector<16x16xf32>,
    %cst_16 = arith.constant 0.000000e+00 : f32
    %17 = vector.broadcast %cst_16 : f32 to vector<16x128xf32>
    %c0_17 = arith.constant 0 : index
    %c0_18 = arith.constant 0 : index
    %18 = vector.load %arg5[%c0_17, %c0_18] : memref<22x128xf32, #tpu.memory_space<vmem>>, vector<16x128xf32>
    %c0_19 = arith.constant 0 : index
    %c0_20 = arith.constant 0 : index
    %19 = vector.load %arg6[%c0_19, %c0_20] : memref<22x128xf32, #tpu.memory_space<vmem>>, vector<16x128xf32>
    %c3_i32 = arith.constant 3 : i32
    %20 = tpu.dynamic_rotate %18 by %c3_i32 dim 1 : vector<16x128xf32>, i32 -> vector<16x128xf32>
    %c0_21 = arith.constant 0 : index
    %c0_22 = arith.constant 0 : index
    %21 = memref.load %arg3[%c0_21, %c0_22] : memref<2x49xf32, #tpu.memory_space<smem>>
    %22 = vector.broadcast %21 : f32 to vector<16x128xf32>
    %23 = arith.mulf %20, %22 : vector<16x128xf32>
    %24 = arith.addf %17, %23 : vector<16x128xf32>
    %c3_i32_23 = arith.constant 3 : i32
    %25 = tpu.dynamic_rotate %19 by %c3_i32_23 dim 1 : vector<16x128xf32>, i32 -> vector<16x128xf32>
    %c1 = arith.constant 1 : index
    %c0_24 = arith.constant 0 : index
    %26 = memref.load %arg3[%c1, %c0_24] : memref<2x49xf32, #tpu.memory_space<smem>>
    %27 = vector.broadcast %26 : f32 to vector<16x128xf32>
    %28 = arith.mulf %25, %27 : vector<16x128xf32>
    %29 = arith.addf %24, %28 : vector<16x128xf32>
    %c2_i32 = arith.constant 2 : i32
    %30 = tpu.dynamic_rotate %18 by %c2_i32 dim 1 : vector<16x128xf32>, i32 -> vector<16x128xf32>
    %c0_25 = arith.constant 0 : index
    %c1_26 = arith.constant 1 : index
    %31 = memref.load %arg3[%c0_25, %c1_26] : memref<2x49xf32, #tpu.memory_space<smem>>
    %32 = vector.broadcast %31 : f32 to vector<16x128xf32>
    %33 = arith.mulf %30, %32 : vector<16x128xf32>
    %34 = arith.addf %29, %33 : vector<16x128xf32>
    %c2_i32_27 = arith.constant 2 : i32
    %35 = tpu.dynamic_rotate %19 by %c2_i32_27 dim 1 : vector<16x128xf32>, i32 -> vector<16x128xf32>
    %c1_28 = arith.constant 1 : index
    %c1_29 = arith.constant 1 : index
    %36 = memref.load %arg3[%c1_28, %c1_29] : memref<2x49xf32, #tpu.memory_space<smem>>
    %37 = vector.broadcast %36 : f32 to vector<16x128xf32>
    %38 = arith.mulf %35, %37 : vector<16x128xf32>
    %39 = arith.addf %34, %38 : vector<16x128xf32>
    %c1_i32 = arith.constant 1 : i32
    %40 = tpu.dynamic_rotate %18 by %c1_i32 dim 1 : vector<16x128xf32>, i32 -> vector<16x128xf32>
    %c0_30 = arith.constant 0 : index
    %c2 = arith.constant 2 : index
    %41 = memref.load %arg3[%c0_30, %c2] : memref<2x49xf32, #tpu.memory_space<smem>>
    %42 = vector.broadcast %41 : f32 to vector<16x128xf32>
    %43 = arith.mulf %40, %42 : vector<16x128xf32>
    %44 = arith.addf %39, %43 : vector<16x128xf32>
    %c1_i32_31 = arith.constant 1 : i32
    %45 = tpu.dynamic_rotate %19 by %c1_i32_31 dim 1 : vector<16x128xf32>, i32 -> vector<16x128xf32>
    %c1_32 = arith.constant 1 : index
    %c2_33 = arith.constant 2 : index
    %46 = memref.load %arg3[%c1_32, %c2_33] : memref<2x49xf32, #tpu.memory_space<smem>>
    %47 = vector.broadcast %46 : f32 to vector<16x128xf32>
    %48 = arith.mulf %45, %47 : vector<16x128xf32>
    %49 = arith.addf %44, %48 : vector<16x128xf32>
    %c0_i32 = arith.constant 0 : i32
    %50 = tpu.dynamic_rotate %18 by %c0_i32 dim 1 : vector<16x128xf32>, i32 -> vector<16x128xf32>
    %c0_34 = arith.constant 0 : index
    %c3_35 = arith.constant 3 : index
    %51 = memref.load %arg3[%c0_34, %c3_35] : memref<2x49xf32, #tpu.memory_space<smem>>
    %52 = vector.broadcast %51 : f32 to vector<16x128xf32>
    %53 = arith.mulf %50, %52 : vector<16x128xf32>
    %54 = arith.addf %49, %53 : vector<16x128xf32>
    %c0_i32_36 = arith.constant 0 : i32
    %55 = tpu.dynamic_rotate %19 by %c0_i32_36 dim 1 : vector<16x128xf32>, i32 -> vector<16x128xf32>
    %c1_37 = arith.constant 1 : index
    %c3_38 = arith.constant 3 : index
    %56 = memref.load %arg3[%c1_37, %c3_38] : memref<2x49xf32, #tpu.memory_space<smem>>
    %57 = vector.broadcast %56 : f32 to vector<16x128xf32>
    %58 = arith.mulf %55, %57 : vector<16x128xf32>
    %59 = arith.addf %54, %58 : vector<16x128xf32>
    %c127_i32 = arith.constant 127 : i32
    %60 = tpu.dynamic_rotate %18 by %c127_i32 dim 1 : vector<16x128xf32>, i32 -> vector<16x128xf32>
    %c0_39 = arith.constant 0 : index
    %c4 = arith.constant 4 : index
    %61 = memref.load %arg3[%c0_39, %c4] : memref<2x49xf32, #tpu.memory_space<smem>>
    %62 = vector.broadcast %61 : f32 to vector<16x128xf32>
    %63 = arith.mulf %60, %62 : vector<16x128xf32>
    %64 = arith.addf %59, %63 : vector<16x128xf32>
    %c127_i32_40 = arith.constant 127 : i32
    %65 = tpu.dynamic_rotate %19 by %c127_i32_40 dim 1 : vector<16x128xf32>, i32 -> vector<16x128xf32>
    %c1_41 = arith.constant 1 : index
    %c4_42 = arith.constant 4 : index
    %66 = memref.load %arg3[%c1_41, %c4_42] : memref<2x49xf32, #tpu.memory_space<smem>>
    %67 = vector.broadcast %66 : f32 to vector<16x128xf32>
    %68 = arith.mulf %65, %67 : vector<16x128xf32>
    %69 = arith.addf %64, %68 : vector<16x128xf32>
    %c126_i32 = arith.constant 126 : i32
    %70 = tpu.dynamic_rotate %18 by %c126_i32 dim 1 : vector<16x128xf32>, i32 -> vector<16x128xf32>
    %c0_43 = arith.constant 0 : index
    %c5 = arith.constant 5 : index
    %71 = memref.load %arg3[%c0_43, %c5] : memref<2x49xf32, #tpu.memory_space<smem>>
    %72 = vector.broadcast %71 : f32 to vector<16x128xf32>
    %73 = arith.mulf %70, %72 : vector<16x128xf32>
    %74 = arith.addf %69, %73 : vector<16x128xf32>
    %c126_i32_44 = arith.constant 126 : i32
    %75 = tpu.dynamic_rotate %19 by %c126_i32_44 dim 1 : vector<16x128xf32>, i32 -> vector<16x128xf32>
    %c1_45 = arith.constant 1 : index
    %c5_46 = arith.constant 5 : index
    %76 = memref.load %arg3[%c1_45, %c5_46] : memref<2x49xf32, #tpu.memory_space<smem>>
    %77 = vector.broadcast %76 : f32 to vector<16x128xf32>
    %78 = arith.mulf %75, %77 : vector<16x128xf32>
    %79 = arith.addf %74, %78 : vector<16x128xf32>
    %c125_i32 = arith.constant 125 : i32
    %80 = tpu.dynamic_rotate %18 by %c125_i32 dim 1 : vector<16x128xf32>, i32 -> vector<16x128xf32>
    %c0_47 = arith.constant 0 : index
    %c6 = arith.constant 6 : index
    %81 = memref.load %arg3[%c0_47, %c6] : memref<2x49xf32, #tpu.memory_space<smem>>
    %82 = vector.broadcast %81 : f32 to vector<16x128xf32>
    %83 = arith.mulf %80, %82 : vector<16x128xf32>
    %84 = arith.addf %79, %83 : vector<16x128xf32>
    %c125_i32_48 = arith.constant 125 : i32
    %85 = tpu.dynamic_rotate %19 by %c125_i32_48 dim 1 : vector<16x128xf32>, i32 -> vector<16x128xf32>
    %c1_49 = arith.constant 1 : index
    %c6_50 = arith.constant 6 : index
    %86 = memref.load %arg3[%c1_49, %c6_50] : memref<2x49xf32, #tpu.memory_space<smem>>
    %87 = vector.broadcast %86 : f32 to vector<16x128xf32>
    %88 = arith.mulf %85, %87 : vector<16x128xf32>
    %89 = arith.addf %84, %88 : vector<16x128xf32>
    %c1_51 = arith.constant 1 : index
    %c0_52 = arith.constant 0 : index
    %90 = vector.load %arg5[%c1_51, %c0_52] : memref<22x128xf32, #tpu.memory_space<vmem>>, vector<16x128xf32>
    %c1_53 = arith.constant 1 : index
    %c0_54 = arith.constant 0 : index
    %91 = vector.load %arg6[%c1_53, %c0_54] : memref<22x128xf32, #tpu.memory_space<vmem>>, vector<16x128xf32>
    %c3_i32_55 = arith.constant 3 : i32
    %92 = tpu.dynamic_rotate %90 by %c3_i32_55 dim 1 : vector<16x128xf32>, i32 -> vector<16x128xf32>
    %c0_56 = arith.constant 0 : index
    %c7 = arith.constant 7 : index
    %93 = memref.load %arg3[%c0_56, %c7] : memref<2x49xf32, #tpu.memory_space<smem>>
    %94 = vector.broadcast %93 : f32 to vector<16x128xf32>
    %95 = arith.mulf %92, %94 : vector<16x128xf32>
    %96 = arith.addf %89, %95 : vector<16x128xf32>
    %c3_i32_57 = arith.constant 3 : i32
    %97 = tpu.dynamic_rotate %91 by %c3_i32_57 dim 1 : vector<16x128xf32>, i32 -> vector<16x128xf32>
    %c1_58 = arith.constant 1 : index
    %c7_59 = arith.constant 7 : index
    %98 = memref.load %arg3[%c1_58, %c7_59] : memref<2x49xf32, #tpu.memory_space<smem>>
    %99 = vector.broadcast %98 : f32 to vector<16x128xf32>
    %100 = arith.mulf %97, %99 : vector<16x128xf32>
    %101 = arith.addf %96, %100 : vector<16x128xf32>
    %c2_i32_60 = arith.constant 2 : i32
    %102 = tpu.dynamic_rotate %90 by %c2_i32_60 dim 1 : vector<16x128xf32>, i32 -> vector<16x128xf32>
    %c0_61 = arith.constant 0 : index
    %c8 = arith.constant 8 : index
    %103 = memref.load %arg3[%c0_61, %c8] : memref<2x49xf32, #tpu.memory_space<smem>>
    %104 = vector.broadcast %103 : f32 to vector<16x128xf32>
    %105 = arith.mulf %102, %104 : vector<16x128xf32>
    %106 = arith.addf %101, %105 : vector<16x128xf32>
    %c2_i32_62 = arith.constant 2 : i32
    %107 = tpu.dynamic_rotate %91 by %c2_i32_62 dim 1 : vector<16x128xf32>, i32 -> vector<16x128xf32>
    %c1_63 = arith.constant 1 : index
    %c8_64 = arith.constant 8 : index
    %108 = memref.load %arg3[%c1_63, %c8_64] : memref<2x49xf32, #tpu.memory_space<smem>>
    %109 = vector.broadcast %108 : f32 to vector<16x128xf32>
    %110 = arith.mulf %107, %109 : vector<16x128xf32>
    %111 = arith.addf %106, %110 : vector<16x128xf32>
    %c1_i32_65 = arith.constant 1 : i32
    %112 = tpu.dynamic_rotate %90 by %c1_i32_65 dim 1 : vector<16x128xf32>, i32 -> vector<16x128xf32>
    %c0_66 = arith.constant 0 : index
    %c9 = arith.constant 9 : index
    %113 = memref.load %arg3[%c0_66, %c9] : memref<2x49xf32, #tpu.memory_space<smem>>
    %114 = vector.broadcast %113 : f32 to vector<16x128xf32>
    %115 = arith.mulf %112, %114 : vector<16x128xf32>
    %116 = arith.addf %111, %115 : vector<16x128xf32>
    %c1_i32_67 = arith.constant 1 : i32
    %117 = tpu.dynamic_rotate %91 by %c1_i32_67 dim 1 : vector<16x128xf32>, i32 -> vector<16x128xf32>
    %c1_68 = arith.constant 1 : index
    %c9_69 = arith.constant 9 : index
    %118 = memref.load %arg3[%c1_68, %c9_69] : memref<2x49xf32, #tpu.memory_space<smem>>
    %119 = vector.broadcast %118 : f32 to vector<16x128xf32>
    %120 = arith.mulf %117, %119 : vector<16x128xf32>
    %121 = arith.addf %116, %120 : vector<16x128xf32>
    %c0_i32_70 = arith.constant 0 : i32
    %122 = tpu.dynamic_rotate %90 by %c0_i32_70 dim 1 : vector<16x128xf32>, i32 -> vector<16x128xf32>
    %c0_71 = arith.constant 0 : index
    %c10 = arith.constant 10 : index
    %123 = memref.load %arg3[%c0_71, %c10] : memref<2x49xf32, #tpu.memory_space<smem>>
    %124 = vector.broadcast %123 : f32 to vector<16x128xf32>
    %125 = arith.mulf %122, %124 : vector<16x128xf32>
    %126 = arith.addf %121, %125 : vector<16x128xf32>
    %c0_i32_72 = arith.constant 0 : i32
    %127 = tpu.dynamic_rotate %91 by %c0_i32_72 dim 1 : vector<16x128xf32>, i32 -> vector<16x128xf32>
    %c1_73 = arith.constant 1 : index
    %c10_74 = arith.constant 10 : index
    %128 = memref.load %arg3[%c1_73, %c10_74] : memref<2x49xf32, #tpu.memory_space<smem>>
    %129 = vector.broadcast %128 : f32 to vector<16x128xf32>
    %130 = arith.mulf %127, %129 : vector<16x128xf32>
    %131 = arith.addf %126, %130 : vector<16x128xf32>
    %c127_i32_75 = arith.constant 127 : i32
    %132 = tpu.dynamic_rotate %90 by %c127_i32_75 dim 1 : vector<16x128xf32>, i32 -> vector<16x128xf32>
    %c0_76 = arith.constant 0 : index
    %c11 = arith.constant 11 : index
    %133 = memref.load %arg3[%c0_76, %c11] : memref<2x49xf32, #tpu.memory_space<smem>>
    %134 = vector.broadcast %133 : f32 to vector<16x128xf32>
    %135 = arith.mulf %132, %134 : vector<16x128xf32>
    %136 = arith.addf %131, %135 : vector<16x128xf32>
    %c127_i32_77 = arith.constant 127 : i32
    %137 = tpu.dynamic_rotate %91 by %c127_i32_77 dim 1 : vector<16x128xf32>, i32 -> vector<16x128xf32>
    %c1_78 = arith.constant 1 : index
    %c11_79 = arith.constant 11 : index
    %138 = memref.load %arg3[%c1_78, %c11_79] : memref<2x49xf32, #tpu.memory_space<smem>>
    %139 = vector.broadcast %138 : f32 to vector<16x128xf32>
    %140 = arith.mulf %137, %139 : vector<16x128xf32>
    %141 = arith.addf %136, %140 : vector<16x128xf32>
    %c126_i32_80 = arith.constant 126 : i32
    %142 = tpu.dynamic_rotate %90 by %c126_i32_80 dim 1 : vector<16x128xf32>, i32 -> vector<16x128xf32>
    %c0_81 = arith.constant 0 : index
    %c12 = arith.constant 12 : index
    %143 = memref.load %arg3[%c0_81, %c12] : memref<2x49xf32, #tpu.memory_space<smem>>
    %144 = vector.broadcast %143 : f32 to vector<16x128xf32>
    %145 = arith.mulf %142, %144 : vector<16x128xf32>
    %146 = arith.addf %141, %145 : vector<16x128xf32>
    %c126_i32_82 = arith.constant 126 : i32
    %147 = tpu.dynamic_rotate %91 by %c126_i32_82 dim 1 : vector<16x128xf32>, i32 -> vector<16x128xf32>
    %c1_83 = arith.constant 1 : index
    %c12_84 = arith.constant 12 : index
    %148 = memref.load %arg3[%c1_83, %c12_84] : memref<2x49xf32, #tpu.memory_space<smem>>
    %149 = vector.broadcast %148 : f32 to vector<16x128xf32>
    %150 = arith.mulf %147, %149 : vector<16x128xf32>
    %151 = arith.addf %146, %150 : vector<16x128xf32>
    %c125_i32_85 = arith.constant 125 : i32
    %152 = tpu.dynamic_rotate %90 by %c125_i32_85 dim 1 : vector<16x128xf32>, i32 -> vector<16x128xf32>
    %c0_86 = arith.constant 0 : index
    %c13 = arith.constant 13 : index
    %153 = memref.load %arg3[%c0_86, %c13] : memref<2x49xf32, #tpu.memory_space<smem>>
    %154 = vector.broadcast %153 : f32 to vector<16x128xf32>
    %155 = arith.mulf %152, %154 : vector<16x128xf32>
    %156 = arith.addf %151, %155 : vector<16x128xf32>
    %c125_i32_87 = arith.constant 125 : i32
    %157 = tpu.dynamic_rotate %91 by %c125_i32_87 dim 1 : vector<16x128xf32>, i32 -> vector<16x128xf32>
    %c1_88 = arith.constant 1 : index
    %c13_89 = arith.constant 13 : index
    %158 = memref.load %arg3[%c1_88, %c13_89] : memref<2x49xf32, #tpu.memory_space<smem>>
    %159 = vector.broadcast %158 : f32 to vector<16x128xf32>
    %160 = arith.mulf %157, %159 : vector<16x128xf32>
    %161 = arith.addf %156, %160 : vector<16x128xf32>
    %c2_90 = arith.constant 2 : index
    %c0_91 = arith.constant 0 : index
    %162 = vector.load %arg5[%c2_90, %c0_91] : memref<22x128xf32, #tpu.memory_space<vmem>>, vector<16x128xf32>
    %c2_92 = arith.constant 2 : index
    %c0_93 = arith.constant 0 : index
    %163 = vector.load %arg6[%c2_92, %c0_93] : memref<22x128xf32, #tpu.memory_space<vmem>>, vector<16x128xf32>
    %c3_i32_94 = arith.constant 3 : i32
    %164 = tpu.dynamic_rotate %162 by %c3_i32_94 dim 1 : vector<16x128xf32>, i32 -> vector<16x128xf32>
    %c0_95 = arith.constant 0 : index
    %c14 = arith.constant 14 : index
    %165 = memref.load %arg3[%c0_95, %c14] : memref<2x49xf32, #tpu.memory_space<smem>>
    %166 = vector.broadcast %165 : f32 to vector<16x128xf32>
    %167 = arith.mulf %164, %166 : vector<16x128xf32>
    %168 = arith.addf %161, %167 : vector<16x128xf32>
    %c3_i32_96 = arith.constant 3 : i32
    %169 = tpu.dynamic_rotate %163 by %c3_i32_96 dim 1 : vector<16x128xf32>, i32 -> vector<16x128xf32>
    %c1_97 = arith.constant 1 : index
    %c14_98 = arith.constant 14 : index
    %170 = memref.load %arg3[%c1_97, %c14_98] : memref<2x49xf32, #tpu.memory_space<smem>>
    %171 = vector.broadcast %170 : f32 to vector<16x128xf32>
    %172 = arith.mulf %169, %171 : vector<16x128xf32>
    %173 = arith.addf %168, %172 : vector<16x128xf32>
    %c2_i32_99 = arith.constant 2 : i32
    %174 = tpu.dynamic_rotate %162 by %c2_i32_99 dim 1 : vector<16x128xf32>, i32 -> vector<16x128xf32>
    %c0_100 = arith.constant 0 : index
    %c15 = arith.constant 15 : index
    %175 = memref.load %arg3[%c0_100, %c15] : memref<2x49xf32, #tpu.memory_space<smem>>
    %176 = vector.broadcast %175 : f32 to vector<16x128xf32>
    %177 = arith.mulf %174, %176 : vector<16x128xf32>
    %178 = arith.addf %173, %177 : vector<16x128xf32>
    %c2_i32_101 = arith.constant 2 : i32
    %179 = tpu.dynamic_rotate %163 by %c2_i32_101 dim 1 : vector<16x128xf32>, i32 -> vector<16x128xf32>
    %c1_102 = arith.constant 1 : index
    %c15_103 = arith.constant 15 : index
    %180 = memref.load %arg3[%c1_102, %c15_103] : memref<2x49xf32, #tpu.memory_space<smem>>
    %181 = vector.broadcast %180 : f32 to vector<16x128xf32>
    %182 = arith.mulf %179, %181 : vector<16x128xf32>
    %183 = arith.addf %178, %182 : vector<16x128xf32>
    %c1_i32_104 = arith.constant 1 : i32
    %184 = tpu.dynamic_rotate %162 by %c1_i32_104 dim 1 : vector<16x128xf32>, i32 -> vector<16x128xf32>
    %c0_105 = arith.constant 0 : index
    %c16 = arith.constant 16 : index
    %185 = memref.load %arg3[%c0_105, %c16] : memref<2x49xf32, #tpu.memory_space<smem>>
    %186 = vector.broadcast %185 : f32 to vector<16x128xf32>
    %187 = arith.mulf %184, %186 : vector<16x128xf32>
    %188 = arith.addf %183, %187 : vector<16x128xf32>
    %c1_i32_106 = arith.constant 1 : i32
    %189 = tpu.dynamic_rotate %163 by %c1_i32_106 dim 1 : vector<16x128xf32>, i32 -> vector<16x128xf32>
    %c1_107 = arith.constant 1 : index
    %c16_108 = arith.constant 16 : index
    %190 = memref.load %arg3[%c1_107, %c16_108] : memref<2x49xf32, #tpu.memory_space<smem>>
    %191 = vector.broadcast %190 : f32 to vector<16x128xf32>
    %192 = arith.mulf %189, %191 : vector<16x128xf32>
    %193 = arith.addf %188, %192 : vector<16x128xf32>
    %c0_i32_109 = arith.constant 0 : i32
    %194 = tpu.dynamic_rotate %162 by %c0_i32_109 dim 1 : vector<16x128xf32>, i32 -> vector<16x128xf32>
    %c0_110 = arith.constant 0 : index
    %c17 = arith.constant 17 : index
    %195 = memref.load %arg3[%c0_110, %c17] : memref<2x49xf32, #tpu.memory_space<smem>>
    %196 = vector.broadcast %195 : f32 to vector<16x128xf32>
    %197 = arith.mulf %194, %196 : vector<16x128xf32>
    %198 = arith.addf %193, %197 : vector<16x128xf32>
    %c0_i32_111 = arith.constant 0 : i32
    %199 = tpu.dynamic_rotate %163 by %c0_i32_111 dim 1 : vector<16x128xf32>, i32 -> vector<16x128xf32>
    %c1_112 = arith.constant 1 : index
    %c17_113 = arith.constant 17 : index
    %200 = memref.load %arg3[%c1_112, %c17_113] : memref<2x49xf32, #tpu.memory_space<smem>>
    %201 = vector.broadcast %200 : f32 to vector<16x128xf32>
    %202 = arith.mulf %199, %201 : vector<16x128xf32>
    %203 = arith.addf %198, %202 : vector<16x128xf32>
    %c127_i32_114 = arith.constant 127 : i32
    %204 = tpu.dynamic_rotate %162 by %c127_i32_114 dim 1 : vector<16x128xf32>, i32 -> vector<16x128xf32>
    %c0_115 = arith.constant 0 : index
    %c18 = arith.constant 18 : index
    %205 = memref.load %arg3[%c0_115, %c18] : memref<2x49xf32, #tpu.memory_space<smem>>
    %206 = vector.broadcast %205 : f32 to vector<16x128xf32>
    %207 = arith.mulf %204, %206 : vector<16x128xf32>
    %208 = arith.addf %203, %207 : vector<16x128xf32>
    %c127_i32_116 = arith.constant 127 : i32
    %209 = tpu.dynamic_rotate %163 by %c127_i32_116 dim 1 : vector<16x128xf32>, i32 -> vector<16x128xf32>
    %c1_117 = arith.constant 1 : index
    %c18_118 = arith.constant 18 : index
    %210 = memref.load %arg3[%c1_117, %c18_118] : memref<2x49xf32, #tpu.memory_space<smem>>
    %211 = vector.broadcast %210 : f32 to vector<16x128xf32>
    %212 = arith.mulf %209, %211 : vector<16x128xf32>
    %213 = arith.addf %208, %212 : vector<16x128xf32>
    %c126_i32_119 = arith.constant 126 : i32
    %214 = tpu.dynamic_rotate %162 by %c126_i32_119 dim 1 : vector<16x128xf32>, i32 -> vector<16x128xf32>
    %c0_120 = arith.constant 0 : index
    %c19 = arith.constant 19 : index
    %215 = memref.load %arg3[%c0_120, %c19] : memref<2x49xf32, #tpu.memory_space<smem>>
    %216 = vector.broadcast %215 : f32 to vector<16x128xf32>
    %217 = arith.mulf %214, %216 : vector<16x128xf32>
    %218 = arith.addf %213, %217 : vector<16x128xf32>
    %c126_i32_121 = arith.constant 126 : i32
    %219 = tpu.dynamic_rotate %163 by %c126_i32_121 dim 1 : vector<16x128xf32>, i32 -> vector<16x128xf32>
    %c1_122 = arith.constant 1 : index
    %c19_123 = arith.constant 19 : index
    %220 = memref.load %arg3[%c1_122, %c19_123] : memref<2x49xf32, #tpu.memory_space<smem>>
    %221 = vector.broadcast %220 : f32 to vector<16x128xf32>
    %222 = arith.mulf %219, %221 : vector<16x128xf32>
    %223 = arith.addf %218, %222 : vector<16x128xf32>
    %c125_i32_124 = arith.constant 125 : i32
    %224 = tpu.dynamic_rotate %162 by %c125_i32_124 dim 1 : vector<16x128xf32>, i32 -> vector<16x128xf32>
    %c0_125 = arith.constant 0 : index
    %c20 = arith.constant 20 : index
    %225 = memref.load %arg3[%c0_125, %c20] : memref<2x49xf32, #tpu.memory_space<smem>>
    %226 = vector.broadcast %225 : f32 to vector<16x128xf32>
    %227 = arith.mulf %224, %226 : vector<16x128xf32>
    %228 = arith.addf %223, %227 : vector<16x128xf32>
    %c125_i32_126 = arith.constant 125 : i32
    %229 = tpu.dynamic_rotate %163 by %c125_i32_126 dim 1 : vector<16x128xf32>, i32 -> vector<16x128xf32>
    %c1_127 = arith.constant 1 : index
    %c20_128 = arith.constant 20 : index
    %230 = memref.load %arg3[%c1_127, %c20_128] : memref<2x49xf32, #tpu.memory_space<smem>>
    %231 = vector.broadcast %230 : f32 to vector<16x128xf32>
    %232 = arith.mulf %229, %231 : vector<16x128xf32>
    %233 = arith.addf %228, %232 : vector<16x128xf32>
    %c3_129 = arith.constant 3 : index
    %c0_130 = arith.constant 0 : index
    %234 = vector.load %arg5[%c3_129, %c0_130] : memref<22x128xf32, #tpu.memory_space<vmem>>, vector<16x128xf32>
    %c3_131 = arith.constant 3 : index
    %c0_132 = arith.constant 0 : index
    %235 = vector.load %arg6[%c3_131, %c0_132] : memref<22x128xf32, #tpu.memory_space<vmem>>, vector<16x128xf32>
    %c3_i32_133 = arith.constant 3 : i32
    %236 = tpu.dynamic_rotate %234 by %c3_i32_133 dim 1 : vector<16x128xf32>, i32 -> vector<16x128xf32>
    %c0_134 = arith.constant 0 : index
    %c21 = arith.constant 21 : index
    %237 = memref.load %arg3[%c0_134, %c21] : memref<2x49xf32, #tpu.memory_space<smem>>
    %238 = vector.broadcast %237 : f32 to vector<16x128xf32>
    %239 = arith.mulf %236, %238 : vector<16x128xf32>
    %240 = arith.addf %233, %239 : vector<16x128xf32>
    %c3_i32_135 = arith.constant 3 : i32
    %241 = tpu.dynamic_rotate %235 by %c3_i32_135 dim 1 : vector<16x128xf32>, i32 -> vector<16x128xf32>
    %c1_136 = arith.constant 1 : index
    %c21_137 = arith.constant 21 : index
    %242 = memref.load %arg3[%c1_136, %c21_137] : memref<2x49xf32, #tpu.memory_space<smem>>
    %243 = vector.broadcast %242 : f32 to vector<16x128xf32>
    %244 = arith.mulf %241, %243 : vector<16x128xf32>
    %245 = arith.addf %240, %244 : vector<16x128xf32>
    %c2_i32_138 = arith.constant 2 : i32
    %246 = tpu.dynamic_rotate %234 by %c2_i32_138 dim 1 : vector<16x128xf32>, i32 -> vector<16x128xf32>
    %c0_139 = arith.constant 0 : index
    %c22 = arith.constant 22 : index
    %247 = memref.load %arg3[%c0_139, %c22] : memref<2x49xf32, #tpu.memory_space<smem>>
    %248 = vector.broadcast %247 : f32 to vector<16x128xf32>
    %249 = arith.mulf %246, %248 : vector<16x128xf32>
    %250 = arith.addf %245, %249 : vector<16x128xf32>
    %c2_i32_140 = arith.constant 2 : i32
    %251 = tpu.dynamic_rotate %235 by %c2_i32_140 dim 1 : vector<16x128xf32>, i32 -> vector<16x128xf32>
    %c1_141 = arith.constant 1 : index
    %c22_142 = arith.constant 22 : index
    %252 = memref.load %arg3[%c1_141, %c22_142] : memref<2x49xf32, #tpu.memory_space<smem>>
    %253 = vector.broadcast %252 : f32 to vector<16x128xf32>
    %254 = arith.mulf %251, %253 : vector<16x128xf32>
    %255 = arith.addf %250, %254 : vector<16x128xf32>
    %c1_i32_143 = arith.constant 1 : i32
    %256 = tpu.dynamic_rotate %234 by %c1_i32_143 dim 1 : vector<16x128xf32>, i32 -> vector<16x128xf32>
    %c0_144 = arith.constant 0 : index
    %c23 = arith.constant 23 : index
    %257 = memref.load %arg3[%c0_144, %c23] : memref<2x49xf32, #tpu.memory_space<smem>>
    %258 = vector.broadcast %257 : f32 to vector<16x128xf32>
    %259 = arith.mulf %256, %258 : vector<16x128xf32>
    %260 = arith.addf %255, %259 : vector<16x128xf32>
    %c1_i32_145 = arith.constant 1 : i32
    %261 = tpu.dynamic_rotate %235 by %c1_i32_145 dim 1 : vector<16x128xf32>, i32 -> vector<16x128xf32>
    %c1_146 = arith.constant 1 : index
    %c23_147 = arith.constant 23 : index
    %262 = memref.load %arg3[%c1_146, %c23_147] : memref<2x49xf32, #tpu.memory_space<smem>>
    %263 = vector.broadcast %262 : f32 to vector<16x128xf32>
    %264 = arith.mulf %261, %263 : vector<16x128xf32>
    %265 = arith.addf %260, %264 : vector<16x128xf32>
    %c0_i32_148 = arith.constant 0 : i32
    %266 = tpu.dynamic_rotate %234 by %c0_i32_148 dim 1 : vector<16x128xf32>, i32 -> vector<16x128xf32>
    %c0_149 = arith.constant 0 : index
    %c24 = arith.constant 24 : index
    %267 = memref.load %arg3[%c0_149, %c24] : memref<2x49xf32, #tpu.memory_space<smem>>
    %268 = vector.broadcast %267 : f32 to vector<16x128xf32>
    %269 = arith.mulf %266, %268 : vector<16x128xf32>
    %270 = arith.addf %265, %269 : vector<16x128xf32>
    %c0_i32_150 = arith.constant 0 : i32
    %271 = tpu.dynamic_rotate %235 by %c0_i32_150 dim 1 : vector<16x128xf32>, i32 -> vector<16x128xf32>
    %c1_151 = arith.constant 1 : index
    %c24_152 = arith.constant 24 : index
    %272 = memref.load %arg3[%c1_151, %c24_152] : memref<2x49xf32, #tpu.memory_space<smem>>
    %273 = vector.broadcast %272 : f32 to vector<16x128xf32>
    %274 = arith.mulf %271, %273 : vector<16x128xf32>
    %275 = arith.addf %270, %274 : vector<16x128xf32>
    %c127_i32_153 = arith.constant 127 : i32
    %276 = tpu.dynamic_rotate %234 by %c127_i32_153 dim 1 : vector<16x128xf32>, i32 -> vector<16x128xf32>
    %c0_154 = arith.constant 0 : index
    %c25 = arith.constant 25 : index
    %277 = memref.load %arg3[%c0_154, %c25] : memref<2x49xf32, #tpu.memory_space<smem>>
    %278 = vector.broadcast %277 : f32 to vector<16x128xf32>
    %279 = arith.mulf %276, %278 : vector<16x128xf32>
    %280 = arith.addf %275, %279 : vector<16x128xf32>
    %c127_i32_155 = arith.constant 127 : i32
    %281 = tpu.dynamic_rotate %235 by %c127_i32_155 dim 1 : vector<16x128xf32>, i32 -> vector<16x128xf32>
    %c1_156 = arith.constant 1 : index
    %c25_157 = arith.constant 25 : index
    %282 = memref.load %arg3[%c1_156, %c25_157] : memref<2x49xf32, #tpu.memory_space<smem>>
    %283 = vector.broadcast %282 : f32 to vector<16x128xf32>
    %284 = arith.mulf %281, %283 : vector<16x128xf32>
    %285 = arith.addf %280, %284 : vector<16x128xf32>
    %c126_i32_158 = arith.constant 126 : i32
    %286 = tpu.dynamic_rotate %234 by %c126_i32_158 dim 1 : vector<16x128xf32>, i32 -> vector<16x128xf32>
    %c0_159 = arith.constant 0 : index
    %c26 = arith.constant 26 : index
    %287 = memref.load %arg3[%c0_159, %c26] : memref<2x49xf32, #tpu.memory_space<smem>>
    %288 = vector.broadcast %287 : f32 to vector<16x128xf32>
    %289 = arith.mulf %286, %288 : vector<16x128xf32>
    %290 = arith.addf %285, %289 : vector<16x128xf32>
    %c126_i32_160 = arith.constant 126 : i32
    %291 = tpu.dynamic_rotate %235 by %c126_i32_160 dim 1 : vector<16x128xf32>, i32 -> vector<16x128xf32>
    %c1_161 = arith.constant 1 : index
    %c26_162 = arith.constant 26 : index
    %292 = memref.load %arg3[%c1_161, %c26_162] : memref<2x49xf32, #tpu.memory_space<smem>>
    %293 = vector.broadcast %292 : f32 to vector<16x128xf32>
    %294 = arith.mulf %291, %293 : vector<16x128xf32>
    %295 = arith.addf %290, %294 : vector<16x128xf32>
    %c125_i32_163 = arith.constant 125 : i32
    %296 = tpu.dynamic_rotate %234 by %c125_i32_163 dim 1 : vector<16x128xf32>, i32 -> vector<16x128xf32>
    %c0_164 = arith.constant 0 : index
    %c27 = arith.constant 27 : index
    %297 = memref.load %arg3[%c0_164, %c27] : memref<2x49xf32, #tpu.memory_space<smem>>
    %298 = vector.broadcast %297 : f32 to vector<16x128xf32>
    %299 = arith.mulf %296, %298 : vector<16x128xf32>
    %300 = arith.addf %295, %299 : vector<16x128xf32>
    %c125_i32_165 = arith.constant 125 : i32
    %301 = tpu.dynamic_rotate %235 by %c125_i32_165 dim 1 : vector<16x128xf32>, i32 -> vector<16x128xf32>
    %c1_166 = arith.constant 1 : index
    %c27_167 = arith.constant 27 : index
    %302 = memref.load %arg3[%c1_166, %c27_167] : memref<2x49xf32, #tpu.memory_space<smem>>
    %303 = vector.broadcast %302 : f32 to vector<16x128xf32>
    %304 = arith.mulf %301, %303 : vector<16x128xf32>
    %305 = arith.addf %300, %304 : vector<16x128xf32>
    %c4_168 = arith.constant 4 : index
    %c0_169 = arith.constant 0 : index
    %306 = vector.load %arg5[%c4_168, %c0_169] : memref<22x128xf32, #tpu.memory_space<vmem>>, vector<16x128xf32>
    %c4_170 = arith.constant 4 : index
    %c0_171 = arith.constant 0 : index
    %307 = vector.load %arg6[%c4_170, %c0_171] : memref<22x128xf32, #tpu.memory_space<vmem>>, vector<16x128xf32>
    %c3_i32_172 = arith.constant 3 : i32
    %308 = tpu.dynamic_rotate %306 by %c3_i32_172 dim 1 : vector<16x128xf32>, i32 -> vector<16x128xf32>
    %c0_173 = arith.constant 0 : index
    %c28 = arith.constant 28 : index
    %309 = memref.load %arg3[%c0_173, %c28] : memref<2x49xf32, #tpu.memory_space<smem>>
    %310 = vector.broadcast %309 : f32 to vector<16x128xf32>
    %311 = arith.mulf %308, %310 : vector<16x128xf32>
    %312 = arith.addf %305, %311 : vector<16x128xf32>
    %c3_i32_174 = arith.constant 3 : i32
    %313 = tpu.dynamic_rotate %307 by %c3_i32_174 dim 1 : vector<16x128xf32>, i32 -> vector<16x128xf32>
    %c1_175 = arith.constant 1 : index
    %c28_176 = arith.constant 28 : index
    %314 = memref.load %arg3[%c1_175, %c28_176] : memref<2x49xf32, #tpu.memory_space<smem>>
    %315 = vector.broadcast %314 : f32 to vector<16x128xf32>
    %316 = arith.mulf %313, %315 : vector<16x128xf32>
    %317 = arith.addf %312, %316 : vector<16x128xf32>
    %c2_i32_177 = arith.constant 2 : i32
    %318 = tpu.dynamic_rotate %306 by %c2_i32_177 dim 1 : vector<16x128xf32>, i32 -> vector<16x128xf32>
    %c0_178 = arith.constant 0 : index
    %c29 = arith.constant 29 : index
    %319 = memref.load %arg3[%c0_178, %c29] : memref<2x49xf32, #tpu.memory_space<smem>>
    %320 = vector.broadcast %319 : f32 to vector<16x128xf32>
    %321 = arith.mulf %318, %320 : vector<16x128xf32>
    %322 = arith.addf %317, %321 : vector<16x128xf32>
    %c2_i32_179 = arith.constant 2 : i32
    %323 = tpu.dynamic_rotate %307 by %c2_i32_179 dim 1 : vector<16x128xf32>, i32 -> vector<16x128xf32>
    %c1_180 = arith.constant 1 : index
    %c29_181 = arith.constant 29 : index
    %324 = memref.load %arg3[%c1_180, %c29_181] : memref<2x49xf32, #tpu.memory_space<smem>>
    %325 = vector.broadcast %324 : f32 to vector<16x128xf32>
    %326 = arith.mulf %323, %325 : vector<16x128xf32>
    %327 = arith.addf %322, %326 : vector<16x128xf32>
    %c1_i32_182 = arith.constant 1 : i32
    %328 = tpu.dynamic_rotate %306 by %c1_i32_182 dim 1 : vector<16x128xf32>, i32 -> vector<16x128xf32>
    %c0_183 = arith.constant 0 : index
    %c30 = arith.constant 30 : index
    %329 = memref.load %arg3[%c0_183, %c30] : memref<2x49xf32, #tpu.memory_space<smem>>
    %330 = vector.broadcast %329 : f32 to vector<16x128xf32>
    %331 = arith.mulf %328, %330 : vector<16x128xf32>
    %332 = arith.addf %327, %331 : vector<16x128xf32>
    %c1_i32_184 = arith.constant 1 : i32
    %333 = tpu.dynamic_rotate %307 by %c1_i32_184 dim 1 : vector<16x128xf32>, i32 -> vector<16x128xf32>
    %c1_185 = arith.constant 1 : index
    %c30_186 = arith.constant 30 : index
    %334 = memref.load %arg3[%c1_185, %c30_186] : memref<2x49xf32, #tpu.memory_space<smem>>
    %335 = vector.broadcast %334 : f32 to vector<16x128xf32>
    %336 = arith.mulf %333, %335 : vector<16x128xf32>
    %337 = arith.addf %332, %336 : vector<16x128xf32>
    %c0_i32_187 = arith.constant 0 : i32
    %338 = tpu.dynamic_rotate %306 by %c0_i32_187 dim 1 : vector<16x128xf32>, i32 -> vector<16x128xf32>
    %c0_188 = arith.constant 0 : index
    %c31 = arith.constant 31 : index
    %339 = memref.load %arg3[%c0_188, %c31] : memref<2x49xf32, #tpu.memory_space<smem>>
    %340 = vector.broadcast %339 : f32 to vector<16x128xf32>
    %341 = arith.mulf %338, %340 : vector<16x128xf32>
    %342 = arith.addf %337, %341 : vector<16x128xf32>
    %c0_i32_189 = arith.constant 0 : i32
    %343 = tpu.dynamic_rotate %307 by %c0_i32_189 dim 1 : vector<16x128xf32>, i32 -> vector<16x128xf32>
    %c1_190 = arith.constant 1 : index
    %c31_191 = arith.constant 31 : index
    %344 = memref.load %arg3[%c1_190, %c31_191] : memref<2x49xf32, #tpu.memory_space<smem>>
    %345 = vector.broadcast %344 : f32 to vector<16x128xf32>
    %346 = arith.mulf %343, %345 : vector<16x128xf32>
    %347 = arith.addf %342, %346 : vector<16x128xf32>
    %c127_i32_192 = arith.constant 127 : i32
    %348 = tpu.dynamic_rotate %306 by %c127_i32_192 dim 1 : vector<16x128xf32>, i32 -> vector<16x128xf32>
    %c0_193 = arith.constant 0 : index
    %c32 = arith.constant 32 : index
    %349 = memref.load %arg3[%c0_193, %c32] : memref<2x49xf32, #tpu.memory_space<smem>>
    %350 = vector.broadcast %349 : f32 to vector<16x128xf32>
    %351 = arith.mulf %348, %350 : vector<16x128xf32>
    %352 = arith.addf %347, %351 : vector<16x128xf32>
    %c127_i32_194 = arith.constant 127 : i32
    %353 = tpu.dynamic_rotate %307 by %c127_i32_194 dim 1 : vector<16x128xf32>, i32 -> vector<16x128xf32>
    %c1_195 = arith.constant 1 : index
    %c32_196 = arith.constant 32 : index
    %354 = memref.load %arg3[%c1_195, %c32_196] : memref<2x49xf32, #tpu.memory_space<smem>>
    %355 = vector.broadcast %354 : f32 to vector<16x128xf32>
    %356 = arith.mulf %353, %355 : vector<16x128xf32>
    %357 = arith.addf %352, %356 : vector<16x128xf32>
    %c126_i32_197 = arith.constant 126 : i32
    %358 = tpu.dynamic_rotate %306 by %c126_i32_197 dim 1 : vector<16x128xf32>, i32 -> vector<16x128xf32>
    %c0_198 = arith.constant 0 : index
    %c33 = arith.constant 33 : index
    %359 = memref.load %arg3[%c0_198, %c33] : memref<2x49xf32, #tpu.memory_space<smem>>
    %360 = vector.broadcast %359 : f32 to vector<16x128xf32>
    %361 = arith.mulf %358, %360 : vector<16x128xf32>
    %362 = arith.addf %357, %361 : vector<16x128xf32>
    %c126_i32_199 = arith.constant 126 : i32
    %363 = tpu.dynamic_rotate %307 by %c126_i32_199 dim 1 : vector<16x128xf32>, i32 -> vector<16x128xf32>
    %c1_200 = arith.constant 1 : index
    %c33_201 = arith.constant 33 : index
    %364 = memref.load %arg3[%c1_200, %c33_201] : memref<2x49xf32, #tpu.memory_space<smem>>
    %365 = vector.broadcast %364 : f32 to vector<16x128xf32>
    %366 = arith.mulf %363, %365 : vector<16x128xf32>
    %367 = arith.addf %362, %366 : vector<16x128xf32>
    %c125_i32_202 = arith.constant 125 : i32
    %368 = tpu.dynamic_rotate %306 by %c125_i32_202 dim 1 : vector<16x128xf32>, i32 -> vector<16x128xf32>
    %c0_203 = arith.constant 0 : index
    %c34 = arith.constant 34 : index
    %369 = memref.load %arg3[%c0_203, %c34] : memref<2x49xf32, #tpu.memory_space<smem>>
    %370 = vector.broadcast %369 : f32 to vector<16x128xf32>
    %371 = arith.mulf %368, %370 : vector<16x128xf32>
    %372 = arith.addf %367, %371 : vector<16x128xf32>
    %c125_i32_204 = arith.constant 125 : i32
    %373 = tpu.dynamic_rotate %307 by %c125_i32_204 dim 1 : vector<16x128xf32>, i32 -> vector<16x128xf32>
    %c1_205 = arith.constant 1 : index
    %c34_206 = arith.constant 34 : index
    %374 = memref.load %arg3[%c1_205, %c34_206] : memref<2x49xf32, #tpu.memory_space<smem>>
    %375 = vector.broadcast %374 : f32 to vector<16x128xf32>
    %376 = arith.mulf %373, %375 : vector<16x128xf32>
    %377 = arith.addf %372, %376 : vector<16x128xf32>
    %c5_207 = arith.constant 5 : index
    %c0_208 = arith.constant 0 : index
    %378 = vector.load %arg5[%c5_207, %c0_208] : memref<22x128xf32, #tpu.memory_space<vmem>>, vector<16x128xf32>
    %c5_209 = arith.constant 5 : index
    %c0_210 = arith.constant 0 : index
    %379 = vector.load %arg6[%c5_209, %c0_210] : memref<22x128xf32, #tpu.memory_space<vmem>>, vector<16x128xf32>
    %c3_i32_211 = arith.constant 3 : i32
    %380 = tpu.dynamic_rotate %378 by %c3_i32_211 dim 1 : vector<16x128xf32>, i32 -> vector<16x128xf32>
    %c0_212 = arith.constant 0 : index
    %c35 = arith.constant 35 : index
    %381 = memref.load %arg3[%c0_212, %c35] : memref<2x49xf32, #tpu.memory_space<smem>>
    %382 = vector.broadcast %381 : f32 to vector<16x128xf32>
    %383 = arith.mulf %380, %382 : vector<16x128xf32>
    %384 = arith.addf %377, %383 : vector<16x128xf32>
    %c3_i32_213 = arith.constant 3 : i32
    %385 = tpu.dynamic_rotate %379 by %c3_i32_213 dim 1 : vector<16x128xf32>, i32 -> vector<16x128xf32>
    %c1_214 = arith.constant 1 : index
    %c35_215 = arith.constant 35 : index
    %386 = memref.load %arg3[%c1_214, %c35_215] : memref<2x49xf32, #tpu.memory_space<smem>>
    %387 = vector.broadcast %386 : f32 to vector<16x128xf32>
    %388 = arith.mulf %385, %387 : vector<16x128xf32>
    %389 = arith.addf %384, %388 : vector<16x128xf32>
    %c2_i32_216 = arith.constant 2 : i32
    %390 = tpu.dynamic_rotate %378 by %c2_i32_216 dim 1 : vector<16x128xf32>, i32 -> vector<16x128xf32>
    %c0_217 = arith.constant 0 : index
    %c36 = arith.constant 36 : index
    %391 = memref.load %arg3[%c0_217, %c36] : memref<2x49xf32, #tpu.memory_space<smem>>
    %392 = vector.broadcast %391 : f32 to vector<16x128xf32>
    %393 = arith.mulf %390, %392 : vector<16x128xf32>
    %394 = arith.addf %389, %393 : vector<16x128xf32>
    %c2_i32_218 = arith.constant 2 : i32
    %395 = tpu.dynamic_rotate %379 by %c2_i32_218 dim 1 : vector<16x128xf32>, i32 -> vector<16x128xf32>
    %c1_219 = arith.constant 1 : index
    %c36_220 = arith.constant 36 : index
    %396 = memref.load %arg3[%c1_219, %c36_220] : memref<2x49xf32, #tpu.memory_space<smem>>
    %397 = vector.broadcast %396 : f32 to vector<16x128xf32>
    %398 = arith.mulf %395, %397 : vector<16x128xf32>
    %399 = arith.addf %394, %398 : vector<16x128xf32>
    %c1_i32_221 = arith.constant 1 : i32
    %400 = tpu.dynamic_rotate %378 by %c1_i32_221 dim 1 : vector<16x128xf32>, i32 -> vector<16x128xf32>
    %c0_222 = arith.constant 0 : index
    %c37 = arith.constant 37 : index
    %401 = memref.load %arg3[%c0_222, %c37] : memref<2x49xf32, #tpu.memory_space<smem>>
    %402 = vector.broadcast %401 : f32 to vector<16x128xf32>
    %403 = arith.mulf %400, %402 : vector<16x128xf32>
    %404 = arith.addf %399, %403 : vector<16x128xf32>
    %c1_i32_223 = arith.constant 1 : i32
    %405 = tpu.dynamic_rotate %379 by %c1_i32_223 dim 1 : vector<16x128xf32>, i32 -> vector<16x128xf32>
    %c1_224 = arith.constant 1 : index
    %c37_225 = arith.constant 37 : index
    %406 = memref.load %arg3[%c1_224, %c37_225] : memref<2x49xf32, #tpu.memory_space<smem>>
    %407 = vector.broadcast %406 : f32 to vector<16x128xf32>
    %408 = arith.mulf %405, %407 : vector<16x128xf32>
    %409 = arith.addf %404, %408 : vector<16x128xf32>
    %c0_i32_226 = arith.constant 0 : i32
    %410 = tpu.dynamic_rotate %378 by %c0_i32_226 dim 1 : vector<16x128xf32>, i32 -> vector<16x128xf32>
    %c0_227 = arith.constant 0 : index
    %c38 = arith.constant 38 : index
    %411 = memref.load %arg3[%c0_227, %c38] : memref<2x49xf32, #tpu.memory_space<smem>>
    %412 = vector.broadcast %411 : f32 to vector<16x128xf32>
    %413 = arith.mulf %410, %412 : vector<16x128xf32>
    %414 = arith.addf %409, %413 : vector<16x128xf32>
    %c0_i32_228 = arith.constant 0 : i32
    %415 = tpu.dynamic_rotate %379 by %c0_i32_228 dim 1 : vector<16x128xf32>, i32 -> vector<16x128xf32>
    %c1_229 = arith.constant 1 : index
    %c38_230 = arith.constant 38 : index
    %416 = memref.load %arg3[%c1_229, %c38_230] : memref<2x49xf32, #tpu.memory_space<smem>>
    %417 = vector.broadcast %416 : f32 to vector<16x128xf32>
    %418 = arith.mulf %415, %417 : vector<16x128xf32>
    %419 = arith.addf %414, %418 : vector<16x128xf32>
    %c127_i32_231 = arith.constant 127 : i32
    %420 = tpu.dynamic_rotate %378 by %c127_i32_231 dim 1 : vector<16x128xf32>, i32 -> vector<16x128xf32>
    %c0_232 = arith.constant 0 : index
    %c39 = arith.constant 39 : index
    %421 = memref.load %arg3[%c0_232, %c39] : memref<2x49xf32, #tpu.memory_space<smem>>
    %422 = vector.broadcast %421 : f32 to vector<16x128xf32>
    %423 = arith.mulf %420, %422 : vector<16x128xf32>
    %424 = arith.addf %419, %423 : vector<16x128xf32>
    %c127_i32_233 = arith.constant 127 : i32
    %425 = tpu.dynamic_rotate %379 by %c127_i32_233 dim 1 : vector<16x128xf32>, i32 -> vector<16x128xf32>
    %c1_234 = arith.constant 1 : index
    %c39_235 = arith.constant 39 : index
    %426 = memref.load %arg3[%c1_234, %c39_235] : memref<2x49xf32, #tpu.memory_space<smem>>
    %427 = vector.broadcast %426 : f32 to vector<16x128xf32>
    %428 = arith.mulf %425, %427 : vector<16x128xf32>
    %429 = arith.addf %424, %428 : vector<16x128xf32>
    %c126_i32_236 = arith.constant 126 : i32
    %430 = tpu.dynamic_rotate %378 by %c126_i32_236 dim 1 : vector<16x128xf32>, i32 -> vector<16x128xf32>
    %c0_237 = arith.constant 0 : index
    %c40 = arith.constant 40 : index
    %431 = memref.load %arg3[%c0_237, %c40] : memref<2x49xf32, #tpu.memory_space<smem>>
    %432 = vector.broadcast %431 : f32 to vector<16x128xf32>
    %433 = arith.mulf %430, %432 : vector<16x128xf32>
    %434 = arith.addf %429, %433 : vector<16x128xf32>
    %c126_i32_238 = arith.constant 126 : i32
    %435 = tpu.dynamic_rotate %379 by %c126_i32_238 dim 1 : vector<16x128xf32>, i32 -> vector<16x128xf32>
    %c1_239 = arith.constant 1 : index
    %c40_240 = arith.constant 40 : index
    %436 = memref.load %arg3[%c1_239, %c40_240] : memref<2x49xf32, #tpu.memory_space<smem>>
    %437 = vector.broadcast %436 : f32 to vector<16x128xf32>
    %438 = arith.mulf %435, %437 : vector<16x128xf32>
    %439 = arith.addf %434, %438 : vector<16x128xf32>
    %c125_i32_241 = arith.constant 125 : i32
    %440 = tpu.dynamic_rotate %378 by %c125_i32_241 dim 1 : vector<16x128xf32>, i32 -> vector<16x128xf32>
    %c0_242 = arith.constant 0 : index
    %c41 = arith.constant 41 : index
    %441 = memref.load %arg3[%c0_242, %c41] : memref<2x49xf32, #tpu.memory_space<smem>>
    %442 = vector.broadcast %441 : f32 to vector<16x128xf32>
    %443 = arith.mulf %440, %442 : vector<16x128xf32>
    %444 = arith.addf %439, %443 : vector<16x128xf32>
    %c125_i32_243 = arith.constant 125 : i32
    %445 = tpu.dynamic_rotate %379 by %c125_i32_243 dim 1 : vector<16x128xf32>, i32 -> vector<16x128xf32>
    %c1_244 = arith.constant 1 : index
    %c41_245 = arith.constant 41 : index
    %446 = memref.load %arg3[%c1_244, %c41_245] : memref<2x49xf32, #tpu.memory_space<smem>>
    %447 = vector.broadcast %446 : f32 to vector<16x128xf32>
    %448 = arith.mulf %445, %447 : vector<16x128xf32>
    %449 = arith.addf %444, %448 : vector<16x128xf32>
    %c6_246 = arith.constant 6 : index
    %c0_247 = arith.constant 0 : index
    %450 = vector.load %arg5[%c6_246, %c0_247] : memref<22x128xf32, #tpu.memory_space<vmem>>, vector<16x128xf32>
    %c6_248 = arith.constant 6 : index
    %c0_249 = arith.constant 0 : index
    %451 = vector.load %arg6[%c6_248, %c0_249] : memref<22x128xf32, #tpu.memory_space<vmem>>, vector<16x128xf32>
    %c3_i32_250 = arith.constant 3 : i32
    %452 = tpu.dynamic_rotate %450 by %c3_i32_250 dim 1 : vector<16x128xf32>, i32 -> vector<16x128xf32>
    %c0_251 = arith.constant 0 : index
    %c42 = arith.constant 42 : index
    %453 = memref.load %arg3[%c0_251, %c42] : memref<2x49xf32, #tpu.memory_space<smem>>
    %454 = vector.broadcast %453 : f32 to vector<16x128xf32>
    %455 = arith.mulf %452, %454 : vector<16x128xf32>
    %456 = arith.addf %449, %455 : vector<16x128xf32>
    %c3_i32_252 = arith.constant 3 : i32
    %457 = tpu.dynamic_rotate %451 by %c3_i32_252 dim 1 : vector<16x128xf32>, i32 -> vector<16x128xf32>
    %c1_253 = arith.constant 1 : index
    %c42_254 = arith.constant 42 : index
    %458 = memref.load %arg3[%c1_253, %c42_254] : memref<2x49xf32, #tpu.memory_space<smem>>
    %459 = vector.broadcast %458 : f32 to vector<16x128xf32>
    %460 = arith.mulf %457, %459 : vector<16x128xf32>
    %461 = arith.addf %456, %460 : vector<16x128xf32>
    %c2_i32_255 = arith.constant 2 : i32
    %462 = tpu.dynamic_rotate %450 by %c2_i32_255 dim 1 : vector<16x128xf32>, i32 -> vector<16x128xf32>
    %c0_256 = arith.constant 0 : index
    %c43 = arith.constant 43 : index
    %463 = memref.load %arg3[%c0_256, %c43] : memref<2x49xf32, #tpu.memory_space<smem>>
    %464 = vector.broadcast %463 : f32 to vector<16x128xf32>
    %465 = arith.mulf %462, %464 : vector<16x128xf32>
    %466 = arith.addf %461, %465 : vector<16x128xf32>
    %c2_i32_257 = arith.constant 2 : i32
    %467 = tpu.dynamic_rotate %451 by %c2_i32_257 dim 1 : vector<16x128xf32>, i32 -> vector<16x128xf32>
    %c1_258 = arith.constant 1 : index
    %c43_259 = arith.constant 43 : index
    %468 = memref.load %arg3[%c1_258, %c43_259] : memref<2x49xf32, #tpu.memory_space<smem>>
    %469 = vector.broadcast %468 : f32 to vector<16x128xf32>
    %470 = arith.mulf %467, %469 : vector<16x128xf32>
    %471 = arith.addf %466, %470 : vector<16x128xf32>
    %c1_i32_260 = arith.constant 1 : i32
    %472 = tpu.dynamic_rotate %450 by %c1_i32_260 dim 1 : vector<16x128xf32>, i32 -> vector<16x128xf32>
    %c0_261 = arith.constant 0 : index
    %c44 = arith.constant 44 : index
    %473 = memref.load %arg3[%c0_261, %c44] : memref<2x49xf32, #tpu.memory_space<smem>>
    %474 = vector.broadcast %473 : f32 to vector<16x128xf32>
    %475 = arith.mulf %472, %474 : vector<16x128xf32>
    %476 = arith.addf %471, %475 : vector<16x128xf32>
    %c1_i32_262 = arith.constant 1 : i32
    %477 = tpu.dynamic_rotate %451 by %c1_i32_262 dim 1 : vector<16x128xf32>, i32 -> vector<16x128xf32>
    %c1_263 = arith.constant 1 : index
    %c44_264 = arith.constant 44 : index
    %478 = memref.load %arg3[%c1_263, %c44_264] : memref<2x49xf32, #tpu.memory_space<smem>>
    %479 = vector.broadcast %478 : f32 to vector<16x128xf32>
    %480 = arith.mulf %477, %479 : vector<16x128xf32>
    %481 = arith.addf %476, %480 : vector<16x128xf32>
    %c0_i32_265 = arith.constant 0 : i32
    %482 = tpu.dynamic_rotate %450 by %c0_i32_265 dim 1 : vector<16x128xf32>, i32 -> vector<16x128xf32>
    %c0_266 = arith.constant 0 : index
    %c45 = arith.constant 45 : index
    %483 = memref.load %arg3[%c0_266, %c45] : memref<2x49xf32, #tpu.memory_space<smem>>
    %484 = vector.broadcast %483 : f32 to vector<16x128xf32>
    %485 = arith.mulf %482, %484 : vector<16x128xf32>
    %486 = arith.addf %481, %485 : vector<16x128xf32>
    %c0_i32_267 = arith.constant 0 : i32
    %487 = tpu.dynamic_rotate %451 by %c0_i32_267 dim 1 : vector<16x128xf32>, i32 -> vector<16x128xf32>
    %c1_268 = arith.constant 1 : index
    %c45_269 = arith.constant 45 : index
    %488 = memref.load %arg3[%c1_268, %c45_269] : memref<2x49xf32, #tpu.memory_space<smem>>
    %489 = vector.broadcast %488 : f32 to vector<16x128xf32>
    %490 = arith.mulf %487, %489 : vector<16x128xf32>
    %491 = arith.addf %486, %490 : vector<16x128xf32>
    %c127_i32_270 = arith.constant 127 : i32
    %492 = tpu.dynamic_rotate %450 by %c127_i32_270 dim 1 : vector<16x128xf32>, i32 -> vector<16x128xf32>
    %c0_271 = arith.constant 0 : index
    %c46 = arith.constant 46 : index
    %493 = memref.load %arg3[%c0_271, %c46] : memref<2x49xf32, #tpu.memory_space<smem>>
    %494 = vector.broadcast %493 : f32 to vector<16x128xf32>
    %495 = arith.mulf %492, %494 : vector<16x128xf32>
    %496 = arith.addf %491, %495 : vector<16x128xf32>
    %c127_i32_272 = arith.constant 127 : i32
    %497 = tpu.dynamic_rotate %451 by %c127_i32_272 dim 1 : vector<16x128xf32>, i32 -> vector<16x128xf32>
    %c1_273 = arith.constant 1 : index
    %c46_274 = arith.constant 46 : index
    %498 = memref.load %arg3[%c1_273, %c46_274] : memref<2x49xf32, #tpu.memory_space<smem>>
    %499 = vector.broadcast %498 : f32 to vector<16x128xf32>
    %500 = arith.mulf %497, %499 : vector<16x128xf32>
    %501 = arith.addf %496, %500 : vector<16x128xf32>
    %c126_i32_275 = arith.constant 126 : i32
    %502 = tpu.dynamic_rotate %450 by %c126_i32_275 dim 1 : vector<16x128xf32>, i32 -> vector<16x128xf32>
    %c0_276 = arith.constant 0 : index
    %c47 = arith.constant 47 : index
    %503 = memref.load %arg3[%c0_276, %c47] : memref<2x49xf32, #tpu.memory_space<smem>>
    %504 = vector.broadcast %503 : f32 to vector<16x128xf32>
    %505 = arith.mulf %502, %504 : vector<16x128xf32>
    %506 = arith.addf %501, %505 : vector<16x128xf32>
    %c126_i32_277 = arith.constant 126 : i32
    %507 = tpu.dynamic_rotate %451 by %c126_i32_277 dim 1 : vector<16x128xf32>, i32 -> vector<16x128xf32>
    %c1_278 = arith.constant 1 : index
    %c47_279 = arith.constant 47 : index
    %508 = memref.load %arg3[%c1_278, %c47_279] : memref<2x49xf32, #tpu.memory_space<smem>>
    %509 = vector.broadcast %508 : f32 to vector<16x128xf32>
    %510 = arith.mulf %507, %509 : vector<16x128xf32>
    %511 = arith.addf %506, %510 : vector<16x128xf32>
    %c125_i32_280 = arith.constant 125 : i32
    %512 = tpu.dynamic_rotate %450 by %c125_i32_280 dim 1 : vector<16x128xf32>, i32 -> vector<16x128xf32>
    %c0_281 = arith.constant 0 : index
    %c48 = arith.constant 48 : index
    %513 = memref.load %arg3[%c0_281, %c48] : memref<2x49xf32, #tpu.memory_space<smem>>
    %514 = vector.broadcast %513 : f32 to vector<16x128xf32>
    %515 = arith.mulf %512, %514 : vector<16x128xf32>
    %516 = arith.addf %511, %515 : vector<16x128xf32>
    %c125_i32_282 = arith.constant 125 : i32
    %517 = tpu.dynamic_rotate %451 by %c125_i32_282 dim 1 : vector<16x128xf32>, i32 -> vector<16x128xf32>
    %c1_283 = arith.constant 1 : index
    %c48_284 = arith.constant 48 : index
    %518 = memref.load %arg3[%c1_283, %c48_284] : memref<2x49xf32, #tpu.memory_space<smem>>
    %519 = vector.broadcast %518 : f32 to vector<16x128xf32>
    %520 = arith.mulf %517, %519 : vector<16x128xf32>
    %521 = arith.addf %516, %520 : vector<16x128xf32>
    %522 = vector.extract_strided_slice %521 {offsets = [0, 0], sizes = [16, 16], strides = [1, 1]} : vector<16x128xf32> to vector<16x16xf32>
    %523 = arith.negf %522 : vector<16x16xf32>
    %524 = math.exp %523 : vector<16x16xf32>
    %cst_285 = arith.constant 1.000000e+00 : f32
    %525 = vector.broadcast %cst_285 : f32 to vector<16x16xf32>
    %526 = arith.addf %525, %524 : vector<16x16xf32>
    %527 = arith.divf %525, %526 : vector<16x16xf32>
    %528 = vector.shape_cast %527 : vector<16x16xf32> to vector<16x16x1xf32>
    %529 = vector.broadcast %528 : vector<16x16x1xf32> to vector<16x16x128xf32>
    %530 = arith.mulf %7, %529 : vector<16x16x128xf32>
    %c0_286 = arith.constant 0 : index
    %c0_287 = arith.constant 0 : index
    %c0_288 = arith.constant 0 : index
    %c0_289 = arith.constant 0 : index
    %531 = vector.load %arg4[%c0_286, %c0_287, %c0_288, %c0_289] : memref<1x16x16x128xf32, #tpu.memory_space<vmem>>, vector<1x16x16x128xf32>
    %532 = vector.shape_cast %531 : vector<1x16x16x128xf32> to vector<16x16x128xf32>
    %533 = vector.shape_cast %530 : vector<16x16x128xf32> to vector<1x16x16x128xf32>
    tpu.vector_store %arg4[%c0_286, %c0_287, %c0_288, %c0_289], %533 {strides = array<i32>} : memref<1x16x16x128xf32, #tpu.memory_space<vmem>>, vector<1x16x16x128xf32>,
    return
  }
  func.func @transform_0(%arg0: i32) -> (i32, i32, i32, i32) {
    %c0_i32 = arith.constant 0 : i32
    %c0_i32_0 = arith.constant 0 : i32
    %c0_i32_1 = arith.constant 0 : i32
    %c0_i32_2 = arith.constant 0 : i32
    return %arg0, %c0_i32, %c0_i32_0, %c0_i32_1 : i32, i32, i32, i32
  }
  func.func @transform_1(%arg0: i32) -> (i32, i32, i32) {
    %c0_i32 = arith.constant 0 : i32
    %c0_i32_0 = arith.constant 0 : i32
    %c0_i32_1 = arith.constant 0 : i32
    return %arg0, %c0_i32, %c0_i32_0 : i32, i32, i32
  }
  func.func @transform_2(%arg0: i32) -> (i32, i32) {
    %c0_i32 = arith.constant 0 : i32
    %c0_i32_0 = arith.constant 0 : i32
    %c0_i32_1 = arith.constant 0 : i32
    return %c0_i32, %c0_i32_0 : i32, i32
  }
  func.func @transform_3(%arg0: i32) -> (i32, i32, i32, i32) {
    %c0_i32 = arith.constant 0 : i32
    %c0_i32_0 = arith.constant 0 : i32
    %c0_i32_1 = arith.constant 0 : i32
    %c0_i32_2 = arith.constant 0 : i32
    return %arg0, %c0_i32, %c0_i32_0, %c0_i32_1 : i32, i32, i32, i32
  }
}

</mosaic_0001>

<llo_original>
// kernel: _lambda_.3
$region0: #{_lambda_.3}
  #allocation0 [shape = 'u32[]', space=smem, size = 0x4, offset = 0x4, fixed_abs, tag = 'smem constant byte address 0x4 - core index']
  #allocation1 [shape = 'u32[144,128]{1,0:T(1,128)}', space=vmem, size = 0x12000, scoped, tag = 'internal scratch']
  %s0 = inlined_call_operand.vmem [shape: bf16[2,18,18,4], index: 0, kind: input, shape index: {}]
  %s1 = inlined_call_operand.vmem [shape: bf16[36,128], index: 1, kind: input, shape index: {}]
  %s2 = inlined_call_operand.vmem [shape: f32[1,128], index: 2, kind: input, shape index: {}]
  %s3 = inlined_call_operand.vmem [shape: f32[1,128], index: 3, kind: input, shape index: {}]
  %s4 = inlined_call_operand.vmem [shape: bf16[2,256,128], index: 4, kind: output, shape index: {}]
  %s5 = sld [smem:[#allocation0]]
  $region49: #{_lambda_.3} parent=0
    _
  %s7 = ssub.s32 1, %s5
  %s8 = scalar_select 0, %s7, %s5
  loop: start=0, step=1, limit=4
  $region2: #{_lambda_.3} parent=0 // loop_pre_header
    _
  $region3: #{_lambda_.3} parent=0 // loop_header
    %s10 = sphi 0, %s14
    %p11 = scmp.ge.s32.totalorder %s10, 4
    %s20 = sphi 0, %s22
    %s23 = sphi 0, %s20
    %s24 = sphi 0, %s23
    %s40 = sphi 0, %s24
    %s44 = sphi 0, %s44
    %s46 = sphi 0, %s44
    %s47 = sphi 0, %s46
    %s61 = sphi 0, %s47
    %s65 = sphi 0, %s65
    %s67 = sphi 0, %s65
    %s68 = sphi 0, %s67
    %s82 = sphi 0, %s68
    %s86 = sphi 0, %s86
    %s88 = sphi 0, %s86
    %s89 = sphi 0, %s88
    %s103 = sphi 0, %s89
    %s109 = sphi 0, %s111
    %s112 = sphi 0, %s109
    %s113 = sphi 0, %s112
    %s129 = sphi 0, %s113
  $region4: #{_lambda_.3} parent=0 // loop_header_branch
    %13 = sbr.rel (%p11) target = $region8
  $region5: #{_lambda_.3} parent=0 // loop_body
    %s15 = ssub.s32 %s10, 1
    %s16 = ssub.s32 %s10, 2
    %s17 = sadd.s32 %s10, 1
    %s18 = ssub.s32 %s10, %s17
    %p19 = scmp.eq.s32.totalorder %s18, 0
    %s21 = sadd.s32 %s20, 1
    %s22 = scalar_select %p19, %s20, %s21
    %p25 = pneg %p19
    %p26 = scmp.eq.s32.totalorder %s10, 1
    %p27 = por %p25, %p26
    %p28 = scmp.ne.s32.totalorder %s20, %s23
    %p29 = scmp.eq.s32.totalorder %s10, 0
    %p30 = por %p28, %p29
    %p31 = scmp.ne.s32.totalorder %s20, %s23
    %p32 = scmp.eq.s32.totalorder %s15, 1
    %p33 = por %p31, %p32
    %p34 = scmp.ne.s32.totalorder %s23, %s24
    %p35 = scmp.eq.s32.totalorder %s15, 0
    %p36 = por %p34, %p35
    %p37 = scmp.ne.s32.totalorder %s23, %s24
    %p38 = scmp.eq.s32.totalorder %s16, 1
    %p39 = por %p37, %p38
    %p41 = scmp.ne.s32.totalorder %s24, %s40
    %p42 = scmp.eq.s32.totalorder %s16, 0
    %p43 = por %p41, %p42
    %s45 = sadd.s32 %s44, 1
    %p48 = scmp.eq.s32.totalorder %s10, 1
    %p49 = scmp.ne.s32.totalorder %s44, %s46
    %p50 = scmp.eq.s32.totalorder %s10, 0
    %p51 = por %p49, %p50
    %p52 = scmp.ne.s32.totalorder %s44, %s46
    %p53 = scmp.eq.s32.totalorder %s15, 1
    %p54 = por %p52, %p53
    %p55 = scmp.ne.s32.totalorder %s46, %s47
    %p56 = scmp.eq.s32.totalorder %s15, 0
    %p57 = por %p55, %p56
    %p58 = scmp.ne.s32.totalorder %s46, %s47
    %p59 = scmp.eq.s32.totalorder %s16, 1
    %p60 = por %p58, %p59
    %p62 = scmp.ne.s32.totalorder %s47, %s61
    %p63 = scmp.eq.s32.totalorder %s16, 0
    %p64 = por %p62, %p63
    %s66 = sadd.s32 %s65, 1
    %p69 = scmp.eq.s32.totalorder %s10, 1
    %p70 = scmp.ne.s32.totalorder %s65, %s67
    %p71 = scmp.eq.s32.totalorder %s10, 0
    %p72 = por %p70, %p71
    %p73 = scmp.ne.s32.totalorder %s65, %s67
    %p74 = scmp.eq.s32.totalorder %s15, 1
    %p75 = por %p73, %p74
    %p76 = scmp.ne.s32.totalorder %s67, %s68
    %p77 = scmp.eq.s32.totalorder %s15, 0
    %p78 = por %p76, %p77
    %p79 = scmp.ne.s32.totalorder %s67, %s68
    %p80 = scmp.eq.s32.totalorder %s16, 1
    %p81 = por %p79, %p80
    %p83 = scmp.ne.s32.totalorder %s68, %s82
    %p84 = scmp.eq.s32.totalorder %s16, 0
    %p85 = por %p83, %p84
    %s87 = sadd.s32 %s86, 1
    %p90 = scmp.eq.s32.totalorder %s10, 1
    %p91 = scmp.ne.s32.totalorder %s86, %s88
    %p92 = scmp.eq.s32.totalorder %s10, 0
    %p93 = por %p91, %p92
    %p94 = scmp.ne.s32.totalorder %s86, %s88
    %p95 = scmp.eq.s32.totalorder %s15, 1
    %p96 = por %p94, %p95
    %p97 = scmp.ne.s32.totalorder %s88, %s89
    %p98 = scmp.eq.s32.totalorder %s15, 0
    %p99 = por %p97, %p98
    %p100 = scmp.ne.s32.totalorder %s88, %s89
    %p101 = scmp.eq.s32.totalorder %s16, 1
    %p102 = por %p100, %p101
    %p104 = scmp.ne.s32.totalorder %s89, %s103
    %p105 = scmp.eq.s32.totalorder %s16, 0
    %p106 = por %p104, %p105
    %s107 = ssub.s32 %s10, %s17
    %p108 = scmp.eq.s32.totalorder %s107, 0
    %s110 = sadd.s32 %s109, 1
    %s111 = scalar_select %p108, %s109, %s110
    %p114 = pneg %p108
    %p115 = scmp.eq.s32.totalorder %s10, 1
    %p116 = por %p114, %p115
    %p117 = scmp.ne.s32.totalorder %s109, %s112
    %p118 = scmp.eq.s32.totalorder %s10, 0
    %p119 = por %p117, %p118
    %p120 = scmp.ne.s32.totalorder %s109, %s112
    %p121 = scmp.eq.s32.totalorder %s15, 1
    %p122 = por %p120, %p121
    %p123 = scmp.ne.s32.totalorder %s112, %s113
    %p124 = scmp.eq.s32.totalorder %s15, 0
    %p125 = por %p123, %p124
    %p126 = scmp.ne.s32.totalorder %s112, %s113
    %p127 = scmp.eq.s32.totalorder %s16, 1
    %p128 = por %p126, %p127
    %p130 = scmp.ne.s32.totalorder %s113, %s129
    %p131 = scmp.eq.s32.totalorder %s16, 0
    %p132 = por %p130, %p131
    %p133 = scmp.le.s32.totalorder 1, %s10
    %p134 = scmp.lt.s32.totalorder %s10, 3
    %p135 = pnand %p133, %p134
    %p136 = pneg %p135
    // Predicated region
    $region9: #{_lambda_.3} parent=5 // pred_check
      _
    $region10: #{_lambda_.3} parent=5 // pred_check_branch
      %138 = sbr.rel (%p135) target = $region12
    $region11: #{_lambda_.3} parent=5 // pred_region
      %s139 = ssub.s32 %s10, 1
      // Predicated region
      $region13: #{_lambda_.3} parent=11 // pred_check
        %p140 = pneg %p57
      $region14: #{_lambda_.3} parent=11 // pred_check_branch
        %142 = sbr.rel (%p140) target = $region16
      $region15: #{_lambda_.3} parent=11 // pred_region
        _
      $region16: #{_lambda_.3} parent=11 // pred_fallthru
        _
      // Predicated region
      $region17: #{_lambda_.3} parent=11 // pred_check
        %p143 = pneg %p78
      $region18: #{_lambda_.3} parent=11 // pred_check_branch
        %145 = sbr.rel (%p143) target = $region20
      $region19: #{_lambda_.3} parent=11 // pred_region
        _
      $region20: #{_lambda_.3} parent=11 // pred_fallthru
        _
      // Predicated region
      $region21: #{_lambda_.3} parent=11 // pred_check
        %p146 = pneg %p99
      $region22: #{_lambda_.3} parent=11 // pred_check_branch
        %148 = sbr.rel (%p146) target = $region24
      $region23: #{_lambda_.3} parent=11 // pred_region
        _
      $region24: #{_lambda_.3} parent=11 // pred_fallthru
        _
    $region12: #{_lambda_.3} parent=5 // pred_fallthru
      _
    %p149 = scmp.lt.s32.totalorder %s10, 2
    // Predicated region
    $region25: #{_lambda_.3} parent=5 // pred_check
      %p150 = pneg %p149
    $region26: #{_lambda_.3} parent=5 // pred_check_branch
      %152 = sbr.rel (%p150) target = $region28
    $region27: #{_lambda_.3} parent=5 // pred_region
      // Predicated region
      $region29: #{_lambda_.3} parent=27 // pred_check
        %p153 = pneg %p30
      $region30: #{_lambda_.3} parent=27 // pred_check_branch
        %155 = sbr.rel (%p153) target = $region32
      $region31: #{_lambda_.3} parent=27 // pred_region
        %p156 = scmp.lt.s32.totalorder %s10, 1
        %s157 = scalar_select %p156, %s10, 1
        %s158 = smul.addr %s157, 54
        %s159 = smul.addr %s158, 4
        %s160 = scalar_lea.vmem %s0, %s159
      $region32: #{_lambda_.3} parent=27 // pred_fallthru
        _
    $region28: #{_lambda_.3} parent=5 // pred_fallthru
      _
    %p161 = scmp.le.s32.totalorder 1, %s10
    %p162 = scmp.lt.s32.totalorder %s10, 3
    %p163 = pnand %p161, %p162
    %p164 = pneg %p163
    // Predicated region
    $region33: #{_lambda_.3} parent=5 // pred_check
      _
    $region34: #{_lambda_.3} parent=5 // pred_check_branch
      %166 = sbr.rel (%p163) target = $region36
    $region35: #{_lambda_.3} parent=5 // pred_region
      %s167 = ssub.s32 %s10, 1
      %p168 = scmp.lt.s32.totalorder %s15, 1
      %s169 = scalar_select %p168, %s15, 1
      %s170 = smul.addr %s169, 54
      %s171 = smul.addr %s170, 4
      %s172 = scalar_lea.vmem %s0, %s171
      %p173 = pneg %p36
      %p174 = pneg %p33
      %p175 = pneg %p57
      %p176 = pneg %p54
      %p177 = pneg %p78
      %p178 = pneg %p75
      %p179 = pneg %p99
      %p180 = pneg %p96
      %p181 = pneg %p125
      %p182 = pneg %p122
      %p183 = scmp.lt.s32.totalorder %s15, 1
      %s184 = scalar_select %p183, %s15, 1
      %s185 = smul.addr %s184, 32
      %s186 = smul.addr %s185, 4
      %s187 = scalar_lea.vmem %s4, %s186
      %p188 = scmp.lt.s32.totalorder %s15, 1
      %s189 = scalar_select %p188, %s15, 1
      %s190 = smul.addr %s189, 54
      %s191 = smul.addr %s190, 4
      %s192 = scalar_lea.vmem %s0, %s191
      %p193 = scmp.lt.s32.totalorder %s15, 1
      %s194 = scalar_select %p193, %s15, 1
      %s195 = smul.addr %s194, 32
      %s196 = smul.addr %s195, 4
      %s197 = scalar_lea.vmem %s4, %s196
      %v199 = vld [vmem:[%s192] sm:$0xf]
      %v200 = vld [vmem:[%s192 + $0x4] sm:$0xf]
      %v201 = vld [vmem:[%s192 + $0x8] sm:$0x1]
      %v202 = vld [vmem:[%s192 + $0xc] sm:$0xf]
      %v203 = vld [vmem:[%s192 + $0x10] sm:$0xf]
      %v204 = vld [vmem:[%s192 + $0x14] sm:$0x1]
      %v205 = vld [vmem:[%s192 + $0x18] sm:$0xf]
      %v206 = vld [vmem:[%s192 + $0x1c] sm:$0xf]
      %v207 = vld [vmem:[%s192 + $0x20] sm:$0x1]
      %v208 = vld [vmem:[%s192 + $0x24] sm:$0xf]
      %v209 = vld [vmem:[%s192 + $0x28] sm:$0xf]
      %v210 = vld [vmem:[%s192 + $0x2c] sm:$0x1]
      %v211 = vld [vmem:[%s192 + $0x30] sm:$0xf]
      %v212 = vld [vmem:[%s192 + $0x34] sm:$0xf]
      %v213 = vld [vmem:[%s192 + $0x38] sm:$0x1]
      %v214 = vld [vmem:[%s192 + $0x3c] sm:$0xf]
      %v215 = vld [vmem:[%s192 + $0x40] sm:$0xf]
      %v216 = vld [vmem:[%s192 + $0x44] sm:$0x1]
      %v217 = vld [vmem:[%s192 + $0x48] sm:$0xf]
      %v218 = vld [vmem:[%s192 + $0x4c] sm:$0xf]
      %v219 = vld [vmem:[%s192 + $0x50] sm:$0x1]
      %v220 = vld [vmem:[%s192 + $0x54] sm:$0xf]
      %v221 = vld [vmem:[%s192 + $0x58] sm:$0xf]
      %v222 = vld [vmem:[%s192 + $0x5c] sm:$0x1]
      %v223 = vld [vmem:[%s192 + $0x60] sm:$0xf]
      %v224 = vld [vmem:[%s192 + $0x64] sm:$0xf]
      %v225 = vld [vmem:[%s192 + $0x68] sm:$0x1]
      %v226 = vld [vmem:[%s192 + $0x6c] sm:$0xf]
      %v227 = vld [vmem:[%s192 + $0x70] sm:$0xf]
      %v228 = vld [vmem:[%s192 + $0x74] sm:$0x1]
      %v229 = vld [vmem:[%s192 + $0x78] sm:$0xf]
      %v230 = vld [vmem:[%s192 + $0x7c] sm:$0xf]
      %v231 = vld [vmem:[%s192 + $0x80] sm:$0x1]
      %v232 = vld [vmem:[%s192 + $0x84] sm:$0xf]
      %v233 = vld [vmem:[%s192 + $0x88] sm:$0xf]
      %v234 = vld [vmem:[%s192 + $0x8c] sm:$0x1]
      %v235 = vld [vmem:[%s192 + $0x90] sm:$0xf]
      %v236 = vld [vmem:[%s192 + $0x94] sm:$0xf]
      %v237 = vld [vmem:[%s192 + $0x98] sm:$0x1]
      %v238 = vld [vmem:[%s192 + $0x9c] sm:$0xf]
      %v239 = vld [vmem:[%s192 + $0xa0] sm:$0xf]
      %v240 = vld [vmem:[%s192 + $0xa4] sm:$0x1]
      %v241 = vld [vmem:[%s192 + $0xa8] sm:$0xf]
      %v242 = vld [vmem:[%s192 + $0xac] sm:$0xf]
      %v243 = vld [vmem:[%s192 + $0xb0] sm:$0x1]
      %v244 = vld [vmem:[%s192 + $0xb4] sm:$0xf]
      %v245 = vld [vmem:[%s192 + $0xb8] sm:$0xf]
      %v246 = vld [vmem:[%s192 + $0xbc] sm:$0x1]
      %v247 = vld [vmem:[%s192 + $0xc0] sm:$0xf]
      %v248 = vld [vmem:[%s192 + $0xc4] sm:$0xf]
      %v249 = vld [vmem:[%s192 + $0xc8] sm:$0x1]
      %v250 = vld [vmem:[%s192 + $0xcc] sm:$0xf]
      %v251 = vld [vmem:[%s192 + $0xd0] sm:$0xf]
      %v252 = vld [vmem:[%s192 + $0xd4] sm:$0x1]
      %v253 = vunpack.c.l.bf16 %v199
      %v254 = vunpack.c.l.bf16 %v200
      %v255 = vunpack.c.l.bf16 %v201
      %v256 = vunpack.c.l.bf16 %v202
      %v257 = vunpack.c.l.bf16 %v203
      %v258 = vunpack.c.l.bf16 %v204
      %v259 = vunpack.c.l.bf16 %v205
      %v260 = vunpack.c.l.bf16 %v206
      %v261 = vunpack.c.l.bf16 %v207
      %v262 = vunpack.c.l.bf16 %v208
      %v263 = vunpack.c.l.bf16 %v209
      %v264 = vunpack.c.l.bf16 %v210
      %v265 = vunpack.c.l.bf16 %v211
      %v266 = vunpack.c.l.bf16 %v212
      %v267 = vunpack.c.l.bf16 %v213
      %v268 = vunpack.c.l.bf16 %v214
      %v269 = vunpack.c.l.bf16 %v215
      %v270 = vunpack.c.l.bf16 %v216
      %v271 = vunpack.c.l.bf16 %v217
      %v272 = vunpack.c.l.bf16 %v218
      %v273 = vunpack.c.l.bf16 %v219
      %v274 = vunpack.c.l.bf16 %v220
      %v275 = vunpack.c.l.bf16 %v221
      %v276 = vunpack.c.l.bf16 %v222
      %v277 = vunpack.c.l.bf16 %v223
      %v278 = vunpack.c.l.bf16 %v224
      %v279 = vunpack.c.l.bf16 %v225
      %v280 = vunpack.c.l.bf16 %v226
      %v281 = vunpack.c.l.bf16 %v227
      %v282 = vunpack.c.l.bf16 %v228
      %v283 = vunpack.c.l.bf16 %v229
      %v284 = vunpack.c.l.bf16 %v230
      %v285 = vunpack.c.l.bf16 %v231
      %v286 = vunpack.c.l.bf16 %v232
      %v287 = vunpack.c.l.bf16 %v233
      %v288 = vunpack.c.l.bf16 %v234
      %v289 = vunpack.c.l.bf16 %v235
      %v290 = vunpack.c.l.bf16 %v236
      %v291 = vunpack.c.l.bf16 %v237
      %v292 = vunpack.c.l.bf16 %v238
      %v293 = vunpack.c.l.bf16 %v239
      %v294 = vunpack.c.l.bf16 %v240
      %v295 = vunpack.c.l.bf16 %v241
      %v296 = vunpack.c.l.bf16 %v242
      %v297 = vunpack.c.l.bf16 %v243
      %v298 = vunpack.c.l.bf16 %v244
      %v299 = vunpack.c.l.bf16 %v245
      %v300 = vunpack.c.l.bf16 %v246
      %v301 = vunpack.c.l.bf16 %v247
      %v302 = vunpack.c.l.bf16 %v248
      %v303 = vunpack.c.l.bf16 %v249
      %v304 = vunpack.c.l.bf16 %v250
      %v305 = vunpack.c.l.bf16 %v251
      %v306 = vunpack.c.l.bf16 %v252
      %vm355 = vcmask 1046528
      %v356 = vrot.slane %v253, 1
      %v357 = vrot.slane %v254, 1
      %v358 = vsel %vm355, %v356, %v357
      %v359 = vrot.slane %v255, 1
      %v360 = vsel %vm355, %v357, %v359
      %v361 = vrot.slane %v256, 1
      %v362 = vrot.slane %v257, 1
      %v363 = vsel %vm355, %v361, %v362
      %v364 = vrot.slane %v258, 1
      %v365 = vsel %vm355, %v362, %v364
      %v366 = vrot.slane %v259, 1
      %v367 = vrot.slane %v260, 1
      %v368 = vsel %vm355, %v366, %v367
      %v369 = vrot.slane %v261, 1
      %v370 = vsel %vm355, %v367, %v369
      %v371 = vrot.slane %v262, 1
      %v372 = vrot.slane %v263, 1
      %v373 = vsel %vm355, %v371, %v372
      %v374 = vrot.slane %v264, 1
      %v375 = vsel %vm355, %v372, %v374
      %v376 = vrot.slane %v265, 1
      %v377 = vrot.slane %v266, 1
      %v378 = vsel %vm355, %v376, %v377
      %v379 = vrot.slane %v267, 1
      %v380 = vsel %vm355, %v377, %v379
      %v381 = vrot.slane %v268, 1
      %v382 = vrot.slane %v269, 1
      %v383 = vsel %vm355, %v381, %v382
      %v384 = vrot.slane %v270, 1
      %v385 = vsel %vm355, %v382, %v384
      %v386 = vrot.slane %v271, 1
      %v387 = vrot.slane %v272, 1
      %v388 = vsel %vm355, %v386, %v387
      %v389 = vrot.slane %v273, 1
      %v390 = vsel %vm355, %v387, %v389
      %v391 = vrot.slane %v274, 1
      %v392 = vrot.slane %v275, 1
      %v393 = vsel %vm355, %v391, %v392
      %v394 = vrot.slane %v276, 1
      %v395 = vsel %vm355, %v392, %v394
      %v396 = vrot.slane %v277, 1
      %v397 = vrot.slane %v278, 1
      %v398 = vsel %vm355, %v396, %v397
      %v399 = vrot.slane %v279, 1
      %v400 = vsel %vm355, %v397, %v399
      %v401 = vrot.slane %v280, 1
      %v402 = vrot.slane %v281, 1
      %v403 = vsel %vm355, %v401, %v402
      %v404 = vrot.slane %v282, 1
      %v405 = vsel %vm355, %v402, %v404
      %v406 = vrot.slane %v283, 1
      %v407 = vrot.slane %v284, 1
      %v408 = vsel %vm355, %v406, %v407
      %v409 = vrot.slane %v285, 1
      %v410 = vsel %vm355, %v407, %v409
      %v411 = vrot.slane %v286, 1
      %v412 = vrot.slane %v287, 1
      %v413 = vsel %vm355, %v411, %v412
      %v414 = vrot.slane %v288, 1
      %v415 = vsel %vm355, %v412, %v414
      %v416 = vrot.slane %v289, 1
      %v417 = vrot.slane %v290, 1
      %v418 = vsel %vm355, %v416, %v417
      %v419 = vrot.slane %v291, 1
      %v420 = vsel %vm355, %v417, %v419
      %v421 = vrot.slane %v292, 1
      %v422 = vrot.slane %v293, 1
      %v423 = vsel %vm355, %v421, %v422
      %v424 = vrot.slane %v294, 1
      %v425 = vsel %vm355, %v422, %v424
      %v426 = vrot.slane %v295, 1
      %v427 = vrot.slane %v296, 1
      %v428 = vsel %vm355, %v426, %v427
      %v429 = vrot.slane %v297, 1
      %v430 = vsel %vm355, %v427, %v429
      %v431 = vrot.slane %v298, 1
      %v432 = vrot.slane %v299, 1
      %v433 = vsel %vm355, %v431, %v432
      %v434 = vrot.slane %v300, 1
      %v435 = vsel %vm355, %v432, %v434
      %436 = vrot.lane.b32.xlu0 %v358, 4
      %v437 = vpop.permute.xlu0 %436
      %438 = vrot.lane.b32.xlu0 %v360, 4
      %v439 = vpop.permute.xlu0 %438
      %440 = vrot.lane.b32.xlu0 %v363, 4
      %v441 = vpop.permute.xlu0 %440
      %442 = vrot.lane.b32.xlu0 %v365, 4
      %v443 = vpop.permute.xlu0 %442
      %444 = vrot.lane.b32.xlu0 %v368, 4
      %v445 = vpop.permute.xlu0 %444
      %446 = vrot.lane.b32.xlu0 %v370, 4
      %v447 = vpop.permute.xlu0 %446
      %448 = vrot.lane.b32.xlu0 %v373, 4
      %v449 = vpop.permute.xlu0 %448
      %450 = vrot.lane.b32.xlu0 %v375, 4
      %v451 = vpop.permute.xlu0 %450
      %452 = vrot.lane.b32.xlu0 %v378, 4
      %v453 = vpop.permute.xlu0 %452
      %454 = vrot.lane.b32.xlu0 %v380, 4
      %v455 = vpop.permute.xlu0 %454
      %456 = vrot.lane.b32.xlu0 %v383, 4
      %v457 = vpop.permute.xlu0 %456
      %458 = vrot.lane.b32.xlu0 %v385, 4
      %v459 = vpop.permute.xlu0 %458
      %460 = vrot.lane.b32.xlu0 %v388, 4
      %v461 = vpop.permute.xlu0 %460
      %462 = vrot.lane.b32.xlu0 %v390, 4
      %v463 = vpop.permute.xlu0 %462
      %464 = vrot.lane.b32.xlu0 %v393, 4
      %v465 = vpop.permute.xlu0 %464
      %466 = vrot.lane.b32.xlu0 %v395, 4
      %v467 = vpop.permute.xlu0 %466
      %468 = vrot.lane.b32.xlu0 %v398, 4
      %v469 = vpop.permute.xlu0 %468
      %470 = vrot.lane.b32.xlu0 %v400, 4
      %v471 = vpop.permute.xlu0 %470
      %472 = vrot.lane.b32.xlu0 %v403, 4
      %v473 = vpop.permute.xlu0 %472
      %474 = vrot.lane.b32.xlu0 %v405, 4
      %v475 = vpop.permute.xlu0 %474
      %476 = vrot.lane.b32.xlu0 %v408, 4
      %v477 = vpop.permute.xlu0 %476
      %478 = vrot.lane.b32.xlu0 %v410, 4
      %v479 = vpop.permute.xlu0 %478
      %480 = vrot.lane.b32.xlu0 %v413, 4
      %v481 = vpop.permute.xlu0 %480
      %482 = vrot.lane.b32.xlu0 %v415, 4
      %v483 = vpop.permute.xlu0 %482
      %484 = vrot.lane.b32.xlu0 %v418, 4
      %v485 = vpop.permute.xlu0 %484
      %486 = vrot.lane.b32.xlu0 %v420, 4
      %v487 = vpop.permute.xlu0 %486
      %488 = vrot.lane.b32.xlu0 %v423, 4
      %v489 = vpop.permute.xlu0 %488
      %490 = vrot.lane.b32.xlu0 %v425, 4
      %v491 = vpop.permute.xlu0 %490
      %492 = vrot.lane.b32.xlu0 %v428, 4
      %v493 = vpop.permute.xlu0 %492
      %494 = vrot.lane.b32.xlu0 %v430, 4
      %v495 = vpop.permute.xlu0 %494
      %496 = vrot.lane.b32.xlu0 %v433, 4
      %v497 = vpop.permute.xlu0 %496
      %498 = vrot.lane.b32.xlu0 %v435, 4
      %v499 = vpop.permute.xlu0 %498
      %vm532 = vcmask 1045504
      %v533 = vrot.slane %v253, 2
      %v534 = vrot.slane %v254, 2
      %v535 = vsel %vm532, %v533, %v534
      %v536 = vrot.slane %v255, 2
      %v537 = vsel %vm532, %v534, %v536
      %v538 = vrot.slane %v256, 2
      %v539 = vrot.slane %v257, 2
      %v540 = vsel %vm532, %v538, %v539
      %v541 = vrot.slane %v258, 2
      %v542 = vsel %vm532, %v539, %v541
      %v543 = vrot.slane %v259, 2
      %v544 = vrot.slane %v260, 2
      %v545 = vsel %vm532, %v543, %v544
      %v546 = vrot.slane %v261, 2
      %v547 = vsel %vm532, %v544, %v546
      %v548 = vrot.slane %v262, 2
      %v549 = vrot.slane %v263, 2
      %v550 = vsel %vm532, %v548, %v549
      %v551 = vrot.slane %v264, 2
      %v552 = vsel %vm532, %v549, %v551
      %v553 = vrot.slane %v265, 2
      %v554 = vrot.slane %v266, 2
      %v555 = vsel %vm532, %v553, %v554
      %v556 = vrot.slane %v267, 2
      %v557 = vsel %vm532, %v554, %v556
      %v558 = vrot.slane %v268, 2
      %v559 = vrot.slane %v269, 2
      %v560 = vsel %vm532, %v558, %v559
      %v561 = vrot.slane %v270, 2
      %v562 = vsel %vm532, %v559, %v561
      %v563 = vrot.slane %v271, 2
      %v564 = vrot.slane %v272, 2
      %v565 = vsel %vm532, %v563, %v564
      %v566 = vrot.slane %v273, 2
      %v567 = vsel %vm532, %v564, %v566
      %v568 = vrot.slane %v274, 2
      %v569 = vrot.slane %v275, 2
      %v570 = vsel %vm532, %v568, %v569
      %v571 = vrot.slane %v276, 2
      %v572 = vsel %vm532, %v569, %v571
      %v573 = vrot.slane %v277, 2
      %v574 = vrot.slane %v278, 2
      %v575 = vsel %vm532, %v573, %v574
      %v576 = vrot.slane %v279, 2
      %v577 = vsel %vm532, %v574, %v576
      %v578 = vrot.slane %v280, 2
      %v579 = vrot.slane %v281, 2
      %v580 = vsel %vm532, %v578, %v579
      %v581 = vrot.slane %v282, 2
      %v582 = vsel %vm532, %v579, %v581
      %v583 = vrot.slane %v283, 2
      %v584 = vrot.slane %v284, 2
      %v585 = vsel %vm532, %v583, %v584
      %v586 = vrot.slane %v285, 2
      %v587 = vsel %vm532, %v584, %v586
      %v588 = vrot.slane %v286, 2
      %v589 = vrot.slane %v287, 2
      %v590 = vsel %vm532, %v588, %v589
      %v591 = vrot.slane %v288, 2
      %v592 = vsel %vm532, %v589, %v591
      %v593 = vrot.slane %v289, 2
      %v594 = vrot.slane %v290, 2
      %v595 = vsel %vm532, %v593, %v594
      %v596 = vrot.slane %v291, 2
      %v597 = vsel %vm532, %v594, %v596
      %v598 = vrot.slane %v292, 2
      %v599 = vrot.slane %v293, 2
      %v600 = vsel %vm532, %v598, %v599
      %v601 = vrot.slane %v294, 2
      %v602 = vsel %vm532, %v599, %v601
      %v603 = vrot.slane %v295, 2
      %v604 = vrot.slane %v296, 2
      %v605 = vsel %vm532, %v603, %v604
      %v606 = vrot.slane %v297, 2
      %v607 = vsel %vm532, %v604, %v606
      %v608 = vrot.slane %v298, 2
      %v609 = vrot.slane %v299, 2
      %v610 = vsel %vm532, %v608, %v609
      %v611 = vrot.slane %v300, 2
      %v612 = vsel %vm532, %v609, %v611
      %613 = vrot.lane.b32.xlu0 %v535, 8
      %v614 = vpop.permute.xlu0 %613
      %615 = vrot.lane.b32.xlu0 %v537, 8
      %v616 = vpop.permute.xlu0 %615
      %617 = vrot.lane.b32.xlu0 %v540, 8
      %v618 = vpop.permute.xlu0 %617
      %619 = vrot.lane.b32.xlu0 %v542, 8
      %v620 = vpop.permute.xlu0 %619
      %621 = vrot.lane.b32.xlu0 %v545, 8
      %v622 = vpop.permute.xlu0 %621
      %623 = vrot.lane.b32.xlu0 %v547, 8
      %v624 = vpop.permute.xlu0 %623
      %625 = vrot.lane.b32.xlu0 %v550, 8
      %v626 = vpop.permute.xlu0 %625
      %627 = vrot.lane.b32.xlu0 %v552, 8
      %v628 = vpop.permute.xlu0 %627
      %629 = vrot.lane.b32.xlu0 %v555, 8
      %v630 = vpop.permute.xlu0 %629
      %631 = vrot.lane.b32.xlu0 %v557, 8
      %v632 = vpop.permute.xlu0 %631
      %633 = vrot.lane.b32.xlu0 %v560, 8
      %v634 = vpop.permute.xlu0 %633
      %635 = vrot.lane.b32.xlu0 %v562, 8
      %v636 = vpop.permute.xlu0 %635
      %637 = vrot.lane.b32.xlu0 %v565, 8
      %v638 = vpop.permute.xlu0 %637
      %639 = vrot.lane.b32.xlu0 %v567, 8
      %v640 = vpop.permute.xlu0 %639
      %641 = vrot.lane.b32.xlu0 %v570, 8
      %v642 = vpop.permute.xlu0 %641
      %643 = vrot.lane.b32.xlu0 %v572, 8
      %v644 = vpop.permute.xlu0 %643
      %645 = vrot.lane.b32.xlu0 %v575, 8
      %v646 = vpop.permute.xlu0 %645
      %647 = vrot.lane.b32.xlu0 %v577, 8
      %v648 = vpop.permute.xlu0 %647
      %649 = vrot.lane.b32.xlu0 %v580, 8
      %v650 = vpop.permute.xlu0 %649
      %651 = vrot.lane.b32.xlu0 %v582, 8
      %v652 = vpop.permute.xlu0 %651
      %653 = vrot.lane.b32.xlu0 %v585, 8
      %v654 = vpop.permute.xlu0 %653
      %655 = vrot.lane.b32.xlu0 %v587, 8
      %v656 = vpop.permute.xlu0 %655
      %657 = vrot.lane.b32.xlu0 %v590, 8
      %v658 = vpop.permute.xlu0 %657
      %659 = vrot.lane.b32.xlu0 %v592, 8
      %v660 = vpop.permute.xlu0 %659
      %661 = vrot.lane.b32.xlu0 %v595, 8
      %v662 = vpop.permute.xlu0 %661
      %663 = vrot.lane.b32.xlu0 %v597, 8
      %v664 = vpop.permute.xlu0 %663
      %665 = vrot.lane.b32.xlu0 %v600, 8
      %v666 = vpop.permute.xlu0 %665
      %667 = vrot.lane.b32.xlu0 %v602, 8
      %v668 = vpop.permute.xlu0 %667
      %669 = vrot.lane.b32.xlu0 %v605, 8
      %v670 = vpop.permute.xlu0 %669
      %671 = vrot.lane.b32.xlu0 %v607, 8
      %v672 = vpop.permute.xlu0 %671
      %673 = vrot.lane.b32.xlu0 %v610, 8
      %v674 = vpop.permute.xlu0 %673
      %675 = vrot.lane.b32.xlu0 %v612, 8
      %v676 = vpop.permute.xlu0 %675
      %711 = vrot.lane.b32.xlu0 %v256, 12
      %v712 = vpop.permute.xlu0 %711
      %713 = vrot.lane.b32.xlu0 %v257, 12
      %v714 = vpop.permute.xlu0 %713
      %715 = vrot.lane.b32.xlu0 %v259, 12
      %v716 = vpop.permute.xlu0 %715
      %717 = vrot.lane.b32.xlu0 %v260, 12
      %v718 = vpop.permute.xlu0 %717
      %719 = vrot.lane.b32.xlu0 %v262, 12
      %v720 = vpop.permute.xlu0 %719
      %721 = vrot.lane.b32.xlu0 %v263, 12
      %v722 = vpop.permute.xlu0 %721
      %723 = vrot.lane.b32.xlu0 %v265, 12
      %v724 = vpop.permute.xlu0 %723
      %725 = vrot.lane.b32.xlu0 %v266, 12
      %v726 = vpop.permute.xlu0 %725
      %727 = vrot.lane.b32.xlu0 %v268, 12
      %v728 = vpop.permute.xlu0 %727
      %729 = vrot.lane.b32.xlu0 %v269, 12
      %v730 = vpop.permute.xlu0 %729
      %731 = vrot.lane.b32.xlu0 %v271, 12
      %v732 = vpop.permute.xlu0 %731
      %733 = vrot.lane.b32.xlu0 %v272, 12
      %v734 = vpop.permute.xlu0 %733
      %735 = vrot.lane.b32.xlu0 %v274, 12
      %v736 = vpop.permute.xlu0 %735
      %737 = vrot.lane.b32.xlu0 %v275, 12
      %v738 = vpop.permute.xlu0 %737
      %739 = vrot.lane.b32.xlu0 %v277, 12
      %v740 = vpop.permute.xlu0 %739
      %741 = vrot.lane.b32.xlu0 %v278, 12
      %v742 = vpop.permute.xlu0 %741
      %743 = vrot.lane.b32.xlu0 %v280, 12
      %v744 = vpop.permute.xlu0 %743
      %745 = vrot.lane.b32.xlu0 %v281, 12
      %v746 = vpop.permute.xlu0 %745
      %747 = vrot.lane.b32.xlu0 %v283, 12
      %v748 = vpop.permute.xlu0 %747
      %749 = vrot.lane.b32.xlu0 %v284, 12
      %v750 = vpop.permute.xlu0 %749
      %751 = vrot.lane.b32.xlu0 %v286, 12
      %v752 = vpop.permute.xlu0 %751
      %753 = vrot.lane.b32.xlu0 %v287, 12
      %v754 = vpop.permute.xlu0 %753
      %755 = vrot.lane.b32.xlu0 %v289, 12
      %v756 = vpop.permute.xlu0 %755
      %757 = vrot.lane.b32.xlu0 %v290, 12
      %v758 = vpop.permute.xlu0 %757
      %759 = vrot.lane.b32.xlu0 %v292, 12
      %v760 = vpop.permute.xlu0 %759
      %761 = vrot.lane.b32.xlu0 %v293, 12
      %v762 = vpop.permute.xlu0 %761
      %763 = vrot.lane.b32.xlu0 %v295, 12
      %v764 = vpop.permute.xlu0 %763
      %765 = vrot.lane.b32.xlu0 %v296, 12
      %v766 = vpop.permute.xlu0 %765
      %767 = vrot.lane.b32.xlu0 %v298, 12
      %v768 = vpop.permute.xlu0 %767
      %769 = vrot.lane.b32.xlu0 %v299, 12
      %v770 = vpop.permute.xlu0 %769
      %771 = vrot.lane.b32.xlu0 %v301, 12
      %v772 = vpop.permute.xlu0 %771
      %773 = vrot.lane.b32.xlu0 %v302, 12
      %v774 = vpop.permute.xlu0 %773
      %v808 = vrot.slane %v301, 1
      %v809 = vrot.slane %v302, 1
      %v810 = vsel %vm355, %v808, %v809
      %v811 = vrot.slane %v303, 1
      %v812 = vsel %vm355, %v809, %v811
      %813 = vrot.lane.b32.xlu0 %v363, 16
      %v814 = vpop.permute.xlu0 %813
      %815 = vrot.lane.b32.xlu0 %v365, 16
      %v816 = vpop.permute.xlu0 %815
      %817 = vrot.lane.b32.xlu0 %v368, 16
      %v818 = vpop.permute.xlu0 %817
      %819 = vrot.lane.b32.xlu0 %v370, 16
      %v820 = vpop.permute.xlu0 %819
      %821 = vrot.lane.b32.xlu0 %v373, 16
      %v822 = vpop.permute.xlu0 %821
      %823 = vrot.lane.b32.xlu0 %v375, 16
      %v824 = vpop.permute.xlu0 %823
      %825 = vrot.lane.b32.xlu0 %v378, 16
      %v826 = vpop.permute.xlu0 %825
      %827 = vrot.lane.b32.xlu0 %v380, 16
      %v828 = vpop.permute.xlu0 %827
      %829 = vrot.lane.b32.xlu0 %v383, 16
      %v830 = vpop.permute.xlu0 %829
      %831 = vrot.lane.b32.xlu0 %v385, 16
      %v832 = vpop.permute.xlu0 %831
      %833 = vrot.lane.b32.xlu0 %v388, 16
      %v834 = vpop.permute.xlu0 %833
      %835 = vrot.lane.b32.xlu0 %v390, 16
      %v836 = vpop.permute.xlu0 %835
      %837 = vrot.lane.b32.xlu0 %v393, 16
      %v838 = vpop.permute.xlu0 %837
      %839 = vrot.lane.b32.xlu0 %v395, 16
      %v840 = vpop.permute.xlu0 %839
      %841 = vrot.lane.b32.xlu0 %v398, 16
      %v842 = vpop.permute.xlu0 %841
      %843 = vrot.lane.b32.xlu0 %v400, 16
      %v844 = vpop.permute.xlu0 %843
      %845 = vrot.lane.b32.xlu0 %v403, 16
      %v846 = vpop.permute.xlu0 %845
      %847 = vrot.lane.b32.xlu0 %v405, 16
      %v848 = vpop.permute.xlu0 %847
      %849 = vrot.lane.b32.xlu0 %v408, 16
      %v850 = vpop.permute.xlu0 %849
      %851 = vrot.lane.b32.xlu0 %v410, 16
      %v852 = vpop.permute.xlu0 %851
      %853 = vrot.lane.b32.xlu0 %v413, 16
      %v854 = vpop.permute.xlu0 %853
      %855 = vrot.lane.b32.xlu0 %v415, 16
      %v856 = vpop.permute.xlu0 %855
      %857 = vrot.lane.b32.xlu0 %v418, 16
      %v858 = vpop.permute.xlu0 %857
      %859 = vrot.lane.b32.xlu0 %v420, 16
      %v860 = vpop.permute.xlu0 %859
      %861 = vrot.lane.b32.xlu0 %v423, 16
      %v862 = vpop.permute.xlu0 %861
      %863 = vrot.lane.b32.xlu0 %v425, 16
      %v864 = vpop.permute.xlu0 %863
      %865 = vrot.lane.b32.xlu0 %v428, 16
      %v866 = vpop.permute.xlu0 %865
      %867 = vrot.lane.b32.xlu0 %v430, 16
      %v868 = vpop.permute.xlu0 %867
      %869 = vrot.lane.b32.xlu0 %v433, 16
      %v870 = vpop.permute.xlu0 %869
      %871 = vrot.lane.b32.xlu0 %v435, 16
      %v872 = vpop.permute.xlu0 %871
      %873 = vrot.lane.b32.xlu0 %v810, 16
      %v874 = vpop.permute.xlu0 %873
      %875 = vrot.lane.b32.xlu0 %v812, 16
      %v876 = vpop.permute.xlu0 %875
      %v909 = vrot.slane %v301, 2
      %v910 = vrot.slane %v302, 2
      %v911 = vsel %vm532, %v909, %v910
      %v912 = vrot.slane %v303, 2
      %v913 = vsel %vm532, %v910, %v912
      %914 = vrot.lane.b32.xlu0 %v540, 20
      %v915 = vpop.permute.xlu0 %914
      %916 = vrot.lane.b32.xlu0 %v542, 20
      %v917 = vpop.permute.xlu0 %916
      %918 = vrot.lane.b32.xlu0 %v545, 20
      %v919 = vpop.permute.xlu0 %918
      %920 = vrot.lane.b32.xlu0 %v547, 20
      %v921 = vpop.permute.xlu0 %920
      %922 = vrot.lane.b32.xlu0 %v550, 20
      %v923 = vpop.permute.xlu0 %922
      %924 = vrot.lane.b32.xlu0 %v552, 20
      %v925 = vpop.permute.xlu0 %924
      %926 = vrot.lane.b32.xlu0 %v555, 20
      %v927 = vpop.permute.xlu0 %926
      %928 = vrot.lane.b32.xlu0 %v557, 20
      %v929 = vpop.permute.xlu0 %928
      %930 = vrot.lane.b32.xlu0 %v560, 20
      %v931 = vpop.permute.xlu0 %930
      %932 = vrot.lane.b32.xlu0 %v562, 20
      %v933 = vpop.permute.xlu0 %932
      %934 = vrot.lane.b32.xlu0 %v565, 20
      %v935 = vpop.permute.xlu0 %934
      %936 = vrot.lane.b32.xlu0 %v567, 20
      %v937 = vpop.permute.xlu0 %936
      %938 = vrot.lane.b32.xlu0 %v570, 20
      %v939 = vpop.permute.xlu0 %938
      %940 = vrot.lane.b32.xlu0 %v572, 20
      %v941 = vpop.permute.xlu0 %940
      %942 = vrot.lane.b32.xlu0 %v575, 20
      %v943 = vpop.permute.xlu0 %942
      %944 = vrot.lane.b32.xlu0 %v577, 20
      %v945 = vpop.permute.xlu0 %944
      %946 = vrot.lane.b32.xlu0 %v580, 20
      %v947 = vpop.permute.xlu0 %946
      %948 = vrot.lane.b32.xlu0 %v582, 20
      %v949 = vpop.permute.xlu0 %948
      %950 = vrot.lane.b32.xlu0 %v585, 20
      %v951 = vpop.permute.xlu0 %950
      %952 = vrot.lane.b32.xlu0 %v587, 20
      %v953 = vpop.permute.xlu0 %952
      %954 = vrot.lane.b32.xlu0 %v590, 20
      %v955 = vpop.permute.xlu0 %954
      %956 = vrot.lane.b32.xlu0 %v592, 20
      %v957 = vpop.permute.xlu0 %956
      %958 = vrot.lane.b32.xlu0 %v595, 20
      %v959 = vpop.permute.xlu0 %958
      %960 = vrot.lane.b32.xlu0 %v597, 20
      %v961 = vpop.permute.xlu0 %960
      %962 = vrot.lane.b32.xlu0 %v600, 20
      %v963 = vpop.permute.xlu0 %962
      %964 = vrot.lane.b32.xlu0 %v602, 20
      %v965 = vpop.permute.xlu0 %964
      %966 = vrot.lane.b32.xlu0 %v605, 20
      %v967 = vpop.permute.xlu0 %966
      %968 = vrot.lane.b32.xlu0 %v607, 20
      %v969 = vpop.permute.xlu0 %968
      %970 = vrot.lane.b32.xlu0 %v610, 20
      %v971 = vpop.permute.xlu0 %970
      %972 = vrot.lane.b32.xlu0 %v612, 20
      %v973 = vpop.permute.xlu0 %972
      %974 = vrot.lane.b32.xlu0 %v911, 20
      %v975 = vpop.permute.xlu0 %974
      %976 = vrot.lane.b32.xlu0 %v913, 20
      %v977 = vpop.permute.xlu0 %976
      %1012 = vrot.lane.b32.xlu0 %v259, 24
      %v1013 = vpop.permute.xlu0 %1012
      %1014 = vrot.lane.b32.xlu0 %v260, 24
      %v1015 = vpop.permute.xlu0 %1014
      %1016 = vrot.lane.b32.xlu0 %v262, 24
      %v1017 = vpop.permute.xlu0 %1016
      %1018 = vrot.lane.b32.xlu0 %v263, 24
      %v1019 = vpop.permute.xlu0 %1018
      %1020 = vrot.lane.b32.xlu0 %v265, 24
      %v1021 = vpop.permute.xlu0 %1020
      %1022 = vrot.lane.b32.xlu0 %v266, 24
      %v1023 = vpop.permute.xlu0 %1022
      %1024 = vrot.lane.b32.xlu0 %v268, 24
      %v1025 = vpop.permute.xlu0 %1024
      %1026 = vrot.lane.b32.xlu0 %v269, 24
      %v1027 = vpop.permute.xlu0 %1026
      %1028 = vrot.lane.b32.xlu0 %v271, 24
      %v1029 = vpop.permute.xlu0 %1028
      %1030 = vrot.lane.b32.xlu0 %v272, 24
      %v1031 = vpop.permute.xlu0 %1030
      %1032 = vrot.lane.b32.xlu0 %v274, 24
      %v1033 = vpop.permute.xlu0 %1032
      %1034 = vrot.lane.b32.xlu0 %v275, 24
      %v1035 = vpop.permute.xlu0 %1034
      %1036 = vrot.lane.b32.xlu0 %v277, 24
      %v1037 = vpop.permute.xlu0 %1036
      %1038 = vrot.lane.b32.xlu0 %v278, 24
      %v1039 = vpop.permute.xlu0 %1038
      %1040 = vrot.lane.b32.xlu0 %v280, 24
      %v1041 = vpop.permute.xlu0 %1040
      %1042 = vrot.lane.b32.xlu0 %v281, 24
      %v1043 = vpop.permute.xlu0 %1042
      %1044 = vrot.lane.b32.xlu0 %v283, 24
      %v1045 = vpop.permute.xlu0 %1044
      %1046 = vrot.lane.b32.xlu0 %v284, 24
      %v1047 = vpop.permute.xlu0 %1046
      %1048 = vrot.lane.b32.xlu0 %v286, 24
      %v1049 = vpop.permute.xlu0 %1048
      %1050 = vrot.lane.b32.xlu0 %v287, 24
      %v1051 = vpop.permute.xlu0 %1050
      %1052 = vrot.lane.b32.xlu0 %v289, 24
      %v1053 = vpop.permute.xlu0 %1052
      %1054 = vrot.lane.b32.xlu0 %v290, 24
      %v1055 = vpop.permute.xlu0 %1054
      %1056 = vrot.lane.b32.xlu0 %v292, 24
      %v1057 = vpop.permute.xlu0 %1056
      %1058 = vrot.lane.b32.xlu0 %v293, 24
      %v1059 = vpop.permute.xlu0 %1058
      %1060 = vrot.lane.b32.xlu0 %v295, 24
      %v1061 = vpop.permute.xlu0 %1060
      %1062 = vrot.lane.b32.xlu0 %v296, 24
      %v1063 = vpop.permute.xlu0 %1062
      %1064 = vrot.lane.b32.xlu0 %v298, 24
      %v1065 = vpop.permute.xlu0 %1064
      %1066 = vrot.lane.b32.xlu0 %v299, 24
      %v1067 = vpop.permute.xlu0 %1066
      %1068 = vrot.lane.b32.xlu0 %v301, 24
      %v1069 = vpop.permute.xlu0 %1068
      %1070 = vrot.lane.b32.xlu0 %v302, 24
      %v1071 = vpop.permute.xlu0 %1070
      %1072 = vrot.lane.b32.xlu0 %v304, 24
      %v1073 = vpop.permute.xlu0 %1072
      %1074 = vrot.lane.b32.xlu0 %v305, 24
      %v1075 = vpop.permute.xlu0 %1074
      %v1109 = vrot.slane %v304, 1
      %v1110 = vrot.slane %v305, 1
      %v1111 = vsel %vm355, %v1109, %v1110
      %v1112 = vrot.slane %v306, 1
      %v1113 = vsel %vm355, %v1110, %v1112
      %1114 = vrot.lane.b32.xlu0 %v368, 28
      %v1115 = vpop.permute.xlu0 %1114
      %1116 = vrot.lane.b32.xlu0 %v370, 28
      %v1117 = vpop.permute.xlu0 %1116
      %1118 = vrot.lane.b32.xlu0 %v373, 28
      %v1119 = vpop.permute.xlu0 %1118
      %1120 = vrot.lane.b32.xlu0 %v375, 28
      %v1121 = vpop.permute.xlu0 %1120
      %1122 = vrot.lane.b32.xlu0 %v378, 28
      %v1123 = vpop.permute.xlu0 %1122
      %1124 = vrot.lane.b32.xlu0 %v380, 28
      %v1125 = vpop.permute.xlu0 %1124
      %1126 = vrot.lane.b32.xlu0 %v383, 28
      %v1127 = vpop.permute.xlu0 %1126
      %1128 = vrot.lane.b32.xlu0 %v385, 28
      %v1129 = vpop.permute.xlu0 %1128
      %1130 = vrot.lane.b32.xlu0 %v388, 28
      %v1131 = vpop.permute.xlu0 %1130
      %1132 = vrot.lane.b32.xlu0 %v390, 28
      %v1133 = vpop.permute.xlu0 %1132
      %1134 = vrot.lane.b32.xlu0 %v393, 28
      %v1135 = vpop.permute.xlu0 %1134
      %1136 = vrot.lane.b32.xlu0 %v395, 28
      %v1137 = vpop.permute.xlu0 %1136
      %1138 = vrot.lane.b32.xlu0 %v398, 28
      %v1139 = vpop.permute.xlu0 %1138
      %1140 = vrot.lane.b32.xlu0 %v400, 28
      %v1141 = vpop.permute.xlu0 %1140
      %1142 = vrot.lane.b32.xlu0 %v403, 28
      %v1143 = vpop.permute.xlu0 %1142
      %1144 = vrot.lane.b32.xlu0 %v405, 28
      %v1145 = vpop.permute.xlu0 %1144
      %1146 = vrot.lane.b32.xlu0 %v408, 28
      %v1147 = vpop.permute.xlu0 %1146
      %1148 = vrot.lane.b32.xlu0 %v410, 28
      %v1149 = vpop.permute.xlu0 %1148
      %1150 = vrot.lane.b32.xlu0 %v413, 28
      %v1151 = vpop.permute.xlu0 %1150
      %1152 = vrot.lane.b32.xlu0 %v415, 28
      %v1153 = vpop.permute.xlu0 %1152
      %1154 = vrot.lane.b32.xlu0 %v418, 28
      %v1155 = vpop.permute.xlu0 %1154
      %1156 = vrot.lane.b32.xlu0 %v420, 28
      %v1157 = vpop.permute.xlu0 %1156
      %1158 = vrot.lane.b32.xlu0 %v423, 28
      %v1159 = vpop.permute.xlu0 %1158
      %1160 = vrot.lane.b32.xlu0 %v425, 28
      %v1161 = vpop.permute.xlu0 %1160
      %1162 = vrot.lane.b32.xlu0 %v428, 28
      %v1163 = vpop.permute.xlu0 %1162
      %1164 = vrot.lane.b32.xlu0 %v430, 28
      %v1165 = vpop.permute.xlu0 %1164
      %1166 = vrot.lane.b32.xlu0 %v433, 28
      %v1167 = vpop.permute.xlu0 %1166
      %1168 = vrot.lane.b32.xlu0 %v435, 28
      %v1169 = vpop.permute.xlu0 %1168
      %1170 = vrot.lane.b32.xlu0 %v810, 28
      %v1171 = vpop.permute.xlu0 %1170
      %1172 = vrot.lane.b32.xlu0 %v812, 28
      %v1173 = vpop.permute.xlu0 %1172
      %1174 = vrot.lane.b32.xlu0 %v1111, 28
      %v1175 = vpop.permute.xlu0 %1174
      %1176 = vrot.lane.b32.xlu0 %v1113, 28
      %v1177 = vpop.permute.xlu0 %1176
      %v1210 = vrot.slane %v304, 2
      %v1211 = vrot.slane %v305, 2
      %v1212 = vsel %vm532, %v1210, %v1211
      %v1213 = vrot.slane %v306, 2
      %v1214 = vsel %vm532, %v1211, %v1213
      %1215 = vrot.lane.b32.xlu0 %v545, 32
      %v1216 = vpop.permute.xlu0 %1215
      %1217 = vrot.lane.b32.xlu0 %v547, 32
      %v1218 = vpop.permute.xlu0 %1217
      %1219 = vrot.lane.b32.xlu0 %v550, 32
      %v1220 = vpop.permute.xlu0 %1219
      %1221 = vrot.lane.b32.xlu0 %v552, 32
      %v1222 = vpop.permute.xlu0 %1221
      %1223 = vrot.lane.b32.xlu0 %v555, 32
      %v1224 = vpop.permute.xlu0 %1223
      %1225 = vrot.lane.b32.xlu0 %v557, 32
      %v1226 = vpop.permute.xlu0 %1225
      %1227 = vrot.lane.b32.xlu0 %v560, 32
      %v1228 = vpop.permute.xlu0 %1227
      %1229 = vrot.lane.b32.xlu0 %v562, 32
      %v1230 = vpop.permute.xlu0 %1229
      %1231 = vrot.lane.b32.xlu0 %v565, 32
      %v1232 = vpop.permute.xlu0 %1231
      %1233 = vrot.lane.b32.xlu0 %v567, 32
      %v1234 = vpop.permute.xlu0 %1233
      %1235 = vrot.lane.b32.xlu0 %v570, 32
      %v1236 = vpop.permute.xlu0 %1235
      %1237 = vrot.lane.b32.xlu0 %v572, 32
      %v1238 = vpop.permute.xlu0 %1237
      %1239 = vrot.lane.b32.xlu0 %v575, 32
      %v1240 = vpop.permute.xlu0 %1239
      %1241 = vrot.lane.b32.xlu0 %v577, 32
      %v1242 = vpop.permute.xlu0 %1241
      %1243 = vrot.lane.b32.xlu0 %v580, 32
      %v1244 = vpop.permute.xlu0 %1243
      %1245 = vrot.lane.b32.xlu0 %v582, 32
      %v1246 = vpop.permute.xlu0 %1245
      %1247 = vrot.lane.b32.xlu0 %v585, 32
      %v1248 = vpop.permute.xlu0 %1247
      %1249 = vrot.lane.b32.xlu0 %v587, 32
      %v1250 = vpop.permute.xlu0 %1249
      %1251 = vrot.lane.b32.xlu0 %v590, 32
      %v1252 = vpop.permute.xlu0 %1251
      %1253 = vrot.lane.b32.xlu0 %v592, 32
      %v1254 = vpop.permute.xlu0 %1253
      %1255 = vrot.lane.b32.xlu0 %v595, 32
      %v1256 = vpop.permute.xlu0 %1255
      %1257 = vrot.lane.b32.xlu0 %v597, 32
      %v1258 = vpop.permute.xlu0 %1257
      %1259 = vrot.lane.b32.xlu0 %v600, 32
      %v1260 = vpop.permute.xlu0 %1259
      %1261 = vrot.lane.b32.xlu0 %v602, 32
      %v1262 = vpop.permute.xlu0 %1261
      %1263 = vrot.lane.b32.xlu0 %v605, 32
      %v1264 = vpop.permute.xlu0 %1263
      %1265 = vrot.lane.b32.xlu0 %v607, 32
      %v1266 = vpop.permute.xlu0 %1265
      %1267 = vrot.lane.b32.xlu0 %v610, 32
      %v1268 = vpop.permute.xlu0 %1267
      %1269 = vrot.lane.b32.xlu0 %v612, 32
      %v1270 = vpop.permute.xlu0 %1269
      %1271 = vrot.lane.b32.xlu0 %v911, 32
      %v1272 = vpop.permute.xlu0 %1271
      %1273 = vrot.lane.b32.xlu0 %v913, 32
      %v1274 = vpop.permute.xlu0 %1273
      %1275 = vrot.lane.b32.xlu0 %v1212, 32
      %v1276 = vpop.permute.xlu0 %1275
      %1277 = vrot.lane.b32.xlu0 %v1214, 32
      %v1278 = vpop.permute.xlu0 %1277
      %vm1311 = vcmask 31744
      %v1312 = vsel %vm1311, %v253, %v437
      %v1313 = vsel %vm1311, %v254, %v439
      %v1314 = vsel %vm1311, %v256, %v441
      %v1315 = vsel %vm1311, %v257, %v443
      %v1316 = vsel %vm1311, %v259, %v445
      %v1317 = vsel %vm1311, %v260, %v447
      %v1318 = vsel %vm1311, %v262, %v449
      %v1319 = vsel %vm1311, %v263, %v451
      %v1320 = vsel %vm1311, %v265, %v453
      %v1321 = vsel %vm1311, %v266, %v455
      %v1322 = vsel %vm1311, %v268, %v457
      %v1323 = vsel %vm1311, %v269, %v459
      %v1324 = vsel %vm1311, %v271, %v461
      %v1325 = vsel %vm1311, %v272, %v463
      %v1326 = vsel %vm1311, %v274, %v465
      %v1327 = vsel %vm1311, %v275, %v467
      %v1328 = vsel %vm1311, %v277, %v469
      %v1329 = vsel %vm1311, %v278, %v471
      %v1330 = vsel %vm1311, %v280, %v473
      %v1331 = vsel %vm1311, %v281, %v475
      %v1332 = vsel %vm1311, %v283, %v477
      %v1333 = vsel %vm1311, %v284, %v479
      %v1334 = vsel %vm1311, %v286, %v481
      %v1335 = vsel %vm1311, %v287, %v483
      %v1336 = vsel %vm1311, %v289, %v485
      %v1337 = vsel %vm1311, %v290, %v487
      %v1338 = vsel %vm1311, %v292, %v489
      %v1339 = vsel %vm1311, %v293, %v491
      %v1340 = vsel %vm1311, %v295, %v493
      %v1341 = vsel %vm1311, %v296, %v495
      %v1342 = vsel %vm1311, %v298, %v497
      %v1343 = vsel %vm1311, %v299, %v499
      %vm1344 = vcmask 64512
      %v1345 = vsel %vm1344, %v1312, %v614
      %v1346 = vsel %vm1344, %v1313, %v616
      %v1347 = vsel %vm1344, %v1314, %v618
      %v1348 = vsel %vm1344, %v1315, %v620
      %v1349 = vsel %vm1344, %v1316, %v622
      %v1350 = vsel %vm1344, %v1317, %v624
      %v1351 = vsel %vm1344, %v1318, %v626
      %v1352 = vsel %vm1344, %v1319, %v628
      %v1353 = vsel %vm1344, %v1320, %v630
      %v1354 = vsel %vm1344, %v1321, %v632
      %v1355 = vsel %vm1344, %v1322, %v634
      %v1356 = vsel %vm1344, %v1323, %v636
      %v1357 = vsel %vm1344, %v1324, %v638
      %v1358 = vsel %vm1344, %v1325, %v640
      %v1359 = vsel %vm1344, %v1326, %v642
      %v1360 = vsel %vm1344, %v1327, %v644
      %v1361 = vsel %vm1344, %v1328, %v646
      %v1362 = vsel %vm1344, %v1329, %v648
      %v1363 = vsel %vm1344, %v1330, %v650
      %v1364 = vsel %vm1344, %v1331, %v652
      %v1365 = vsel %vm1344, %v1332, %v654
      %v1366 = vsel %vm1344, %v1333, %v656
      %v1367 = vsel %vm1344, %v1334, %v658
      %v1368 = vsel %vm1344, %v1335, %v660
      %v1369 = vsel %vm1344, %v1336, %v662
      %v1370 = vsel %vm1344, %v1337, %v664
      %v1371 = vsel %vm1344, %v1338, %v666
      %v1372 = vsel %vm1344, %v1339, %v668
      %v1373 = vsel %vm1344, %v1340, %v670
      %v1374 = vsel %vm1344, %v1341, %v672
      %v1375 = vsel %vm1344, %v1342, %v674
      %v1376 = vsel %vm1344, %v1343, %v676
      %vm1377 = vcmask 97280
      %v1378 = vsel %vm1377, %v1345, %v712
      %v1379 = vsel %vm1377, %v1346, %v714
      %v1380 = vsel %vm1377, %v1347, %v716
      %v1381 = vsel %vm1377, %v1348, %v718
      %v1382 = vsel %vm1377, %v1349, %v720
      %v1383 = vsel %vm1377, %v1350, %v722
      %v1384 = vsel %vm1377, %v1351, %v724
      %v1385 = vsel %vm1377, %v1352, %v726
      %v1386 = vsel %vm1377, %v1353, %v728
      %v1387 = vsel %vm1377, %v1354, %v730
      %v1388 = vsel %vm1377, %v1355, %v732
      %v1389 = vsel %vm1377, %v1356, %v734
      %v1390 = vsel %vm1377, %v1357, %v736
      %v1391 = vsel %vm1377, %v1358, %v738
      %v1392 = vsel %vm1377, %v1359, %v740
      %v1393 = vsel %vm1377, %v1360, %v742
      %v1394 = vsel %vm1377, %v1361, %v744
      %v1395 = vsel %vm1377, %v1362, %v746
      %v1396 = vsel %vm1377, %v1363, %v748
      %v1397 = vsel %vm1377, %v1364, %v750
      %v1398 = vsel %vm1377, %v1365, %v752
      %v1399 = vsel %vm1377, %v1366, %v754
      %v1400 = vsel %vm1377, %v1367, %v756
      %v1401 = vsel %vm1377, %v1368, %v758
      %v1402 = vsel %vm1377, %v1369, %v760
      %v1403 = vsel %vm1377, %v1370, %v762
      %v1404 = vsel %vm1377, %v1371, %v764
      %v1405 = vsel %vm1377, %v1372, %v766
      %v1406 = vsel %vm1377, %v1373, %v768
      %v1407 = vsel %vm1377, %v1374, %v770
      %v1408 = vsel %vm1377, %v1375, %v772
      %v1409 = vsel %vm1377, %v1376, %v774
      %vm1410 = vcmask 130048
      %v1411 = vsel %vm1410, %v1378, %v814
      %v1412 = vsel %vm1410, %v1379, %v816
      %v1413 = vsel %vm1410, %v1380, %v818
      %v1414 = vsel %vm1410, %v1381, %v820
      %v1415 = vsel %vm1410, %v1382, %v822
      %v1416 = vsel %vm1410, %v1383, %v824
      %v1417 = vsel %vm1410, %v1384, %v826
      %v1418 = vsel %vm1410, %v1385, %v828
      %v1419 = vsel %vm1410, %v1386, %v830
      %v1420 = vsel %vm1410, %v1387, %v832
      %v1421 = vsel %vm1410, %v1388, %v834
      %v1422 = vsel %vm1410, %v1389, %v836
      %v1423 = vsel %vm1410, %v1390, %v838
      %v1424 = vsel %vm1410, %v1391, %v840
      %v1425 = vsel %vm1410, %v1392, %v842
      %v1426 = vsel %vm1410, %v1393, %v844
      %v1427 = vsel %vm1410, %v1394, %v846
      %v1428 = vsel %vm1410, %v1395, %v848
      %v1429 = vsel %vm1410, %v1396, %v850
      %v1430 = vsel %vm1410, %v1397, %v852
      %v1431 = vsel %vm1410, %v1398, %v854
      %v1432 = vsel %vm1410, %v1399, %v856
      %v1433 = vsel %vm1410, %v1400, %v858
      %v1434 = vsel %vm1410, %v1401, %v860
      %v1435 = vsel %vm1410, %v1402, %v862
      %v1436 = vsel %vm1410, %v1403, %v864
      %v1437 = vsel %vm1410, %v1404, %v866
      %v1438 = vsel %vm1410, %v1405, %v868
      %v1439 = vsel %vm1410, %v1406, %v870
      %v1440 = vsel %vm1410, %v1407, %v872
      %v1441 = vsel %vm1410, %v1408, %v874
      %v1442 = vsel %vm1410, %v1409, %v876
      %vm1443 = vcmask 162816
      %v1444 = vsel %vm1443, %v1411, %v915
      %v1445 = vsel %vm1443, %v1412, %v917
      %v1446 = vsel %vm1443, %v1413, %v919
      %v1447 = vsel %vm1443, %v1414, %v921
      %v1448 = vsel %vm1443, %v1415, %v923
      %v1449 = vsel %vm1443, %v1416, %v925
      %v1450 = vsel %vm1443, %v1417, %v927
      %v1451 = vsel %vm1443, %v1418, %v929
      %v1452 = vsel %vm1443, %v1419, %v931
      %v1453 = vsel %vm1443, %v1420, %v933
      %v1454 = vsel %vm1443, %v1421, %v935
      %v1455 = vsel %vm1443, %v1422, %v937
      %v1456 = vsel %vm1443, %v1423, %v939
      %v1457 = vsel %vm1443, %v1424, %v941
      %v1458 = vsel %vm1443, %v1425, %v943
      %v1459 = vsel %vm1443, %v1426, %v945
      %v1460 = vsel %vm1443, %v1427, %v947
      %v1461 = vsel %vm1443, %v1428, %v949
      %v1462 = vsel %vm1443, %v1429, %v951
      %v1463 = vsel %vm1443, %v1430, %v953
      %v1464 = vsel %vm1443, %v1431, %v955
      %v1465 = vsel %vm1443, %v1432, %v957
      %v1466 = vsel %vm1443, %v1433, %v959
      %v1467 = vsel %vm1443, %v1434, %v961
      %v1468 = vsel %vm1443, %v1435, %v963
      %v1469 = vsel %vm1443, %v1436, %v965
      %v1470 = vsel %vm1443, %v1437, %v967
      %v1471 = vsel %vm1443, %v1438, %v969
      %v1472 = vsel %vm1443, %v1439, %v971
      %v1473 = vsel %vm1443, %v1440, %v973
      %v1474 = vsel %vm1443, %v1441, %v975
      %v1475 = vsel %vm1443, %v1442, %v977
      %vm1476 = vcmask 195584
      %v1477 = vsel %vm1476, %v1444, %v1013
      %v1478 = vsel %vm1476, %v1445, %v1015
      %v1479 = vsel %vm1476, %v1446, %v1017
      %v1480 = vsel %vm1476, %v1447, %v1019
      %v1481 = vsel %vm1476, %v1448, %v1021
      %v1482 = vsel %vm1476, %v1449, %v1023
      %v1483 = vsel %vm1476, %v1450, %v1025
      %v1484 = vsel %vm1476, %v1451, %v1027
      %v1485 = vsel %vm1476, %v1452, %v1029
      %v1486 = vsel %vm1476, %v1453, %v1031
      %v1487 = vsel %vm1476, %v1454, %v1033
      %v1488 = vsel %vm1476, %v1455, %v1035
      %v1489 = vsel %vm1476, %v1456, %v1037
      %v1490 = vsel %vm1476, %v1457, %v1039
      %v1491 = vsel %vm1476, %v1458, %v1041
      %v1492 = vsel %vm1476, %v1459, %v1043
      %v1493 = vsel %vm1476, %v1460, %v1045
      %v1494 = vsel %vm1476, %v1461, %v1047
      %v1495 = vsel %vm1476, %v1462, %v1049
      %v1496 = vsel %vm1476, %v1463, %v1051
      %v1497 = vsel %vm1476, %v1464, %v1053
      %v1498 = vsel %vm1476, %v1465, %v1055
      %v1499 = vsel %vm1476, %v1466, %v1057
      %v1500 = vsel %vm1476, %v1467, %v1059
      %v1501 = vsel %vm1476, %v1468, %v1061
      %v1502 = vsel %vm1476, %v1469, %v1063
      %v1503 = vsel %vm1476, %v1470, %v1065
      %v1504 = vsel %vm1476, %v1471, %v1067
      %v1505 = vsel %vm1476, %v1472, %v1069
      %v1506 = vsel %vm1476, %v1473, %v1071
      %v1507 = vsel %vm1476, %v1474, %v1073
      %v1508 = vsel %vm1476, %v1475, %v1075
      %vm1509 = vcmask 228352
      %v1510 = vsel %vm1509, %v1477, %v1115
      %v1511 = vsel %vm1509, %v1478, %v1117
      %v1512 = vsel %vm1509, %v1479, %v1119
      %v1513 = vsel %vm1509, %v1480, %v1121
      %v1514 = vsel %vm1509, %v1481, %v1123
      %v1515 = vsel %vm1509, %v1482, %v1125
      %v1516 = vsel %vm1509, %v1483, %v1127
      %v1517 = vsel %vm1509, %v1484, %v1129
      %v1518 = vsel %vm1509, %v1485, %v1131
      %v1519 = vsel %vm1509, %v1486, %v1133
      %v1520 = vsel %vm1509, %v1487, %v1135
      %v1521 = vsel %vm1509, %v1488, %v1137
      %v1522 = vsel %vm1509, %v1489, %v1139
      %v1523 = vsel %vm1509, %v1490, %v1141
      %v1524 = vsel %vm1509, %v1491, %v1143
      %v1525 = vsel %vm1509, %v1492, %v1145
      %v1526 = vsel %vm1509, %v1493, %v1147
      %v1527 = vsel %vm1509, %v1494, %v1149
      %v1528 = vsel %vm1509, %v1495, %v1151
      %v1529 = vsel %vm1509, %v1496, %v1153
      %v1530 = vsel %vm1509, %v1497, %v1155
      %v1531 = vsel %vm1509, %v1498, %v1157
      %v1532 = vsel %vm1509, %v1499, %v1159
      %v1533 = vsel %vm1509, %v1500, %v1161
      %v1534 = vsel %vm1509, %v1501, %v1163
      %v1535 = vsel %vm1509, %v1502, %v1165
      %v1536 = vsel %vm1509, %v1503, %v1167
      %v1537 = vsel %vm1509, %v1504, %v1169
      %v1538 = vsel %vm1509, %v1505, %v1171
      %v1539 = vsel %vm1509, %v1506, %v1173
      %v1540 = vsel %vm1509, %v1507, %v1175
      %v1541 = vsel %vm1509, %v1508, %v1177
      %vm1542 = vcmask 261120
      %v1543 = vsel %vm1542, %v1510, %v1216
      %v1544 = vsel %vm1542, %v1511, %v1218
      %v1545 = vsel %vm1542, %v1512, %v1220
      %v1546 = vsel %vm1542, %v1513, %v1222
      %v1547 = vsel %vm1542, %v1514, %v1224
      %v1548 = vsel %vm1542, %v1515, %v1226
      %v1549 = vsel %vm1542, %v1516, %v1228
      %v1550 = vsel %vm1542, %v1517, %v1230
      %v1551 = vsel %vm1542, %v1518, %v1232
      %v1552 = vsel %vm1542, %v1519, %v1234
      %v1553 = vsel %vm1542, %v1520, %v1236
      %v1554 = vsel %vm1542, %v1521, %v1238
      %v1555 = vsel %vm1542, %v1522, %v1240
      %v1556 = vsel %vm1542, %v1523, %v1242
      %v1557 = vsel %vm1542, %v1524, %v1244
      %v1558 = vsel %vm1542, %v1525, %v1246
      %v1559 = vsel %vm1542, %v1526, %v1248
      %v1560 = vsel %vm1542, %v1527, %v1250
      %v1561 = vsel %vm1542, %v1528, %v1252
      %v1562 = vsel %vm1542, %v1529, %v1254
      %v1563 = vsel %vm1542, %v1530, %v1256
      %v1564 = vsel %vm1542, %v1531, %v1258
      %v1565 = vsel %vm1542, %v1532, %v1260
      %v1566 = vsel %vm1542, %v1533, %v1262
      %v1567 = vsel %vm1542, %v1534, %v1264
      %v1568 = vsel %vm1542, %v1535, %v1266
      %v1569 = vsel %vm1542, %v1536, %v1268
      %v1570 = vsel %vm1542, %v1537, %v1270
      %v1571 = vsel %vm1542, %v1538, %v1272
      %v1572 = vsel %vm1542, %v1539, %v1274
      %v1573 = vsel %vm1542, %v1540, %v1276
      %v1574 = vsel %vm1542, %v1541, %v1278
      %v1575 = vpack.c.bf16 %v1544, %v1543
      %v1576 = vpack.c.bf16 %v1546, %v1545
      %v1577 = vpack.c.bf16 %v1548, %v1547
      %v1578 = vpack.c.bf16 %v1550, %v1549
      %v1579 = vpack.c.bf16 %v1552, %v1551
      %v1580 = vpack.c.bf16 %v1554, %v1553
      %v1581 = vpack.c.bf16 %v1556, %v1555
      %v1582 = vpack.c.bf16 %v1558, %v1557
      %v1583 = vpack.c.bf16 %v1560, %v1559
      %v1584 = vpack.c.bf16 %v1562, %v1561
      %v1585 = vpack.c.bf16 %v1564, %v1563
      %v1586 = vpack.c.bf16 %v1566, %v1565
      %v1587 = vpack.c.bf16 %v1568, %v1567
      %v1588 = vpack.c.bf16 %v1570, %v1569
      %v1589 = vpack.c.bf16 %v1572, %v1571
      %v1590 = vpack.c.bf16 %v1574, %v1573
      %v1591 = vld [vmem:[%s1] sm:$0xf]
      %v1592 = vld [vmem:[%s1 + $0x4] sm:$0xf]
      %v1593 = vld [vmem:[%s1 + $0x8] sm:$0xf]
      %v1594 = vld [vmem:[%s1 + $0xc] sm:$0xf]
      %v1595 = vld [vmem:[%s1 + $0x10] sm:$0x3]
      %v1601 = vunpack.c.l.b16 %v1591
      %v1602 = vunpack.c.l.b16 %v1592
      %v1603 = vunpack.c.l.b16 %v1593
      %v1604 = vunpack.c.l.b16 %v1594
      %v1605 = vunpack.c.l.b16 %v1595
      %v1606 = vpack.c.b16 %v1602, %v1601
      %v1607 = vpack.c.b16 %v1604, %v1603
      %v1608 = vpack.c.b16 %v1605, %v1605
      %vm1611 = vcmask 293888
      %v1613 = vsel %vm1611, %v1575, 0
      %v1616 = vsel %vm1611, %v1576, 0
      %v1619 = vsel %vm1611, %v1577, 0
      %v1622 = vsel %vm1611, %v1578, 0
      %v1625 = vsel %vm1611, %v1579, 0
      %v1628 = vsel %vm1611, %v1580, 0
      %v1631 = vsel %vm1611, %v1581, 0
      %v1634 = vsel %vm1611, %v1582, 0
      %v1637 = vsel %vm1611, %v1583, 0
      %v1640 = vsel %vm1611, %v1584, 0
      %v1643 = vsel %vm1611, %v1585, 0
      %v1646 = vsel %vm1611, %v1586, 0
      %v1649 = vsel %vm1611, %v1587, 0
      %v1652 = vsel %vm1611, %v1588, 0
      %v1655 = vsel %vm1611, %v1589, 0
      %v1658 = vsel %vm1611, %v1590, 0
      %vm1660 = vcmask 1041408
      %v1662 = vsel %vm1660, %v1608, 0
      %1664 = vmatprep.subr.bf16.mxu0 0
      %1665 = vmatpush1.bf16.msra.mxu0 %v1606
      %1666 = vmatprep.subr.bf16.mxu0 0
      %1667 = vmatpush1.bf16.msra.mxu0 %v1607
      %1668 = vmatprep.subr.bf16.mxu0 0
      %1669 = vmatpush1.bf16.msra.mxu0 %v1662
      %1670 = vmatprep.subr.bf16.mxu0 0
      %1671 = vmatpush1.bf16.msra.mxu0 0
      %1672 = vmatprep.subr.bf16.mxu0 0
      %1673 = vmatpush1.bf16.msra.mxu0 0
      %1674 = vmatprep.subr.bf16.mxu0 0
      %1675 = vmatpush1.bf16.msra.mxu0 0
      %1676 = vmatprep.subr.bf16.mxu0 0
      %1677 = vmatpush1.bf16.msra.mxu0 0
      %1678 = vmatprep.subr.bf16.mxu0 0
      %1679 = vmatpush1.bf16.msra.mxu0 0
      %1680 = vmatprep.subr.bf16.mxu0 0
      %1681 = vmatpush1.bf16.msra.mxu0 0
      %1682 = vmatprep.subr.bf16.mxu0 0
      %1683 = vmatpush1.bf16.msra.mxu0 0
      %1684 = vmatprep.subr.bf16.mxu0 0
      %1685 = vmatpush1.bf16.msra.mxu0 0
      %1686 = vmatprep.subr.bf16.mxu0 0
      %1687 = vmatpush1.bf16.msra.mxu0 0
      %1688 = vmatprep.subr.bf16.mxu0 0
      %1689 = vmatpush1.bf16.msra.mxu0 0
      %1690 = vmatprep.subr.bf16.mxu0 0
      %1691 = vmatpush1.bf16.msra.mxu0 0
      %1692 = vmatprep.subr.bf16.mxu0 0
      %1693 = vmatpush1.bf16.msra.mxu0 0
      %1694 = vmatprep.subr.bf16.mxu0 0
      %1695 = vmatpush1.bf16.msra.mxu0 0
      %1696 = vmatprep.mubr.bf16.mxu0 0
      %1697 = vmatmul.mubr.bf16.gmra.mrb[0].mxu0 %v1613
      %v1698 = vpop.f32.mrb[0].mxu0
      %v1699 = vadd.f32 0.0, %v1698
      %v1700 = vpop.f32.mrb[0].mxu0
      %v1701 = vpop.f32.mrb[0].mxu0
      %v1702 = vadd.f32 0.0, %v1701
      %v1703 = vpop.f32.mrb[0].mxu0
      %1704 = vmatprep.mubr.bf16.mxu0 0
      %1705 = vmatmul.mubr.bf16.gmra.mrb[0].mxu0 %v1616
      %v1706 = vpop.f32.mrb[0].mxu0
      %v1707 = vadd.f32 0.0, %v1706
      %v1708 = vpop.f32.mrb[0].mxu0
      %v1709 = vpop.f32.mrb[0].mxu0
      %v1710 = vadd.f32 0.0, %v1709
      %v1711 = vpop.f32.mrb[0].mxu0
      %1712 = vmatprep.mubr.bf16.mxu0 0
      %1713 = vmatmul.mubr.bf16.gmra.mrb[0].mxu0 %v1619
      %v1714 = vpop.f32.mrb[0].mxu0
      %v1715 = vadd.f32 0.0, %v1714
      %v1716 = vpop.f32.mrb[0].mxu0
      %v1717 = vpop.f32.mrb[0].mxu0
      %v1718 = vadd.f32 0.0, %v1717
      %v1719 = vpop.f32.mrb[0].mxu0
      %1720 = vmatprep.mubr.bf16.mxu0 0
      %1721 = vmatmul.mubr.bf16.gmra.mrb[0].mxu0 %v1622
      %v1722 = vpop.f32.mrb[0].mxu0
      %v1723 = vadd.f32 0.0, %v1722
      %v1724 = vpop.f32.mrb[0].mxu0
      %v1725 = vpop.f32.mrb[0].mxu0
      %v1726 = vadd.f32 0.0, %v1725
      %v1727 = vpop.f32.mrb[0].mxu0
      %1728 = vmatprep.mubr.bf16.mxu0 0
      %1729 = vmatmul.mubr.bf16.gmra.mrb[0].mxu0 %v1625
      %v1730 = vpop.f32.mrb[0].mxu0
      %v1731 = vadd.f32 0.0, %v1730
      %v1732 = vpop.f32.mrb[0].mxu0
      %v1733 = vpop.f32.mrb[0].mxu0
      %v1734 = vadd.f32 0.0, %v1733
      %v1735 = vpop.f32.mrb[0].mxu0
      %1736 = vmatprep.mubr.bf16.mxu0 0
      %1737 = vmatmul.mubr.bf16.gmra.mrb[0].mxu0 %v1628
      %v1738 = vpop.f32.mrb[0].mxu0
      %v1739 = vadd.f32 0.0, %v1738
      %v1740 = vpop.f32.mrb[0].mxu0
      %v1741 = vpop.f32.mrb[0].mxu0
      %v1742 = vadd.f32 0.0, %v1741
      %v1743 = vpop.f32.mrb[0].mxu0
      %1744 = vmatprep.mubr.bf16.mxu0 0
      %1745 = vmatmul.mubr.bf16.gmra.mrb[0].mxu0 %v1631
      %v1746 = vpop.f32.mrb[0].mxu0
      %v1747 = vadd.f32 0.0, %v1746
      %v1748 = vpop.f32.mrb[0].mxu0
      %v1749 = vpop.f32.mrb[0].mxu0
      %v1750 = vadd.f32 0.0, %v1749
      %v1751 = vpop.f32.mrb[0].mxu0
      %1752 = vmatprep.mubr.bf16.mxu0 0
      %1753 = vmatmul.mubr.bf16.gmra.mrb[0].mxu0 %v1634
      %v1754 = vpop.f32.mrb[0].mxu0
      %v1755 = vadd.f32 0.0, %v1754
      %v1756 = vpop.f32.mrb[0].mxu0
      %v1757 = vpop.f32.mrb[0].mxu0
      %v1758 = vadd.f32 0.0, %v1757
      %v1759 = vpop.f32.mrb[0].mxu0
      %1760 = vmatprep.mubr.bf16.mxu0 0
      %1761 = vmatmul.mubr.bf16.gmra.mrb[0].mxu0 %v1637
      %v1762 = vpop.f32.mrb[0].mxu0
      %v1763 = vadd.f32 0.0, %v1762
      %v1764 = vpop.f32.mrb[0].mxu0
      %v1765 = vpop.f32.mrb[0].mxu0
      %v1766 = vadd.f32 0.0, %v1765
      %v1767 = vpop.f32.mrb[0].mxu0
      %1768 = vmatprep.mubr.bf16.mxu0 0
      %1769 = vmatmul.mubr.bf16.gmra.mrb[0].mxu0 %v1640
      %v1770 = vpop.f32.mrb[0].mxu0
      %v1771 = vadd.f32 0.0, %v1770
      %v1772 = vpop.f32.mrb[0].mxu0
      %v1773 = vpop.f32.mrb[0].mxu0
      %v1774 = vadd.f32 0.0, %v1773
      %v1775 = vpop.f32.mrb[0].mxu0
      %1776 = vmatprep.mubr.bf16.mxu0 0
      %1777 = vmatmul.mubr.bf16.gmra.mrb[0].mxu0 %v1643
      %v1778 = vpop.f32.mrb[0].mxu0
      %v1779 = vadd.f32 0.0, %v1778
      %v1780 = vpop.f32.mrb[0].mxu0
      %v1781 = vpop.f32.mrb[0].mxu0
      %v1782 = vadd.f32 0.0, %v1781
      %v1783 = vpop.f32.mrb[0].mxu0
      %1784 = vmatprep.mubr.bf16.mxu0 0
      %1785 = vmatmul.mubr.bf16.gmra.mrb[0].mxu0 %v1646
      %v1786 = vpop.f32.mrb[0].mxu0
      %v1787 = vadd.f32 0.0, %v1786
      %v1788 = vpop.f32.mrb[0].mxu0
      %v1789 = vpop.f32.mrb[0].mxu0
      %v1790 = vadd.f32 0.0, %v1789
      %v1791 = vpop.f32.mrb[0].mxu0
      %1792 = vmatprep.mubr.bf16.mxu0 0
      %1793 = vmatmul.mubr.bf16.gmra.mrb[0].mxu0 %v1649
      %v1794 = vpop.f32.mrb[0].mxu0
      %v1795 = vadd.f32 0.0, %v1794
      %v1796 = vpop.f32.mrb[0].mxu0
      %v1797 = vpop.f32.mrb[0].mxu0
      %v1798 = vadd.f32 0.0, %v1797
      %v1799 = vpop.f32.mrb[0].mxu0
      %1800 = vmatprep.mubr.bf16.mxu0 0
      %1801 = vmatmul.mubr.bf16.gmra.mrb[0].mxu0 %v1652
      %v1802 = vpop.f32.mrb[0].mxu0
      %v1803 = vadd.f32 0.0, %v1802
      %v1804 = vpop.f32.mrb[0].mxu0
      %v1805 = vpop.f32.mrb[0].mxu0
      %v1806 = vadd.f32 0.0, %v1805
      %v1807 = vpop.f32.mrb[0].mxu0
      %1808 = vmatprep.mubr.bf16.mxu0 0
      %1809 = vmatmul.mubr.bf16.gmra.mrb[0].mxu0 %v1655
      %v1810 = vpop.f32.mrb[0].mxu0
      %v1811 = vadd.f32 0.0, %v1810
      %v1812 = vpop.f32.mrb[0].mxu0
      %v1813 = vpop.f32.mrb[0].mxu0
      %v1814 = vadd.f32 0.0, %v1813
      %v1815 = vpop.f32.mrb[0].mxu0
      %1816 = vmatprep.mubr.bf16.mxu0 0
      %1817 = vmatmul.mubr.bf16.gmra.mrb[0].mxu0 %v1658
      %v1818 = vpop.f32.mrb[0].mxu0
      %v1819 = vadd.f32 0.0, %v1818
      %v1820 = vpop.f32.mrb[0].mxu0
      %v1821 = vpop.f32.mrb[0].mxu0
      %v1822 = vadd.f32 0.0, %v1821
      %v1823 = vpop.f32.mrb[0].mxu0
      %1824 = vdwg.mxu0
      %v1825 = vld [vmem:[%s2] sm:$0x1]
      %v1827 = vlaneseq
      %v1828 = vshrl.u32 %v1827, 7
      %v1829 = vsub.s32 0, %v1828
      %v1830 = vrot.slane %v1825, %v1829
      %v1832 = vmul.f32 %v1699, %v1830
      %v1833 = vmul.f32 %v1702, %v1830
      %v1834 = vmul.f32 %v1707, %v1830
      %v1835 = vmul.f32 %v1710, %v1830
      %v1836 = vmul.f32 %v1715, %v1830
      %v1837 = vmul.f32 %v1718, %v1830
      %v1838 = vmul.f32 %v1723, %v1830
      %v1839 = vmul.f32 %v1726, %v1830
      %v1840 = vmul.f32 %v1731, %v1830
      %v1841 = vmul.f32 %v1734, %v1830
      %v1842 = vmul.f32 %v1739, %v1830
      %v1843 = vmul.f32 %v1742, %v1830
      %v1844 = vmul.f32 %v1747, %v1830
      %v1845 = vmul.f32 %v1750, %v1830
      %v1846 = vmul.f32 %v1755, %v1830
      %v1847 = vmul.f32 %v1758, %v1830
      %v1848 = vmul.f32 %v1763, %v1830
      %v1849 = vmul.f32 %v1766, %v1830
      %v1850 = vmul.f32 %v1771, %v1830
      %v1851 = vmul.f32 %v1774, %v1830
      %v1852 = vmul.f32 %v1779, %v1830
      %v1853 = vmul.f32 %v1782, %v1830
      %v1854 = vmul.f32 %v1787, %v1830
      %v1855 = vmul.f32 %v1790, %v1830
      %v1856 = vmul.f32 %v1795, %v1830
      %v1857 = vmul.f32 %v1798, %v1830
      %v1858 = vmul.f32 %v1803, %v1830
      %v1859 = vmul.f32 %v1806, %v1830
      %v1860 = vmul.f32 %v1811, %v1830
      %v1861 = vmul.f32 %v1814, %v1830
      %v1862 = vmul.f32 %v1819, %v1830
      %v1863 = vmul.f32 %v1822, %v1830
      %v1864 = vld [vmem:[%s3] sm:$0x1]
      %v1866 = vlaneseq
      %v1867 = vshrl.u32 %v1866, 7
      %v1868 = vsub.s32 0, %v1867
      %v1869 = vrot.slane %v1864, %v1868
      %v1871 = vadd.f32 %v1832, %v1869
      %v1872 = vadd.f32 %v1833, %v1869
      %v1873 = vadd.f32 %v1834, %v1869
      %v1874 = vadd.f32 %v1835, %v1869
      %v1875 = vadd.f32 %v1836, %v1869
      %v1876 = vadd.f32 %v1837, %v1869
      %v1877 = vadd.f32 %v1838, %v1869
      %v1878 = vadd.f32 %v1839, %v1869
      %v1879 = vadd.f32 %v1840, %v1869
      %v1880 = vadd.f32 %v1841, %v1869
      %v1881 = vadd.f32 %v1842, %v1869
      %v1882 = vadd.f32 %v1843, %v1869
      %v1883 = vadd.f32 %v1844, %v1869
      %v1884 = vadd.f32 %v1845, %v1869
      %v1885 = vadd.f32 %v1846, %v1869
      %v1886 = vadd.f32 %v1847, %v1869
      %v1887 = vadd.f32 %v1848, %v1869
      %v1888 = vadd.f32 %v1849, %v1869
      %v1889 = vadd.f32 %v1850, %v1869
      %v1890 = vadd.f32 %v1851, %v1869
      %v1891 = vadd.f32 %v1852, %v1869
      %v1892 = vadd.f32 %v1853, %v1869
      %v1893 = vadd.f32 %v1854, %v1869
      %v1894 = vadd.f32 %v1855, %v1869
      %v1895 = vadd.f32 %v1856, %v1869
      %v1896 = vadd.f32 %v1857, %v1869
      %v1897 = vadd.f32 %v1858, %v1869
      %v1898 = vadd.f32 %v1859, %v1869
      %v1899 = vadd.f32 %v1860, %v1869
      %v1900 = vadd.f32 %v1861, %v1869
      %v1901 = vadd.f32 %v1862, %v1869
      %v1902 = vadd.f32 %v1863, %v1869
      %v1903 = vmax.f32 %v1871, 0.0
      %v1904 = vmax.f32 %v1872, 0.0
      %v1905 = vmax.f32 %v1873, 0.0
      %v1906 = vmax.f32 %v1874, 0.0
      %v1907 = vmax.f32 %v1875, 0.0
      %v1908 = vmax.f32 %v1876, 0.0
      %v1909 = vmax.f32 %v1877, 0.0
      %v1910 = vmax.f32 %v1878, 0.0
      %v1911 = vmax.f32 %v1879, 0.0
      %v1912 = vmax.f32 %v1880, 0.0
      %v1913 = vmax.f32 %v1881, 0.0
      %v1914 = vmax.f32 %v1882, 0.0
      %v1915 = vmax.f32 %v1883, 0.0
      %v1916 = vmax.f32 %v1884, 0.0
      %v1917 = vmax.f32 %v1885, 0.0
      %v1918 = vmax.f32 %v1886, 0.0
      %v1919 = vmax.f32 %v1887, 0.0
      %v1920 = vmax.f32 %v1888, 0.0
      %v1921 = vmax.f32 %v1889, 0.0
      %v1922 = vmax.f32 %v1890, 0.0
      %v1923 = vmax.f32 %v1891, 0.0
      %v1924 = vmax.f32 %v1892, 0.0
      %v1925 = vmax.f32 %v1893, 0.0
      %v1926 = vmax.f32 %v1894, 0.0
      %v1927 = vmax.f32 %v1895, 0.0
      %v1928 = vmax.f32 %v1896, 0.0
      %v1929 = vmax.f32 %v1897, 0.0
      %v1930 = vmax.f32 %v1898, 0.0
      %v1931 = vmax.f32 %v1899, 0.0
      %v1932 = vmax.f32 %v1900, 0.0
      %v1933 = vmax.f32 %v1901, 0.0
      %v1934 = vmax.f32 %v1902, 0.0
      %v1935 = vpack.c.bf16 %v1904, %v1903
      %v1936 = vpack.c.bf16 %v1906, %v1905
      %v1937 = vpack.c.bf16 %v1908, %v1907
      %v1938 = vpack.c.bf16 %v1910, %v1909
      %v1939 = vpack.c.bf16 %v1912, %v1911
      %v1940 = vpack.c.bf16 %v1914, %v1913
      %v1941 = vpack.c.bf16 %v1916, %v1915
      %v1942 = vpack.c.bf16 %v1918, %v1917
      %v1943 = vpack.c.bf16 %v1920, %v1919
      %v1944 = vpack.c.bf16 %v1922, %v1921
      %v1945 = vpack.c.bf16 %v1924, %v1923
      %v1946 = vpack.c.bf16 %v1926, %v1925
      %v1947 = vpack.c.bf16 %v1928, %v1927
      %v1948 = vpack.c.bf16 %v1930, %v1929
      %v1949 = vpack.c.bf16 %v1932, %v1931
      %v1950 = vpack.c.bf16 %v1934, %v1933
      %v1967 = vunpack.c.l.b16 %v1935
      %v1968 = vunpack.c.h.b16 %v1935
      %v1969 = vunpack.c.l.b16 %v1936
      %v1970 = vunpack.c.h.b16 %v1936
      %v1971 = vunpack.c.l.b16 %v1937
      %v1972 = vunpack.c.h.b16 %v1937
      %v1973 = vunpack.c.l.b16 %v1938
      %v1974 = vunpack.c.h.b16 %v1938
      %v1975 = vunpack.c.l.b16 %v1939
      %v1976 = vunpack.c.h.b16 %v1939
      %v1977 = vunpack.c.l.b16 %v1940
      %v1978 = vunpack.c.h.b16 %v1940
      %v1979 = vunpack.c.l.b16 %v1941
      %v1980 = vunpack.c.h.b16 %v1941
      %v1981 = vunpack.c.l.b16 %v1942
      %v1982 = vunpack.c.h.b16 %v1942
      %v1983 = vunpack.c.l.b16 %v1943
      %v1984 = vunpack.c.h.b16 %v1943
      %v1985 = vunpack.c.l.b16 %v1944
      %v1986 = vunpack.c.h.b16 %v1944
      %v1987 = vunpack.c.l.b16 %v1945
      %v1988 = vunpack.c.h.b16 %v1945
      %v1989 = vunpack.c.l.b16 %v1946
      %v1990 = vunpack.c.h.b16 %v1946
      %v1991 = vunpack.c.l.b16 %v1947
      %v1992 = vunpack.c.h.b16 %v1947
      %v1993 = vunpack.c.l.b16 %v1948
      %v1994 = vunpack.c.h.b16 %v1948
      %v1995 = vunpack.c.l.b16 %v1949
      %v1996 = vunpack.c.h.b16 %v1949
      %v1997 = vunpack.c.l.b16 %v1950
      %v1998 = vunpack.c.h.b16 %v1950
      %v1999 = vpack.c.b16 %v1967, %v1967
      %v2000 = vpack.c.b16 %v1968, %v1968
      %v2001 = vpack.c.b16 %v1969, %v1969
      %v2002 = vpack.c.b16 %v1970, %v1970
      %v2003 = vpack.c.b16 %v1971, %v1971
      %v2004 = vpack.c.b16 %v1972, %v1972
      %v2005 = vpack.c.b16 %v1973, %v1973
      %v2006 = vpack.c.b16 %v1974, %v1974
      %v2007 = vpack.c.b16 %v1975, %v1975
      %v2008 = vpack.c.b16 %v1976, %v1976
      %v2009 = vpack.c.b16 %v1977, %v1977
      %v2010 = vpack.c.b16 %v1978, %v1978
      %v2011 = vpack.c.b16 %v1979, %v1979
      %v2012 = vpack.c.b16 %v1980, %v1980
      %v2013 = vpack.c.b16 %v1981, %v1981
      %v2014 = vpack.c.b16 %v1982, %v1982
      %v2015 = vpack.c.b16 %v1983, %v1983
      %v2016 = vpack.c.b16 %v1984, %v1984
      %v2017 = vpack.c.b16 %v1985, %v1985
      %v2018 = vpack.c.b16 %v1986, %v1986
      %v2019 = vpack.c.b16 %v1987, %v1987
      %v2020 = vpack.c.b16 %v1988, %v1988
      %v2021 = vpack.c.b16 %v1989, %v1989
      %v2022 = vpack.c.b16 %v1990, %v1990
      %v2023 = vpack.c.b16 %v1991, %v1991
      %v2024 = vpack.c.b16 %v1992, %v1992
      %v2025 = vpack.c.b16 %v1993, %v1993
      %v2026 = vpack.c.b16 %v1994, %v1994
      %v2027 = vpack.c.b16 %v1995, %v1995
      %v2028 = vpack.c.b16 %v1996, %v1996
      %v2029 = vpack.c.b16 %v1997, %v1997
      %v2030 = vpack.c.b16 %v1998, %v1998
      %2063 = vst [vmem:[%s197] sm:$0xf] %v1999
      %2064 = vst [vmem:[%s197 + $0x4] sm:$0xf] %v2000
      %2065 = vst [vmem:[%s197 + $0x8] sm:$0xf] %v2001
      %2066 = vst [vmem:[%s197 + $0xc] sm:$0xf] %v2002
      %2067 = vst [vmem:[%s197 + $0x10] sm:$0xf] %v2003
      %2068 = vst [vmem:[%s197 + $0x14] sm:$0xf] %v2004
      %2069 = vst [vmem:[%s197 + $0x18] sm:$0xf] %v2005
      %2070 = vst [vmem:[%s197 + $0x1c] sm:$0xf] %v2006
      %2071 = vst [vmem:[%s197 + $0x20] sm:$0xf] %v2007
      %2072 = vst [vmem:[%s197 + $0x24] sm:$0xf] %v2008
      %2073 = vst [vmem:[%s197 + $0x28] sm:$0xf] %v2009
      %2074 = vst [vmem:[%s197 + $0x2c] sm:$0xf] %v2010
      %2075 = vst [vmem:[%s197 + $0x30] sm:$0xf] %v2011
      %2076 = vst [vmem:[%s197 + $0x34] sm:$0xf] %v2012
      %2077 = vst [vmem:[%s197 + $0x38] sm:$0xf] %v2013
      %2078 = vst [vmem:[%s197 + $0x3c] sm:$0xf] %v2014
      %2079 = vst [vmem:[%s197 + $0x40] sm:$0xf] %v2015
      %2080 = vst [vmem:[%s197 + $0x44] sm:$0xf] %v2016
      %2081 = vst [vmem:[%s197 + $0x48] sm:$0xf] %v2017
      %2082 = vst [vmem:[%s197 + $0x4c] sm:$0xf] %v2018
      %2083 = vst [vmem:[%s197 + $0x50] sm:$0xf] %v2019
      %2084 = vst [vmem:[%s197 + $0x54] sm:$0xf] %v2020
      %2085 = vst [vmem:[%s197 + $0x58] sm:$0xf] %v2021
      %2086 = vst [vmem:[%s197 + $0x5c] sm:$0xf] %v2022
      %2087 = vst [vmem:[%s197 + $0x60] sm:$0xf] %v2023
      %2088 = vst [vmem:[%s197 + $0x64] sm:$0xf] %v2024
      %2089 = vst [vmem:[%s197 + $0x68] sm:$0xf] %v2025
      %2090 = vst [vmem:[%s197 + $0x6c] sm:$0xf] %v2026
      %2091 = vst [vmem:[%s197 + $0x70] sm:$0xf] %v2027
      %2092 = vst [vmem:[%s197 + $0x74] sm:$0xf] %v2028
      %2093 = vst [vmem:[%s197 + $0x78] sm:$0xf] %v2029
      %2094 = vst [vmem:[%s197 + $0x7c] sm:$0xf] %v2030
      %p2095 = scmp.lt.s32.totalorder %s15, 1
      %s2096 = scalar_select %p2095, %s15, 1
      %s2097 = smul.addr %s2096, 32
      %s2098 = smul.addr %s2097, 4
      %s2099 = scalar_lea.vmem %s4, %s2098
      // Predicated region
      $region37: #{_lambda_.3} parent=35 // pred_check
        %p2100 = pneg %p122
      $region38: #{_lambda_.3} parent=35 // pred_check_branch
        %2102 = sbr.rel (%p2100) target = $region40
      $region39: #{_lambda_.3} parent=35 // pred_region
        _
      $region40: #{_lambda_.3} parent=35 // pred_fallthru
        _
    $region36: #{_lambda_.3} parent=5 // pred_fallthru
      _
    %p2103 = scmp.le.s32.totalorder 2, %s10
    // Predicated region
    $region41: #{_lambda_.3} parent=5 // pred_check
      %p2104 = pneg %p2103
    $region42: #{_lambda_.3} parent=5 // pred_check_branch
      %2106 = sbr.rel (%p2104) target = $region44
    $region43: #{_lambda_.3} parent=5 // pred_region
      %s2107 = ssub.s32 %s10, 2
      // Predicated region
      $region45: #{_lambda_.3} parent=43 // pred_check
        %p2108 = pneg %p128
      $region46: #{_lambda_.3} parent=43 // pred_check_branch
        %2110 = sbr.rel (%p2108) target = $region48
      $region47: #{_lambda_.3} parent=43 // pred_region
        %p2111 = scmp.lt.s32.totalorder %s16, 1
        %s2112 = scalar_select %p2111, %s16, 1
        %s2113 = smul.addr %s2112, 32
        %s2114 = smul.addr %s2113, 4
        %s2115 = scalar_lea.vmem %s4, %s2114
      $region48: #{_lambda_.3} parent=43 // pred_fallthru
        _
    $region44: #{_lambda_.3} parent=5 // pred_fallthru
      _
  $region6: #{_lambda_.3} parent=0 // loop_footer
    %s14 = sadd.s32 1, %s10
  $region7: #{_lambda_.3} parent=0 // loop_footer_branch
    %9 = sbr.rel target = $region3
  $region8: #{_lambda_.3} parent=0 // loop_exit
    _

// kernel: _lambda_.4
$region0: #{_lambda_.4}
  #allocation0 [shape = 'u32[]', space=smem, size = 0x4, offset = 0x4, fixed_abs, tag = 'smem constant byte address 0x4 - core index']
  #allocation1 [shape = 'u32[144,128]{1,0:T(1,128)}', space=vmem, size = 0x12000, scoped, tag = 'internal scratch']
  %s0 = inlined_call_operand.vmem [shape: bf16[2,18,18,128], index: 0, kind: input, shape index: {}]
  %s1 = inlined_call_operand.vmem [shape: bf16[1152,128], index: 1, kind: input, shape index: {}]
  %s2 = inlined_call_operand.vmem [shape: f32[1,128], index: 2, kind: input, shape index: {}]
  %s3 = inlined_call_operand.vmem [shape: f32[1,128], index: 3, kind: input, shape index: {}]
  %s4 = inlined_call_operand.vmem [shape: bf16[2,256,128], index: 4, kind: output, shape index: {0}]
  %s5 = inlined_call_operand.vmem [shape: f32[2,1,128], index: 5, kind: output, shape index: {1}]
  %6 = xla_tuple %s4, %s5
  %s7 = sld [smem:[#allocation0]]
  $region57: #{_lambda_.4} parent=0
    _
  %s9 = ssub.s32 1, %s7
  %s10 = scalar_select 0, %s9, %s7
  loop: start=0, step=1, limit=4
  $region2: #{_lambda_.4} parent=0 // loop_pre_header
    _
  $region3: #{_lambda_.4} parent=0 // loop_header
    %s12 = sphi 0, %s16
    %p13 = scmp.ge.s32.totalorder %s12, 4
    %s22 = sphi 0, %s24
    %s25 = sphi 0, %s22
    %s26 = sphi 0, %s25
    %s42 = sphi 0, %s26
    %s46 = sphi 0, %s46
    %s48 = sphi 0, %s46
    %s49 = sphi 0, %s48
    %s63 = sphi 0, %s49
    %s67 = sphi 0, %s67
    %s69 = sphi 0, %s67
    %s70 = sphi 0, %s69
    %s84 = sphi 0, %s70
    %s88 = sphi 0, %s88
    %s90 = sphi 0, %s88
    %s91 = sphi 0, %s90
    %s105 = sphi 0, %s91
    %s111 = sphi 0, %s113
    %s114 = sphi 0, %s111
    %s115 = sphi 0, %s114
    %s131 = sphi 0, %s115
    %s137 = sphi 0, %s139
    %s140 = sphi 0, %s137
    %s141 = sphi 0, %s140
    %s157 = sphi 0, %s141
  $region4: #{_lambda_.4} parent=0 // loop_header_branch
    %15 = sbr.rel (%p13) target = $region8
  $region5: #{_lambda_.4} parent=0 // loop_body
    %s17 = ssub.s32 %s12, 1
    %s18 = ssub.s32 %s12, 2
    %s19 = sadd.s32 %s12, 1
    %s20 = ssub.s32 %s12, %s19
    %p21 = scmp.eq.s32.totalorder %s20, 0
    %s23 = sadd.s32 %s22, 1
    %s24 = scalar_select %p21, %s22, %s23
    %p27 = pneg %p21
    %p28 = scmp.eq.s32.totalorder %s12, 1
    %p29 = por %p27, %p28
    %p30 = scmp.ne.s32.totalorder %s22, %s25
    %p31 = scmp.eq.s32.totalorder %s12, 0
    %p32 = por %p30, %p31
    %p33 = scmp.ne.s32.totalorder %s22, %s25
    %p34 = scmp.eq.s32.totalorder %s17, 1
    %p35 = por %p33, %p34
    %p36 = scmp.ne.s32.totalorder %s25, %s26
    %p37 = scmp.eq.s32.totalorder %s17, 0
    %p38 = por %p36, %p37
    %p39 = scmp.ne.s32.totalorder %s25, %s26
    %p40 = scmp.eq.s32.totalorder %s18, 1
    %p41 = por %p39, %p40
    %p43 = scmp.ne.s32.totalorder %s26, %s42
    %p44 = scmp.eq.s32.totalorder %s18, 0
    %p45 = por %p43, %p44
    %s47 = sadd.s32 %s46, 1
    %p50 = scmp.eq.s32.totalorder %s12, 1
    %p51 = scmp.ne.s32.totalorder %s46, %s48
    %p52 = scmp.eq.s32.totalorder %s12, 0
    %p53 = por %p51, %p52
    %p54 = scmp.ne.s32.totalorder %s46, %s48
    %p55 = scmp.eq.s32.totalorder %s17, 1
    %p56 = por %p54, %p55
    %p57 = scmp.ne.s32.totalorder %s48, %s49
    %p58 = scmp.eq.s32.totalorder %s17, 0
    %p59 = por %p57, %p58
    %p60 = scmp.ne.s32.totalorder %s48, %s49
    %p61 = scmp.eq.s32.totalorder %s18, 1
    %p62 = por %p60, %p61
    %p64 = scmp.ne.s32.totalorder %s49, %s63
    %p65 = scmp.eq.s32.totalorder %s18, 0
    %p66 = por %p64, %p65
    %s68 = sadd.s32 %s67, 1
    %p71 = scmp.eq.s32.totalorder %s12, 1
    %p72 = scmp.ne.s32.totalorder %s67, %s69
    %p73 = scmp.eq.s32.totalorder %s12, 0
    %p74 = por %p72, %p73
    %p75 = scmp.ne.s32.totalorder %s67, %s69
    %p76 = scmp.eq.s32.totalorder %s17, 1
    %p77 = por %p75, %p76
    %p78 = scmp.ne.s32.totalorder %s69, %s70
    %p79 = scmp.eq.s32.totalorder %s17, 0
    %p80 = por %p78, %p79
    %p81 = scmp.ne.s32.totalorder %s69, %s70
    %p82 = scmp.eq.s32.totalorder %s18, 1
    %p83 = por %p81, %p82
    %p85 = scmp.ne.s32.totalorder %s70, %s84
    %p86 = scmp.eq.s32.totalorder %s18, 0
    %p87 = por %p85, %p86
    %s89 = sadd.s32 %s88, 1
    %p92 = scmp.eq.s32.totalorder %s12, 1
    %p93 = scmp.ne.s32.totalorder %s88, %s90
    %p94 = scmp.eq.s32.totalorder %s12, 0
    %p95 = por %p93, %p94
    %p96 = scmp.ne.s32.totalorder %s88, %s90
    %p97 = scmp.eq.s32.totalorder %s17, 1
    %p98 = por %p96, %p97
    %p99 = scmp.ne.s32.totalorder %s90, %s91
    %p100 = scmp.eq.s32.totalorder %s17, 0
    %p101 = por %p99, %p100
    %p102 = scmp.ne.s32.totalorder %s90, %s91
    %p103 = scmp.eq.s32.totalorder %s18, 1
    %p104 = por %p102, %p103
    %p106 = scmp.ne.s32.totalorder %s91, %s105
    %p107 = scmp.eq.s32.totalorder %s18, 0
    %p108 = por %p106, %p107
    %s109 = ssub.s32 %s12, %s19
    %p110 = scmp.eq.s32.totalorder %s109, 0
    %s112 = sadd.s32 %s111, 1
    %s113 = scalar_select %p110, %s111, %s112
    %p116 = pneg %p110
    %p117 = scmp.eq.s32.totalorder %s12, 1
    %p118 = por %p116, %p117
    %p119 = scmp.ne.s32.totalorder %s111, %s114
    %p120 = scmp.eq.s32.totalorder %s12, 0
    %p121 = por %p119, %p120
    %p122 = scmp.ne.s32.totalorder %s111, %s114
    %p123 = scmp.eq.s32.totalorder %s17, 1
    %p124 = por %p122, %p123
    %p125 = scmp.ne.s32.totalorder %s114, %s115
    %p126 = scmp.eq.s32.totalorder %s17, 0
    %p127 = por %p125, %p126
    %p128 = scmp.ne.s32.totalorder %s114, %s115
    %p129 = scmp.eq.s32.totalorder %s18, 1
    %p130 = por %p128, %p129
    %p132 = scmp.ne.s32.totalorder %s115, %s131
    %p133 = scmp.eq.s32.totalorder %s18, 0
    %p134 = por %p132, %p133
    %s135 = ssub.s32 %s12, %s19
    %p136 = scmp.eq.s32.totalorder %s135, 0
    %s138 = sadd.s32 %s137, 1
    %s139 = scalar_select %p136, %s137, %s138
    %p142 = pneg %p136
    %p143 = scmp.eq.s32.totalorder %s12, 1
    %p144 = por %p142, %p143
    %p145 = scmp.ne.s32.totalorder %s137, %s140
    %p146 = scmp.eq.s32.totalorder %s12, 0
    %p147 = por %p145, %p146
    %p148 = scmp.ne.s32.totalorder %s137, %s140
    %p149 = scmp.eq.s32.totalorder %s17, 1
    %p150 = por %p148, %p149
    %p151 = scmp.ne.s32.totalorder %s140, %s141
    %p152 = scmp.eq.s32.totalorder %s17, 0
    %p153 = por %p151, %p152
    %p154 = scmp.ne.s32.totalorder %s140, %s141
    %p155 = scmp.eq.s32.totalorder %s18, 1
    %p156 = por %p154, %p155
    %p158 = scmp.ne.s32.totalorder %s141, %s157
    %p159 = scmp.eq.s32.totalorder %s18, 0
    %p160 = por %p158, %p159
    %p161 = scmp.le.s32.totalorder 1, %s12
    %p162 = scmp.lt.s32.totalorder %s12, 3
    %p163 = pnand %p161, %p162
    %p164 = pneg %p163
    // Predicated region
    $region9: #{_lambda_.4} parent=5 // pred_check
      _
    $region10: #{_lambda_.4} parent=5 // pred_check_branch
      %166 = sbr.rel (%p163) target = $region12
    $region11: #{_lambda_.4} parent=5 // pred_region
      %s167 = ssub.s32 %s12, 1
      // Predicated region
      $region13: #{_lambda_.4} parent=11 // pred_check
        %p168 = pneg %p59
      $region14: #{_lambda_.4} parent=11 // pred_check_branch
        %170 = sbr.rel (%p168) target = $region16
      $region15: #{_lambda_.4} parent=11 // pred_region
        _
      $region16: #{_lambda_.4} parent=11 // pred_fallthru
        _
      // Predicated region
      $region17: #{_lambda_.4} parent=11 // pred_check
        %p171 = pneg %p80
      $region18: #{_lambda_.4} parent=11 // pred_check_branch
        %173 = sbr.rel (%p171) target = $region20
      $region19: #{_lambda_.4} parent=11 // pred_region
        _
      $region20: #{_lambda_.4} parent=11 // pred_fallthru
        _
      // Predicated region
      $region21: #{_lambda_.4} parent=11 // pred_check
        %p174 = pneg %p101
      $region22: #{_lambda_.4} parent=11 // pred_check_branch
        %176 = sbr.rel (%p174) target = $region24
      $region23: #{_lambda_.4} parent=11 // pred_region
        _
      $region24: #{_lambda_.4} parent=11 // pred_fallthru
        _
    $region12: #{_lambda_.4} parent=5 // pred_fallthru
      _
    %p177 = scmp.lt.s32.totalorder %s12, 2
    // Predicated region
    $region25: #{_lambda_.4} parent=5 // pred_check
      %p178 = pneg %p177
    $region26: #{_lambda_.4} parent=5 // pred_check_branch
      %180 = sbr.rel (%p178) target = $region28
    $region27: #{_lambda_.4} parent=5 // pred_region
      // Predicated region
      $region29: #{_lambda_.4} parent=27 // pred_check
        %p181 = pneg %p32
      $region30: #{_lambda_.4} parent=27 // pred_check_branch
        %183 = sbr.rel (%p181) target = $region32
      $region31: #{_lambda_.4} parent=27 // pred_region
        %p184 = scmp.lt.s32.totalorder %s12, 1
        %s185 = scalar_select %p184, %s12, 1
        %s186 = smul.addr %s185, 54
        %s187 = smul.addr %s186, 4
        %s188 = scalar_lea.vmem %s0, %s187
      $region32: #{_lambda_.4} parent=27 // pred_fallthru
        _
    $region28: #{_lambda_.4} parent=5 // pred_fallthru
      _
    %p189 = scmp.le.s32.totalorder 1, %s12
    %p190 = scmp.lt.s32.totalorder %s12, 3
    %p191 = pnand %p189, %p190
    %p192 = pneg %p191
    // Predicated region
    $region33: #{_lambda_.4} parent=5 // pred_check
      _
    $region34: #{_lambda_.4} parent=5 // pred_check_branch
      %194 = sbr.rel (%p191) target = $region36
    $region35: #{_lambda_.4} parent=5 // pred_region
      %s195 = ssub.s32 %s12, 1
      %p196 = scmp.lt.s32.totalorder %s17, 1
      %s197 = scalar_select %p196, %s17, 1
      %s198 = smul.addr %s197, 54
      %s199 = smul.addr %s198, 4
      %s200 = scalar_lea.vmem %s0, %s199
      %p201 = pneg %p38
      %p202 = pneg %p35
      %p203 = pneg %p59
      %p204 = pneg %p56
      %p205 = pneg %p80
      %p206 = pneg %p77
      %p207 = pneg %p101
      %p208 = pneg %p98
      %p209 = pneg %p127
      %p210 = pneg %p124
      %p211 = scmp.lt.s32.totalorder %s17, 1
      %s212 = scalar_select %p211, %s17, 1
      %s213 = smul.addr %s212, 32
      %s214 = smul.addr %s213, 4
      %s215 = scalar_lea.vmem %s4, %s214
      %p216 = pneg %p153
      %p217 = pneg %p150
      %p218 = scmp.lt.s32.totalorder %s17, 1
      %s219 = scalar_select %p218, %s17, 1
      %s220 = scalar_lea.vmem %s5, %s219
      %p221 = scmp.lt.s32.totalorder %s17, 1
      %s222 = scalar_select %p221, %s17, 1
      %s223 = smul.addr %s222, 54
      %s224 = smul.addr %s223, 4
      %s225 = scalar_lea.vmem %s0, %s224
      %p226 = scmp.lt.s32.totalorder %s17, 1
      %s227 = scalar_select %p226, %s17, 1
      %s228 = smul.addr %s227, 32
      %s229 = smul.addr %s228, 4
      %s230 = scalar_lea.vmem %s4, %s229
      %p231 = scmp.lt.s32.totalorder %s17, 1
      %s232 = scalar_select %p231, %s17, 1
      %s233 = scalar_lea.vmem %s5, %s232
      %v235 = vld [vmem:[%s225] sm:$0xf]
      %v236 = vld [vmem:[%s225 + $0x4] sm:$0xf]
      %v237 = vld [vmem:[%s225 + $0x8] sm:$0x1]
      %v238 = vld [vmem:[%s225 + $0xc] sm:$0xf]
      %v239 = vld [vmem:[%s225 + $0x10] sm:$0xf]
      %v240 = vld [vmem:[%s225 + $0x14] sm:$0x1]
      %v241 = vld [vmem:[%s225 + $0x18] sm:$0xf]
      %v242 = vld [vmem:[%s225 + $0x1c] sm:$0xf]
      %v243 = vld [vmem:[%s225 + $0x20] sm:$0x1]
      %v244 = vld [vmem:[%s225 + $0x24] sm:$0xf]
      %v245 = vld [vmem:[%s225 + $0x28] sm:$0xf]
      %v246 = vld [vmem:[%s225 + $0x2c] sm:$0x1]
      %v247 = vld [vmem:[%s225 + $0x30] sm:$0xf]
      %v248 = vld [vmem:[%s225 + $0x34] sm:$0xf]
      %v249 = vld [vmem:[%s225 + $0x38] sm:$0x1]
      %v250 = vld [vmem:[%s225 + $0x3c] sm:$0xf]
      %v251 = vld [vmem:[%s225 + $0x40] sm:$0xf]
      %v252 = vld [vmem:[%s225 + $0x44] sm:$0x1]
      %v253 = vld [vmem:[%s225 + $0x48] sm:$0xf]
      %v254 = vld [vmem:[%s225 + $0x4c] sm:$0xf]
      %v255 = vld [vmem:[%s225 + $0x50] sm:$0x1]
      %v256 = vld [vmem:[%s225 + $0x54] sm:$0xf]
      %v257 = vld [vmem:[%s225 + $0x58] sm:$0xf]
      %v258 = vld [vmem:[%s225 + $0x5c] sm:$0x1]
      %v259 = vld [vmem:[%s225 + $0x60] sm:$0xf]
      %v260 = vld [vmem:[%s225 + $0x64] sm:$0xf]
      %v261 = vld [vmem:[%s225 + $0x68] sm:$0x1]
      %v262 = vld [vmem:[%s225 + $0x6c] sm:$0xf]
      %v263 = vld [vmem:[%s225 + $0x70] sm:$0xf]
      %v264 = vld [vmem:[%s225 + $0x74] sm:$0x1]
      %v265 = vld [vmem:[%s225 + $0x78] sm:$0xf]
      %v266 = vld [vmem:[%s225 + $0x7c] sm:$0xf]
      %v267 = vld [vmem:[%s225 + $0x80] sm:$0x1]
      %v268 = vld [vmem:[%s225 + $0x84] sm:$0xf]
      %v269 = vld [vmem:[%s225 + $0x88] sm:$0xf]
      %v270 = vld [vmem:[%s225 + $0x8c] sm:$0x1]
      %v271 = vld [vmem:[%s225 + $0x90] sm:$0xf]
      %v272 = vld [vmem:[%s225 + $0x94] sm:$0xf]
      %v273 = vld [vmem:[%s225 + $0x98] sm:$0x1]
      %v274 = vld [vmem:[%s225 + $0x9c] sm:$0xf]
      %v275 = vld [vmem:[%s225 + $0xa0] sm:$0xf]
      %v276 = vld [vmem:[%s225 + $0xa4] sm:$0x1]
      %v277 = vld [vmem:[%s225 + $0xa8] sm:$0xf]
      %v278 = vld [vmem:[%s225 + $0xac] sm:$0xf]
      %v279 = vld [vmem:[%s225 + $0xb0] sm:$0x1]
      %v280 = vld [vmem:[%s225 + $0xb4] sm:$0xf]
      %v281 = vld [vmem:[%s225 + $0xb8] sm:$0xf]
      %v282 = vld [vmem:[%s225 + $0xbc] sm:$0x1]
      %v283 = vld [vmem:[%s225 + $0xc0] sm:$0xf]
      %v284 = vld [vmem:[%s225 + $0xc4] sm:$0xf]
      %v285 = vld [vmem:[%s225 + $0xc8] sm:$0x1]
      %v286 = vld [vmem:[%s225 + $0xcc] sm:$0xf]
      %v287 = vld [vmem:[%s225 + $0xd0] sm:$0xf]
      %v288 = vld [vmem:[%s225 + $0xd4] sm:$0x1]
      %v289 = vunpack.c.l.bf16 %v235
      %v290 = vunpack.c.l.bf16 %v236
      %v291 = vunpack.c.l.bf16 %v237
      %v292 = vunpack.c.l.bf16 %v238
      %v293 = vunpack.c.l.bf16 %v239
      %v294 = vunpack.c.l.bf16 %v240
      %v295 = vunpack.c.l.bf16 %v241
      %v296 = vunpack.c.l.bf16 %v242
      %v297 = vunpack.c.l.bf16 %v243
      %v298 = vunpack.c.l.bf16 %v244
      %v299 = vunpack.c.l.bf16 %v245
      %v300 = vunpack.c.l.bf16 %v246
      %v301 = vunpack.c.l.bf16 %v247
      %v302 = vunpack.c.l.bf16 %v248
      %v303 = vunpack.c.l.bf16 %v249
      %v304 = vunpack.c.l.bf16 %v250
      %v305 = vunpack.c.l.bf16 %v251
      %v306 = vunpack.c.l.bf16 %v252
      %v307 = vunpack.c.l.bf16 %v253
      %v308 = vunpack.c.l.bf16 %v254
      %v309 = vunpack.c.l.bf16 %v255
      %v310 = vunpack.c.l.bf16 %v256
      %v311 = vunpack.c.l.bf16 %v257
      %v312 = vunpack.c.l.bf16 %v258
      %v313 = vunpack.c.l.bf16 %v259
      %v314 = vunpack.c.l.bf16 %v260
      %v315 = vunpack.c.l.bf16 %v261
      %v316 = vunpack.c.l.bf16 %v262
      %v317 = vunpack.c.l.bf16 %v263
      %v318 = vunpack.c.l.bf16 %v264
      %v319 = vunpack.c.l.bf16 %v265
      %v320 = vunpack.c.l.bf16 %v266
      %v321 = vunpack.c.l.bf16 %v267
      %v322 = vunpack.c.l.bf16 %v268
      %v323 = vunpack.c.l.bf16 %v269
      %v324 = vunpack.c.l.bf16 %v270
      %v325 = vunpack.c.l.bf16 %v271
      %v326 = vunpack.c.l.bf16 %v272
      %v327 = vunpack.c.l.bf16 %v273
      %v328 = vunpack.c.l.bf16 %v274
      %v329 = vunpack.c.l.bf16 %v275
      %v330 = vunpack.c.l.bf16 %v276
      %v331 = vunpack.c.l.bf16 %v277
      %v332 = vunpack.c.l.bf16 %v278
      %v333 = vunpack.c.l.bf16 %v279
      %v334 = vunpack.c.l.bf16 %v280
      %v335 = vunpack.c.l.bf16 %v281
      %v336 = vunpack.c.l.bf16 %v282
      %v337 = vunpack.c.l.bf16 %v283
      %v338 = vunpack.c.l.bf16 %v284
      %v339 = vunpack.c.l.bf16 %v285
      %v340 = vunpack.c.l.bf16 %v286
      %v341 = vunpack.c.l.bf16 %v287
      %v342 = vunpack.c.l.bf16 %v288
      %vm391 = vcmask 1046528
      %v392 = vrot.slane %v289, 1
      %v393 = vrot.slane %v290, 1
      %v394 = vsel %vm391, %v392, %v393
      %v395 = vrot.slane %v291, 1
      %v396 = vsel %vm391, %v393, %v395
      %v397 = vrot.slane %v292, 1
      %v398 = vrot.slane %v293, 1
      %v399 = vsel %vm391, %v397, %v398
      %v400 = vrot.slane %v294, 1
      %v401 = vsel %vm391, %v398, %v400
      %v402 = vrot.slane %v295, 1
      %v403 = vrot.slane %v296, 1
      %v404 = vsel %vm391, %v402, %v403
      %v405 = vrot.slane %v297, 1
      %v406 = vsel %vm391, %v403, %v405
      %v407 = vrot.slane %v298, 1
      %v408 = vrot.slane %v299, 1
      %v409 = vsel %vm391, %v407, %v408
      %v410 = vrot.slane %v300, 1
      %v411 = vsel %vm391, %v408, %v410
      %v412 = vrot.slane %v301, 1
      %v413 = vrot.slane %v302, 1
      %v414 = vsel %vm391, %v412, %v413
      %v415 = vrot.slane %v303, 1
      %v416 = vsel %vm391, %v413, %v415
      %v417 = vrot.slane %v304, 1
      %v418 = vrot.slane %v305, 1
      %v419 = vsel %vm391, %v417, %v418
      %v420 = vrot.slane %v306, 1
      %v421 = vsel %vm391, %v418, %v420
      %v422 = vrot.slane %v307, 1
      %v423 = vrot.slane %v308, 1
      %v424 = vsel %vm391, %v422, %v423
      %v425 = vrot.slane %v309, 1
      %v426 = vsel %vm391, %v423, %v425
      %v427 = vrot.slane %v310, 1
      %v428 = vrot.slane %v311, 1
      %v429 = vsel %vm391, %v427, %v428
      %v430 = vrot.slane %v312, 1
      %v431 = vsel %vm391, %v428, %v430
      %v432 = vrot.slane %v313, 1
      %v433 = vrot.slane %v314, 1
      %v434 = vsel %vm391, %v432, %v433
      %v435 = vrot.slane %v315, 1
      %v436 = vsel %vm391, %v433, %v435
      %v437 = vrot.slane %v316, 1
      %v438 = vrot.slane %v317, 1
      %v439 = vsel %vm391, %v437, %v438
      %v440 = vrot.slane %v318, 1
      %v441 = vsel %vm391, %v438, %v440
      %v442 = vrot.slane %v319, 1
      %v443 = vrot.slane %v320, 1
      %v444 = vsel %vm391, %v442, %v443
      %v445 = vrot.slane %v321, 1
      %v446 = vsel %vm391, %v443, %v445
      %v447 = vrot.slane %v322, 1
      %v448 = vrot.slane %v323, 1
      %v449 = vsel %vm391, %v447, %v448
      %v450 = vrot.slane %v324, 1
      %v451 = vsel %vm391, %v448, %v450
      %v452 = vrot.slane %v325, 1
      %v453 = vrot.slane %v326, 1
      %v454 = vsel %vm391, %v452, %v453
      %v455 = vrot.slane %v327, 1
      %v456 = vsel %vm391, %v453, %v455
      %v457 = vrot.slane %v328, 1
      %v458 = vrot.slane %v329, 1
      %v459 = vsel %vm391, %v457, %v458
      %v460 = vrot.slane %v330, 1
      %v461 = vsel %vm391, %v458, %v460
      %v462 = vrot.slane %v331, 1
      %v463 = vrot.slane %v332, 1
      %v464 = vsel %vm391, %v462, %v463
      %v465 = vrot.slane %v333, 1
      %v466 = vsel %vm391, %v463, %v465
      %v467 = vrot.slane %v334, 1
      %v468 = vrot.slane %v335, 1
      %v469 = vsel %vm391, %v467, %v468
      %v470 = vrot.slane %v336, 1
      %v471 = vsel %vm391, %v468, %v470
      %vm504 = vcmask 1045504
      %v505 = vrot.slane %v289, 2
      %v506 = vrot.slane %v290, 2
      %v507 = vsel %vm504, %v505, %v506
      %v508 = vrot.slane %v291, 2
      %v509 = vsel %vm504, %v506, %v508
      %v510 = vrot.slane %v292, 2
      %v511 = vrot.slane %v293, 2
      %v512 = vsel %vm504, %v510, %v511
      %v513 = vrot.slane %v294, 2
      %v514 = vsel %vm504, %v511, %v513
      %v515 = vrot.slane %v295, 2
      %v516 = vrot.slane %v296, 2
      %v517 = vsel %vm504, %v515, %v516
      %v518 = vrot.slane %v297, 2
      %v519 = vsel %vm504, %v516, %v518
      %v520 = vrot.slane %v298, 2
      %v521 = vrot.slane %v299, 2
      %v522 = vsel %vm504, %v520, %v521
      %v523 = vrot.slane %v300, 2
      %v524 = vsel %vm504, %v521, %v523
      %v525 = vrot.slane %v301, 2
      %v526 = vrot.slane %v302, 2
      %v527 = vsel %vm504, %v525, %v526
      %v528 = vrot.slane %v303, 2
      %v529 = vsel %vm504, %v526, %v528
      %v530 = vrot.slane %v304, 2
      %v531 = vrot.slane %v305, 2
      %v532 = vsel %vm504, %v530, %v531
      %v533 = vrot.slane %v306, 2
      %v534 = vsel %vm504, %v531, %v533
      %v535 = vrot.slane %v307, 2
      %v536 = vrot.slane %v308, 2
      %v537 = vsel %vm504, %v535, %v536
      %v538 = vrot.slane %v309, 2
      %v539 = vsel %vm504, %v536, %v538
      %v540 = vrot.slane %v310, 2
      %v541 = vrot.slane %v311, 2
      %v542 = vsel %vm504, %v540, %v541
      %v543 = vrot.slane %v312, 2
      %v544 = vsel %vm504, %v541, %v543
      %v545 = vrot.slane %v313, 2
      %v546 = vrot.slane %v314, 2
      %v547 = vsel %vm504, %v545, %v546
      %v548 = vrot.slane %v315, 2
      %v549 = vsel %vm504, %v546, %v548
      %v550 = vrot.slane %v316, 2
      %v551 = vrot.slane %v317, 2
      %v552 = vsel %vm504, %v550, %v551
      %v553 = vrot.slane %v318, 2
      %v554 = vsel %vm504, %v551, %v553
      %v555 = vrot.slane %v319, 2
      %v556 = vrot.slane %v320, 2
      %v557 = vsel %vm504, %v555, %v556
      %v558 = vrot.slane %v321, 2
      %v559 = vsel %vm504, %v556, %v558
      %v560 = vrot.slane %v322, 2
      %v561 = vrot.slane %v323, 2
      %v562 = vsel %vm504, %v560, %v561
      %v563 = vrot.slane %v324, 2
      %v564 = vsel %vm504, %v561, %v563
      %v565 = vrot.slane %v325, 2
      %v566 = vrot.slane %v326, 2
      %v567 = vsel %vm504, %v565, %v566
      %v568 = vrot.slane %v327, 2
      %v569 = vsel %vm504, %v566, %v568
      %v570 = vrot.slane %v328, 2
      %v571 = vrot.slane %v329, 2
      %v572 = vsel %vm504, %v570, %v571
      %v573 = vrot.slane %v330, 2
      %v574 = vsel %vm504, %v571, %v573
      %v575 = vrot.slane %v331, 2
      %v576 = vrot.slane %v332, 2
      %v577 = vsel %vm504, %v575, %v576
      %v578 = vrot.slane %v333, 2
      %v579 = vsel %vm504, %v576, %v578
      %v580 = vrot.slane %v334, 2
      %v581 = vrot.slane %v335, 2
      %v582 = vsel %vm504, %v580, %v581
      %v583 = vrot.slane %v336, 2
      %v584 = vsel %vm504, %v581, %v583
      %v620 = vrot.slane %v337, 1
      %v621 = vrot.slane %v338, 1
      %v622 = vsel %vm391, %v620, %v621
      %v623 = vrot.slane %v339, 1
      %v624 = vsel %vm391, %v621, %v623
      %v627 = vrot.slane %v337, 2
      %v628 = vrot.slane %v338, 2
      %v629 = vsel %vm504, %v627, %v628
      %v630 = vrot.slane %v339, 2
      %v631 = vsel %vm504, %v628, %v630
      %v637 = vrot.slane %v340, 1
      %v638 = vrot.slane %v341, 1
      %v639 = vsel %vm391, %v637, %v638
      %v640 = vrot.slane %v342, 1
      %v641 = vsel %vm391, %v638, %v640
      %v644 = vrot.slane %v340, 2
      %v645 = vrot.slane %v341, 2
      %v646 = vsel %vm504, %v644, %v645
      %v647 = vrot.slane %v342, 2
      %v648 = vsel %vm504, %v645, %v647
      %v651 = vpack.c.bf16 %v290, %v289
      %v652 = vpack.c.bf16 %v396, %v394
      %v653 = vpack.c.bf16 %v509, %v507
      %v654 = vpack.c.bf16 %v293, %v292
      %v655 = vpack.c.bf16 %v401, %v399
      %v656 = vpack.c.bf16 %v514, %v512
      %v657 = vpack.c.bf16 %v296, %v295
      %v658 = vpack.c.bf16 %v406, %v404
      %v659 = vpack.c.bf16 %v519, %v517
      %v660 = vpack.c.bf16 %v299, %v298
      %v661 = vpack.c.bf16 %v411, %v409
      %v662 = vpack.c.bf16 %v524, %v522
      %v663 = vpack.c.bf16 %v302, %v301
      %v664 = vpack.c.bf16 %v416, %v414
      %v665 = vpack.c.bf16 %v529, %v527
      %v666 = vpack.c.bf16 %v305, %v304
      %v667 = vpack.c.bf16 %v421, %v419
      %v668 = vpack.c.bf16 %v534, %v532
      %v669 = vpack.c.bf16 %v308, %v307
      %v670 = vpack.c.bf16 %v426, %v424
      %v671 = vpack.c.bf16 %v539, %v537
      %v672 = vpack.c.bf16 %v311, %v310
      %v673 = vpack.c.bf16 %v431, %v429
      %v674 = vpack.c.bf16 %v544, %v542
      %v675 = vpack.c.bf16 %v314, %v313
      %v676 = vpack.c.bf16 %v436, %v434
      %v677 = vpack.c.bf16 %v549, %v547
      %v678 = vpack.c.bf16 %v317, %v316
      %v679 = vpack.c.bf16 %v441, %v439
      %v680 = vpack.c.bf16 %v554, %v552
      %v681 = vpack.c.bf16 %v320, %v319
      %v682 = vpack.c.bf16 %v446, %v444
      %v683 = vpack.c.bf16 %v559, %v557
      %v684 = vpack.c.bf16 %v323, %v322
      %v685 = vpack.c.bf16 %v451, %v449
      %v686 = vpack.c.bf16 %v564, %v562
      %v687 = vpack.c.bf16 %v326, %v325
      %v688 = vpack.c.bf16 %v456, %v454
      %v689 = vpack.c.bf16 %v569, %v567
      %v690 = vpack.c.bf16 %v329, %v328
      %v691 = vpack.c.bf16 %v461, %v459
      %v692 = vpack.c.bf16 %v574, %v572
      %v693 = vpack.c.bf16 %v332, %v331
      %v694 = vpack.c.bf16 %v466, %v464
      %v695 = vpack.c.bf16 %v579, %v577
      %v696 = vpack.c.bf16 %v335, %v334
      %v697 = vpack.c.bf16 %v471, %v469
      %v698 = vpack.c.bf16 %v584, %v582
      %v699 = vpack.c.bf16 %v338, %v337
      %v700 = vpack.c.bf16 %v624, %v622
      %v701 = vpack.c.bf16 %v631, %v629
      %v702 = vpack.c.bf16 %v341, %v340
      %v703 = vpack.c.bf16 %v641, %v639
      %v704 = vpack.c.bf16 %v648, %v646
      %v705 = vld [vmem:[%s1] sm:$0xf]
      %v706 = vld [vmem:[%s1 + $0x4] sm:$0xf]
      %v707 = vld [vmem:[%s1 + $0x8] sm:$0xf]
      %v708 = vld [vmem:[%s1 + $0xc] sm:$0xf]
      %v709 = vld [vmem:[%s1 + $0x10] sm:$0xf]
      %v710 = vld [vmem:[%s1 + $0x14] sm:$0xf]
      %v711 = vld [vmem:[%s1 + $0x18] sm:$0xf]
      %v712 = vld [vmem:[%s1 + $0x1c] sm:$0xf]
      %v713 = vld [vmem:[%s1 + $0x20] sm:$0xf]
      %v714 = vld [vmem:[%s1 + $0x24] sm:$0xf]
      %v715 = vld [vmem:[%s1 + $0x28] sm:$0xf]
      %v716 = vld [vmem:[%s1 + $0x2c] sm:$0xf]
      %v717 = vld [vmem:[%s1 + $0x30] sm:$0xf]
      %v718 = vld [vmem:[%s1 + $0x34] sm:$0xf]
      %v719 = vld [vmem:[%s1 + $0x38] sm:$0xf]
      %v720 = vld [vmem:[%s1 + $0x3c] sm:$0xf]
      %v721 = vld [vmem:[%s1 + $0x40] sm:$0xf]
      %v722 = vld [vmem:[%s1 + $0x44] sm:$0xf]
      %v723 = vld [vmem:[%s1 + $0x48] sm:$0xf]
      %v724 = vld [vmem:[%s1 + $0x4c] sm:$0xf]
      %v725 = vld [vmem:[%s1 + $0x50] sm:$0xf]
      %v726 = vld [vmem:[%s1 + $0x54] sm:$0xf]
      %v727 = vld [vmem:[%s1 + $0x58] sm:$0xf]
      %v728 = vld [vmem:[%s1 + $0x5c] sm:$0xf]
      %v729 = vld [vmem:[%s1 + $0x60] sm:$0xf]
      %v730 = vld [vmem:[%s1 + $0x64] sm:$0xf]
      %v731 = vld [vmem:[%s1 + $0x68] sm:$0xf]
      %v732 = vld [vmem:[%s1 + $0x6c] sm:$0xf]
      %v733 = vld [vmem:[%s1 + $0x70] sm:$0xf]
      %v734 = vld [vmem:[%s1 + $0x74] sm:$0xf]
      %v735 = vld [vmem:[%s1 + $0x78] sm:$0xf]
      %v736 = vld [vmem:[%s1 + $0x7c] sm:$0xf]
      %v737 = vld [vmem:[%s1 + $0x80] sm:$0xf]
      %v738 = vld [vmem:[%s1 + $0x84] sm:$0xf]
      %v739 = vld [vmem:[%s1 + $0x88] sm:$0xf]
      %v740 = vld [vmem:[%s1 + $0x8c] sm:$0xf]
      %v741 = vld [vmem:[%s1 + $0x90] sm:$0xf]
      %v742 = vld [vmem:[%s1 + $0x94] sm:$0xf]
      %v743 = vld [vmem:[%s1 + $0x98] sm:$0xf]
      %v744 = vld [vmem:[%s1 + $0x9c] sm:$0xf]
      %v745 = vld [vmem:[%s1 + $0xa0] sm:$0xf]
      %v746 = vld [vmem:[%s1 + $0xa4] sm:$0xf]
      %v747 = vld [vmem:[%s1 + $0xa8] sm:$0xf]
      %v748 = vld [vmem:[%s1 + $0xac] sm:$0xf]
      %v749 = vld [vmem:[%s1 + $0xb0] sm:$0xf]
      %v750 = vld [vmem:[%s1 + $0xb4] sm:$0xf]
      %v751 = vld [vmem:[%s1 + $0xb8] sm:$0xf]
      %v752 = vld [vmem:[%s1 + $0xbc] sm:$0xf]
      %v753 = vld [vmem:[%s1 + $0xc0] sm:$0xf]
      %v754 = vld [vmem:[%s1 + $0xc4] sm:$0xf]
      %v755 = vld [vmem:[%s1 + $0xc8] sm:$0xf]
      %v756 = vld [vmem:[%s1 + $0xcc] sm:$0xf]
      %v757 = vld [vmem:[%s1 + $0xd0] sm:$0xf]
      %v758 = vld [vmem:[%s1 + $0xd4] sm:$0xf]
      %v759 = vld [vmem:[%s1 + $0xd8] sm:$0xf]
      %v760 = vld [vmem:[%s1 + $0xdc] sm:$0xf]
      %v761 = vld [vmem:[%s1 + $0xe0] sm:$0xf]
      %v762 = vld [vmem:[%s1 + $0xe4] sm:$0xf]
      %v763 = vld [vmem:[%s1 + $0xe8] sm:$0xf]
      %v764 = vld [vmem:[%s1 + $0xec] sm:$0xf]
      %v765 = vld [vmem:[%s1 + $0xf0] sm:$0xf]
      %v766 = vld [vmem:[%s1 + $0xf4] sm:$0xf]
      %v767 = vld [vmem:[%s1 + $0xf8] sm:$0xf]
      %v768 = vld [vmem:[%s1 + $0xfc] sm:$0xf]
      %v769 = vld [vmem:[%s1 + $0x100] sm:$0xf]
      %v770 = vld [vmem:[%s1 + $0x104] sm:$0xf]
      %v771 = vld [vmem:[%s1 + $0x108] sm:$0xf]
      %v772 = vld [vmem:[%s1 + $0x10c] sm:$0xf]
      %v773 = vld [vmem:[%s1 + $0x110] sm:$0xf]
      %v774 = vld [vmem:[%s1 + $0x114] sm:$0xf]
      %v775 = vld [vmem:[%s1 + $0x118] sm:$0xf]
      %v776 = vld [vmem:[%s1 + $0x11c] sm:$0xf]
      %v777 = vld [vmem:[%s1 + $0x120] sm:$0xf]
      %v778 = vld [vmem:[%s1 + $0x124] sm:$0xf]
      %v779 = vld [vmem:[%s1 + $0x128] sm:$0xf]
      %v780 = vld [vmem:[%s1 + $0x12c] sm:$0xf]
      %v781 = vld [vmem:[%s1 + $0x130] sm:$0xf]
      %v782 = vld [vmem:[%s1 + $0x134] sm:$0xf]
      %v783 = vld [vmem:[%s1 + $0x138] sm:$0xf]
      %v784 = vld [vmem:[%s1 + $0x13c] sm:$0xf]
      %v785 = vld [vmem:[%s1 + $0x140] sm:$0xf]
      %v786 = vld [vmem:[%s1 + $0x144] sm:$0xf]
      %v787 = vld [vmem:[%s1 + $0x148] sm:$0xf]
      %v788 = vld [vmem:[%s1 + $0x14c] sm:$0xf]
      %v789 = vld [vmem:[%s1 + $0x150] sm:$0xf]
      %v790 = vld [vmem:[%s1 + $0x154] sm:$0xf]
      %v791 = vld [vmem:[%s1 + $0x158] sm:$0xf]
      %v792 = vld [vmem:[%s1 + $0x15c] sm:$0xf]
      %v793 = vld [vmem:[%s1 + $0x160] sm:$0xf]
      %v794 = vld [vmem:[%s1 + $0x164] sm:$0xf]
      %v795 = vld [vmem:[%s1 + $0x168] sm:$0xf]
      %v796 = vld [vmem:[%s1 + $0x16c] sm:$0xf]
      %v797 = vld [vmem:[%s1 + $0x170] sm:$0xf]
      %v798 = vld [vmem:[%s1 + $0x174] sm:$0xf]
      %v799 = vld [vmem:[%s1 + $0x178] sm:$0xf]
      %v800 = vld [vmem:[%s1 + $0x17c] sm:$0xf]
      %v801 = vld [vmem:[%s1 + $0x180] sm:$0xf]
      %v802 = vld [vmem:[%s1 + $0x184] sm:$0xf]
      %v803 = vld [vmem:[%s1 + $0x188] sm:$0xf]
      %v804 = vld [vmem:[%s1 + $0x18c] sm:$0xf]
      %v805 = vld [vmem:[%s1 + $0x190] sm:$0xf]
      %v806 = vld [vmem:[%s1 + $0x194] sm:$0xf]
      %v807 = vld [vmem:[%s1 + $0x198] sm:$0xf]
      %v808 = vld [vmem:[%s1 + $0x19c] sm:$0xf]
      %v809 = vld [vmem:[%s1 + $0x1a0] sm:$0xf]
      %v810 = vld [vmem:[%s1 + $0x1a4] sm:$0xf]
      %v811 = vld [vmem:[%s1 + $0x1a8] sm:$0xf]
      %v812 = vld [vmem:[%s1 + $0x1ac] sm:$0xf]
      %v813 = vld [vmem:[%s1 + $0x1b0] sm:$0xf]
      %v814 = vld [vmem:[%s1 + $0x1b4] sm:$0xf]
      %v815 = vld [vmem:[%s1 + $0x1b8] sm:$0xf]
      %v816 = vld [vmem:[%s1 + $0x1bc] sm:$0xf]
      %v817 = vld [vmem:[%s1 + $0x1c0] sm:$0xf]
      %v818 = vld [vmem:[%s1 + $0x1c4] sm:$0xf]
      %v819 = vld [vmem:[%s1 + $0x1c8] sm:$0xf]
      %v820 = vld [vmem:[%s1 + $0x1cc] sm:$0xf]
      %v821 = vld [vmem:[%s1 + $0x1d0] sm:$0xf]
      %v822 = vld [vmem:[%s1 + $0x1d4] sm:$0xf]
      %v823 = vld [vmem:[%s1 + $0x1d8] sm:$0xf]
      %v824 = vld [vmem:[%s1 + $0x1dc] sm:$0xf]
      %v825 = vld [vmem:[%s1 + $0x1e0] sm:$0xf]
      %v826 = vld [vmem:[%s1 + $0x1e4] sm:$0xf]
      %v827 = vld [vmem:[%s1 + $0x1e8] sm:$0xf]
      %v828 = vld [vmem:[%s1 + $0x1ec] sm:$0xf]
      %v829 = vld [vmem:[%s1 + $0x1f0] sm:$0xf]
      %v830 = vld [vmem:[%s1 + $0x1f4] sm:$0xf]
      %v831 = vld [vmem:[%s1 + $0x1f8] sm:$0xf]
      %v832 = vld [vmem:[%s1 + $0x1fc] sm:$0xf]
      %v833 = vld [vmem:[%s1 + $0x200] sm:$0xf]
      %v834 = vld [vmem:[%s1 + $0x204] sm:$0xf]
      %v835 = vld [vmem:[%s1 + $0x208] sm:$0xf]
      %v836 = vld [vmem:[%s1 + $0x20c] sm:$0xf]
      %v837 = vld [vmem:[%s1 + $0x210] sm:$0xf]
      %v838 = vld [vmem:[%s1 + $0x214] sm:$0xf]
      %v839 = vld [vmem:[%s1 + $0x218] sm:$0xf]
      %v840 = vld [vmem:[%s1 + $0x21c] sm:$0xf]
      %v841 = vld [vmem:[%s1 + $0x220] sm:$0xf]
      %v842 = vld [vmem:[%s1 + $0x224] sm:$0xf]
      %v843 = vld [vmem:[%s1 + $0x228] sm:$0xf]
      %v844 = vld [vmem:[%s1 + $0x22c] sm:$0xf]
      %v845 = vld [vmem:[%s1 + $0x230] sm:$0xf]
      %v846 = vld [vmem:[%s1 + $0x234] sm:$0xf]
      %v847 = vld [vmem:[%s1 + $0x238] sm:$0xf]
      %v848 = vld [vmem:[%s1 + $0x23c] sm:$0xf]
      %v993 = vunpack.c.l.b16 %v705
      %v994 = vunpack.c.l.b16 %v706
      %v995 = vunpack.c.l.b16 %v707
      %v996 = vunpack.c.l.b16 %v708
      %v997 = vunpack.c.l.b16 %v709
      %v998 = vunpack.c.l.b16 %v710
      %v999 = vunpack.c.l.b16 %v711
      %v1000 = vunpack.c.l.b16 %v712
      %v1001 = vunpack.c.l.b16 %v713
      %v1002 = vunpack.c.l.b16 %v714
      %v1003 = vunpack.c.l.b16 %v715
      %v1004 = vunpack.c.l.b16 %v716
      %v1005 = vunpack.c.l.b16 %v717
      %v1006 = vunpack.c.l.b16 %v718
      %v1007 = vunpack.c.l.b16 %v719
      %v1008 = vunpack.c.l.b16 %v720
      %v1009 = vunpack.c.l.b16 %v721
      %v1010 = vunpack.c.l.b16 %v722
      %v1011 = vunpack.c.l.b16 %v723
      %v1012 = vunpack.c.l.b16 %v724
      %v1013 = vunpack.c.l.b16 %v725
      %v1014 = vunpack.c.l.b16 %v726
      %v1015 = vunpack.c.l.b16 %v727
      %v1016 = vunpack.c.l.b16 %v728
      %v1017 = vunpack.c.l.b16 %v729
      %v1018 = vunpack.c.l.b16 %v730
      %v1019 = vunpack.c.l.b16 %v731
      %v1020 = vunpack.c.l.b16 %v732
      %v1021 = vunpack.c.l.b16 %v733
      %v1022 = vunpack.c.l.b16 %v734
      %v1023 = vunpack.c.l.b16 %v735
      %v1024 = vunpack.c.l.b16 %v736
      %v1025 = vunpack.c.l.b16 %v737
      %v1026 = vunpack.c.l.b16 %v738
      %v1027 = vunpack.c.l.b16 %v739
      %v1028 = vunpack.c.l.b16 %v740
      %v1029 = vunpack.c.l.b16 %v741
      %v1030 = vunpack.c.l.b16 %v742
      %v1031 = vunpack.c.l.b16 %v743
      %v1032 = vunpack.c.l.b16 %v744
      %v1033 = vunpack.c.l.b16 %v745
      %v1034 = vunpack.c.l.b16 %v746
      %v1035 = vunpack.c.l.b16 %v747
      %v1036 = vunpack.c.l.b16 %v748
      %v1037 = vunpack.c.l.b16 %v749
      %v1038 = vunpack.c.l.b16 %v750
      %v1039 = vunpack.c.l.b16 %v751
      %v1040 = vunpack.c.l.b16 %v752
      %v1041 = vunpack.c.l.b16 %v753
      %v1042 = vunpack.c.l.b16 %v754
      %v1043 = vunpack.c.l.b16 %v755
      %v1044 = vunpack.c.l.b16 %v756
      %v1045 = vunpack.c.l.b16 %v757
      %v1046 = vunpack.c.l.b16 %v758
      %v1047 = vunpack.c.l.b16 %v759
      %v1048 = vunpack.c.l.b16 %v760
      %v1049 = vunpack.c.l.b16 %v761
      %v1050 = vunpack.c.l.b16 %v762
      %v1051 = vunpack.c.l.b16 %v763
      %v1052 = vunpack.c.l.b16 %v764
      %v1053 = vunpack.c.l.b16 %v765
      %v1054 = vunpack.c.l.b16 %v766
      %v1055 = vunpack.c.l.b16 %v767
      %v1056 = vunpack.c.l.b16 %v768
      %v1057 = vunpack.c.l.b16 %v769
      %v1058 = vunpack.c.l.b16 %v770
      %v1059 = vunpack.c.l.b16 %v771
      %v1060 = vunpack.c.l.b16 %v772
      %v1061 = vunpack.c.l.b16 %v773
      %v1062 = vunpack.c.l.b16 %v774
      %v1063 = vunpack.c.l.b16 %v775
      %v1064 = vunpack.c.l.b16 %v776
      %v1065 = vunpack.c.l.b16 %v777
      %v1066 = vunpack.c.l.b16 %v778
      %v1067 = vunpack.c.l.b16 %v779
      %v1068 = vunpack.c.l.b16 %v780
      %v1069 = vunpack.c.l.b16 %v781
      %v1070 = vunpack.c.l.b16 %v782
      %v1071 = vunpack.c.l.b16 %v783
      %v1072 = vunpack.c.l.b16 %v784
      %v1073 = vunpack.c.l.b16 %v785
      %v1074 = vunpack.c.l.b16 %v786
      %v1075 = vunpack.c.l.b16 %v787
      %v1076 = vunpack.c.l.b16 %v788
      %v1077 = vunpack.c.l.b16 %v789
      %v1078 = vunpack.c.l.b16 %v790
      %v1079 = vunpack.c.l.b16 %v791
      %v1080 = vunpack.c.l.b16 %v792
      %v1081 = vunpack.c.l.b16 %v793
      %v1082 = vunpack.c.l.b16 %v794
      %v1083 = vunpack.c.l.b16 %v795
      %v1084 = vunpack.c.l.b16 %v796
      %v1085 = vunpack.c.l.b16 %v797
      %v1086 = vunpack.c.l.b16 %v798
      %v1087 = vunpack.c.l.b16 %v799
      %v1088 = vunpack.c.l.b16 %v800
      %v1089 = vunpack.c.l.b16 %v801
      %v1090 = vunpack.c.l.b16 %v802
      %v1091 = vunpack.c.l.b16 %v803
      %v1092 = vunpack.c.l.b16 %v804
      %v1093 = vunpack.c.l.b16 %v805
      %v1094 = vunpack.c.l.b16 %v806
      %v1095 = vunpack.c.l.b16 %v807
      %v1096 = vunpack.c.l.b16 %v808
      %v1097 = vunpack.c.l.b16 %v809
      %v1098 = vunpack.c.l.b16 %v810
      %v1099 = vunpack.c.l.b16 %v811
      %v1100 = vunpack.c.l.b16 %v812
      %v1101 = vunpack.c.l.b16 %v813
      %v1102 = vunpack.c.l.b16 %v814
      %v1103 = vunpack.c.l.b16 %v815
      %v1104 = vunpack.c.l.b16 %v816
      %v1105 = vunpack.c.l.b16 %v817
      %v1106 = vunpack.c.l.b16 %v818
      %v1107 = vunpack.c.l.b16 %v819
      %v1108 = vunpack.c.l.b16 %v820
      %v1109 = vunpack.c.l.b16 %v821
      %v1110 = vunpack.c.l.b16 %v822
      %v1111 = vunpack.c.l.b16 %v823
      %v1112 = vunpack.c.l.b16 %v824
      %v1113 = vunpack.c.l.b16 %v825
      %v1114 = vunpack.c.l.b16 %v826
      %v1115 = vunpack.c.l.b16 %v827
      %v1116 = vunpack.c.l.b16 %v828
      %v1117 = vunpack.c.l.b16 %v829
      %v1118 = vunpack.c.l.b16 %v830
      %v1119 = vunpack.c.l.b16 %v831
      %v1120 = vunpack.c.l.b16 %v832
      %v1121 = vunpack.c.l.b16 %v833
      %v1122 = vunpack.c.l.b16 %v834
      %v1123 = vunpack.c.l.b16 %v835
      %v1124 = vunpack.c.l.b16 %v836
      %v1125 = vunpack.c.l.b16 %v837
      %v1126 = vunpack.c.l.b16 %v838
      %v1127 = vunpack.c.l.b16 %v839
      %v1128 = vunpack.c.l.b16 %v840
      %v1129 = vunpack.c.l.b16 %v841
      %v1130 = vunpack.c.l.b16 %v842
      %v1131 = vunpack.c.l.b16 %v843
      %v1132 = vunpack.c.l.b16 %v844
      %v1133 = vunpack.c.l.b16 %v845
      %v1134 = vunpack.c.l.b16 %v846
      %v1135 = vunpack.c.l.b16 %v847
      %v1136 = vunpack.c.l.b16 %v848
      %v1137 = vpack.c.b16 %v994, %v993
      %v1138 = vpack.c.b16 %v996, %v995
      %v1139 = vpack.c.b16 %v998, %v997
      %v1140 = vpack.c.b16 %v1000, %v999
      %v1141 = vpack.c.b16 %v1002, %v1001
      %v1142 = vpack.c.b16 %v1004, %v1003
      %v1143 = vpack.c.b16 %v1006, %v1005
      %v1144 = vpack.c.b16 %v1008, %v1007
      %v1145 = vpack.c.b16 %v1010, %v1009
      %v1146 = vpack.c.b16 %v1012, %v1011
      %v1147 = vpack.c.b16 %v1014, %v1013
      %v1148 = vpack.c.b16 %v1016, %v1015
      %v1149 = vpack.c.b16 %v1018, %v1017
      %v1150 = vpack.c.b16 %v1020, %v1019
      %v1151 = vpack.c.b16 %v1022, %v1021
      %v1152 = vpack.c.b16 %v1024, %v1023
      %v1153 = vpack.c.b16 %v1026, %v1025
      %v1154 = vpack.c.b16 %v1028, %v1027
      %v1155 = vpack.c.b16 %v1030, %v1029
      %v1156 = vpack.c.b16 %v1032, %v1031
      %v1157 = vpack.c.b16 %v1034, %v1033
      %v1158 = vpack.c.b16 %v1036, %v1035
      %v1159 = vpack.c.b16 %v1038, %v1037
      %v1160 = vpack.c.b16 %v1040, %v1039
      %v1161 = vpack.c.b16 %v1042, %v1041
      %v1162 = vpack.c.b16 %v1044, %v1043
      %v1163 = vpack.c.b16 %v1046, %v1045
      %v1164 = vpack.c.b16 %v1048, %v1047
      %v1165 = vpack.c.b16 %v1050, %v1049
      %v1166 = vpack.c.b16 %v1052, %v1051
      %v1167 = vpack.c.b16 %v1054, %v1053
      %v1168 = vpack.c.b16 %v1056, %v1055
      %v1169 = vpack.c.b16 %v1058, %v1057
      %v1170 = vpack.c.b16 %v1060, %v1059
      %v1171 = vpack.c.b16 %v1062, %v1061
      %v1172 = vpack.c.b16 %v1064, %v1063
      %v1173 = vpack.c.b16 %v1066, %v1065
      %v1174 = vpack.c.b16 %v1068, %v1067
      %v1175 = vpack.c.b16 %v1070, %v1069
      %v1176 = vpack.c.b16 %v1072, %v1071
      %v1177 = vpack.c.b16 %v1074, %v1073
      %v1178 = vpack.c.b16 %v1076, %v1075
      %v1179 = vpack.c.b16 %v1078, %v1077
      %v1180 = vpack.c.b16 %v1080, %v1079
      %v1181 = vpack.c.b16 %v1082, %v1081
      %v1182 = vpack.c.b16 %v1084, %v1083
      %v1183 = vpack.c.b16 %v1086, %v1085
      %v1184 = vpack.c.b16 %v1088, %v1087
      %v1185 = vpack.c.b16 %v1090, %v1089
      %v1186 = vpack.c.b16 %v1092, %v1091
      %v1187 = vpack.c.b16 %v1094, %v1093
      %v1188 = vpack.c.b16 %v1096, %v1095
      %v1189 = vpack.c.b16 %v1098, %v1097
      %v1190 = vpack.c.b16 %v1100, %v1099
      %v1191 = vpack.c.b16 %v1102, %v1101
      %v1192 = vpack.c.b16 %v1104, %v1103
      %v1193 = vpack.c.b16 %v1106, %v1105
      %v1194 = vpack.c.b16 %v1108, %v1107
      %v1195 = vpack.c.b16 %v1110, %v1109
      %v1196 = vpack.c.b16 %v1112, %v1111
      %v1197 = vpack.c.b16 %v1114, %v1113
      %v1198 = vpack.c.b16 %v1116, %v1115
      %v1199 = vpack.c.b16 %v1118, %v1117
      %v1200 = vpack.c.b16 %v1120, %v1119
      %v1201 = vpack.c.b16 %v1122, %v1121
      %v1202 = vpack.c.b16 %v1124, %v1123
      %v1203 = vpack.c.b16 %v1126, %v1125
      %v1204 = vpack.c.b16 %v1128, %v1127
      %v1205 = vpack.c.b16 %v1130, %v1129
      %v1206 = vpack.c.b16 %v1132, %v1131
      %v1207 = vpack.c.b16 %v1134, %v1133
      %v1208 = vpack.c.b16 %v1136, %v1135
      %1281 = vmatprep.subr.bf16.mxu0 0
      %1282 = vmatpush1.bf16.msra.mxu0 %v1137
      %1283 = vmatprep.subr.bf16.mxu0 0
      %1284 = vmatpush1.bf16.msra.mxu0 %v1138
      %1285 = vmatprep.subr.bf16.mxu0 0
      %1286 = vmatpush1.bf16.msra.mxu0 %v1139
      %1287 = vmatprep.subr.bf16.mxu0 0
      %1288 = vmatpush1.bf16.msra.mxu0 %v1140
      %1289 = vmatprep.subr.bf16.mxu0 0
      %1290 = vmatpush1.bf16.msra.mxu0 %v1141
      %1291 = vmatprep.subr.bf16.mxu0 0
      %1292 = vmatpush1.bf16.msra.mxu0 %v1142
      %1293 = vmatprep.subr.bf16.mxu0 0
      %1294 = vmatpush1.bf16.msra.mxu0 %v1143
      %1295 = vmatprep.subr.bf16.mxu0 0
      %1296 = vmatpush1.bf16.msra.mxu0 %v1144
      %1297 = vmatprep.subr.bf16.mxu0 0
      %1298 = vmatpush1.bf16.msra.mxu0 %v1145
      %1299 = vmatprep.subr.bf16.mxu0 0
      %1300 = vmatpush1.bf16.msra.mxu0 %v1146
      %1301 = vmatprep.subr.bf16.mxu0 0
      %1302 = vmatpush1.bf16.msra.mxu0 %v1147
      %1303 = vmatprep.subr.bf16.mxu0 0
      %1304 = vmatpush1.bf16.msra.mxu0 %v1148
      %1305 = vmatprep.subr.bf16.mxu0 0
      %1306 = vmatpush1.bf16.msra.mxu0 %v1149
      %1307 = vmatprep.subr.bf16.mxu0 0
      %1308 = vmatpush1.bf16.msra.mxu0 %v1150
      %1309 = vmatprep.subr.bf16.mxu0 0
      %1310 = vmatpush1.bf16.msra.mxu0 %v1151
      %1311 = vmatprep.subr.bf16.mxu0 0
      %1312 = vmatpush1.bf16.msra.mxu0 %v1152
      %1313 = vmatprep.mubr.bf16.mxu0 %v652
      %1314 = vmatmul.mubr.bf16.gmra.mrb[0].mxu0 %v651
      %v1315 = vpop.f32.mrb[0].mxu0
      %v1316 = vadd.f32 0.0, %v1315
      %v1317 = vpop.f32.mrb[0].mxu0
      %v1318 = vpop.f32.mrb[0].mxu0
      %v1319 = vadd.f32 0.0, %v1318
      %v1320 = vpop.f32.mrb[0].mxu0
      %1321 = vmatprep.mubr.bf16.mxu0 %v655
      %1322 = vmatmul.mubr.bf16.gmra.mrb[0].mxu0 %v654
      %v1323 = vpop.f32.mrb[0].mxu0
      %v1324 = vadd.f32 0.0, %v1323
      %v1325 = vpop.f32.mrb[0].mxu0
      %v1326 = vpop.f32.mrb[0].mxu0
      %v1327 = vadd.f32 0.0, %v1326
      %v1328 = vpop.f32.mrb[0].mxu0
      %1329 = vmatprep.mubr.bf16.mxu0 %v658
      %1330 = vmatmul.mubr.bf16.gmra.mrb[0].mxu0 %v657
      %v1331 = vpop.f32.mrb[0].mxu0
      %v1332 = vadd.f32 0.0, %v1331
      %v1333 = vpop.f32.mrb[0].mxu0
      %v1334 = vpop.f32.mrb[0].mxu0
      %v1335 = vadd.f32 0.0, %v1334
      %v1336 = vpop.f32.mrb[0].mxu0
      %1337 = vmatprep.mubr.bf16.mxu0 %v661
      %1338 = vmatmul.mubr.bf16.gmra.mrb[0].mxu0 %v660
      %v1339 = vpop.f32.mrb[0].mxu0
      %v1340 = vadd.f32 0.0, %v1339
      %v1341 = vpop.f32.mrb[0].mxu0
      %v1342 = vpop.f32.mrb[0].mxu0
      %v1343 = vadd.f32 0.0, %v1342
      %v1344 = vpop.f32.mrb[0].mxu0
      %1345 = vmatprep.mubr.bf16.mxu0 %v664
      %1346 = vmatmul.mubr.bf16.gmra.mrb[0].mxu0 %v663
      %v1347 = vpop.f32.mrb[0].mxu0
      %v1348 = vadd.f32 0.0, %v1347
      %v1349 = vpop.f32.mrb[0].mxu0
      %v1350 = vpop.f32.mrb[0].mxu0
      %v1351 = vadd.f32 0.0, %v1350
      %v1352 = vpop.f32.mrb[0].mxu0
      %1353 = vmatprep.mubr.bf16.mxu0 %v667
      %1354 = vmatmul.mubr.bf16.gmra.mrb[0].mxu0 %v666
      %v1355 = vpop.f32.mrb[0].mxu0
      %v1356 = vadd.f32 0.0, %v1355
      %v1357 = vpop.f32.mrb[0].mxu0
      %v1358 = vpop.f32.mrb[0].mxu0
      %v1359 = vadd.f32 0.0, %v1358
      %v1360 = vpop.f32.mrb[0].mxu0
      %1361 = vmatprep.mubr.bf16.mxu0 %v670
      %1362 = vmatmul.mubr.bf16.gmra.mrb[0].mxu0 %v669
      %v1363 = vpop.f32.mrb[0].mxu0
      %v1364 = vadd.f32 0.0, %v1363
      %v1365 = vpop.f32.mrb[0].mxu0
      %v1366 = vpop.f32.mrb[0].mxu0
      %v1367 = vadd.f32 0.0, %v1366
      %v1368 = vpop.f32.mrb[0].mxu0
      %1369 = vmatprep.mubr.bf16.mxu0 %v673
      %1370 = vmatmul.mubr.bf16.gmra.mrb[0].mxu0 %v672
      %v1371 = vpop.f32.mrb[0].mxu0
      %v1372 = vadd.f32 0.0, %v1371
      %v1373 = vpop.f32.mrb[0].mxu0
      %v1374 = vpop.f32.mrb[0].mxu0
      %v1375 = vadd.f32 0.0, %v1374
      %v1376 = vpop.f32.mrb[0].mxu0
      %1377 = vmatprep.mubr.bf16.mxu0 %v676
      %1378 = vmatmul.mubr.bf16.gmra.mrb[0].mxu0 %v675
      %v1379 = vpop.f32.mrb[0].mxu0
      %v1380 = vadd.f32 0.0, %v1379
      %v1381 = vpop.f32.mrb[0].mxu0
      %v1382 = vpop.f32.mrb[0].mxu0
      %v1383 = vadd.f32 0.0, %v1382
      %v1384 = vpop.f32.mrb[0].mxu0
      %1385 = vmatprep.mubr.bf16.mxu0 %v679
      %1386 = vmatmul.mubr.bf16.gmra.mrb[0].mxu0 %v678
      %v1387 = vpop.f32.mrb[0].mxu0
      %v1388 = vadd.f32 0.0, %v1387
      %v1389 = vpop.f32.mrb[0].mxu0
      %v1390 = vpop.f32.mrb[0].mxu0
      %v1391 = vadd.f32 0.0, %v1390
      %v1392 = vpop.f32.mrb[0].mxu0
      %1393 = vmatprep.mubr.bf16.mxu0 %v682
      %1394 = vmatmul.mubr.bf16.gmra.mrb[0].mxu0 %v681
      %v1395 = vpop.f32.mrb[0].mxu0
      %v1396 = vadd.f32 0.0, %v1395
      %v1397 = vpop.f32.mrb[0].mxu0
      %v1398 = vpop.f32.mrb[0].mxu0
      %v1399 = vadd.f32 0.0, %v1398
      %v1400 = vpop.f32.mrb[0].mxu0
      %1401 = vmatprep.mubr.bf16.mxu0 %v685
      %1402 = vmatmul.mubr.bf16.gmra.mrb[0].mxu0 %v684
      %v1403 = vpop.f32.mrb[0].mxu0
      %v1404 = vadd.f32 0.0, %v1403
      %v1405 = vpop.f32.mrb[0].mxu0
      %v1406 = vpop.f32.mrb[0].mxu0
      %v1407 = vadd.f32 0.0, %v1406
      %v1408 = vpop.f32.mrb[0].mxu0
      %1409 = vmatprep.mubr.bf16.mxu0 %v688
      %1410 = vmatmul.mubr.bf16.gmra.mrb[0].mxu0 %v687
      %v1411 = vpop.f32.mrb[0].mxu0
      %v1412 = vadd.f32 0.0, %v1411
      %v1413 = vpop.f32.mrb[0].mxu0
      %v1414 = vpop.f32.mrb[0].mxu0
      %v1415 = vadd.f32 0.0, %v1414
      %v1416 = vpop.f32.mrb[0].mxu0
      %1417 = vmatprep.mubr.bf16.mxu0 %v691
      %1418 = vmatmul.mubr.bf16.gmra.mrb[0].mxu0 %v690
      %v1419 = vpop.f32.mrb[0].mxu0
      %v1420 = vadd.f32 0.0, %v1419
      %v1421 = vpop.f32.mrb[0].mxu0
      %v1422 = vpop.f32.mrb[0].mxu0
      %v1423 = vadd.f32 0.0, %v1422
      %v1424 = vpop.f32.mrb[0].mxu0
      %1425 = vmatprep.mubr.bf16.mxu0 %v694
      %1426 = vmatmul.mubr.bf16.gmra.mrb[0].mxu0 %v693
      %v1427 = vpop.f32.mrb[0].mxu0
      %v1428 = vadd.f32 0.0, %v1427
      %v1429 = vpop.f32.mrb[0].mxu0
      %v1430 = vpop.f32.mrb[0].mxu0
      %v1431 = vadd.f32 0.0, %v1430
      %v1432 = vpop.f32.mrb[0].mxu0
      %1433 = vmatprep.mubr.bf16.mxu0 %v697
      %1434 = vmatmul.mubr.bf16.gmra.mrb[0].mxu0 %v696
      %v1435 = vpop.f32.mrb[0].mxu0
      %v1436 = vadd.f32 0.0, %v1435
      %v1437 = vpop.f32.mrb[0].mxu0
      %v1438 = vpop.f32.mrb[0].mxu0
      %v1439 = vadd.f32 0.0, %v1438
      %v1440 = vpop.f32.mrb[0].mxu0
      %1441 = vdwg.mxu0
      %1442 = vmatprep.subr.bf16.mxu0 0
      %1443 = vmatpush1.bf16.msra.mxu0 %v1153
      %1444 = vmatprep.subr.bf16.mxu0 0
      %1445 = vmatpush1.bf16.msra.mxu0 %v1154
      %1446 = vmatprep.subr.bf16.mxu0 0
      %1447 = vmatpush1.bf16.msra.mxu0 %v1155
      %1448 = vmatprep.subr.bf16.mxu0 0
      %1449 = vmatpush1.bf16.msra.mxu0 %v1156
      %1450 = vmatprep.subr.bf16.mxu0 0
      %1451 = vmatpush1.bf16.msra.mxu0 %v1157
      %1452 = vmatprep.subr.bf16.mxu0 0
      %1453 = vmatpush1.bf16.msra.mxu0 %v1158
      %1454 = vmatprep.subr.bf16.mxu0 0
      %1455 = vmatpush1.bf16.msra.mxu0 %v1159
      %1456 = vmatprep.subr.bf16.mxu0 0
      %1457 = vmatpush1.bf16.msra.mxu0 %v1160
      %1458 = vmatprep.subr.bf16.mxu0 0
      %1459 = vmatpush1.bf16.msra.mxu0 %v1161
      %1460 = vmatprep.subr.bf16.mxu0 0
      %1461 = vmatpush1.bf16.msra.mxu0 %v1162
      %1462 = vmatprep.subr.bf16.mxu0 0
      %1463 = vmatpush1.bf16.msra.mxu0 %v1163
      %1464 = vmatprep.subr.bf16.mxu0 0
      %1465 = vmatpush1.bf16.msra.mxu0 %v1164
      %1466 = vmatprep.subr.bf16.mxu0 0
      %1467 = vmatpush1.bf16.msra.mxu0 %v1165
      %1468 = vmatprep.subr.bf16.mxu0 0
      %1469 = vmatpush1.bf16.msra.mxu0 %v1166
      %1470 = vmatprep.subr.bf16.mxu0 0
      %1471 = vmatpush1.bf16.msra.mxu0 %v1167
      %1472 = vmatprep.subr.bf16.mxu0 0
      %1473 = vmatpush1.bf16.msra.mxu0 %v1168
      %1474 = vmatprep.mubr.bf16.mxu0 %v654
      %1475 = vmatmul.mubr.bf16.gmra.mrb[0].mxu0 %v653
      %v1476 = vpop.f32.mrb[0].mxu0
      %v1477 = vadd.f32 %v1316, %v1476
      %v1478 = vpop.f32.mrb[0].mxu0
      %v1479 = vpop.f32.mrb[0].mxu0
      %v1480 = vadd.f32 %v1319, %v1479
      %v1481 = vpop.f32.mrb[0].mxu0
      %1482 = vmatprep.mubr.bf16.mxu0 %v657
      %1483 = vmatmul.mubr.bf16.gmra.mrb[0].mxu0 %v656
      %v1484 = vpop.f32.mrb[0].mxu0
      %v1485 = vadd.f32 %v1324, %v1484
      %v1486 = vpop.f32.mrb[0].mxu0
      %v1487 = vpop.f32.mrb[0].mxu0
      %v1488 = vadd.f32 %v1327, %v1487
      %v1489 = vpop.f32.mrb[0].mxu0
      %1490 = vmatprep.mubr.bf16.mxu0 %v660
      %1491 = vmatmul.mubr.bf16.gmra.mrb[0].mxu0 %v659
      %v1492 = vpop.f32.mrb[0].mxu0
      %v1493 = vadd.f32 %v1332, %v1492
      %v1494 = vpop.f32.mrb[0].mxu0
      %v1495 = vpop.f32.mrb[0].mxu0
      %v1496 = vadd.f32 %v1335, %v1495
      %v1497 = vpop.f32.mrb[0].mxu0
      %1498 = vmatprep.mubr.bf16.mxu0 %v663
      %1499 = vmatmul.mubr.bf16.gmra.mrb[0].mxu0 %v662
      %v1500 = vpop.f32.mrb[0].mxu0
      %v1501 = vadd.f32 %v1340, %v1500
      %v1502 = vpop.f32.mrb[0].mxu0
      %v1503 = vpop.f32.mrb[0].mxu0
      %v1504 = vadd.f32 %v1343, %v1503
      %v1505 = vpop.f32.mrb[0].mxu0
      %1506 = vmatprep.mubr.bf16.mxu0 %v666
      %1507 = vmatmul.mubr.bf16.gmra.mrb[0].mxu0 %v665
      %v1508 = vpop.f32.mrb[0].mxu0
      %v1509 = vadd.f32 %v1348, %v1508
      %v1510 = vpop.f32.mrb[0].mxu0
      %v1511 = vpop.f32.mrb[0].mxu0
      %v1512 = vadd.f32 %v1351, %v1511
      %v1513 = vpop.f32.mrb[0].mxu0
      %1514 = vmatprep.mubr.bf16.mxu0 %v669
      %1515 = vmatmul.mubr.bf16.gmra.mrb[0].mxu0 %v668
      %v1516 = vpop.f32.mrb[0].mxu0
      %v1517 = vadd.f32 %v1356, %v1516
      %v1518 = vpop.f32.mrb[0].mxu0
      %v1519 = vpop.f32.mrb[0].mxu0
      %v1520 = vadd.f32 %v1359, %v1519
      %v1521 = vpop.f32.mrb[0].mxu0
      %1522 = vmatprep.mubr.bf16.mxu0 %v672
      %1523 = vmatmul.mubr.bf16.gmra.mrb[0].mxu0 %v671
      %v1524 = vpop.f32.mrb[0].mxu0
      %v1525 = vadd.f32 %v1364, %v1524
      %v1526 = vpop.f32.mrb[0].mxu0
      %v1527 = vpop.f32.mrb[0].mxu0
      %v1528 = vadd.f32 %v1367, %v1527
      %v1529 = vpop.f32.mrb[0].mxu0
      %1530 = vmatprep.mubr.bf16.mxu0 %v675
      %1531 = vmatmul.mubr.bf16.gmra.mrb[0].mxu0 %v674
      %v1532 = vpop.f32.mrb[0].mxu0
      %v1533 = vadd.f32 %v1372, %v1532
      %v1534 = vpop.f32.mrb[0].mxu0
      %v1535 = vpop.f32.mrb[0].mxu0
      %v1536 = vadd.f32 %v1375, %v1535
      %v1537 = vpop.f32.mrb[0].mxu0
      %1538 = vmatprep.mubr.bf16.mxu0 %v678
      %1539 = vmatmul.mubr.bf16.gmra.mrb[0].mxu0 %v677
      %v1540 = vpop.f32.mrb[0].mxu0
      %v1541 = vadd.f32 %v1380, %v1540
      %v1542 = vpop.f32.mrb[0].mxu0
      %v1543 = vpop.f32.mrb[0].mxu0
      %v1544 = vadd.f32 %v1383, %v1543
      %v1545 = vpop.f32.mrb[0].mxu0
      %1546 = vmatprep.mubr.bf16.mxu0 %v681
      %1547 = vmatmul.mubr.bf16.gmra.mrb[0].mxu0 %v680
      %v1548 = vpop.f32.mrb[0].mxu0
      %v1549 = vadd.f32 %v1388, %v1548
      %v1550 = vpop.f32.mrb[0].mxu0
      %v1551 = vpop.f32.mrb[0].mxu0
      %v1552 = vadd.f32 %v1391, %v1551
      %v1553 = vpop.f32.mrb[0].mxu0
      %1554 = vmatprep.mubr.bf16.mxu0 %v684
      %1555 = vmatmul.mubr.bf16.gmra.mrb[0].mxu0 %v683
      %v1556 = vpop.f32.mrb[0].mxu0
      %v1557 = vadd.f32 %v1396, %v1556
      %v1558 = vpop.f32.mrb[0].mxu0
      %v1559 = vpop.f32.mrb[0].mxu0
      %v1560 = vadd.f32 %v1399, %v1559
      %v1561 = vpop.f32.mrb[0].mxu0
      %1562 = vmatprep.mubr.bf16.mxu0 %v687
      %1563 = vmatmul.mubr.bf16.gmra.mrb[0].mxu0 %v686
      %v1564 = vpop.f32.mrb[0].mxu0
      %v1565 = vadd.f32 %v1404, %v1564
      %v1566 = vpop.f32.mrb[0].mxu0
      %v1567 = vpop.f32.mrb[0].mxu0
      %v1568 = vadd.f32 %v1407, %v1567
      %v1569 = vpop.f32.mrb[0].mxu0
      %1570 = vmatprep.mubr.bf16.mxu0 %v690
      %1571 = vmatmul.mubr.bf16.gmra.mrb[0].mxu0 %v689
      %v1572 = vpop.f32.mrb[0].mxu0
      %v1573 = vadd.f32 %v1412, %v1572
      %v1574 = vpop.f32.mrb[0].mxu0
      %v1575 = vpop.f32.mrb[0].mxu0
      %v1576 = vadd.f32 %v1415, %v1575
      %v1577 = vpop.f32.mrb[0].mxu0
      %1578 = vmatprep.mubr.bf16.mxu0 %v693
      %1579 = vmatmul.mubr.bf16.gmra.mrb[0].mxu0 %v692
      %v1580 = vpop.f32.mrb[0].mxu0
      %v1581 = vadd.f32 %v1420, %v1580
      %v1582 = vpop.f32.mrb[0].mxu0
      %v1583 = vpop.f32.mrb[0].mxu0
      %v1584 = vadd.f32 %v1423, %v1583
      %v1585 = vpop.f32.mrb[0].mxu0
      %1586 = vmatprep.mubr.bf16.mxu0 %v696
      %1587 = vmatmul.mubr.bf16.gmra.mrb[0].mxu0 %v695
      %v1588 = vpop.f32.mrb[0].mxu0
      %v1589 = vadd.f32 %v1428, %v1588
      %v1590 = vpop.f32.mrb[0].mxu0
      %v1591 = vpop.f32.mrb[0].mxu0
      %v1592 = vadd.f32 %v1431, %v1591
      %v1593 = vpop.f32.mrb[0].mxu0
      %1594 = vmatprep.mubr.bf16.mxu0 %v699
      %1595 = vmatmul.mubr.bf16.gmra.mrb[0].mxu0 %v698
      %v1596 = vpop.f32.mrb[0].mxu0
      %v1597 = vadd.f32 %v1436, %v1596
      %v1598 = vpop.f32.mrb[0].mxu0
      %v1599 = vpop.f32.mrb[0].mxu0
      %v1600 = vadd.f32 %v1439, %v1599
      %v1601 = vpop.f32.mrb[0].mxu0
      %1602 = vdwg.mxu0
      %1603 = vmatprep.subr.bf16.mxu0 0
      %1604 = vmatpush1.bf16.msra.mxu0 %v1169
      %1605 = vmatprep.subr.bf16.mxu0 0
      %1606 = vmatpush1.bf16.msra.mxu0 %v1170
      %1607 = vmatprep.subr.bf16.mxu0 0
      %1608 = vmatpush1.bf16.msra.mxu0 %v1171
      %1609 = vmatprep.subr.bf16.mxu0 0
      %1610 = vmatpush1.bf16.msra.mxu0 %v1172
      %1611 = vmatprep.subr.bf16.mxu0 0
      %1612 = vmatpush1.bf16.msra.mxu0 %v1173
      %1613 = vmatprep.subr.bf16.mxu0 0
      %1614 = vmatpush1.bf16.msra.mxu0 %v1174
      %1615 = vmatprep.subr.bf16.mxu0 0
      %1616 = vmatpush1.bf16.msra.mxu0 %v1175
      %1617 = vmatprep.subr.bf16.mxu0 0
      %1618 = vmatpush1.bf16.msra.mxu0 %v1176
      %1619 = vmatprep.subr.bf16.mxu0 0
      %1620 = vmatpush1.bf16.msra.mxu0 %v1177
      %1621 = vmatprep.subr.bf16.mxu0 0
      %1622 = vmatpush1.bf16.msra.mxu0 %v1178
      %1623 = vmatprep.subr.bf16.mxu0 0
      %1624 = vmatpush1.bf16.msra.mxu0 %v1179
      %1625 = vmatprep.subr.bf16.mxu0 0
      %1626 = vmatpush1.bf16.msra.mxu0 %v1180
      %1627 = vmatprep.subr.bf16.mxu0 0
      %1628 = vmatpush1.bf16.msra.mxu0 %v1181
      %1629 = vmatprep.subr.bf16.mxu0 0
      %1630 = vmatpush1.bf16.msra.mxu0 %v1182
      %1631 = vmatprep.subr.bf16.mxu0 0
      %1632 = vmatpush1.bf16.msra.mxu0 %v1183
      %1633 = vmatprep.subr.bf16.mxu0 0
      %1634 = vmatpush1.bf16.msra.mxu0 %v1184
      %1635 = vmatprep.mubr.bf16.mxu0 %v656
      %1636 = vmatmul.mubr.bf16.gmra.mrb[0].mxu0 %v655
      %v1637 = vpop.f32.mrb[0].mxu0
      %v1638 = vadd.f32 %v1477, %v1637
      %v1639 = vpop.f32.mrb[0].mxu0
      %v1640 = vpop.f32.mrb[0].mxu0
      %v1641 = vadd.f32 %v1480, %v1640
      %v1642 = vpop.f32.mrb[0].mxu0
      %1643 = vmatprep.mubr.bf16.mxu0 %v659
      %1644 = vmatmul.mubr.bf16.gmra.mrb[0].mxu0 %v658
      %v1645 = vpop.f32.mrb[0].mxu0
      %v1646 = vadd.f32 %v1485, %v1645
      %v1647 = vpop.f32.mrb[0].mxu0
      %v1648 = vpop.f32.mrb[0].mxu0
      %v1649 = vadd.f32 %v1488, %v1648
      %v1650 = vpop.f32.mrb[0].mxu0
      %1651 = vmatprep.mubr.bf16.mxu0 %v662
      %1652 = vmatmul.mubr.bf16.gmra.mrb[0].mxu0 %v661
      %v1653 = vpop.f32.mrb[0].mxu0
      %v1654 = vadd.f32 %v1493, %v1653
      %v1655 = vpop.f32.mrb[0].mxu0
      %v1656 = vpop.f32.mrb[0].mxu0
      %v1657 = vadd.f32 %v1496, %v1656
      %v1658 = vpop.f32.mrb[0].mxu0
      %1659 = vmatprep.mubr.bf16.mxu0 %v665
      %1660 = vmatmul.mubr.bf16.gmra.mrb[0].mxu0 %v664
      %v1661 = vpop.f32.mrb[0].mxu0
      %v1662 = vadd.f32 %v1501, %v1661
      %v1663 = vpop.f32.mrb[0].mxu0
      %v1664 = vpop.f32.mrb[0].mxu0
      %v1665 = vadd.f32 %v1504, %v1664
      %v1666 = vpop.f32.mrb[0].mxu0
      %1667 = vmatprep.mubr.bf16.mxu0 %v668
      %1668 = vmatmul.mubr.bf16.gmra.mrb[0].mxu0 %v667
      %v1669 = vpop.f32.mrb[0].mxu0
      %v1670 = vadd.f32 %v1509, %v1669
      %v1671 = vpop.f32.mrb[0].mxu0
      %v1672 = vpop.f32.mrb[0].mxu0
      %v1673 = vadd.f32 %v1512, %v1672
      %v1674 = vpop.f32.mrb[0].mxu0
      %1675 = vmatprep.mubr.bf16.mxu0 %v671
      %1676 = vmatmul.mubr.bf16.gmra.mrb[0].mxu0 %v670
      %v1677 = vpop.f32.mrb[0].mxu0
      %v1678 = vadd.f32 %v1517, %v1677
      %v1679 = vpop.f32.mrb[0].mxu0
      %v1680 = vpop.f32.mrb[0].mxu0
      %v1681 = vadd.f32 %v1520, %v1680
      %v1682 = vpop.f32.mrb[0].mxu0
      %1683 = vmatprep.mubr.bf16.mxu0 %v674
      %1684 = vmatmul.mubr.bf16.gmra.mrb[0].mxu0 %v673
      %v1685 = vpop.f32.mrb[0].mxu0
      %v1686 = vadd.f32 %v1525, %v1685
      %v1687 = vpop.f32.mrb[0].mxu0
      %v1688 = vpop.f32.mrb[0].mxu0
      %v1689 = vadd.f32 %v1528, %v1688
      %v1690 = vpop.f32.mrb[0].mxu0
      %1691 = vmatprep.mubr.bf16.mxu0 %v677
      %1692 = vmatmul.mubr.bf16.gmra.mrb[0].mxu0 %v676
      %v1693 = vpop.f32.mrb[0].mxu0
      %v1694 = vadd.f32 %v1533, %v1693
      %v1695 = vpop.f32.mrb[0].mxu0
      %v1696 = vpop.f32.mrb[0].mxu0
      %v1697 = vadd.f32 %v1536, %v1696
      %v1698 = vpop.f32.mrb[0].mxu0
      %1699 = vmatprep.mubr.bf16.mxu0 %v680
      %1700 = vmatmul.mubr.bf16.gmra.mrb[0].mxu0 %v679
      %v1701 = vpop.f32.mrb[0].mxu0
      %v1702 = vadd.f32 %v1541, %v1701
      %v1703 = vpop.f32.mrb[0].mxu0
      %v1704 = vpop.f32.mrb[0].mxu0
      %v1705 = vadd.f32 %v1544, %v1704
      %v1706 = vpop.f32.mrb[0].mxu0
      %1707 = vmatprep.mubr.bf16.mxu0 %v683
      %1708 = vmatmul.mubr.bf16.gmra.mrb[0].mxu0 %v682
      %v1709 = vpop.f32.mrb[0].mxu0
      %v1710 = vadd.f32 %v1549, %v1709
      %v1711 = vpop.f32.mrb[0].mxu0
      %v1712 = vpop.f32.mrb[0].mxu0
      %v1713 = vadd.f32 %v1552, %v1712
      %v1714 = vpop.f32.mrb[0].mxu0
      %1715 = vmatprep.mubr.bf16.mxu0 %v686
      %1716 = vmatmul.mubr.bf16.gmra.mrb[0].mxu0 %v685
      %v1717 = vpop.f32.mrb[0].mxu0
      %v1718 = vadd.f32 %v1557, %v1717
      %v1719 = vpop.f32.mrb[0].mxu0
      %v1720 = vpop.f32.mrb[0].mxu0
      %v1721 = vadd.f32 %v1560, %v1720
      %v1722 = vpop.f32.mrb[0].mxu0
      %1723 = vmatprep.mubr.bf16.mxu0 %v689
      %1724 = vmatmul.mubr.bf16.gmra.mrb[0].mxu0 %v688
      %v1725 = vpop.f32.mrb[0].mxu0
      %v1726 = vadd.f32 %v1565, %v1725
      %v1727 = vpop.f32.mrb[0].mxu0
      %v1728 = vpop.f32.mrb[0].mxu0
      %v1729 = vadd.f32 %v1568, %v1728
      %v1730 = vpop.f32.mrb[0].mxu0
      %1731 = vmatprep.mubr.bf16.mxu0 %v692
      %1732 = vmatmul.mubr.bf16.gmra.mrb[0].mxu0 %v691
      %v1733 = vpop.f32.mrb[0].mxu0
      %v1734 = vadd.f32 %v1573, %v1733
      %v1735 = vpop.f32.mrb[0].mxu0
      %v1736 = vpop.f32.mrb[0].mxu0
      %v1737 = vadd.f32 %v1576, %v1736
      %v1738 = vpop.f32.mrb[0].mxu0
      %1739 = vmatprep.mubr.bf16.mxu0 %v695
      %1740 = vmatmul.mubr.bf16.gmra.mrb[0].mxu0 %v694
      %v1741 = vpop.f32.mrb[0].mxu0
      %v1742 = vadd.f32 %v1581, %v1741
      %v1743 = vpop.f32.mrb[0].mxu0
      %v1744 = vpop.f32.mrb[0].mxu0
      %v1745 = vadd.f32 %v1584, %v1744
      %v1746 = vpop.f32.mrb[0].mxu0
      %1747 = vmatprep.mubr.bf16.mxu0 %v698
      %1748 = vmatmul.mubr.bf16.gmra.mrb[0].mxu0 %v697
      %v1749 = vpop.f32.mrb[0].mxu0
      %v1750 = vadd.f32 %v1589, %v1749
      %v1751 = vpop.f32.mrb[0].mxu0
      %v1752 = vpop.f32.mrb[0].mxu0
      %v1753 = vadd.f32 %v1592, %v1752
      %v1754 = vpop.f32.mrb[0].mxu0
      %1755 = vmatprep.mubr.bf16.mxu0 %v701
      %1756 = vmatmul.mubr.bf16.gmra.mrb[0].mxu0 %v700
      %v1757 = vpop.f32.mrb[0].mxu0
      %v1758 = vadd.f32 %v1597, %v1757
      %v1759 = vpop.f32.mrb[0].mxu0
      %v1760 = vpop.f32.mrb[0].mxu0
      %v1761 = vadd.f32 %v1600, %v1760
      %v1762 = vpop.f32.mrb[0].mxu0
      %1763 = vdwg.mxu0
      %1764 = vmatprep.subr.bf16.mxu0 0
      %1765 = vmatpush1.bf16.msra.mxu0 %v1185
      %1766 = vmatprep.subr.bf16.mxu0 0
      %1767 = vmatpush1.bf16.msra.mxu0 %v1186
      %1768 = vmatprep.subr.bf16.mxu0 0
      %1769 = vmatpush1.bf16.msra.mxu0 %v1187
      %1770 = vmatprep.subr.bf16.mxu0 0
      %1771 = vmatpush1.bf16.msra.mxu0 %v1188
      %1772 = vmatprep.subr.bf16.mxu0 0
      %1773 = vmatpush1.bf16.msra.mxu0 %v1189
      %1774 = vmatprep.subr.bf16.mxu0 0
      %1775 = vmatpush1.bf16.msra.mxu0 %v1190
      %1776 = vmatprep.subr.bf16.mxu0 0
      %1777 = vmatpush1.bf16.msra.mxu0 %v1191
      %1778 = vmatprep.subr.bf16.mxu0 0
      %1779 = vmatpush1.bf16.msra.mxu0 %v1192
      %1780 = vmatprep.subr.bf16.mxu0 0
      %1781 = vmatpush1.bf16.msra.mxu0 %v1193
      %1782 = vmatprep.subr.bf16.mxu0 0
      %1783 = vmatpush1.bf16.msra.mxu0 %v1194
      %1784 = vmatprep.subr.bf16.mxu0 0
      %1785 = vmatpush1.bf16.msra.mxu0 %v1195
      %1786 = vmatprep.subr.bf16.mxu0 0
      %1787 = vmatpush1.bf16.msra.mxu0 %v1196
      %1788 = vmatprep.subr.bf16.mxu0 0
      %1789 = vmatpush1.bf16.msra.mxu0 %v1197
      %1790 = vmatprep.subr.bf16.mxu0 0
      %1791 = vmatpush1.bf16.msra.mxu0 %v1198
      %1792 = vmatprep.subr.bf16.mxu0 0
      %1793 = vmatpush1.bf16.msra.mxu0 %v1199
      %1794 = vmatprep.subr.bf16.mxu0 0
      %1795 = vmatpush1.bf16.msra.mxu0 %v1200
      %1796 = vmatprep.mubr.bf16.mxu0 %v658
      %1797 = vmatmul.mubr.bf16.gmra.mrb[0].mxu0 %v657
      %v1798 = vpop.f32.mrb[0].mxu0
      %v1799 = vadd.f32 %v1638, %v1798
      %v1800 = vpop.f32.mrb[0].mxu0
      %v1801 = vpop.f32.mrb[0].mxu0
      %v1802 = vadd.f32 %v1641, %v1801
      %v1803 = vpop.f32.mrb[0].mxu0
      %1804 = vmatprep.mubr.bf16.mxu0 %v661
      %1805 = vmatmul.mubr.bf16.gmra.mrb[0].mxu0 %v660
      %v1806 = vpop.f32.mrb[0].mxu0
      %v1807 = vadd.f32 %v1646, %v1806
      %v1808 = vpop.f32.mrb[0].mxu0
      %v1809 = vpop.f32.mrb[0].mxu0
      %v1810 = vadd.f32 %v1649, %v1809
      %v1811 = vpop.f32.mrb[0].mxu0
      %1812 = vmatprep.mubr.bf16.mxu0 %v664
      %1813 = vmatmul.mubr.bf16.gmra.mrb[0].mxu0 %v663
      %v1814 = vpop.f32.mrb[0].mxu0
      %v1815 = vadd.f32 %v1654, %v1814
      %v1816 = vpop.f32.mrb[0].mxu0
      %v1817 = vpop.f32.mrb[0].mxu0
      %v1818 = vadd.f32 %v1657, %v1817
      %v1819 = vpop.f32.mrb[0].mxu0
      %1820 = vmatprep.mubr.bf16.mxu0 %v667
      %1821 = vmatmul.mubr.bf16.gmra.mrb[0].mxu0 %v666
      %v1822 = vpop.f32.mrb[0].mxu0
      %v1823 = vadd.f32 %v1662, %v1822
      %v1824 = vpop.f32.mrb[0].mxu0
      %v1825 = vpop.f32.mrb[0].mxu0
      %v1826 = vadd.f32 %v1665, %v1825
      %v1827 = vpop.f32.mrb[0].mxu0
      %1828 = vmatprep.mubr.bf16.mxu0 %v670
      %1829 = vmatmul.mubr.bf16.gmra.mrb[0].mxu0 %v669
      %v1830 = vpop.f32.mrb[0].mxu0
      %v1831 = vadd.f32 %v1670, %v1830
      %v1832 = vpop.f32.mrb[0].mxu0
      %v1833 = vpop.f32.mrb[0].mxu0
      %v1834 = vadd.f32 %v1673, %v1833
      %v1835 = vpop.f32.mrb[0].mxu0
      %1836 = vmatprep.mubr.bf16.mxu0 %v673
      %1837 = vmatmul.mubr.bf16.gmra.mrb[0].mxu0 %v672
      %v1838 = vpop.f32.mrb[0].mxu0
      %v1839 = vadd.f32 %v1678, %v1838
      %v1840 = vpop.f32.mrb[0].mxu0
      %v1841 = vpop.f32.mrb[0].mxu0
      %v1842 = vadd.f32 %v1681, %v1841
      %v1843 = vpop.f32.mrb[0].mxu0
      %1844 = vmatprep.mubr.bf16.mxu0 %v676
      %1845 = vmatmul.mubr.bf16.gmra.mrb[0].mxu0 %v675
      %v1846 = vpop.f32.mrb[0].mxu0
      %v1847 = vadd.f32 %v1686, %v1846
      %v1848 = vpop.f32.mrb[0].mxu0
      %v1849 = vpop.f32.mrb[0].mxu0
      %v1850 = vadd.f32 %v1689, %v1849
      %v1851 = vpop.f32.mrb[0].mxu0
      %1852 = vmatprep.mubr.bf16.mxu0 %v679
      %1853 = vmatmul.mubr.bf16.gmra.mrb[0].mxu0 %v678
      %v1854 = vpop.f32.mrb[0].mxu0
      %v1855 = vadd.f32 %v1694, %v1854
      %v1856 = vpop.f32.mrb[0].mxu0
      %v1857 = vpop.f32.mrb[0].mxu0
      %v1858 = vadd.f32 %v1697, %v1857
      %v1859 = vpop.f32.mrb[0].mxu0
      %1860 = vmatprep.mubr.bf16.mxu0 %v682
      %1861 = vmatmul.mubr.bf16.gmra.mrb[0].mxu0 %v681
      %v1862 = vpop.f32.mrb[0].mxu0
      %v1863 = vadd.f32 %v1702, %v1862
      %v1864 = vpop.f32.mrb[0].mxu0
      %v1865 = vpop.f32.mrb[0].mxu0
      %v1866 = vadd.f32 %v1705, %v1865
      %v1867 = vpop.f32.mrb[0].mxu0
      %1868 = vmatprep.mubr.bf16.mxu0 %v685
      %1869 = vmatmul.mubr.bf16.gmra.mrb[0].mxu0 %v684
      %v1870 = vpop.f32.mrb[0].mxu0
      %v1871 = vadd.f32 %v1710, %v1870
      %v1872 = vpop.f32.mrb[0].mxu0
      %v1873 = vpop.f32.mrb[0].mxu0
      %v1874 = vadd.f32 %v1713, %v1873
      %v1875 = vpop.f32.mrb[0].mxu0
      %1876 = vmatprep.mubr.bf16.mxu0 %v688
      %1877 = vmatmul.mubr.bf16.gmra.mrb[0].mxu0 %v687
      %v1878 = vpop.f32.mrb[0].mxu0
      %v1879 = vadd.f32 %v1718, %v1878
      %v1880 = vpop.f32.mrb[0].mxu0
      %v1881 = vpop.f32.mrb[0].mxu0
      %v1882 = vadd.f32 %v1721, %v1881
      %v1883 = vpop.f32.mrb[0].mxu0
      %1884 = vmatprep.mubr.bf16.mxu0 %v691
      %1885 = vmatmul.mubr.bf16.gmra.mrb[0].mxu0 %v690
      %v1886 = vpop.f32.mrb[0].mxu0
      %v1887 = vadd.f32 %v1726, %v1886
      %v1888 = vpop.f32.mrb[0].mxu0
      %v1889 = vpop.f32.mrb[0].mxu0
      %v1890 = vadd.f32 %v1729, %v1889
      %v1891 = vpop.f32.mrb[0].mxu0
      %1892 = vmatprep.mubr.bf16.mxu0 %v694
      %1893 = vmatmul.mubr.bf16.gmra.mrb[0].mxu0 %v693
      %v1894 = vpop.f32.mrb[0].mxu0
      %v1895 = vadd.f32 %v1734, %v1894
      %v1896 = vpop.f32.mrb[0].mxu0
      %v1897 = vpop.f32.mrb[0].mxu0
      %v1898 = vadd.f32 %v1737, %v1897
      %v1899 = vpop.f32.mrb[0].mxu0
      %1900 = vmatprep.mubr.bf16.mxu0 %v697
      %1901 = vmatmul.mubr.bf16.gmra.mrb[0].mxu0 %v696
      %v1902 = vpop.f32.mrb[0].mxu0
      %v1903 = vadd.f32 %v1742, %v1902
      %v1904 = vpop.f32.mrb[0].mxu0
      %v1905 = vpop.f32.mrb[0].mxu0
      %v1906 = vadd.f32 %v1745, %v1905
      %v1907 = vpop.f32.mrb[0].mxu0
      %1908 = vmatprep.mubr.bf16.mxu0 %v700
      %1909 = vmatmul.mubr.bf16.gmra.mrb[0].mxu0 %v699
      %v1910 = vpop.f32.mrb[0].mxu0
      %v1911 = vadd.f32 %v1750, %v1910
      %v1912 = vpop.f32.mrb[0].mxu0
      %v1913 = vpop.f32.mrb[0].mxu0
      %v1914 = vadd.f32 %v1753, %v1913
      %v1915 = vpop.f32.mrb[0].mxu0
      %1916 = vmatprep.mubr.bf16.mxu0 %v703
      %1917 = vmatmul.mubr.bf16.gmra.mrb[0].mxu0 %v702
      %v1918 = vpop.f32.mrb[0].mxu0
      %v1919 = vadd.f32 %v1758, %v1918
      %v1920 = vpop.f32.mrb[0].mxu0
      %v1921 = vpop.f32.mrb[0].mxu0
      %v1922 = vadd.f32 %v1761, %v1921
      %v1923 = vpop.f32.mrb[0].mxu0
      %1924 = vdwg.mxu0
      %1925 = vmatprep.subr.bf16.mxu0 0
      %1926 = vmatpush1.bf16.msra.mxu0 %v1201
      %1927 = vmatprep.subr.bf16.mxu0 0
      %1928 = vmatpush1.bf16.msra.mxu0 %v1202
      %1929 = vmatprep.subr.bf16.mxu0 0
      %1930 = vmatpush1.bf16.msra.mxu0 %v1203
      %1931 = vmatprep.subr.bf16.mxu0 0
      %1932 = vmatpush1.bf16.msra.mxu0 %v1204
      %1933 = vmatprep.subr.bf16.mxu0 0
      %1934 = vmatpush1.bf16.msra.mxu0 %v1205
      %1935 = vmatprep.subr.bf16.mxu0 0
      %1936 = vmatpush1.bf16.msra.mxu0 %v1206
      %1937 = vmatprep.subr.bf16.mxu0 0
      %1938 = vmatpush1.bf16.msra.mxu0 %v1207
      %1939 = vmatprep.subr.bf16.mxu0 0
      %1940 = vmatpush1.bf16.msra.mxu0 %v1208
      %1941 = vmatprep.subr.bf16.mxu0 0
      %1942 = vmatpush1.bf16.msra.mxu0 0
      %1943 = vmatprep.subr.bf16.mxu0 0
      %1944 = vmatpush1.bf16.msra.mxu0 0
      %1945 = vmatprep.subr.bf16.mxu0 0
      %1946 = vmatpush1.bf16.msra.mxu0 0
      %1947 = vmatprep.subr.bf16.mxu0 0
      %1948 = vmatpush1.bf16.msra.mxu0 0
      %1949 = vmatprep.subr.bf16.mxu0 0
      %1950 = vmatpush1.bf16.msra.mxu0 0
      %1951 = vmatprep.subr.bf16.mxu0 0
      %1952 = vmatpush1.bf16.msra.mxu0 0
      %1953 = vmatprep.subr.bf16.mxu0 0
      %1954 = vmatpush1.bf16.msra.mxu0 0
      %1955 = vmatprep.subr.bf16.mxu0 0
      %1956 = vmatpush1.bf16.msra.mxu0 0
      %1957 = vmatprep.mubr.bf16.mxu0 0
      %1958 = vmatmul.mubr.bf16.gmra.mrb[0].mxu0 %v659
      %v1959 = vpop.f32.mrb[0].mxu0
      %v1960 = vadd.f32 %v1799, %v1959
      %v1961 = vpop.f32.mrb[0].mxu0
      %v1962 = vpop.f32.mrb[0].mxu0
      %v1963 = vadd.f32 %v1802, %v1962
      %v1964 = vpop.f32.mrb[0].mxu0
      %1965 = vmatprep.mubr.bf16.mxu0 0
      %1966 = vmatmul.mubr.bf16.gmra.mrb[0].mxu0 %v662
      %v1967 = vpop.f32.mrb[0].mxu0
      %v1968 = vadd.f32 %v1807, %v1967
      %v1969 = vpop.f32.mrb[0].mxu0
      %v1970 = vpop.f32.mrb[0].mxu0
      %v1971 = vadd.f32 %v1810, %v1970
      %v1972 = vpop.f32.mrb[0].mxu0
      %1973 = vmatprep.mubr.bf16.mxu0 0
      %1974 = vmatmul.mubr.bf16.gmra.mrb[0].mxu0 %v665
      %v1975 = vpop.f32.mrb[0].mxu0
      %v1976 = vadd.f32 %v1815, %v1975
      %v1977 = vpop.f32.mrb[0].mxu0
      %v1978 = vpop.f32.mrb[0].mxu0
      %v1979 = vadd.f32 %v1818, %v1978
      %v1980 = vpop.f32.mrb[0].mxu0
      %1981 = vmatprep.mubr.bf16.mxu0 0
      %1982 = vmatmul.mubr.bf16.gmra.mrb[0].mxu0 %v668
      %v1983 = vpop.f32.mrb[0].mxu0
      %v1984 = vadd.f32 %v1823, %v1983
      %v1985 = vpop.f32.mrb[0].mxu0
      %v1986 = vpop.f32.mrb[0].mxu0
      %v1987 = vadd.f32 %v1826, %v1986
      %v1988 = vpop.f32.mrb[0].mxu0
      %1989 = vmatprep.mubr.bf16.mxu0 0
      %1990 = vmatmul.mubr.bf16.gmra.mrb[0].mxu0 %v671
      %v1991 = vpop.f32.mrb[0].mxu0
      %v1992 = vadd.f32 %v1831, %v1991
      %v1993 = vpop.f32.mrb[0].mxu0
      %v1994 = vpop.f32.mrb[0].mxu0
      %v1995 = vadd.f32 %v1834, %v1994
      %v1996 = vpop.f32.mrb[0].mxu0
      %1997 = vmatprep.mubr.bf16.mxu0 0
      %1998 = vmatmul.mubr.bf16.gmra.mrb[0].mxu0 %v674
      %v1999 = vpop.f32.mrb[0].mxu0
      %v2000 = vadd.f32 %v1839, %v1999
      %v2001 = vpop.f32.mrb[0].mxu0
      %v2002 = vpop.f32.mrb[0].mxu0
      %v2003 = vadd.f32 %v1842, %v2002
      %v2004 = vpop.f32.mrb[0].mxu0
      %2005 = vmatprep.mubr.bf16.mxu0 0
      %2006 = vmatmul.mubr.bf16.gmra.mrb[0].mxu0 %v677
      %v2007 = vpop.f32.mrb[0].mxu0
      %v2008 = vadd.f32 %v1847, %v2007
      %v2009 = vpop.f32.mrb[0].mxu0
      %v2010 = vpop.f32.mrb[0].mxu0
      %v2011 = vadd.f32 %v1850, %v2010
      %v2012 = vpop.f32.mrb[0].mxu0
      %2013 = vmatprep.mubr.bf16.mxu0 0
      %2014 = vmatmul.mubr.bf16.gmra.mrb[0].mxu0 %v680
      %v2015 = vpop.f32.mrb[0].mxu0
      %v2016 = vadd.f32 %v1855, %v2015
      %v2017 = vpop.f32.mrb[0].mxu0
      %v2018 = vpop.f32.mrb[0].mxu0
      %v2019 = vadd.f32 %v1858, %v2018
      %v2020 = vpop.f32.mrb[0].mxu0
      %2021 = vmatprep.mubr.bf16.mxu0 0
      %2022 = vmatmul.mubr.bf16.gmra.mrb[0].mxu0 %v683
      %v2023 = vpop.f32.mrb[0].mxu0
      %v2024 = vadd.f32 %v1863, %v2023
      %v2025 = vpop.f32.mrb[0].mxu0
      %v2026 = vpop.f32.mrb[0].mxu0
      %v2027 = vadd.f32 %v1866, %v2026
      %v2028 = vpop.f32.mrb[0].mxu0
      %2029 = vmatprep.mubr.bf16.mxu0 0
      %2030 = vmatmul.mubr.bf16.gmra.mrb[0].mxu0 %v686
      %v2031 = vpop.f32.mrb[0].mxu0
      %v2032 = vadd.f32 %v1871, %v2031
      %v2033 = vpop.f32.mrb[0].mxu0
      %v2034 = vpop.f32.mrb[0].mxu0
      %v2035 = vadd.f32 %v1874, %v2034
      %v2036 = vpop.f32.mrb[0].mxu0
      %2037 = vmatprep.mubr.bf16.mxu0 0
      %2038 = vmatmul.mubr.bf16.gmra.mrb[0].mxu0 %v689
      %v2039 = vpop.f32.mrb[0].mxu0
      %v2040 = vadd.f32 %v1879, %v2039
      %v2041 = vpop.f32.mrb[0].mxu0
      %v2042 = vpop.f32.mrb[0].mxu0
      %v2043 = vadd.f32 %v1882, %v2042
      %v2044 = vpop.f32.mrb[0].mxu0
      %2045 = vmatprep.mubr.bf16.mxu0 0
      %2046 = vmatmul.mubr.bf16.gmra.mrb[0].mxu0 %v692
      %v2047 = vpop.f32.mrb[0].mxu0
      %v2048 = vadd.f32 %v1887, %v2047
      %v2049 = vpop.f32.mrb[0].mxu0
      %v2050 = vpop.f32.mrb[0].mxu0
      %v2051 = vadd.f32 %v1890, %v2050
      %v2052 = vpop.f32.mrb[0].mxu0
      %2053 = vmatprep.mubr.bf16.mxu0 0
      %2054 = vmatmul.mubr.bf16.gmra.mrb[0].mxu0 %v695
      %v2055 = vpop.f32.mrb[0].mxu0
      %v2056 = vadd.f32 %v1895, %v2055
      %v2057 = vpop.f32.mrb[0].mxu0
      %v2058 = vpop.f32.mrb[0].mxu0
      %v2059 = vadd.f32 %v1898, %v2058
      %v2060 = vpop.f32.mrb[0].mxu0
      %2061 = vmatprep.mubr.bf16.mxu0 0
      %2062 = vmatmul.mubr.bf16.gmra.mrb[0].mxu0 %v698
      %v2063 = vpop.f32.mrb[0].mxu0
      %v2064 = vadd.f32 %v1903, %v2063
      %v2065 = vpop.f32.mrb[0].mxu0
      %v2066 = vpop.f32.mrb[0].mxu0
      %v2067 = vadd.f32 %v1906, %v2066
      %v2068 = vpop.f32.mrb[0].mxu0
      %2069 = vmatprep.mubr.bf16.mxu0 0
      %2070 = vmatmul.mubr.bf16.gmra.mrb[0].mxu0 %v701
      %v2071 = vpop.f32.mrb[0].mxu0
      %v2072 = vadd.f32 %v1911, %v2071
      %v2073 = vpop.f32.mrb[0].mxu0
      %v2074 = vpop.f32.mrb[0].mxu0
      %v2075 = vadd.f32 %v1914, %v2074
      %v2076 = vpop.f32.mrb[0].mxu0
      %2077 = vmatprep.mubr.bf16.mxu0 0
      %2078 = vmatmul.mubr.bf16.gmra.mrb[0].mxu0 %v704
      %v2079 = vpop.f32.mrb[0].mxu0
      %v2080 = vadd.f32 %v1919, %v2079
      %v2081 = vpop.f32.mrb[0].mxu0
      %v2082 = vpop.f32.mrb[0].mxu0
      %v2083 = vadd.f32 %v1922, %v2082
      %v2084 = vpop.f32.mrb[0].mxu0
      %2085 = vdwg.mxu0
      %v2086 = vld [vmem:[%s2] sm:$0x1]
      %v2088 = vlaneseq
      %v2089 = vshrl.u32 %v2088, 7
      %v2090 = vsub.s32 0, %v2089
      %v2091 = vrot.slane %v2086, %v2090
      %v2093 = vmul.f32 %v1960, %v2091
      %v2094 = vmul.f32 %v1963, %v2091
      %v2095 = vmul.f32 %v1968, %v2091
      %v2096 = vmul.f32 %v1971, %v2091
      %v2097 = vmul.f32 %v1976, %v2091
      %v2098 = vmul.f32 %v1979, %v2091
      %v2099 = vmul.f32 %v1984, %v2091
      %v2100 = vmul.f32 %v1987, %v2091
      %v2101 = vmul.f32 %v1992, %v2091
      %v2102 = vmul.f32 %v1995, %v2091
      %v2103 = vmul.f32 %v2000, %v2091
      %v2104 = vmul.f32 %v2003, %v2091
      %v2105 = vmul.f32 %v2008, %v2091
      %v2106 = vmul.f32 %v2011, %v2091
      %v2107 = vmul.f32 %v2016, %v2091
      %v2108 = vmul.f32 %v2019, %v2091
      %v2109 = vmul.f32 %v2024, %v2091
      %v2110 = vmul.f32 %v2027, %v2091
      %v2111 = vmul.f32 %v2032, %v2091
      %v2112 = vmul.f32 %v2035, %v2091
      %v2113 = vmul.f32 %v2040, %v2091
      %v2114 = vmul.f32 %v2043, %v2091
      %v2115 = vmul.f32 %v2048, %v2091
      %v2116 = vmul.f32 %v2051, %v2091
      %v2117 = vmul.f32 %v2056, %v2091
      %v2118 = vmul.f32 %v2059, %v2091
      %v2119 = vmul.f32 %v2064, %v2091
      %v2120 = vmul.f32 %v2067, %v2091
      %v2121 = vmul.f32 %v2072, %v2091
      %v2122 = vmul.f32 %v2075, %v2091
      %v2123 = vmul.f32 %v2080, %v2091
      %v2124 = vmul.f32 %v2083, %v2091
      %v2125 = vld [vmem:[%s3] sm:$0x1]
      %v2127 = vlaneseq
      %v2128 = vshrl.u32 %v2127, 7
      %v2129 = vsub.s32 0, %v2128
      %v2130 = vrot.slane %v2125, %v2129
      %v2132 = vadd.f32 %v2093, %v2130
      %v2133 = vadd.f32 %v2094, %v2130
      %v2134 = vadd.f32 %v2095, %v2130
      %v2135 = vadd.f32 %v2096, %v2130
      %v2136 = vadd.f32 %v2097, %v2130
      %v2137 = vadd.f32 %v2098, %v2130
      %v2138 = vadd.f32 %v2099, %v2130
      %v2139 = vadd.f32 %v2100, %v2130
      %v2140 = vadd.f32 %v2101, %v2130
      %v2141 = vadd.f32 %v2102, %v2130
      %v2142 = vadd.f32 %v2103, %v2130
      %v2143 = vadd.f32 %v2104, %v2130
      %v2144 = vadd.f32 %v2105, %v2130
      %v2145 = vadd.f32 %v2106, %v2130
      %v2146 = vadd.f32 %v2107, %v2130
      %v2147 = vadd.f32 %v2108, %v2130
      %v2148 = vadd.f32 %v2109, %v2130
      %v2149 = vadd.f32 %v2110, %v2130
      %v2150 = vadd.f32 %v2111, %v2130
      %v2151 = vadd.f32 %v2112, %v2130
      %v2152 = vadd.f32 %v2113, %v2130
      %v2153 = vadd.f32 %v2114, %v2130
      %v2154 = vadd.f32 %v2115, %v2130
      %v2155 = vadd.f32 %v2116, %v2130
      %v2156 = vadd.f32 %v2117, %v2130
      %v2157 = vadd.f32 %v2118, %v2130
      %v2158 = vadd.f32 %v2119, %v2130
      %v2159 = vadd.f32 %v2120, %v2130
      %v2160 = vadd.f32 %v2121, %v2130
      %v2161 = vadd.f32 %v2122, %v2130
      %v2162 = vadd.f32 %v2123, %v2130
      %v2163 = vadd.f32 %v2124, %v2130
      %v2164 = vmax.f32 %v2132, 0.0
      %v2165 = vmax.f32 %v2133, 0.0
      %v2166 = vmax.f32 %v2134, 0.0
      %v2167 = vmax.f32 %v2135, 0.0
      %v2168 = vmax.f32 %v2136, 0.0
      %v2169 = vmax.f32 %v2137, 0.0
      %v2170 = vmax.f32 %v2138, 0.0
      %v2171 = vmax.f32 %v2139, 0.0
      %v2172 = vmax.f32 %v2140, 0.0
      %v2173 = vmax.f32 %v2141, 0.0
      %v2174 = vmax.f32 %v2142, 0.0
      %v2175 = vmax.f32 %v2143, 0.0
      %v2176 = vmax.f32 %v2144, 0.0
      %v2177 = vmax.f32 %v2145, 0.0
      %v2178 = vmax.f32 %v2146, 0.0
      %v2179 = vmax.f32 %v2147, 0.0
      %v2180 = vmax.f32 %v2148, 0.0
      %v2181 = vmax.f32 %v2149, 0.0
      %v2182 = vmax.f32 %v2150, 0.0
      %v2183 = vmax.f32 %v2151, 0.0
      %v2184 = vmax.f32 %v2152, 0.0
      %v2185 = vmax.f32 %v2153, 0.0
      %v2186 = vmax.f32 %v2154, 0.0
      %v2187 = vmax.f32 %v2155, 0.0
      %v2188 = vmax.f32 %v2156, 0.0
      %v2189 = vmax.f32 %v2157, 0.0
      %v2190 = vmax.f32 %v2158, 0.0
      %v2191 = vmax.f32 %v2159, 0.0
      %v2192 = vmax.f32 %v2160, 0.0
      %v2193 = vmax.f32 %v2161, 0.0
      %v2194 = vmax.f32 %v2162, 0.0
      %v2195 = vmax.f32 %v2163, 0.0
      %v2196 = vpack.c.bf16 %v2165, %v2164
      %v2197 = vpack.c.bf16 %v2167, %v2166
      %v2198 = vpack.c.bf16 %v2169, %v2168
      %v2199 = vpack.c.bf16 %v2171, %v2170
      %v2200 = vpack.c.bf16 %v2173, %v2172
      %v2201 = vpack.c.bf16 %v2175, %v2174
      %v2202 = vpack.c.bf16 %v2177, %v2176
      %v2203 = vpack.c.bf16 %v2179, %v2178
      %v2204 = vpack.c.bf16 %v2181, %v2180
      %v2205 = vpack.c.bf16 %v2183, %v2182
      %v2206 = vpack.c.bf16 %v2185, %v2184
      %v2207 = vpack.c.bf16 %v2187, %v2186
      %v2208 = vpack.c.bf16 %v2189, %v2188
      %v2209 = vpack.c.bf16 %v2191, %v2190
      %v2210 = vpack.c.bf16 %v2193, %v2192
      %v2211 = vpack.c.bf16 %v2195, %v2194
      %v2228 = vunpack.c.l.b16 %v2196
      %v2229 = vunpack.c.h.b16 %v2196
      %v2230 = vunpack.c.l.b16 %v2197
      %v2231 = vunpack.c.h.b16 %v2197
      %v2232 = vunpack.c.l.b16 %v2198
      %v2233 = vunpack.c.h.b16 %v2198
      %v2234 = vunpack.c.l.b16 %v2199
      %v2235 = vunpack.c.h.b16 %v2199
      %v2236 = vunpack.c.l.b16 %v2200
      %v2237 = vunpack.c.h.b16 %v2200
      %v2238 = vunpack.c.l.b16 %v2201
      %v2239 = vunpack.c.h.b16 %v2201
      %v2240 = vunpack.c.l.b16 %v2202
      %v2241 = vunpack.c.h.b16 %v2202
      %v2242 = vunpack.c.l.b16 %v2203
      %v2243 = vunpack.c.h.b16 %v2203
      %v2244 = vunpack.c.l.b16 %v2204
      %v2245 = vunpack.c.h.b16 %v2204
      %v2246 = vunpack.c.l.b16 %v2205
      %v2247 = vunpack.c.h.b16 %v2205
      %v2248 = vunpack.c.l.b16 %v2206
      %v2249 = vunpack.c.h.b16 %v2206
      %v2250 = vunpack.c.l.b16 %v2207
      %v2251 = vunpack.c.h.b16 %v2207
      %v2252 = vunpack.c.l.b16 %v2208
      %v2253 = vunpack.c.h.b16 %v2208
      %v2254 = vunpack.c.l.b16 %v2209
      %v2255 = vunpack.c.h.b16 %v2209
      %v2256 = vunpack.c.l.b16 %v2210
      %v2257 = vunpack.c.h.b16 %v2210
      %v2258 = vunpack.c.l.b16 %v2211
      %v2259 = vunpack.c.h.b16 %v2211
      %v2260 = vpack.c.b16 %v2228, %v2228
      %v2261 = vpack.c.b16 %v2229, %v2229
      %v2262 = vpack.c.b16 %v2230, %v2230
      %v2263 = vpack.c.b16 %v2231, %v2231
      %v2264 = vpack.c.b16 %v2232, %v2232
      %v2265 = vpack.c.b16 %v2233, %v2233
      %v2266 = vpack.c.b16 %v2234, %v2234
      %v2267 = vpack.c.b16 %v2235, %v2235
      %v2268 = vpack.c.b16 %v2236, %v2236
      %v2269 = vpack.c.b16 %v2237, %v2237
      %v2270 = vpack.c.b16 %v2238, %v2238
      %v2271 = vpack.c.b16 %v2239, %v2239
      %v2272 = vpack.c.b16 %v2240, %v2240
      %v2273 = vpack.c.b16 %v2241, %v2241
      %v2274 = vpack.c.b16 %v2242, %v2242
      %v2275 = vpack.c.b16 %v2243, %v2243
      %v2276 = vpack.c.b16 %v2244, %v2244
      %v2277 = vpack.c.b16 %v2245, %v2245
      %v2278 = vpack.c.b16 %v2246, %v2246
      %v2279 = vpack.c.b16 %v2247, %v2247
      %v2280 = vpack.c.b16 %v2248, %v2248
      %v2281 = vpack.c.b16 %v2249, %v2249
      %v2282 = vpack.c.b16 %v2250, %v2250
      %v2283 = vpack.c.b16 %v2251, %v2251
      %v2284 = vpack.c.b16 %v2252, %v2252
      %v2285 = vpack.c.b16 %v2253, %v2253
      %v2286 = vpack.c.b16 %v2254, %v2254
      %v2287 = vpack.c.b16 %v2255, %v2255
      %v2288 = vpack.c.b16 %v2256, %v2256
      %v2289 = vpack.c.b16 %v2257, %v2257
      %v2290 = vpack.c.b16 %v2258, %v2258
      %v2291 = vpack.c.b16 %v2259, %v2259
      %2324 = vst [vmem:[%s230] sm:$0xf] %v2260
      %2325 = vst [vmem:[%s230 + $0x4] sm:$0xf] %v2261
      %2326 = vst [vmem:[%s230 + $0x8] sm:$0xf] %v2262
      %2327 = vst [vmem:[%s230 + $0xc] sm:$0xf] %v2263
      %2328 = vst [vmem:[%s230 + $0x10] sm:$0xf] %v2264
      %2329 = vst [vmem:[%s230 + $0x14] sm:$0xf] %v2265
      %2330 = vst [vmem:[%s230 + $0x18] sm:$0xf] %v2266
      %2331 = vst [vmem:[%s230 + $0x1c] sm:$0xf] %v2267
      %2332 = vst [vmem:[%s230 + $0x20] sm:$0xf] %v2268
      %2333 = vst [vmem:[%s230 + $0x24] sm:$0xf] %v2269
      %2334 = vst [vmem:[%s230 + $0x28] sm:$0xf] %v2270
      %2335 = vst [vmem:[%s230 + $0x2c] sm:$0xf] %v2271
      %2336 = vst [vmem:[%s230 + $0x30] sm:$0xf] %v2272
      %2337 = vst [vmem:[%s230 + $0x34] sm:$0xf] %v2273
      %2338 = vst [vmem:[%s230 + $0x38] sm:$0xf] %v2274
      %2339 = vst [vmem:[%s230 + $0x3c] sm:$0xf] %v2275
      %2340 = vst [vmem:[%s230 + $0x40] sm:$0xf] %v2276
      %2341 = vst [vmem:[%s230 + $0x44] sm:$0xf] %v2277
      %2342 = vst [vmem:[%s230 + $0x48] sm:$0xf] %v2278
      %2343 = vst [vmem:[%s230 + $0x4c] sm:$0xf] %v2279
      %2344 = vst [vmem:[%s230 + $0x50] sm:$0xf] %v2280
      %2345 = vst [vmem:[%s230 + $0x54] sm:$0xf] %v2281
      %2346 = vst [vmem:[%s230 + $0x58] sm:$0xf] %v2282
      %2347 = vst [vmem:[%s230 + $0x5c] sm:$0xf] %v2283
      %2348 = vst [vmem:[%s230 + $0x60] sm:$0xf] %v2284
      %2349 = vst [vmem:[%s230 + $0x64] sm:$0xf] %v2285
      %2350 = vst [vmem:[%s230 + $0x68] sm:$0xf] %v2286
      %2351 = vst [vmem:[%s230 + $0x6c] sm:$0xf] %v2287
      %2352 = vst [vmem:[%s230 + $0x70] sm:$0xf] %v2288
      %2353 = vst [vmem:[%s230 + $0x74] sm:$0xf] %v2289
      %2354 = vst [vmem:[%s230 + $0x78] sm:$0xf] %v2290
      %2355 = vst [vmem:[%s230 + $0x7c] sm:$0xf] %v2291
      %v2356 = vadd.f32 %v2164, %v2165
      %v2357 = vadd.f32 %v2356, %v2166
      %v2358 = vadd.f32 %v2357, %v2167
      %v2359 = vadd.f32 %v2358, %v2168
      %v2360 = vadd.f32 %v2359, %v2169
      %v2361 = vadd.f32 %v2360, %v2170
      %v2362 = vadd.f32 %v2361, %v2171
      %v2363 = vadd.f32 %v2362, %v2172
      %v2364 = vadd.f32 %v2363, %v2173
      %v2365 = vadd.f32 %v2364, %v2174
      %v2366 = vadd.f32 %v2365, %v2175
      %v2367 = vadd.f32 %v2366, %v2176
      %v2368 = vadd.f32 %v2367, %v2177
      %v2369 = vadd.f32 %v2368, %v2178
      %v2370 = vadd.f32 %v2369, %v2179
      %v2371 = vadd.f32 %v2370, %v2180
      %v2372 = vadd.f32 %v2371, %v2181
      %v2373 = vadd.f32 %v2372, %v2182
      %v2374 = vadd.f32 %v2373, %v2183
      %v2375 = vadd.f32 %v2374, %v2184
      %v2376 = vadd.f32 %v2375, %v2185
      %v2377 = vadd.f32 %v2376, %v2186
      %v2378 = vadd.f32 %v2377, %v2187
      %v2379 = vadd.f32 %v2378, %v2188
      %v2380 = vadd.f32 %v2379, %v2189
      %v2381 = vadd.f32 %v2380, %v2190
      %v2382 = vadd.f32 %v2381, %v2191
      %v2383 = vadd.f32 %v2382, %v2192
      %v2384 = vadd.f32 %v2383, %v2193
      %v2385 = vadd.f32 %v2384, %v2194
      %v2386 = vadd.f32 %v2385, %v2195
      %v2387 = vrot.slane %v2386, 4
      %v2388 = vadd.f32 %v2386, %v2387
      %v2389 = vrot.slane %v2388, 2
      %v2390 = vadd.f32 %v2388, %v2389
      %v2391 = vrot.slane %v2390, 1
      %v2392 = vadd.f32 %v2390, %v2391
      %v2393 = vrcp.pop 256.0
      %v2394 = vmul.f32 %v2392, %v2393
      %2395 = vst [vmem:[%s233] sm:$0x1] %v2394
      %p2396 = scmp.lt.s32.totalorder %s17, 1
      %s2397 = scalar_select %p2396, %s17, 1
      %s2398 = smul.addr %s2397, 32
      %s2399 = smul.addr %s2398, 4
      %s2400 = scalar_lea.vmem %s4, %s2399
      %p2401 = scmp.lt.s32.totalorder %s17, 1
      %s2402 = scalar_select %p2401, %s17, 1
      %s2403 = scalar_lea.vmem %s5, %s2402
      // Predicated region
      $region37: #{_lambda_.4} parent=35 // pred_check
        %p2404 = pneg %p124
      $region38: #{_lambda_.4} parent=35 // pred_check_branch
        %2406 = sbr.rel (%p2404) target = $region40
      $region39: #{_lambda_.4} parent=35 // pred_region
        _
      $region40: #{_lambda_.4} parent=35 // pred_fallthru
        _
      // Predicated region
      $region41: #{_lambda_.4} parent=35 // pred_check
        %p2407 = pneg %p150
      $region42: #{_lambda_.4} parent=35 // pred_check_branch
        %2409 = sbr.rel (%p2407) target = $region44
      $region43: #{_lambda_.4} parent=35 // pred_region
        _
      $region44: #{_lambda_.4} parent=35 // pred_fallthru
        _
    $region36: #{_lambda_.4} parent=5 // pred_fallthru
      _
    %p2410 = scmp.le.s32.totalorder 2, %s12
    // Predicated region
    $region45: #{_lambda_.4} parent=5 // pred_check
      %p2411 = pneg %p2410
    $region46: #{_lambda_.4} parent=5 // pred_check_branch
      %2413 = sbr.rel (%p2411) target = $region48
    $region47: #{_lambda_.4} parent=5 // pred_region
      %s2414 = ssub.s32 %s12, 2
      // Predicated region
      $region49: #{_lambda_.4} parent=47 // pred_check
        %p2415 = pneg %p130
      $region50: #{_lambda_.4} parent=47 // pred_check_branch
        %2417 = sbr.rel (%p2415) target = $region52
      $region51: #{_lambda_.4} parent=47 // pred_region
        %p2418 = scmp.lt.s32.totalorder %s18, 1
        %s2419 = scalar_select %p2418, %s18, 1
        %s2420 = smul.addr %s2419, 32
        %s2421 = smul.addr %s2420, 4
        %s2422 = scalar_lea.vmem %s4, %s2421
      $region52: #{_lambda_.4} parent=47 // pred_fallthru
        _
      // Predicated region
      $region53: #{_lambda_.4} parent=47 // pred_check
        %p2423 = pneg %p156
      $region54: #{_lambda_.4} parent=47 // pred_check_branch
        %2425 = sbr.rel (%p2423) target = $region56
      $region55: #{_lambda_.4} parent=47 // pred_region
        %p2426 = scmp.lt.s32.totalorder %s18, 1
        %s2427 = scalar_select %p2426, %s18, 1
        %s2428 = scalar_lea.vmem %s5, %s2427
      $region56: #{_lambda_.4} parent=47 // pred_fallthru
        _
    $region48: #{_lambda_.4} parent=5 // pred_fallthru
      _
  $region6: #{_lambda_.4} parent=0 // loop_footer
    %s16 = sadd.s32 1, %s12
  $region7: #{_lambda_.4} parent=0 // loop_footer_branch
    %11 = sbr.rel target = $region3
  $region8: #{_lambda_.4} parent=0 // loop_exit
    _

// kernel: _lambda_.5
$region0: #{_lambda_.5}
  #allocation0 [shape = 'u32[]', space=smem, size = 0x4, offset = 0x4, fixed_abs, tag = 'smem constant byte address 0x4 - core index']
  #allocation1 [shape = 'u32[144,128]{1,0:T(1,128)}', space=vmem, size = 0x12000, scoped, tag = 'internal scratch']
  #allocation2 [shape = 'f32[22,128]{1,0:T(8,128)}', space=vmem, size = 0x3000, scoped, tag = 'scratch operand']
  #allocation3 [shape = 'f32[22,128]{1,0:T(8,128)}', space=vmem, size = 0x3000, scoped, tag = 'scratch operand']
  %s0 = inlined_call_operand.vmem [shape: bf16[2,16,16,128], index: 0, kind: input, shape index: {}]
  %s1 = inlined_call_operand.vmem [shape: f32[2,1,128], index: 1, kind: input, shape index: {}]
  %s2 = inlined_call_operand.vmem [shape: f32[2,49], index: 2, kind: input, shape index: {}]
  %s3 = inlined_call_operand.vmem [shape: f32[2,16,16,128], index: 3, kind: output, shape index: {}]
  %s4 = sld [smem:[#allocation0]]
  $region49: #{_lambda_.5} parent=0
    _
  %s6 = ssub.s32 1, %s4
  %s7 = scalar_select 0, %s6, %s4
  $region1: #{_lambda_.5} parent=0
    #allocation4 [shape = 'u8[1024]{0}', space=smem, size = 0x400, scoped, tag = 'input window, operand 2, single buffered']
    #allocation5 [shape = 's32[2]{0}', space=sflag, size = 0x8, scoped, tag = 'scoped memory for _lambda_.5']
    %8 = vsyncpa [#allocation5], 0
    loop: start=0, step=1, limit=4
    $region2: #{_lambda_.5} parent=1 // loop_pre_header
      _
    $region3: #{_lambda_.5} parent=1 // loop_header
      %s10 = sphi 0, %s14
      %p11 = scmp.ge.s32.totalorder %s10, 4
      %s20 = sphi 0, %s22
      %s23 = sphi 0, %s20
      %s24 = sphi 0, %s23
      %s40 = sphi 0, %s24
      %s46 = sphi 0, %s48
      %s49 = sphi 0, %s46
      %s50 = sphi 0, %s49
      %s66 = sphi 0, %s50
      %s70 = sphi 0, %s70
      %s72 = sphi 0, %s70
      %s73 = sphi 0, %s72
      %s87 = sphi 0, %s73
      %s93 = sphi 0, %s95
      %s96 = sphi 0, %s93
      %s97 = sphi 0, %s96
      %s113 = sphi 0, %s97
    $region4: #{_lambda_.5} parent=1 // loop_header_branch
      %13 = sbr.rel (%p11) target = $region8
    $region5: #{_lambda_.5} parent=1 // loop_body
      %s15 = ssub.s32 %s10, 1
      %s16 = ssub.s32 %s10, 2
      %s17 = sadd.s32 %s10, 1
      %s18 = ssub.s32 %s10, %s17
      %p19 = scmp.eq.s32.totalorder %s18, 0
      %s21 = sadd.s32 %s20, 1
      %s22 = scalar_select %p19, %s20, %s21
      %p25 = pneg %p19
      %p26 = scmp.eq.s32.totalorder %s10, 1
      %p27 = por %p25, %p26
      %p28 = scmp.ne.s32.totalorder %s20, %s23
      %p29 = scmp.eq.s32.totalorder %s10, 0
      %p30 = por %p28, %p29
      %p31 = scmp.ne.s32.totalorder %s20, %s23
      %p32 = scmp.eq.s32.totalorder %s15, 1
      %p33 = por %p31, %p32
      %p34 = scmp.ne.s32.totalorder %s23, %s24
      %p35 = scmp.eq.s32.totalorder %s15, 0
      %p36 = por %p34, %p35
      %p37 = scmp.ne.s32.totalorder %s23, %s24
      %p38 = scmp.eq.s32.totalorder %s16, 1
      %p39 = por %p37, %p38
      %p41 = scmp.ne.s32.totalorder %s24, %s40
      %p42 = scmp.eq.s32.totalorder %s16, 0
      %p43 = por %p41, %p42
      %s44 = ssub.s32 %s10, %s17
      %p45 = scmp.eq.s32.totalorder %s44, 0
      %s47 = sadd.s32 %s46, 1
      %s48 = scalar_select %p45, %s46, %s47
      %p51 = pneg %p45
      %p52 = scmp.eq.s32.totalorder %s10, 1
      %p53 = por %p51, %p52
      %p54 = scmp.ne.s32.totalorder %s46, %s49
      %p55 = scmp.eq.s32.totalorder %s10, 0
      %p56 = por %p54, %p55
      %p57 = scmp.ne.s32.totalorder %s46, %s49
      %p58 = scmp.eq.s32.totalorder %s15, 1
      %p59 = por %p57, %p58
      %p60 = scmp.ne.s32.totalorder %s49, %s50
      %p61 = scmp.eq.s32.totalorder %s15, 0
      %p62 = por %p60, %p61
      %p63 = scmp.ne.s32.totalorder %s49, %s50
      %p64 = scmp.eq.s32.totalorder %s16, 1
      %p65 = por %p63, %p64
      %p67 = scmp.ne.s32.totalorder %s50, %s66
      %p68 = scmp.eq.s32.totalorder %s16, 0
      %p69 = por %p67, %p68
      %s71 = sadd.s32 %s70, 1
      %p74 = scmp.eq.s32.totalorder %s10, 1
      %p75 = scmp.ne.s32.totalorder %s70, %s72
      %p76 = scmp.eq.s32.totalorder %s10, 0
      %p77 = por %p75, %p76
      %p78 = scmp.ne.s32.totalorder %s70, %s72
      %p79 = scmp.eq.s32.totalorder %s15, 1
      %p80 = por %p78, %p79
      %p81 = scmp.ne.s32.totalorder %s72, %s73
      %p82 = scmp.eq.s32.totalorder %s15, 0
      %p83 = por %p81, %p82
      %p84 = scmp.ne.s32.totalorder %s72, %s73
      %p85 = scmp.eq.s32.totalorder %s16, 1
      %p86 = por %p84, %p85
      %p88 = scmp.ne.s32.totalorder %s73, %s87
      %p89 = scmp.eq.s32.totalorder %s16, 0
      %p90 = por %p88, %p89
      %s91 = ssub.s32 %s10, %s17
      %p92 = scmp.eq.s32.totalorder %s91, 0
      %s94 = sadd.s32 %s93, 1
      %s95 = scalar_select %p92, %s93, %s94
      %p98 = pneg %p92
      %p99 = scmp.eq.s32.totalorder %s10, 1
      %p100 = por %p98, %p99
      %p101 = scmp.ne.s32.totalorder %s93, %s96
      %p102 = scmp.eq.s32.totalorder %s10, 0
      %p103 = por %p101, %p102
      %p104 = scmp.ne.s32.totalorder %s93, %s96
      %p105 = scmp.eq.s32.totalorder %s15, 1
      %p106 = por %p104, %p105
      %p107 = scmp.ne.s32.totalorder %s96, %s97
      %p108 = scmp.eq.s32.totalorder %s15, 0
      %p109 = por %p107, %p108
      %p110 = scmp.ne.s32.totalorder %s96, %s97
      %p111 = scmp.eq.s32.totalorder %s16, 1
      %p112 = por %p110, %p111
      %p114 = scmp.ne.s32.totalorder %s97, %s113
      %p115 = scmp.eq.s32.totalorder %s16, 0
      %p116 = por %p114, %p115
      %p117 = scmp.le.s32.totalorder 1, %s10
      %p118 = scmp.lt.s32.totalorder %s10, 3
      %p119 = pnand %p117, %p118
      %p120 = pneg %p119
      // Predicated region
      $region9: #{_lambda_.5} parent=5 // pred_check
        _
      $region10: #{_lambda_.5} parent=5 // pred_check_branch
        %122 = sbr.rel (%p119) target = $region12
      $region11: #{_lambda_.5} parent=5 // pred_region
        %s123 = ssub.s32 %s10, 1
        // Predicated region
        $region13: #{_lambda_.5} parent=11 // pred_check
          %p124 = pneg %p83
        $region14: #{_lambda_.5} parent=11 // pred_check_branch
          %126 = sbr.rel (%p124) target = $region16
        $region15: #{_lambda_.5} parent=11 // pred_region
          %s128 = ssub.s32 32, 32
          %129 = vsyncadd [#allocation5], %s128
          %s131 = sshll.u32 %s2, 4
          %s132 = int_to_ptr.vmem [resolvable:$true] %s131
          %134 = dma.vmem_to_smem %s132, 32, [#allocation4], [#allocation5]
        $region16: #{_lambda_.5} parent=11 // pred_fallthru
          _
      $region12: #{_lambda_.5} parent=5 // pred_fallthru
        _
      %p135 = scmp.lt.s32.totalorder %s10, 2
      // Predicated region
      $region17: #{_lambda_.5} parent=5 // pred_check
        %p136 = pneg %p135
      $region18: #{_lambda_.5} parent=5 // pred_check_branch
        %138 = sbr.rel (%p136) target = $region20
      $region19: #{_lambda_.5} parent=5 // pred_region
        // Predicated region
        $region21: #{_lambda_.5} parent=19 // pred_check
          %p139 = pneg %p30
        $region22: #{_lambda_.5} parent=19 // pred_check_branch
          %141 = sbr.rel (%p139) target = $region24
        $region23: #{_lambda_.5} parent=19 // pred_region
          %p142 = scmp.lt.s32.totalorder %s10, 1
          %s143 = scalar_select %p142, %s10, 1
          %s144 = smul.addr %s143, 32
          %s145 = smul.addr %s144, 4
          %s146 = scalar_lea.vmem %s0, %s145
        $region24: #{_lambda_.5} parent=19 // pred_fallthru
          _
        // Predicated region
        $region25: #{_lambda_.5} parent=19 // pred_check
          %p147 = pneg %p56
        $region26: #{_lambda_.5} parent=19 // pred_check_branch
          %149 = sbr.rel (%p147) target = $region28
        $region27: #{_lambda_.5} parent=19 // pred_region
          %p150 = scmp.lt.s32.totalorder %s10, 1
          %s151 = scalar_select %p150, %s10, 1
          %s152 = scalar_lea.vmem %s1, %s151
        $region28: #{_lambda_.5} parent=19 // pred_fallthru
          _
      $region20: #{_lambda_.5} parent=5 // pred_fallthru
        _
      %p153 = scmp.le.s32.totalorder 1, %s10
      %p154 = scmp.lt.s32.totalorder %s10, 3
      %p155 = pnand %p153, %p154
      %p156 = pneg %p155
      // Predicated region
      $region29: #{_lambda_.5} parent=5 // pred_check
        _
      $region30: #{_lambda_.5} parent=5 // pred_check_branch
        %158 = sbr.rel (%p155) target = $region32
      $region31: #{_lambda_.5} parent=5 // pred_region
        %s159 = ssub.s32 %s10, 1
        // Predicated region
        $region33: #{_lambda_.5} parent=31 // pred_check
          %p160 = pneg %p83
        $region34: #{_lambda_.5} parent=31 // pred_check_branch
          %162 = sbr.rel (%p160) target = $region36
        $region35: #{_lambda_.5} parent=31 // pred_region
          %163 = dma.done [#allocation5], 32
        $region36: #{_lambda_.5} parent=31 // pred_fallthru
          _
        %164 = sfence
        %p165 = scmp.lt.s32.totalorder %s15, 1
        %s166 = scalar_select %p165, %s15, 1
        %s167 = smul.addr %s166, 32
        %s168 = smul.addr %s167, 4
        %s169 = scalar_lea.vmem %s0, %s168
        %p170 = pneg %p36
        %p171 = pneg %p33
        %p172 = scmp.lt.s32.totalorder %s15, 1
        %s173 = scalar_select %p172, %s15, 1
        %s174 = scalar_lea.vmem %s1, %s173
        %p175 = pneg %p62
        %p176 = pneg %p59
        %p177 = pneg %p83
        %p178 = pneg %p80
        %p179 = pneg %p109
        %p180 = pneg %p106
        %p181 = scmp.lt.s32.totalorder %s15, 1
        %s182 = scalar_select %p181, %s15, 1
        %s183 = smul.addr %s182, 32
        %s184 = smul.addr %s183, 8
        %s185 = scalar_lea.vmem %s3, %s184
        %p186 = scmp.lt.s32.totalorder %s15, 1
        %s187 = scalar_select %p186, %s15, 1
        %s188 = smul.addr %s187, 32
        %s189 = smul.addr %s188, 4
        %s190 = scalar_lea.vmem %s0, %s189
        %p191 = scmp.lt.s32.totalorder %s15, 1
        %s192 = scalar_select %p191, %s15, 1
        %s193 = scalar_lea.vmem %s1, %s192
        %p194 = scmp.lt.s32.totalorder %s15, 1
        %s195 = scalar_select %p194, %s15, 1
        %s196 = smul.addr %s195, 32
        %s197 = smul.addr %s196, 8
        %s198 = scalar_lea.vmem %s3, %s197
        %v199 = vld [vmem:[%s190] sm:$0xf]
        %v200 = vld [vmem:[%s190 + $0x4] sm:$0xf]
        %v201 = vld [vmem:[%s190 + $0x8] sm:$0xf]
        %v202 = vld [vmem:[%s190 + $0xc] sm:$0xf]
        %v203 = vld [vmem:[%s190 + $0x10] sm:$0xf]
        %v204 = vld [vmem:[%s190 + $0x14] sm:$0xf]
        %v205 = vld [vmem:[%s190 + $0x18] sm:$0xf]
        %v206 = vld [vmem:[%s190 + $0x1c] sm:$0xf]
        %v207 = vld [vmem:[%s190 + $0x20] sm:$0xf]
        %v208 = vld [vmem:[%s190 + $0x24] sm:$0xf]
        %v209 = vld [vmem:[%s190 + $0x28] sm:$0xf]
        %v210 = vld [vmem:[%s190 + $0x2c] sm:$0xf]
        %v211 = vld [vmem:[%s190 + $0x30] sm:$0xf]
        %v212 = vld [vmem:[%s190 + $0x34] sm:$0xf]
        %v213 = vld [vmem:[%s190 + $0x38] sm:$0xf]
        %v214 = vld [vmem:[%s190 + $0x3c] sm:$0xf]
        %v215 = vld [vmem:[%s190 + $0x40] sm:$0xf]
        %v216 = vld [vmem:[%s190 + $0x44] sm:$0xf]
        %v217 = vld [vmem:[%s190 + $0x48] sm:$0xf]
        %v218 = vld [vmem:[%s190 + $0x4c] sm:$0xf]
        %v219 = vld [vmem:[%s190 + $0x50] sm:$0xf]
        %v220 = vld [vmem:[%s190 + $0x54] sm:$0xf]
        %v221 = vld [vmem:[%s190 + $0x58] sm:$0xf]
        %v222 = vld [vmem:[%s190 + $0x5c] sm:$0xf]
        %v223 = vld [vmem:[%s190 + $0x60] sm:$0xf]
        %v224 = vld [vmem:[%s190 + $0x64] sm:$0xf]
        %v225 = vld [vmem:[%s190 + $0x68] sm:$0xf]
        %v226 = vld [vmem:[%s190 + $0x6c] sm:$0xf]
        %v227 = vld [vmem:[%s190 + $0x70] sm:$0xf]
        %v228 = vld [vmem:[%s190 + $0x74] sm:$0xf]
        %v229 = vld [vmem:[%s190 + $0x78] sm:$0xf]
        %v230 = vld [vmem:[%s190 + $0x7c] sm:$0xf]
        %v231 = vunpack.c.l.bf16 %v199
        %v232 = vunpack.c.l.bf16 %v200
        %v233 = vunpack.c.l.bf16 %v201
        %v234 = vunpack.c.l.bf16 %v202
        %v235 = vunpack.c.l.bf16 %v203
        %v236 = vunpack.c.l.bf16 %v204
        %v237 = vunpack.c.l.bf16 %v205
        %v238 = vunpack.c.l.bf16 %v206
        %v239 = vunpack.c.l.bf16 %v207
        %v240 = vunpack.c.l.bf16 %v208
        %v241 = vunpack.c.l.bf16 %v209
        %v242 = vunpack.c.l.bf16 %v210
        %v243 = vunpack.c.l.bf16 %v211
        %v244 = vunpack.c.l.bf16 %v212
        %v245 = vunpack.c.l.bf16 %v213
        %v246 = vunpack.c.l.bf16 %v214
        %v247 = vunpack.c.l.bf16 %v215
        %v248 = vunpack.c.l.bf16 %v216
        %v249 = vunpack.c.l.bf16 %v217
        %v250 = vunpack.c.l.bf16 %v218
        %v251 = vunpack.c.l.bf16 %v219
        %v252 = vunpack.c.l.bf16 %v220
        %v253 = vunpack.c.l.bf16 %v221
        %v254 = vunpack.c.l.bf16 %v222
        %v255 = vunpack.c.l.bf16 %v223
        %v256 = vunpack.c.l.bf16 %v224
        %v257 = vunpack.c.l.bf16 %v225
        %v258 = vunpack.c.l.bf16 %v226
        %v259 = vunpack.c.l.bf16 %v227
        %v260 = vunpack.c.l.bf16 %v228
        %v261 = vunpack.c.l.bf16 %v229
        %v262 = vunpack.c.l.bf16 %v230
        %v263 = vld [vmem:[%s193] sm:$0x1]
        %v265 = vlaneseq
        %v266 = vshrl.u32 %v265, 7
        %v267 = vsub.s32 0, %v266
        %v268 = vrot.slane %v263, %v267
        %v270 = vmul.f32 %v231, %v268
        %v271 = vmul.f32 %v232, %v268
        %v272 = vmul.f32 %v233, %v268
        %v273 = vmul.f32 %v234, %v268
        %v274 = vmul.f32 %v235, %v268
        %v275 = vmul.f32 %v236, %v268
        %v276 = vmul.f32 %v237, %v268
        %v277 = vmul.f32 %v238, %v268
        %v278 = vmul.f32 %v239, %v268
        %v279 = vmul.f32 %v240, %v268
        %v280 = vmul.f32 %v241, %v268
        %v281 = vmul.f32 %v242, %v268
        %v282 = vmul.f32 %v243, %v268
        %v283 = vmul.f32 %v244, %v268
        %v284 = vmul.f32 %v245, %v268
        %v285 = vmul.f32 %v246, %v268
        %v286 = vmul.f32 %v247, %v268
        %v287 = vmul.f32 %v248, %v268
        %v288 = vmul.f32 %v249, %v268
        %v289 = vmul.f32 %v250, %v268
        %v290 = vmul.f32 %v251, %v268
        %v291 = vmul.f32 %v252, %v268
        %v292 = vmul.f32 %v253, %v268
        %v293 = vmul.f32 %v254, %v268
        %v294 = vmul.f32 %v255, %v268
        %v295 = vmul.f32 %v256, %v268
        %v296 = vmul.f32 %v257, %v268
        %v297 = vmul.f32 %v258, %v268
        %v298 = vmul.f32 %v259, %v268
        %v299 = vmul.f32 %v260, %v268
        %v300 = vmul.f32 %v261, %v268
        %v301 = vmul.f32 %v262, %v268
        %302 = vadd.xlane.f32.xlu0 %v270
        %v303 = vpop.xlane.xlu0 %302
        %304 = vadd.xlane.f32.xlu0 %v271
        %v305 = vpop.xlane.xlu0 %304
        %306 = vadd.xlane.f32.xlu0 %v272
        %v307 = vpop.xlane.xlu0 %306
        %308 = vadd.xlane.f32.xlu0 %v273
        %v309 = vpop.xlane.xlu0 %308
        %310 = vadd.xlane.f32.xlu0 %v274
        %v311 = vpop.xlane.xlu0 %310
        %312 = vadd.xlane.f32.xlu0 %v275
        %v313 = vpop.xlane.xlu0 %312
        %314 = vadd.xlane.f32.xlu0 %v276
        %v315 = vpop.xlane.xlu0 %314
        %316 = vadd.xlane.f32.xlu0 %v277
        %v317 = vpop.xlane.xlu0 %316
        %318 = vadd.xlane.f32.xlu0 %v278
        %v319 = vpop.xlane.xlu0 %318
        %320 = vadd.xlane.f32.xlu0 %v279
        %v321 = vpop.xlane.xlu0 %320
        %322 = vadd.xlane.f32.xlu0 %v280
        %v323 = vpop.xlane.xlu0 %322
        %324 = vadd.xlane.f32.xlu0 %v281
        %v325 = vpop.xlane.xlu0 %324
        %326 = vadd.xlane.f32.xlu0 %v282
        %v327 = vpop.xlane.xlu0 %326
        %328 = vadd.xlane.f32.xlu0 %v283
        %v329 = vpop.xlane.xlu0 %328
        %330 = vadd.xlane.f32.xlu0 %v284
        %v331 = vpop.xlane.xlu0 %330
        %332 = vadd.xlane.f32.xlu0 %v285
        %v333 = vpop.xlane.xlu0 %332
        %334 = vadd.xlane.f32.xlu0 %v286
        %v335 = vpop.xlane.xlu0 %334
        %336 = vadd.xlane.f32.xlu0 %v287
        %v337 = vpop.xlane.xlu0 %336
        %338 = vadd.xlane.f32.xlu0 %v288
        %v339 = vpop.xlane.xlu0 %338
        %340 = vadd.xlane.f32.xlu0 %v289
        %v341 = vpop.xlane.xlu0 %340
        %342 = vadd.xlane.f32.xlu0 %v290
        %v343 = vpop.xlane.xlu0 %342
        %344 = vadd.xlane.f32.xlu0 %v291
        %v345 = vpop.xlane.xlu0 %344
        %346 = vadd.xlane.f32.xlu0 %v292
        %v347 = vpop.xlane.xlu0 %346
        %348 = vadd.xlane.f32.xlu0 %v293
        %v349 = vpop.xlane.xlu0 %348
        %350 = vadd.xlane.f32.xlu0 %v294
        %v351 = vpop.xlane.xlu0 %350
        %352 = vadd.xlane.f32.xlu0 %v295
        %v353 = vpop.xlane.xlu0 %352
        %354 = vadd.xlane.f32.xlu0 %v296
        %v355 = vpop.xlane.xlu0 %354
        %356 = vadd.xlane.f32.xlu0 %v297
        %v357 = vpop.xlane.xlu0 %356
        %358 = vadd.xlane.f32.xlu0 %v298
        %v359 = vpop.xlane.xlu0 %358
        %360 = vadd.xlane.f32.xlu0 %v299
        %v361 = vpop.xlane.xlu0 %360
        %362 = vadd.xlane.f32.xlu0 %v300
        %v363 = vpop.xlane.xlu0 %362
        %364 = vadd.xlane.f32.xlu0 %v301
        %v365 = vpop.xlane.xlu0 %364
        %v366 = vmul.f32 %v303, 0.0625
        %v367 = vmul.f32 %v305, 0.0625
        %v368 = vmul.f32 %v307, 0.0625
        %v369 = vmul.f32 %v309, 0.0625
        %v370 = vmul.f32 %v311, 0.0625
        %v371 = vmul.f32 %v313, 0.0625
        %v372 = vmul.f32 %v315, 0.0625
        %v373 = vmul.f32 %v317, 0.0625
        %v374 = vmul.f32 %v319, 0.0625
        %v375 = vmul.f32 %v321, 0.0625
        %v376 = vmul.f32 %v323, 0.0625
        %v377 = vmul.f32 %v325, 0.0625
        %v378 = vmul.f32 %v327, 0.0625
        %v379 = vmul.f32 %v329, 0.0625
        %v380 = vmul.f32 %v331, 0.0625
        %v381 = vmul.f32 %v333, 0.0625
        %v382 = vmul.f32 %v335, 0.0625
        %v383 = vmul.f32 %v337, 0.0625
        %v384 = vmul.f32 %v339, 0.0625
        %v385 = vmul.f32 %v341, 0.0625
        %v386 = vmul.f32 %v343, 0.0625
        %v387 = vmul.f32 %v345, 0.0625
        %v388 = vmul.f32 %v347, 0.0625
        %v389 = vmul.f32 %v349, 0.0625
        %v390 = vmul.f32 %v351, 0.0625
        %v391 = vmul.f32 %v353, 0.0625
        %v392 = vmul.f32 %v355, 0.0625
        %v393 = vmul.f32 %v357, 0.0625
        %v394 = vmul.f32 %v359, 0.0625
        %v395 = vmul.f32 %v361, 0.0625
        %v396 = vmul.f32 %v363, 0.0625
        %v397 = vmul.f32 %v365, 0.0625
        %398 = vmax.xlane.f32.xlu0 %v270
        %v399 = vpop.xlane.xlu0 %398
        %400 = vmax.xlane.f32.xlu0 %v271
        %v401 = vpop.xlane.xlu0 %400
        %402 = vmax.xlane.f32.xlu0 %v272
        %v403 = vpop.xlane.xlu0 %402
        %404 = vmax.xlane.f32.xlu0 %v273
        %v405 = vpop.xlane.xlu0 %404
        %406 = vmax.xlane.f32.xlu0 %v274
        %v407 = vpop.xlane.xlu0 %406
        %408 = vmax.xlane.f32.xlu0 %v275
        %v409 = vpop.xlane.xlu0 %408
        %410 = vmax.xlane.f32.xlu0 %v276
        %v411 = vpop.xlane.xlu0 %410
        %412 = vmax.xlane.f32.xlu0 %v277
        %v413 = vpop.xlane.xlu0 %412
        %414 = vmax.xlane.f32.xlu0 %v278
        %v415 = vpop.xlane.xlu0 %414
        %416 = vmax.xlane.f32.xlu0 %v279
        %v417 = vpop.xlane.xlu0 %416
        %418 = vmax.xlane.f32.xlu0 %v280
        %v419 = vpop.xlane.xlu0 %418
        %420 = vmax.xlane.f32.xlu0 %v281
        %v421 = vpop.xlane.xlu0 %420
        %422 = vmax.xlane.f32.xlu0 %v282
        %v423 = vpop.xlane.xlu0 %422
        %424 = vmax.xlane.f32.xlu0 %v283
        %v425 = vpop.xlane.xlu0 %424
        %426 = vmax.xlane.f32.xlu0 %v284
        %v427 = vpop.xlane.xlu0 %426
        %428 = vmax.xlane.f32.xlu0 %v285
        %v429 = vpop.xlane.xlu0 %428
        %430 = vmax.xlane.f32.xlu0 %v286
        %v431 = vpop.xlane.xlu0 %430
        %432 = vmax.xlane.f32.xlu0 %v287
        %v433 = vpop.xlane.xlu0 %432
        %434 = vmax.xlane.f32.xlu0 %v288
        %v435 = vpop.xlane.xlu0 %434
        %436 = vmax.xlane.f32.xlu0 %v289
        %v437 = vpop.xlane.xlu0 %436
        %438 = vmax.xlane.f32.xlu0 %v290
        %v439 = vpop.xlane.xlu0 %438
        %440 = vmax.xlane.f32.xlu0 %v291
        %v441 = vpop.xlane.xlu0 %440
        %442 = vmax.xlane.f32.xlu0 %v292
        %v443 = vpop.xlane.xlu0 %442
        %444 = vmax.xlane.f32.xlu0 %v293
        %v445 = vpop.xlane.xlu0 %444
        %446 = vmax.xlane.f32.xlu0 %v294
        %v447 = vpop.xlane.xlu0 %446
        %448 = vmax.xlane.f32.xlu0 %v295
        %v449 = vpop.xlane.xlu0 %448
        %450 = vmax.xlane.f32.xlu0 %v296
        %v451 = vpop.xlane.xlu0 %450
        %452 = vmax.xlane.f32.xlu0 %v297
        %v453 = vpop.xlane.xlu0 %452
        %454 = vmax.xlane.f32.xlu0 %v298
        %v455 = vpop.xlane.xlu0 %454
        %456 = vmax.xlane.f32.xlu0 %v299
        %v457 = vpop.xlane.xlu0 %456
        %458 = vmax.xlane.f32.xlu0 %v300
        %v459 = vpop.xlane.xlu0 %458
        %460 = vmax.xlane.f32.xlu0 %v301
        %v461 = vpop.xlane.xlu0 %460
        %462 = vst [vmem:[#allocation2] sm:$0xff] 0.0
        %463 = vst [vmem:[#allocation2 + $0x8] sm:$0xff] 0.0
        %464 = vst [vmem:[#allocation2 + $0x10] sm:$0x3f] 0.0
        %465 = vst [vmem:[#allocation3] sm:$0xff] 0.0
        %466 = vst [vmem:[#allocation3 + $0x8] sm:$0xff] 0.0
        %467 = vst [vmem:[#allocation3 + $0x10] sm:$0x3f] 0.0
        %v500 = vlaneseq
        %v501 = vand.u32 %v500, 127
        %v502 = vlaneseq
        %v503 = vshrl.u32 %v502, 7
        %v504 = vsub.s32 %v501, %v503
        %v505 = vrot.slane %v366, %v504
        %v506 = vadd.s32 %v501, 4294967288
        %v507 = vlaneseq
        %v508 = vshrl.u32 %v507, 7
        %v509 = vsub.s32 %v506, %v508
        %v510 = vrot.slane %v367, %v509
        %vm511 = vcmask 130112
        %v512 = vsel %vm511, %v510, %v505
        %v513 = vlaneseq
        %v514 = vshrl.u32 %v513, 7
        %v515 = vsub.s32 %v501, %v514
        %v516 = vrot.slane %v368, %v515
        %v517 = vlaneseq
        %v518 = vshrl.u32 %v517, 7
        %v519 = vsub.s32 %v506, %v518
        %v520 = vrot.slane %v369, %v519
        %v521 = vsel %vm511, %v520, %v516
        %v522 = vlaneseq
        %v523 = vshrl.u32 %v522, 7
        %v524 = vsub.s32 %v501, %v523
        %v525 = vrot.slane %v370, %v524
        %v526 = vlaneseq
        %v527 = vshrl.u32 %v526, 7
        %v528 = vsub.s32 %v506, %v527
        %v529 = vrot.slane %v371, %v528
        %v530 = vsel %vm511, %v529, %v525
        %v531 = vlaneseq
        %v532 = vshrl.u32 %v531, 7
        %v533 = vsub.s32 %v501, %v532
        %v534 = vrot.slane %v372, %v533
        %v535 = vlaneseq
        %v536 = vshrl.u32 %v535, 7
        %v537 = vsub.s32 %v506, %v536
        %v538 = vrot.slane %v373, %v537
        %v539 = vsel %vm511, %v538, %v534
        %v540 = vlaneseq
        %v541 = vshrl.u32 %v540, 7
        %v542 = vsub.s32 %v501, %v541
        %v543 = vrot.slane %v374, %v542
        %v544 = vlaneseq
        %v545 = vshrl.u32 %v544, 7
        %v546 = vsub.s32 %v506, %v545
        %v547 = vrot.slane %v375, %v546
        %v548 = vsel %vm511, %v547, %v543
        %v549 = vlaneseq
        %v550 = vshrl.u32 %v549, 7
        %v551 = vsub.s32 %v501, %v550
        %v552 = vrot.slane %v376, %v551
        %v553 = vlaneseq
        %v554 = vshrl.u32 %v553, 7
        %v555 = vsub.s32 %v506, %v554
        %v556 = vrot.slane %v377, %v555
        %v557 = vsel %vm511, %v556, %v552
        %v558 = vlaneseq
        %v559 = vshrl.u32 %v558, 7
        %v560 = vsub.s32 %v501, %v559
        %v561 = vrot.slane %v378, %v560
        %v562 = vlaneseq
        %v563 = vshrl.u32 %v562, 7
        %v564 = vsub.s32 %v506, %v563
        %v565 = vrot.slane %v379, %v564
        %v566 = vsel %vm511, %v565, %v561
        %v567 = vlaneseq
        %v568 = vshrl.u32 %v567, 7
        %v569 = vsub.s32 %v501, %v568
        %v570 = vrot.slane %v380, %v569
        %v571 = vlaneseq
        %v572 = vshrl.u32 %v571, 7
        %v573 = vsub.s32 %v506, %v572
        %v574 = vrot.slane %v381, %v573
        %v575 = vsel %vm511, %v574, %v570
        %v576 = vlaneseq
        %v577 = vshrl.u32 %v576, 7
        %v578 = vsub.s32 %v501, %v577
        %v579 = vrot.slane %v382, %v578
        %v580 = vlaneseq
        %v581 = vshrl.u32 %v580, 7
        %v582 = vsub.s32 %v506, %v581
        %v583 = vrot.slane %v383, %v582
        %v584 = vsel %vm511, %v583, %v579
        %v585 = vlaneseq
        %v586 = vshrl.u32 %v585, 7
        %v587 = vsub.s32 %v501, %v586
        %v588 = vrot.slane %v384, %v587
        %v589 = vlaneseq
        %v590 = vshrl.u32 %v589, 7
        %v591 = vsub.s32 %v506, %v590
        %v592 = vrot.slane %v385, %v591
        %v593 = vsel %vm511, %v592, %v588
        %v594 = vlaneseq
        %v595 = vshrl.u32 %v594, 7
        %v596 = vsub.s32 %v501, %v595
        %v597 = vrot.slane %v386, %v596
        %v598 = vlaneseq
        %v599 = vshrl.u32 %v598, 7
        %v600 = vsub.s32 %v506, %v599
        %v601 = vrot.slane %v387, %v600
        %v602 = vsel %vm511, %v601, %v597
        %v603 = vlaneseq
        %v604 = vshrl.u32 %v603, 7
        %v605 = vsub.s32 %v501, %v604
        %v606 = vrot.slane %v388, %v605
        %v607 = vlaneseq
        %v608 = vshrl.u32 %v607, 7
        %v609 = vsub.s32 %v506, %v608
        %v610 = vrot.slane %v389, %v609
        %v611 = vsel %vm511, %v610, %v606
        %v612 = vlaneseq
        %v613 = vshrl.u32 %v612, 7
        %v614 = vsub.s32 %v501, %v613
        %v615 = vrot.slane %v390, %v614
        %v616 = vlaneseq
        %v617 = vshrl.u32 %v616, 7
        %v618 = vsub.s32 %v506, %v617
        %v619 = vrot.slane %v391, %v618
        %v620 = vsel %vm511, %v619, %v615
        %v621 = vlaneseq
        %v622 = vshrl.u32 %v621, 7
        %v623 = vsub.s32 %v501, %v622
        %v624 = vrot.slane %v392, %v623
        %v625 = vlaneseq
        %v626 = vshrl.u32 %v625, 7
        %v627 = vsub.s32 %v506, %v626
        %v628 = vrot.slane %v393, %v627
        %v629 = vsel %vm511, %v628, %v624
        %v630 = vlaneseq
        %v631 = vshrl.u32 %v630, 7
        %v632 = vsub.s32 %v501, %v631
        %v633 = vrot.slane %v394, %v632
        %v634 = vlaneseq
        %v635 = vshrl.u32 %v634, 7
        %v636 = vsub.s32 %v506, %v635
        %v637 = vrot.slane %v395, %v636
        %v638 = vsel %vm511, %v637, %v633
        %v639 = vlaneseq
        %v640 = vshrl.u32 %v639, 7
        %v641 = vsub.s32 %v501, %v640
        %v642 = vrot.slane %v396, %v641
        %v643 = vlaneseq
        %v644 = vshrl.u32 %v643, 7
        %v645 = vsub.s32 %v506, %v644
        %v646 = vrot.slane %v397, %v645
        %v647 = vsel %vm511, %v646, %v642
        %vm648 = vcmask 1041409
        %v649 = vsel %vm648, %v521, %v512
        %vm650 = vcmask 1042434
        %v651 = vsel %vm650, %v530, %v649
        %vm652 = vcmask 1043459
        %v653 = vsel %vm652, %v539, %v651
        %vm654 = vcmask 1044484
        %v655 = vsel %vm654, %v548, %v653
        %vm656 = vcmask 1045509
        %v657 = vsel %vm656, %v557, %v655
        %vm658 = vcmask 1046534
        %v659 = vsel %vm658, %v566, %v657
        %vm660 = vcmask 1047559
        %v661 = vsel %vm660, %v575, %v659
        %v662 = vsel %vm648, %v593, %v584
        %v663 = vsel %vm650, %v602, %v662
        %v664 = vsel %vm652, %v611, %v663
        %v665 = vsel %vm654, %v620, %v664
        %v666 = vsel %vm656, %v629, %v665
        %v667 = vsel %vm658, %v638, %v666
        %v668 = vsel %vm660, %v647, %v667
        %vm671 = vcmask 130048
        %672 = vst.msk [vmem:[#allocation2 + $0x3] sm:$0xff] %vm671, %v661
        %673 = vst.msk [vmem:[#allocation2 + $0xb] sm:$0xff] %vm671, %v668
        %v706 = vlaneseq
        %v707 = vshrl.u32 %v706, 7
        %v708 = vsub.s32 %v501, %v707
        %v709 = vrot.slane %v399, %v708
        %v710 = vlaneseq
        %v711 = vshrl.u32 %v710, 7
        %v712 = vsub.s32 %v506, %v711
        %v713 = vrot.slane %v401, %v712
        %v714 = vsel %vm511, %v713, %v709
        %v715 = vlaneseq
        %v716 = vshrl.u32 %v715, 7
        %v717 = vsub.s32 %v501, %v716
        %v718 = vrot.slane %v403, %v717
        %v719 = vlaneseq
        %v720 = vshrl.u32 %v719, 7
        %v721 = vsub.s32 %v506, %v720
        %v722 = vrot.slane %v405, %v721
        %v723 = vsel %vm511, %v722, %v718
        %v724 = vlaneseq
        %v725 = vshrl.u32 %v724, 7
        %v726 = vsub.s32 %v501, %v725
        %v727 = vrot.slane %v407, %v726
        %v728 = vlaneseq
        %v729 = vshrl.u32 %v728, 7
        %v730 = vsub.s32 %v506, %v729
        %v731 = vrot.slane %v409, %v730
        %v732 = vsel %vm511, %v731, %v727
        %v733 = vlaneseq
        %v734 = vshrl.u32 %v733, 7
        %v735 = vsub.s32 %v501, %v734
        %v736 = vrot.slane %v411, %v735
        %v737 = vlaneseq
        %v738 = vshrl.u32 %v737, 7
        %v739 = vsub.s32 %v506, %v738
        %v740 = vrot.slane %v413, %v739
        %v741 = vsel %vm511, %v740, %v736
        %v742 = vlaneseq
        %v743 = vshrl.u32 %v742, 7
        %v744 = vsub.s32 %v501, %v743
        %v745 = vrot.slane %v415, %v744
        %v746 = vlaneseq
        %v747 = vshrl.u32 %v746, 7
        %v748 = vsub.s32 %v506, %v747
        %v749 = vrot.slane %v417, %v748
        %v750 = vsel %vm511, %v749, %v745
        %v751 = vlaneseq
        %v752 = vshrl.u32 %v751, 7
        %v753 = vsub.s32 %v501, %v752
        %v754 = vrot.slane %v419, %v753
        %v755 = vlaneseq
        %v756 = vshrl.u32 %v755, 7
        %v757 = vsub.s32 %v506, %v756
        %v758 = vrot.slane %v421, %v757
        %v759 = vsel %vm511, %v758, %v754
        %v760 = vlaneseq
        %v761 = vshrl.u32 %v760, 7
        %v762 = vsub.s32 %v501, %v761
        %v763 = vrot.slane %v423, %v762
        %v764 = vlaneseq
        %v765 = vshrl.u32 %v764, 7
        %v766 = vsub.s32 %v506, %v765
        %v767 = vrot.slane %v425, %v766
        %v768 = vsel %vm511, %v767, %v763
        %v769 = vlaneseq
        %v770 = vshrl.u32 %v769, 7
        %v771 = vsub.s32 %v501, %v770
        %v772 = vrot.slane %v427, %v771
        %v773 = vlaneseq
        %v774 = vshrl.u32 %v773, 7
        %v775 = vsub.s32 %v506, %v774
        %v776 = vrot.slane %v429, %v775
        %v777 = vsel %vm511, %v776, %v772
        %v778 = vlaneseq
        %v779 = vshrl.u32 %v778, 7
        %v780 = vsub.s32 %v501, %v779
        %v781 = vrot.slane %v431, %v780
        %v782 = vlaneseq
        %v783 = vshrl.u32 %v782, 7
        %v784 = vsub.s32 %v506, %v783
        %v785 = vrot.slane %v433, %v784
        %v786 = vsel %vm511, %v785, %v781
        %v787 = vlaneseq
        %v788 = vshrl.u32 %v787, 7
        %v789 = vsub.s32 %v501, %v788
        %v790 = vrot.slane %v435, %v789
        %v791 = vlaneseq
        %v792 = vshrl.u32 %v791, 7
        %v793 = vsub.s32 %v506, %v792
        %v794 = vrot.slane %v437, %v793
        %v795 = vsel %vm511, %v794, %v790
        %v796 = vlaneseq
        %v797 = vshrl.u32 %v796, 7
        %v798 = vsub.s32 %v501, %v797
        %v799 = vrot.slane %v439, %v798
        %v800 = vlaneseq
        %v801 = vshrl.u32 %v800, 7
        %v802 = vsub.s32 %v506, %v801
        %v803 = vrot.slane %v441, %v802
        %v804 = vsel %vm511, %v803, %v799
        %v805 = vlaneseq
        %v806 = vshrl.u32 %v805, 7
        %v807 = vsub.s32 %v501, %v806
        %v808 = vrot.slane %v443, %v807
        %v809 = vlaneseq
        %v810 = vshrl.u32 %v809, 7
        %v811 = vsub.s32 %v506, %v810
        %v812 = vrot.slane %v445, %v811
        %v813 = vsel %vm511, %v812, %v808
        %v814 = vlaneseq
        %v815 = vshrl.u32 %v814, 7
        %v816 = vsub.s32 %v501, %v815
        %v817 = vrot.slane %v447, %v816
        %v818 = vlaneseq
        %v819 = vshrl.u32 %v818, 7
        %v820 = vsub.s32 %v506, %v819
        %v821 = vrot.slane %v449, %v820
        %v822 = vsel %vm511, %v821, %v817
        %v823 = vlaneseq
        %v824 = vshrl.u32 %v823, 7
        %v825 = vsub.s32 %v501, %v824
        %v826 = vrot.slane %v451, %v825
        %v827 = vlaneseq
        %v828 = vshrl.u32 %v827, 7
        %v829 = vsub.s32 %v506, %v828
        %v830 = vrot.slane %v453, %v829
        %v831 = vsel %vm511, %v830, %v826
        %v832 = vlaneseq
        %v833 = vshrl.u32 %v832, 7
        %v834 = vsub.s32 %v501, %v833
        %v835 = vrot.slane %v455, %v834
        %v836 = vlaneseq
        %v837 = vshrl.u32 %v836, 7
        %v838 = vsub.s32 %v506, %v837
        %v839 = vrot.slane %v457, %v838
        %v840 = vsel %vm511, %v839, %v835
        %v841 = vlaneseq
        %v842 = vshrl.u32 %v841, 7
        %v843 = vsub.s32 %v501, %v842
        %v844 = vrot.slane %v459, %v843
        %v845 = vlaneseq
        %v846 = vshrl.u32 %v845, 7
        %v847 = vsub.s32 %v506, %v846
        %v848 = vrot.slane %v461, %v847
        %v849 = vsel %vm511, %v848, %v844
        %v850 = vsel %vm648, %v723, %v714
        %v851 = vsel %vm650, %v732, %v850
        %v852 = vsel %vm652, %v741, %v851
        %v853 = vsel %vm654, %v750, %v852
        %v854 = vsel %vm656, %v759, %v853
        %v855 = vsel %vm658, %v768, %v854
        %v856 = vsel %vm660, %v777, %v855
        %v857 = vsel %vm648, %v795, %v786
        %v858 = vsel %vm650, %v804, %v857
        %v859 = vsel %vm652, %v813, %v858
        %v860 = vsel %vm654, %v822, %v859
        %v861 = vsel %vm656, %v831, %v860
        %v862 = vsel %vm658, %v840, %v861
        %v863 = vsel %vm660, %v849, %v862
        %866 = vst.msk [vmem:[#allocation3 + $0x3] sm:$0xff] %vm671, %v856
        %867 = vst.msk [vmem:[#allocation3 + $0xb] sm:$0xff] %vm671, %v863
        %v868 = vld [vmem:[#allocation2] sm:$0xff]
        %v869 = vld [vmem:[#allocation2 + $0x8] sm:$0xff]
        %v870 = vld [vmem:[#allocation3] sm:$0xff]
        %v871 = vld [vmem:[#allocation3 + $0x8] sm:$0xff]
        %872 = vrot.lane.b32.xlu0 %v868, 3
        %v873 = vpop.permute.xlu0 %872
        %874 = vrot.lane.b32.xlu0 %v869, 3
        %v875 = vpop.permute.xlu0 %874
        %s876 = sld [smem:[#allocation4]]
        %v877 = vstv %s876
        %v878 = vmul.f32 %v873, %v877
        %v879 = vmul.f32 %v875, %v877
        %v880 = vadd.f32 %v878, 0.0
        %v881 = vadd.f32 %v879, 0.0
        %882 = vrot.lane.b32.xlu0 %v870, 3
        %v883 = vpop.permute.xlu0 %882
        %884 = vrot.lane.b32.xlu0 %v871, 3
        %v885 = vpop.permute.xlu0 %884
        %s886 = sld [smem:[#allocation4 + $0x80]]
        %v887 = vstv %s886
        %v888 = vmul.f32 %v883, %v887
        %v889 = vmul.f32 %v885, %v887
        %v890 = vadd.f32 %v880, %v888
        %v891 = vadd.f32 %v881, %v889
        %892 = vrot.lane.b32.xlu0 %v868, 2
        %v893 = vpop.permute.xlu0 %892
        %894 = vrot.lane.b32.xlu0 %v869, 2
        %v895 = vpop.permute.xlu0 %894
        %s896 = sld [smem:[#allocation4 + $0x1]]
        %v897 = vstv %s896
        %v898 = vmul.f32 %v893, %v897
        %v899 = vmul.f32 %v895, %v897
        %v900 = vadd.f32 %v890, %v898
        %v901 = vadd.f32 %v891, %v899
        %902 = vrot.lane.b32.xlu0 %v870, 2
        %v903 = vpop.permute.xlu0 %902
        %904 = vrot.lane.b32.xlu0 %v871, 2
        %v905 = vpop.permute.xlu0 %904
        %s906 = sld [smem:[#allocation4 + $0x81]]
        %v907 = vstv %s906
        %v908 = vmul.f32 %v903, %v907
        %v909 = vmul.f32 %v905, %v907
        %v910 = vadd.f32 %v900, %v908
        %v911 = vadd.f32 %v901, %v909
        %912 = vrot.lane.b32.xlu0 %v868, 1
        %v913 = vpop.permute.xlu0 %912
        %914 = vrot.lane.b32.xlu0 %v869, 1
        %v915 = vpop.permute.xlu0 %914
        %s916 = sld [smem:[#allocation4 + $0x2]]
        %v917 = vstv %s916
        %v918 = vmul.f32 %v913, %v917
        %v919 = vmul.f32 %v915, %v917
        %v920 = vadd.f32 %v910, %v918
        %v921 = vadd.f32 %v911, %v919
        %922 = vrot.lane.b32.xlu0 %v870, 1
        %v923 = vpop.permute.xlu0 %922
        %924 = vrot.lane.b32.xlu0 %v871, 1
        %v925 = vpop.permute.xlu0 %924
        %s926 = sld [smem:[#allocation4 + $0x82]]
        %v927 = vstv %s926
        %v928 = vmul.f32 %v923, %v927
        %v929 = vmul.f32 %v925, %v927
        %v930 = vadd.f32 %v920, %v928
        %v931 = vadd.f32 %v921, %v929
        %s932 = sld [smem:[#allocation4 + $0x3]]
        %v933 = vstv %s932
        %v934 = vmul.f32 %v868, %v933
        %v935 = vmul.f32 %v869, %v933
        %v936 = vadd.f32 %v930, %v934
        %v937 = vadd.f32 %v931, %v935
        %s938 = sld [smem:[#allocation4 + $0x83]]
        %v939 = vstv %s938
        %v940 = vmul.f32 %v870, %v939
        %v941 = vmul.f32 %v871, %v939
        %v942 = vadd.f32 %v936, %v940
        %v943 = vadd.f32 %v937, %v941
        %944 = vrot.lane.b32.xlu0 %v868, 127
        %v945 = vpop.permute.xlu0 %944
        %946 = vrot.lane.b32.xlu0 %v869, 127
        %v947 = vpop.permute.xlu0 %946
        %s948 = sld [smem:[#allocation4 + $0x4]]
        %v949 = vstv %s948
        %v950 = vmul.f32 %v945, %v949
        %v951 = vmul.f32 %v947, %v949
        %v952 = vadd.f32 %v942, %v950
        %v953 = vadd.f32 %v943, %v951
        %954 = vrot.lane.b32.xlu0 %v870, 127
        %v955 = vpop.permute.xlu0 %954
        %956 = vrot.lane.b32.xlu0 %v871, 127
        %v957 = vpop.permute.xlu0 %956
        %s958 = sld [smem:[#allocation4 + $0x84]]
        %v959 = vstv %s958
        %v960 = vmul.f32 %v955, %v959
        %v961 = vmul.f32 %v957, %v959
        %v962 = vadd.f32 %v952, %v960
        %v963 = vadd.f32 %v953, %v961
        %964 = vrot.lane.b32.xlu0 %v868, 126
        %v965 = vpop.permute.xlu0 %964
        %966 = vrot.lane.b32.xlu0 %v869, 126
        %v967 = vpop.permute.xlu0 %966
        %s968 = sld [smem:[#allocation4 + $0x5]]
        %v969 = vstv %s968
        %v970 = vmul.f32 %v965, %v969
        %v971 = vmul.f32 %v967, %v969
        %v972 = vadd.f32 %v962, %v970
        %v973 = vadd.f32 %v963, %v971
        %974 = vrot.lane.b32.xlu0 %v870, 126
        %v975 = vpop.permute.xlu0 %974
        %976 = vrot.lane.b32.xlu0 %v871, 126
        %v977 = vpop.permute.xlu0 %976
        %s978 = sld [smem:[#allocation4 + $0x85]]
        %v979 = vstv %s978
        %v980 = vmul.f32 %v975, %v979
        %v981 = vmul.f32 %v977, %v979
        %v982 = vadd.f32 %v972, %v980
        %v983 = vadd.f32 %v973, %v981
        %984 = vrot.lane.b32.xlu0 %v868, 125
        %v985 = vpop.permute.xlu0 %984
        %986 = vrot.lane.b32.xlu0 %v869, 125
        %v987 = vpop.permute.xlu0 %986
        %s988 = sld [smem:[#allocation4 + $0x6]]
        %v989 = vstv %s988
        %v990 = vmul.f32 %v985, %v989
        %v991 = vmul.f32 %v987, %v989
        %v992 = vadd.f32 %v982, %v990
        %v993 = vadd.f32 %v983, %v991
        %994 = vrot.lane.b32.xlu0 %v870, 125
        %v995 = vpop.permute.xlu0 %994
        %996 = vrot.lane.b32.xlu0 %v871, 125
        %v997 = vpop.permute.xlu0 %996
        %s998 = sld [smem:[#allocation4 + $0x86]]
        %v999 = vstv %s998
        %v1000 = vmul.f32 %v995, %v999
        %v1001 = vmul.f32 %v997, %v999
        %v1002 = vadd.f32 %v992, %v1000
        %v1003 = vadd.f32 %v993, %v1001
        %v1004 = vld [vmem:[#allocation2 + $0x1] sm:$0xff]
        %v1005 = vld [vmem:[#allocation2 + $0x9] sm:$0xff]
        %v1006 = vld [vmem:[#allocation3 + $0x1] sm:$0xff]
        %v1007 = vld [vmem:[#allocation3 + $0x9] sm:$0xff]
        %1008 = vrot.lane.b32.xlu0 %v1004, 3
        %v1009 = vpop.permute.xlu0 %1008
        %1010 = vrot.lane.b32.xlu0 %v1005, 3
        %v1011 = vpop.permute.xlu0 %1010
        %s1012 = sld [smem:[#allocation4 + $0x7]]
        %v1013 = vstv %s1012
        %v1014 = vmul.f32 %v1009, %v1013
        %v1015 = vmul.f32 %v1011, %v1013
        %v1016 = vadd.f32 %v1002, %v1014
        %v1017 = vadd.f32 %v1003, %v1015
        %1018 = vrot.lane.b32.xlu0 %v1006, 3
        %v1019 = vpop.permute.xlu0 %1018
        %1020 = vrot.lane.b32.xlu0 %v1007, 3
        %v1021 = vpop.permute.xlu0 %1020
        %s1022 = sld [smem:[#allocation4 + $0x87]]
        %v1023 = vstv %s1022
        %v1024 = vmul.f32 %v1019, %v1023
        %v1025 = vmul.f32 %v1021, %v1023
        %v1026 = vadd.f32 %v1016, %v1024
        %v1027 = vadd.f32 %v1017, %v1025
        %1028 = vrot.lane.b32.xlu0 %v1004, 2
        %v1029 = vpop.permute.xlu0 %1028
        %1030 = vrot.lane.b32.xlu0 %v1005, 2
        %v1031 = vpop.permute.xlu0 %1030
        %s1032 = sld [smem:[#allocation4 + $0x8]]
        %v1033 = vstv %s1032
        %v1034 = vmul.f32 %v1029, %v1033
        %v1035 = vmul.f32 %v1031, %v1033
        %v1036 = vadd.f32 %v1026, %v1034
        %v1037 = vadd.f32 %v1027, %v1035
        %1038 = vrot.lane.b32.xlu0 %v1006, 2
        %v1039 = vpop.permute.xlu0 %1038
        %1040 = vrot.lane.b32.xlu0 %v1007, 2
        %v1041 = vpop.permute.xlu0 %1040
        %s1042 = sld [smem:[#allocation4 + $0x88]]
        %v1043 = vstv %s1042
        %v1044 = vmul.f32 %v1039, %v1043
        %v1045 = vmul.f32 %v1041, %v1043
        %v1046 = vadd.f32 %v1036, %v1044
        %v1047 = vadd.f32 %v1037, %v1045
        %1048 = vrot.lane.b32.xlu0 %v1004, 1
        %v1049 = vpop.permute.xlu0 %1048
        %1050 = vrot.lane.b32.xlu0 %v1005, 1
        %v1051 = vpop.permute.xlu0 %1050
        %s1052 = sld [smem:[#allocation4 + $0x9]]
        %v1053 = vstv %s1052
        %v1054 = vmul.f32 %v1049, %v1053
        %v1055 = vmul.f32 %v1051, %v1053
        %v1056 = vadd.f32 %v1046, %v1054
        %v1057 = vadd.f32 %v1047, %v1055
        %1058 = vrot.lane.b32.xlu0 %v1006, 1
        %v1059 = vpop.permute.xlu0 %1058
        %1060 = vrot.lane.b32.xlu0 %v1007, 1
        %v1061 = vpop.permute.xlu0 %1060
        %s1062 = sld [smem:[#allocation4 + $0x89]]
        %v1063 = vstv %s1062
        %v1064 = vmul.f32 %v1059, %v1063
        %v1065 = vmul.f32 %v1061, %v1063
        %v1066 = vadd.f32 %v1056, %v1064
        %v1067 = vadd.f32 %v1057, %v1065
        %s1068 = sld [smem:[#allocation4 + $0xa]]
        %v1069 = vstv %s1068
        %v1070 = vmul.f32 %v1004, %v1069
        %v1071 = vmul.f32 %v1005, %v1069
        %v1072 = vadd.f32 %v1066, %v1070
        %v1073 = vadd.f32 %v1067, %v1071
        %s1074 = sld [smem:[#allocation4 + $0x8a]]
        %v1075 = vstv %s1074
        %v1076 = vmul.f32 %v1006, %v1075
        %v1077 = vmul.f32 %v1007, %v1075
        %v1078 = vadd.f32 %v1072, %v1076
        %v1079 = vadd.f32 %v1073, %v1077
        %1080 = vrot.lane.b32.xlu0 %v1004, 127
        %v1081 = vpop.permute.xlu0 %1080
        %1082 = vrot.lane.b32.xlu0 %v1005, 127
        %v1083 = vpop.permute.xlu0 %1082
        %s1084 = sld [smem:[#allocation4 + $0xb]]
        %v1085 = vstv %s1084
        %v1086 = vmul.f32 %v1081, %v1085
        %v1087 = vmul.f32 %v1083, %v1085
        %v1088 = vadd.f32 %v1078, %v1086
        %v1089 = vadd.f32 %v1079, %v1087
        %1090 = vrot.lane.b32.xlu0 %v1006, 127
        %v1091 = vpop.permute.xlu0 %1090
        %1092 = vrot.lane.b32.xlu0 %v1007, 127
        %v1093 = vpop.permute.xlu0 %1092
        %s1094 = sld [smem:[#allocation4 + $0x8b]]
        %v1095 = vstv %s1094
        %v1096 = vmul.f32 %v1091, %v1095
        %v1097 = vmul.f32 %v1093, %v1095
        %v1098 = vadd.f32 %v1088, %v1096
        %v1099 = vadd.f32 %v1089, %v1097
        %1100 = vrot.lane.b32.xlu0 %v1004, 126
        %v1101 = vpop.permute.xlu0 %1100
        %1102 = vrot.lane.b32.xlu0 %v1005, 126
        %v1103 = vpop.permute.xlu0 %1102
        %s1104 = sld [smem:[#allocation4 + $0xc]]
        %v1105 = vstv %s1104
        %v1106 = vmul.f32 %v1101, %v1105
        %v1107 = vmul.f32 %v1103, %v1105
        %v1108 = vadd.f32 %v1098, %v1106
        %v1109 = vadd.f32 %v1099, %v1107
        %1110 = vrot.lane.b32.xlu0 %v1006, 126
        %v1111 = vpop.permute.xlu0 %1110
        %1112 = vrot.lane.b32.xlu0 %v1007, 126
        %v1113 = vpop.permute.xlu0 %1112
        %s1114 = sld [smem:[#allocation4 + $0x8c]]
        %v1115 = vstv %s1114
        %v1116 = vmul.f32 %v1111, %v1115
        %v1117 = vmul.f32 %v1113, %v1115
        %v1118 = vadd.f32 %v1108, %v1116
        %v1119 = vadd.f32 %v1109, %v1117
        %1120 = vrot.lane.b32.xlu0 %v1004, 125
        %v1121 = vpop.permute.xlu0 %1120
        %1122 = vrot.lane.b32.xlu0 %v1005, 125
        %v1123 = vpop.permute.xlu0 %1122
        %s1124 = sld [smem:[#allocation4 + $0xd]]
        %v1125 = vstv %s1124
        %v1126 = vmul.f32 %v1121, %v1125
        %v1127 = vmul.f32 %v1123, %v1125
        %v1128 = vadd.f32 %v1118, %v1126
        %v1129 = vadd.f32 %v1119, %v1127
        %1130 = vrot.lane.b32.xlu0 %v1006, 125
        %v1131 = vpop.permute.xlu0 %1130
        %1132 = vrot.lane.b32.xlu0 %v1007, 125
        %v1133 = vpop.permute.xlu0 %1132
        %s1134 = sld [smem:[#allocation4 + $0x8d]]
        %v1135 = vstv %s1134
        %v1136 = vmul.f32 %v1131, %v1135
        %v1137 = vmul.f32 %v1133, %v1135
        %v1138 = vadd.f32 %v1128, %v1136
        %v1139 = vadd.f32 %v1129, %v1137
        %v1140 = vld [vmem:[#allocation2 + $0x2] sm:$0xff]
        %v1141 = vld [vmem:[#allocation2 + $0xa] sm:$0xff]
        %v1142 = vld [vmem:[#allocation3 + $0x2] sm:$0xff]
        %v1143 = vld [vmem:[#allocation3 + $0xa] sm:$0xff]
        %1144 = vrot.lane.b32.xlu0 %v1140, 3
        %v1145 = vpop.permute.xlu0 %1144
        %1146 = vrot.lane.b32.xlu0 %v1141, 3
        %v1147 = vpop.permute.xlu0 %1146
        %s1148 = sld [smem:[#allocation4 + $0xe]]
        %v1149 = vstv %s1148
        %v1150 = vmul.f32 %v1145, %v1149
        %v1151 = vmul.f32 %v1147, %v1149
        %v1152 = vadd.f32 %v1138, %v1150
        %v1153 = vadd.f32 %v1139, %v1151
        %1154 = vrot.lane.b32.xlu0 %v1142, 3
        %v1155 = vpop.permute.xlu0 %1154
        %1156 = vrot.lane.b32.xlu0 %v1143, 3
        %v1157 = vpop.permute.xlu0 %1156
        %s1158 = sld [smem:[#allocation4 + $0x8e]]
        %v1159 = vstv %s1158
        %v1160 = vmul.f32 %v1155, %v1159
        %v1161 = vmul.f32 %v1157, %v1159
        %v1162 = vadd.f32 %v1152, %v1160
        %v1163 = vadd.f32 %v1153, %v1161
        %1164 = vrot.lane.b32.xlu0 %v1140, 2
        %v1165 = vpop.permute.xlu0 %1164
        %1166 = vrot.lane.b32.xlu0 %v1141, 2
        %v1167 = vpop.permute.xlu0 %1166
        %s1168 = sld [smem:[#allocation4 + $0xf]]
        %v1169 = vstv %s1168
        %v1170 = vmul.f32 %v1165, %v1169
        %v1171 = vmul.f32 %v1167, %v1169
        %v1172 = vadd.f32 %v1162, %v1170
        %v1173 = vadd.f32 %v1163, %v1171
        %1174 = vrot.lane.b32.xlu0 %v1142, 2
        %v1175 = vpop.permute.xlu0 %1174
        %1176 = vrot.lane.b32.xlu0 %v1143, 2
        %v1177 = vpop.permute.xlu0 %1176
        %s1178 = sld [smem:[#allocation4 + $0x8f]]
        %v1179 = vstv %s1178
        %v1180 = vmul.f32 %v1175, %v1179
        %v1181 = vmul.f32 %v1177, %v1179
        %v1182 = vadd.f32 %v1172, %v1180
        %v1183 = vadd.f32 %v1173, %v1181
        %1184 = vrot.lane.b32.xlu0 %v1140, 1
        %v1185 = vpop.permute.xlu0 %1184
        %1186 = vrot.lane.b32.xlu0 %v1141, 1
        %v1187 = vpop.permute.xlu0 %1186
        %s1188 = sld [smem:[#allocation4 + $0x10]]
        %v1189 = vstv %s1188
        %v1190 = vmul.f32 %v1185, %v1189
        %v1191 = vmul.f32 %v1187, %v1189
        %v1192 = vadd.f32 %v1182, %v1190
        %v1193 = vadd.f32 %v1183, %v1191
        %1194 = vrot.lane.b32.xlu0 %v1142, 1
        %v1195 = vpop.permute.xlu0 %1194
        %1196 = vrot.lane.b32.xlu0 %v1143, 1
        %v1197 = vpop.permute.xlu0 %1196
        %s1198 = sld [smem:[#allocation4 + $0x90]]
        %v1199 = vstv %s1198
        %v1200 = vmul.f32 %v1195, %v1199
        %v1201 = vmul.f32 %v1197, %v1199
        %v1202 = vadd.f32 %v1192, %v1200
        %v1203 = vadd.f32 %v1193, %v1201
        %s1204 = sld [smem:[#allocation4 + $0x11]]
        %v1205 = vstv %s1204
        %v1206 = vmul.f32 %v1140, %v1205
        %v1207 = vmul.f32 %v1141, %v1205
        %v1208 = vadd.f32 %v1202, %v1206
        %v1209 = vadd.f32 %v1203, %v1207
        %s1210 = sld [smem:[#allocation4 + $0x91]]
        %v1211 = vstv %s1210
        %v1212 = vmul.f32 %v1142, %v1211
        %v1213 = vmul.f32 %v1143, %v1211
        %v1214 = vadd.f32 %v1208, %v1212
        %v1215 = vadd.f32 %v1209, %v1213
        %1216 = vrot.lane.b32.xlu0 %v1140, 127
        %v1217 = vpop.permute.xlu0 %1216
        %1218 = vrot.lane.b32.xlu0 %v1141, 127
        %v1219 = vpop.permute.xlu0 %1218
        %s1220 = sld [smem:[#allocation4 + $0x12]]
        %v1221 = vstv %s1220
        %v1222 = vmul.f32 %v1217, %v1221
        %v1223 = vmul.f32 %v1219, %v1221
        %v1224 = vadd.f32 %v1214, %v1222
        %v1225 = vadd.f32 %v1215, %v1223
        %1226 = vrot.lane.b32.xlu0 %v1142, 127
        %v1227 = vpop.permute.xlu0 %1226
        %1228 = vrot.lane.b32.xlu0 %v1143, 127
        %v1229 = vpop.permute.xlu0 %1228
        %s1230 = sld [smem:[#allocation4 + $0x92]]
        %v1231 = vstv %s1230
        %v1232 = vmul.f32 %v1227, %v1231
        %v1233 = vmul.f32 %v1229, %v1231
        %v1234 = vadd.f32 %v1224, %v1232
        %v1235 = vadd.f32 %v1225, %v1233
        %1236 = vrot.lane.b32.xlu0 %v1140, 126
        %v1237 = vpop.permute.xlu0 %1236
        %1238 = vrot.lane.b32.xlu0 %v1141, 126
        %v1239 = vpop.permute.xlu0 %1238
        %s1240 = sld [smem:[#allocation4 + $0x13]]
        %v1241 = vstv %s1240
        %v1242 = vmul.f32 %v1237, %v1241
        %v1243 = vmul.f32 %v1239, %v1241
        %v1244 = vadd.f32 %v1234, %v1242
        %v1245 = vadd.f32 %v1235, %v1243
        %1246 = vrot.lane.b32.xlu0 %v1142, 126
        %v1247 = vpop.permute.xlu0 %1246
        %1248 = vrot.lane.b32.xlu0 %v1143, 126
        %v1249 = vpop.permute.xlu0 %1248
        %s1250 = sld [smem:[#allocation4 + $0x93]]
        %v1251 = vstv %s1250
        %v1252 = vmul.f32 %v1247, %v1251
        %v1253 = vmul.f32 %v1249, %v1251
        %v1254 = vadd.f32 %v1244, %v1252
        %v1255 = vadd.f32 %v1245, %v1253
        %1256 = vrot.lane.b32.xlu0 %v1140, 125
        %v1257 = vpop.permute.xlu0 %1256
        %1258 = vrot.lane.b32.xlu0 %v1141, 125
        %v1259 = vpop.permute.xlu0 %1258
        %s1260 = sld [smem:[#allocation4 + $0x14]]
        %v1261 = vstv %s1260
        %v1262 = vmul.f32 %v1257, %v1261
        %v1263 = vmul.f32 %v1259, %v1261
        %v1264 = vadd.f32 %v1254, %v1262
        %v1265 = vadd.f32 %v1255, %v1263
        %1266 = vrot.lane.b32.xlu0 %v1142, 125
        %v1267 = vpop.permute.xlu0 %1266
        %1268 = vrot.lane.b32.xlu0 %v1143, 125
        %v1269 = vpop.permute.xlu0 %1268
        %s1270 = sld [smem:[#allocation4 + $0x94]]
        %v1271 = vstv %s1270
        %v1272 = vmul.f32 %v1267, %v1271
        %v1273 = vmul.f32 %v1269, %v1271
        %v1274 = vadd.f32 %v1264, %v1272
        %v1275 = vadd.f32 %v1265, %v1273
        %v1276 = vld [vmem:[#allocation2 + $0x3] sm:$0xff]
        %v1277 = vld [vmem:[#allocation2 + $0xb] sm:$0xff]
        %v1278 = vld [vmem:[#allocation3 + $0x3] sm:$0xff]
        %v1279 = vld [vmem:[#allocation3 + $0xb] sm:$0xff]
        %1280 = vrot.lane.b32.xlu0 %v1276, 3
        %v1281 = vpop.permute.xlu0 %1280
        %1282 = vrot.lane.b32.xlu0 %v1277, 3
        %v1283 = vpop.permute.xlu0 %1282
        %s1284 = sld [smem:[#allocation4 + $0x15]]
        %v1285 = vstv %s1284
        %v1286 = vmul.f32 %v1281, %v1285
        %v1287 = vmul.f32 %v1283, %v1285
        %v1288 = vadd.f32 %v1274, %v1286
        %v1289 = vadd.f32 %v1275, %v1287
        %1290 = vrot.lane.b32.xlu0 %v1278, 3
        %v1291 = vpop.permute.xlu0 %1290
        %1292 = vrot.lane.b32.xlu0 %v1279, 3
        %v1293 = vpop.permute.xlu0 %1292
        %s1294 = sld [smem:[#allocation4 + $0x95]]
        %v1295 = vstv %s1294
        %v1296 = vmul.f32 %v1291, %v1295
        %v1297 = vmul.f32 %v1293, %v1295
        %v1298 = vadd.f32 %v1288, %v1296
        %v1299 = vadd.f32 %v1289, %v1297
        %1300 = vrot.lane.b32.xlu0 %v1276, 2
        %v1301 = vpop.permute.xlu0 %1300
        %1302 = vrot.lane.b32.xlu0 %v1277, 2
        %v1303 = vpop.permute.xlu0 %1302
        %s1304 = sld [smem:[#allocation4 + $0x16]]
        %v1305 = vstv %s1304
        %v1306 = vmul.f32 %v1301, %v1305
        %v1307 = vmul.f32 %v1303, %v1305
        %v1308 = vadd.f32 %v1298, %v1306
        %v1309 = vadd.f32 %v1299, %v1307
        %1310 = vrot.lane.b32.xlu0 %v1278, 2
        %v1311 = vpop.permute.xlu0 %1310
        %1312 = vrot.lane.b32.xlu0 %v1279, 2
        %v1313 = vpop.permute.xlu0 %1312
        %s1314 = sld [smem:[#allocation4 + $0x96]]
        %v1315 = vstv %s1314
        %v1316 = vmul.f32 %v1311, %v1315
        %v1317 = vmul.f32 %v1313, %v1315
        %v1318 = vadd.f32 %v1308, %v1316
        %v1319 = vadd.f32 %v1309, %v1317
        %1320 = vrot.lane.b32.xlu0 %v1276, 1
        %v1321 = vpop.permute.xlu0 %1320
        %1322 = vrot.lane.b32.xlu0 %v1277, 1
        %v1323 = vpop.permute.xlu0 %1322
        %s1324 = sld [smem:[#allocation4 + $0x17]]
        %v1325 = vstv %s1324
        %v1326 = vmul.f32 %v1321, %v1325
        %v1327 = vmul.f32 %v1323, %v1325
        %v1328 = vadd.f32 %v1318, %v1326
        %v1329 = vadd.f32 %v1319, %v1327
        %1330 = vrot.lane.b32.xlu0 %v1278, 1
        %v1331 = vpop.permute.xlu0 %1330
        %1332 = vrot.lane.b32.xlu0 %v1279, 1
        %v1333 = vpop.permute.xlu0 %1332
        %s1334 = sld [smem:[#allocation4 + $0x97]]
        %v1335 = vstv %s1334
        %v1336 = vmul.f32 %v1331, %v1335
        %v1337 = vmul.f32 %v1333, %v1335
        %v1338 = vadd.f32 %v1328, %v1336
        %v1339 = vadd.f32 %v1329, %v1337
        %s1340 = sld [smem:[#allocation4 + $0x18]]
        %v1341 = vstv %s1340
        %v1342 = vmul.f32 %v1276, %v1341
        %v1343 = vmul.f32 %v1277, %v1341
        %v1344 = vadd.f32 %v1338, %v1342
        %v1345 = vadd.f32 %v1339, %v1343
        %s1346 = sld [smem:[#allocation4 + $0x98]]
        %v1347 = vstv %s1346
        %v1348 = vmul.f32 %v1278, %v1347
        %v1349 = vmul.f32 %v1279, %v1347
        %v1350 = vadd.f32 %v1344, %v1348
        %v1351 = vadd.f32 %v1345, %v1349
        %1352 = vrot.lane.b32.xlu0 %v1276, 127
        %v1353 = vpop.permute.xlu0 %1352
        %1354 = vrot.lane.b32.xlu0 %v1277, 127
        %v1355 = vpop.permute.xlu0 %1354
        %s1356 = sld [smem:[#allocation4 + $0x19]]
        %v1357 = vstv %s1356
        %v1358 = vmul.f32 %v1353, %v1357
        %v1359 = vmul.f32 %v1355, %v1357
        %v1360 = vadd.f32 %v1350, %v1358
        %v1361 = vadd.f32 %v1351, %v1359
        %1362 = vrot.lane.b32.xlu0 %v1278, 127
        %v1363 = vpop.permute.xlu0 %1362
        %1364 = vrot.lane.b32.xlu0 %v1279, 127
        %v1365 = vpop.permute.xlu0 %1364
        %s1366 = sld [smem:[#allocation4 + $0x99]]
        %v1367 = vstv %s1366
        %v1368 = vmul.f32 %v1363, %v1367
        %v1369 = vmul.f32 %v1365, %v1367
        %v1370 = vadd.f32 %v1360, %v1368
        %v1371 = vadd.f32 %v1361, %v1369
        %1372 = vrot.lane.b32.xlu0 %v1276, 126
        %v1373 = vpop.permute.xlu0 %1372
        %1374 = vrot.lane.b32.xlu0 %v1277, 126
        %v1375 = vpop.permute.xlu0 %1374
        %s1376 = sld [smem:[#allocation4 + $0x1a]]
        %v1377 = vstv %s1376
        %v1378 = vmul.f32 %v1373, %v1377
        %v1379 = vmul.f32 %v1375, %v1377
        %v1380 = vadd.f32 %v1370, %v1378
        %v1381 = vadd.f32 %v1371, %v1379
        %1382 = vrot.lane.b32.xlu0 %v1278, 126
        %v1383 = vpop.permute.xlu0 %1382
        %1384 = vrot.lane.b32.xlu0 %v1279, 126
        %v1385 = vpop.permute.xlu0 %1384
        %s1386 = sld [smem:[#allocation4 + $0x9a]]
        %v1387 = vstv %s1386
        %v1388 = vmul.f32 %v1383, %v1387
        %v1389 = vmul.f32 %v1385, %v1387
        %v1390 = vadd.f32 %v1380, %v1388
        %v1391 = vadd.f32 %v1381, %v1389
        %1392 = vrot.lane.b32.xlu0 %v1276, 125
        %v1393 = vpop.permute.xlu0 %1392
        %1394 = vrot.lane.b32.xlu0 %v1277, 125
        %v1395 = vpop.permute.xlu0 %1394
        %s1396 = sld [smem:[#allocation4 + $0x1b]]
        %v1397 = vstv %s1396
        %v1398 = vmul.f32 %v1393, %v1397
        %v1399 = vmul.f32 %v1395, %v1397
        %v1400 = vadd.f32 %v1390, %v1398
        %v1401 = vadd.f32 %v1391, %v1399
        %1402 = vrot.lane.b32.xlu0 %v1278, 125
        %v1403 = vpop.permute.xlu0 %1402
        %1404 = vrot.lane.b32.xlu0 %v1279, 125
        %v1405 = vpop.permute.xlu0 %1404
        %s1406 = sld [smem:[#allocation4 + $0x9b]]
        %v1407 = vstv %s1406
        %v1408 = vmul.f32 %v1403, %v1407
        %v1409 = vmul.f32 %v1405, %v1407
        %v1410 = vadd.f32 %v1400, %v1408
        %v1411 = vadd.f32 %v1401, %v1409
        %v1412 = vld [vmem:[#allocation2 + $0x4] sm:$0xff]
        %v1413 = vld [vmem:[#allocation2 + $0xc] sm:$0xff]
        %v1414 = vld [vmem:[#allocation3 + $0x4] sm:$0xff]
        %v1415 = vld [vmem:[#allocation3 + $0xc] sm:$0xff]
        %1416 = vrot.lane.b32.xlu0 %v1412, 3
        %v1417 = vpop.permute.xlu0 %1416
        %1418 = vrot.lane.b32.xlu0 %v1413, 3
        %v1419 = vpop.permute.xlu0 %1418
        %s1420 = sld [smem:[#allocation4 + $0x1c]]
        %v1421 = vstv %s1420
        %v1422 = vmul.f32 %v1417, %v1421
        %v1423 = vmul.f32 %v1419, %v1421
        %v1424 = vadd.f32 %v1410, %v1422
        %v1425 = vadd.f32 %v1411, %v1423
        %1426 = vrot.lane.b32.xlu0 %v1414, 3
        %v1427 = vpop.permute.xlu0 %1426
        %1428 = vrot.lane.b32.xlu0 %v1415, 3
        %v1429 = vpop.permute.xlu0 %1428
        %s1430 = sld [smem:[#allocation4 + $0x9c]]
        %v1431 = vstv %s1430
        %v1432 = vmul.f32 %v1427, %v1431
        %v1433 = vmul.f32 %v1429, %v1431
        %v1434 = vadd.f32 %v1424, %v1432
        %v1435 = vadd.f32 %v1425, %v1433
        %1436 = vrot.lane.b32.xlu0 %v1412, 2
        %v1437 = vpop.permute.xlu0 %1436
        %1438 = vrot.lane.b32.xlu0 %v1413, 2
        %v1439 = vpop.permute.xlu0 %1438
        %s1440 = sld [smem:[#allocation4 + $0x1d]]
        %v1441 = vstv %s1440
        %v1442 = vmul.f32 %v1437, %v1441
        %v1443 = vmul.f32 %v1439, %v1441
        %v1444 = vadd.f32 %v1434, %v1442
        %v1445 = vadd.f32 %v1435, %v1443
        %1446 = vrot.lane.b32.xlu0 %v1414, 2
        %v1447 = vpop.permute.xlu0 %1446
        %1448 = vrot.lane.b32.xlu0 %v1415, 2
        %v1449 = vpop.permute.xlu0 %1448
        %s1450 = sld [smem:[#allocation4 + $0x9d]]
        %v1451 = vstv %s1450
        %v1452 = vmul.f32 %v1447, %v1451
        %v1453 = vmul.f32 %v1449, %v1451
        %v1454 = vadd.f32 %v1444, %v1452
        %v1455 = vadd.f32 %v1445, %v1453
        %1456 = vrot.lane.b32.xlu0 %v1412, 1
        %v1457 = vpop.permute.xlu0 %1456
        %1458 = vrot.lane.b32.xlu0 %v1413, 1
        %v1459 = vpop.permute.xlu0 %1458
        %s1460 = sld [smem:[#allocation4 + $0x1e]]
        %v1461 = vstv %s1460
        %v1462 = vmul.f32 %v1457, %v1461
        %v1463 = vmul.f32 %v1459, %v1461
        %v1464 = vadd.f32 %v1454, %v1462
        %v1465 = vadd.f32 %v1455, %v1463
        %1466 = vrot.lane.b32.xlu0 %v1414, 1
        %v1467 = vpop.permute.xlu0 %1466
        %1468 = vrot.lane.b32.xlu0 %v1415, 1
        %v1469 = vpop.permute.xlu0 %1468
        %s1470 = sld [smem:[#allocation4 + $0x9e]]
        %v1471 = vstv %s1470
        %v1472 = vmul.f32 %v1467, %v1471
        %v1473 = vmul.f32 %v1469, %v1471
        %v1474 = vadd.f32 %v1464, %v1472
        %v1475 = vadd.f32 %v1465, %v1473
        %s1476 = sld [smem:[#allocation4 + $0x1f]]
        %v1477 = vstv %s1476
        %v1478 = vmul.f32 %v1412, %v1477
        %v1479 = vmul.f32 %v1413, %v1477
        %v1480 = vadd.f32 %v1474, %v1478
        %v1481 = vadd.f32 %v1475, %v1479
        %s1482 = sld [smem:[#allocation4 + $0x9f]]
        %v1483 = vstv %s1482
        %v1484 = vmul.f32 %v1414, %v1483
        %v1485 = vmul.f32 %v1415, %v1483
        %v1486 = vadd.f32 %v1480, %v1484
        %v1487 = vadd.f32 %v1481, %v1485
        %1488 = vrot.lane.b32.xlu0 %v1412, 127
        %v1489 = vpop.permute.xlu0 %1488
        %1490 = vrot.lane.b32.xlu0 %v1413, 127
        %v1491 = vpop.permute.xlu0 %1490
        %s1492 = sld [smem:[#allocation4 + $0x20]]
        %v1493 = vstv %s1492
        %v1494 = vmul.f32 %v1489, %v1493
        %v1495 = vmul.f32 %v1491, %v1493
        %v1496 = vadd.f32 %v1486, %v1494
        %v1497 = vadd.f32 %v1487, %v1495
        %1498 = vrot.lane.b32.xlu0 %v1414, 127
        %v1499 = vpop.permute.xlu0 %1498
        %1500 = vrot.lane.b32.xlu0 %v1415, 127
        %v1501 = vpop.permute.xlu0 %1500
        %s1502 = sld [smem:[#allocation4 + $0xa0]]
        %v1503 = vstv %s1502
        %v1504 = vmul.f32 %v1499, %v1503
        %v1505 = vmul.f32 %v1501, %v1503
        %v1506 = vadd.f32 %v1496, %v1504
        %v1507 = vadd.f32 %v1497, %v1505
        %1508 = vrot.lane.b32.xlu0 %v1412, 126
        %v1509 = vpop.permute.xlu0 %1508
        %1510 = vrot.lane.b32.xlu0 %v1413, 126
        %v1511 = vpop.permute.xlu0 %1510
        %s1512 = sld [smem:[#allocation4 + $0x21]]
        %v1513 = vstv %s1512
        %v1514 = vmul.f32 %v1509, %v1513
        %v1515 = vmul.f32 %v1511, %v1513
        %v1516 = vadd.f32 %v1506, %v1514
        %v1517 = vadd.f32 %v1507, %v1515
        %1518 = vrot.lane.b32.xlu0 %v1414, 126
        %v1519 = vpop.permute.xlu0 %1518
        %1520 = vrot.lane.b32.xlu0 %v1415, 126
        %v1521 = vpop.permute.xlu0 %1520
        %s1522 = sld [smem:[#allocation4 + $0xa1]]
        %v1523 = vstv %s1522
        %v1524 = vmul.f32 %v1519, %v1523
        %v1525 = vmul.f32 %v1521, %v1523
        %v1526 = vadd.f32 %v1516, %v1524
        %v1527 = vadd.f32 %v1517, %v1525
        %1528 = vrot.lane.b32.xlu0 %v1412, 125
        %v1529 = vpop.permute.xlu0 %1528
        %1530 = vrot.lane.b32.xlu0 %v1413, 125
        %v1531 = vpop.permute.xlu0 %1530
        %s1532 = sld [smem:[#allocation4 + $0x22]]
        %v1533 = vstv %s1532
        %v1534 = vmul.f32 %v1529, %v1533
        %v1535 = vmul.f32 %v1531, %v1533
        %v1536 = vadd.f32 %v1526, %v1534
        %v1537 = vadd.f32 %v1527, %v1535
        %1538 = vrot.lane.b32.xlu0 %v1414, 125
        %v1539 = vpop.permute.xlu0 %1538
        %1540 = vrot.lane.b32.xlu0 %v1415, 125
        %v1541 = vpop.permute.xlu0 %1540
        %s1542 = sld [smem:[#allocation4 + $0xa2]]
        %v1543 = vstv %s1542
        %v1544 = vmul.f32 %v1539, %v1543
        %v1545 = vmul.f32 %v1541, %v1543
        %v1546 = vadd.f32 %v1536, %v1544
        %v1547 = vadd.f32 %v1537, %v1545
        %v1548 = vld [vmem:[#allocation2 + $0x5] sm:$0xff]
        %v1549 = vld [vmem:[#allocation2 + $0xd] sm:$0xff]
        %v1550 = vld [vmem:[#allocation3 + $0x5] sm:$0xff]
        %v1551 = vld [vmem:[#allocation3 + $0xd] sm:$0xff]
        %1552 = vrot.lane.b32.xlu0 %v1548, 3
        %v1553 = vpop.permute.xlu0 %1552
        %1554 = vrot.lane.b32.xlu0 %v1549, 3
        %v1555 = vpop.permute.xlu0 %1554
        %s1556 = sld [smem:[#allocation4 + $0x23]]
        %v1557 = vstv %s1556
        %v1558 = vmul.f32 %v1553, %v1557
        %v1559 = vmul.f32 %v1555, %v1557
        %v1560 = vadd.f32 %v1546, %v1558
        %v1561 = vadd.f32 %v1547, %v1559
        %1562 = vrot.lane.b32.xlu0 %v1550, 3
        %v1563 = vpop.permute.xlu0 %1562
        %1564 = vrot.lane.b32.xlu0 %v1551, 3
        %v1565 = vpop.permute.xlu0 %1564
        %s1566 = sld [smem:[#allocation4 + $0xa3]]
        %v1567 = vstv %s1566
        %v1568 = vmul.f32 %v1563, %v1567
        %v1569 = vmul.f32 %v1565, %v1567
        %v1570 = vadd.f32 %v1560, %v1568
        %v1571 = vadd.f32 %v1561, %v1569
        %1572 = vrot.lane.b32.xlu0 %v1548, 2
        %v1573 = vpop.permute.xlu0 %1572
        %1574 = vrot.lane.b32.xlu0 %v1549, 2
        %v1575 = vpop.permute.xlu0 %1574
        %s1576 = sld [smem:[#allocation4 + $0x24]]
        %v1577 = vstv %s1576
        %v1578 = vmul.f32 %v1573, %v1577
        %v1579 = vmul.f32 %v1575, %v1577
        %v1580 = vadd.f32 %v1570, %v1578
        %v1581 = vadd.f32 %v1571, %v1579
        %1582 = vrot.lane.b32.xlu0 %v1550, 2
        %v1583 = vpop.permute.xlu0 %1582
        %1584 = vrot.lane.b32.xlu0 %v1551, 2
        %v1585 = vpop.permute.xlu0 %1584
        %s1586 = sld [smem:[#allocation4 + $0xa4]]
        %v1587 = vstv %s1586
        %v1588 = vmul.f32 %v1583, %v1587
        %v1589 = vmul.f32 %v1585, %v1587
        %v1590 = vadd.f32 %v1580, %v1588
        %v1591 = vadd.f32 %v1581, %v1589
        %1592 = vrot.lane.b32.xlu0 %v1548, 1
        %v1593 = vpop.permute.xlu0 %1592
        %1594 = vrot.lane.b32.xlu0 %v1549, 1
        %v1595 = vpop.permute.xlu0 %1594
        %s1596 = sld [smem:[#allocation4 + $0x25]]
        %v1597 = vstv %s1596
        %v1598 = vmul.f32 %v1593, %v1597
        %v1599 = vmul.f32 %v1595, %v1597
        %v1600 = vadd.f32 %v1590, %v1598
        %v1601 = vadd.f32 %v1591, %v1599
        %1602 = vrot.lane.b32.xlu0 %v1550, 1
        %v1603 = vpop.permute.xlu0 %1602
        %1604 = vrot.lane.b32.xlu0 %v1551, 1
        %v1605 = vpop.permute.xlu0 %1604
        %s1606 = sld [smem:[#allocation4 + $0xa5]]
        %v1607 = vstv %s1606
        %v1608 = vmul.f32 %v1603, %v1607
        %v1609 = vmul.f32 %v1605, %v1607
        %v1610 = vadd.f32 %v1600, %v1608
        %v1611 = vadd.f32 %v1601, %v1609
        %s1612 = sld [smem:[#allocation4 + $0x26]]
        %v1613 = vstv %s1612
        %v1614 = vmul.f32 %v1548, %v1613
        %v1615 = vmul.f32 %v1549, %v1613
        %v1616 = vadd.f32 %v1610, %v1614
        %v1617 = vadd.f32 %v1611, %v1615
        %s1618 = sld [smem:[#allocation4 + $0xa6]]
        %v1619 = vstv %s1618
        %v1620 = vmul.f32 %v1550, %v1619
        %v1621 = vmul.f32 %v1551, %v1619
        %v1622 = vadd.f32 %v1616, %v1620
        %v1623 = vadd.f32 %v1617, %v1621
        %1624 = vrot.lane.b32.xlu0 %v1548, 127
        %v1625 = vpop.permute.xlu0 %1624
        %1626 = vrot.lane.b32.xlu0 %v1549, 127
        %v1627 = vpop.permute.xlu0 %1626
        %s1628 = sld [smem:[#allocation4 + $0x27]]
        %v1629 = vstv %s1628
        %v1630 = vmul.f32 %v1625, %v1629
        %v1631 = vmul.f32 %v1627, %v1629
        %v1632 = vadd.f32 %v1622, %v1630
        %v1633 = vadd.f32 %v1623, %v1631
        %1634 = vrot.lane.b32.xlu0 %v1550, 127
        %v1635 = vpop.permute.xlu0 %1634
        %1636 = vrot.lane.b32.xlu0 %v1551, 127
        %v1637 = vpop.permute.xlu0 %1636
        %s1638 = sld [smem:[#allocation4 + $0xa7]]
        %v1639 = vstv %s1638
        %v1640 = vmul.f32 %v1635, %v1639
        %v1641 = vmul.f32 %v1637, %v1639
        %v1642 = vadd.f32 %v1632, %v1640
        %v1643 = vadd.f32 %v1633, %v1641
        %1644 = vrot.lane.b32.xlu0 %v1548, 126
        %v1645 = vpop.permute.xlu0 %1644
        %1646 = vrot.lane.b32.xlu0 %v1549, 126
        %v1647 = vpop.permute.xlu0 %1646
        %s1648 = sld [smem:[#allocation4 + $0x28]]
        %v1649 = vstv %s1648
        %v1650 = vmul.f32 %v1645, %v1649
        %v1651 = vmul.f32 %v1647, %v1649
        %v1652 = vadd.f32 %v1642, %v1650
        %v1653 = vadd.f32 %v1643, %v1651
        %1654 = vrot.lane.b32.xlu0 %v1550, 126
        %v1655 = vpop.permute.xlu0 %1654
        %1656 = vrot.lane.b32.xlu0 %v1551, 126
        %v1657 = vpop.permute.xlu0 %1656
        %s1658 = sld [smem:[#allocation4 + $0xa8]]
        %v1659 = vstv %s1658
        %v1660 = vmul.f32 %v1655, %v1659
        %v1661 = vmul.f32 %v1657, %v1659
        %v1662 = vadd.f32 %v1652, %v1660
        %v1663 = vadd.f32 %v1653, %v1661
        %1664 = vrot.lane.b32.xlu0 %v1548, 125
        %v1665 = vpop.permute.xlu0 %1664
        %1666 = vrot.lane.b32.xlu0 %v1549, 125
        %v1667 = vpop.permute.xlu0 %1666
        %s1668 = sld [smem:[#allocation4 + $0x29]]
        %v1669 = vstv %s1668
        %v1670 = vmul.f32 %v1665, %v1669
        %v1671 = vmul.f32 %v1667, %v1669
        %v1672 = vadd.f32 %v1662, %v1670
        %v1673 = vadd.f32 %v1663, %v1671
        %1674 = vrot.lane.b32.xlu0 %v1550, 125
        %v1675 = vpop.permute.xlu0 %1674
        %1676 = vrot.lane.b32.xlu0 %v1551, 125
        %v1677 = vpop.permute.xlu0 %1676
        %s1678 = sld [smem:[#allocation4 + $0xa9]]
        %v1679 = vstv %s1678
        %v1680 = vmul.f32 %v1675, %v1679
        %v1681 = vmul.f32 %v1677, %v1679
        %v1682 = vadd.f32 %v1672, %v1680
        %v1683 = vadd.f32 %v1673, %v1681
        %v1684 = vld [vmem:[#allocation2 + $0x6] sm:$0xff]
        %v1685 = vld [vmem:[#allocation2 + $0xe] sm:$0xff]
        %v1686 = vld [vmem:[#allocation3 + $0x6] sm:$0xff]
        %v1687 = vld [vmem:[#allocation3 + $0xe] sm:$0xff]
        %1688 = vrot.lane.b32.xlu0 %v1684, 3
        %v1689 = vpop.permute.xlu0 %1688
        %1690 = vrot.lane.b32.xlu0 %v1685, 3
        %v1691 = vpop.permute.xlu0 %1690
        %s1692 = sld [smem:[#allocation4 + $0x2a]]
        %v1693 = vstv %s1692
        %v1694 = vmul.f32 %v1689, %v1693
        %v1695 = vmul.f32 %v1691, %v1693
        %v1696 = vadd.f32 %v1682, %v1694
        %v1697 = vadd.f32 %v1683, %v1695
        %1698 = vrot.lane.b32.xlu0 %v1686, 3
        %v1699 = vpop.permute.xlu0 %1698
        %1700 = vrot.lane.b32.xlu0 %v1687, 3
        %v1701 = vpop.permute.xlu0 %1700
        %s1702 = sld [smem:[#allocation4 + $0xaa]]
        %v1703 = vstv %s1702
        %v1704 = vmul.f32 %v1699, %v1703
        %v1705 = vmul.f32 %v1701, %v1703
        %v1706 = vadd.f32 %v1696, %v1704
        %v1707 = vadd.f32 %v1697, %v1705
        %1708 = vrot.lane.b32.xlu0 %v1684, 2
        %v1709 = vpop.permute.xlu0 %1708
        %1710 = vrot.lane.b32.xlu0 %v1685, 2
        %v1711 = vpop.permute.xlu0 %1710
        %s1712 = sld [smem:[#allocation4 + $0x2b]]
        %v1713 = vstv %s1712
        %v1714 = vmul.f32 %v1709, %v1713
        %v1715 = vmul.f32 %v1711, %v1713
        %v1716 = vadd.f32 %v1706, %v1714
        %v1717 = vadd.f32 %v1707, %v1715
        %1718 = vrot.lane.b32.xlu0 %v1686, 2
        %v1719 = vpop.permute.xlu0 %1718
        %1720 = vrot.lane.b32.xlu0 %v1687, 2
        %v1721 = vpop.permute.xlu0 %1720
        %s1722 = sld [smem:[#allocation4 + $0xab]]
        %v1723 = vstv %s1722
        %v1724 = vmul.f32 %v1719, %v1723
        %v1725 = vmul.f32 %v1721, %v1723
        %v1726 = vadd.f32 %v1716, %v1724
        %v1727 = vadd.f32 %v1717, %v1725
        %1728 = vrot.lane.b32.xlu0 %v1684, 1
        %v1729 = vpop.permute.xlu0 %1728
        %1730 = vrot.lane.b32.xlu0 %v1685, 1
        %v1731 = vpop.permute.xlu0 %1730
        %s1732 = sld [smem:[#allocation4 + $0x2c]]
        %v1733 = vstv %s1732
        %v1734 = vmul.f32 %v1729, %v1733
        %v1735 = vmul.f32 %v1731, %v1733
        %v1736 = vadd.f32 %v1726, %v1734
        %v1737 = vadd.f32 %v1727, %v1735
        %1738 = vrot.lane.b32.xlu0 %v1686, 1
        %v1739 = vpop.permute.xlu0 %1738
        %1740 = vrot.lane.b32.xlu0 %v1687, 1
        %v1741 = vpop.permute.xlu0 %1740
        %s1742 = sld [smem:[#allocation4 + $0xac]]
        %v1743 = vstv %s1742
        %v1744 = vmul.f32 %v1739, %v1743
        %v1745 = vmul.f32 %v1741, %v1743
        %v1746 = vadd.f32 %v1736, %v1744
        %v1747 = vadd.f32 %v1737, %v1745
        %s1748 = sld [smem:[#allocation4 + $0x2d]]
        %v1749 = vstv %s1748
        %v1750 = vmul.f32 %v1684, %v1749
        %v1751 = vmul.f32 %v1685, %v1749
        %v1752 = vadd.f32 %v1746, %v1750
        %v1753 = vadd.f32 %v1747, %v1751
        %s1754 = sld [smem:[#allocation4 + $0xad]]
        %v1755 = vstv %s1754
        %v1756 = vmul.f32 %v1686, %v1755
        %v1757 = vmul.f32 %v1687, %v1755
        %v1758 = vadd.f32 %v1752, %v1756
        %v1759 = vadd.f32 %v1753, %v1757
        %1760 = vrot.lane.b32.xlu0 %v1684, 127
        %v1761 = vpop.permute.xlu0 %1760
        %1762 = vrot.lane.b32.xlu0 %v1685, 127
        %v1763 = vpop.permute.xlu0 %1762
        %s1764 = sld [smem:[#allocation4 + $0x2e]]
        %v1765 = vstv %s1764
        %v1766 = vmul.f32 %v1761, %v1765
        %v1767 = vmul.f32 %v1763, %v1765
        %v1768 = vadd.f32 %v1758, %v1766
        %v1769 = vadd.f32 %v1759, %v1767
        %1770 = vrot.lane.b32.xlu0 %v1686, 127
        %v1771 = vpop.permute.xlu0 %1770
        %1772 = vrot.lane.b32.xlu0 %v1687, 127
        %v1773 = vpop.permute.xlu0 %1772
        %s1774 = sld [smem:[#allocation4 + $0xae]]
        %v1775 = vstv %s1774
        %v1776 = vmul.f32 %v1771, %v1775
        %v1777 = vmul.f32 %v1773, %v1775
        %v1778 = vadd.f32 %v1768, %v1776
        %v1779 = vadd.f32 %v1769, %v1777
        %1780 = vrot.lane.b32.xlu0 %v1684, 126
        %v1781 = vpop.permute.xlu0 %1780
        %1782 = vrot.lane.b32.xlu0 %v1685, 126
        %v1783 = vpop.permute.xlu0 %1782
        %s1784 = sld [smem:[#allocation4 + $0x2f]]
        %v1785 = vstv %s1784
        %v1786 = vmul.f32 %v1781, %v1785
        %v1787 = vmul.f32 %v1783, %v1785
        %v1788 = vadd.f32 %v1778, %v1786
        %v1789 = vadd.f32 %v1779, %v1787
        %1790 = vrot.lane.b32.xlu0 %v1686, 126
        %v1791 = vpop.permute.xlu0 %1790
        %1792 = vrot.lane.b32.xlu0 %v1687, 126
        %v1793 = vpop.permute.xlu0 %1792
        %s1794 = sld [smem:[#allocation4 + $0xaf]]
        %v1795 = vstv %s1794
        %v1796 = vmul.f32 %v1791, %v1795
        %v1797 = vmul.f32 %v1793, %v1795
        %v1798 = vadd.f32 %v1788, %v1796
        %v1799 = vadd.f32 %v1789, %v1797
        %1800 = vrot.lane.b32.xlu0 %v1684, 125
        %v1801 = vpop.permute.xlu0 %1800
        %1802 = vrot.lane.b32.xlu0 %v1685, 125
        %v1803 = vpop.permute.xlu0 %1802
        %s1804 = sld [smem:[#allocation4 + $0x30]]
        %v1805 = vstv %s1804
        %v1806 = vmul.f32 %v1801, %v1805
        %v1807 = vmul.f32 %v1803, %v1805
        %v1808 = vadd.f32 %v1798, %v1806
        %v1809 = vadd.f32 %v1799, %v1807
        %1810 = vrot.lane.b32.xlu0 %v1686, 125
        %v1811 = vpop.permute.xlu0 %1810
        %1812 = vrot.lane.b32.xlu0 %v1687, 125
        %v1813 = vpop.permute.xlu0 %1812
        %s1814 = sld [smem:[#allocation4 + $0xb0]]
        %v1815 = vstv %s1814
        %v1816 = vmul.f32 %v1811, %v1815
        %v1817 = vmul.f32 %v1813, %v1815
        %v1818 = vadd.f32 %v1808, %v1816
        %v1819 = vadd.f32 %v1809, %v1817
        %v1820 = vxor.u32 %v1818, 2147483648
        %v1821 = vxor.u32 %v1819, 2147483648
        %v1822 = vmul.f32 %v1820, 1.442695
        %v1823 = vpow.pop %v1822
        %v1824 = vmul.f32 %v1821, 1.442695
        %v1825 = vpow.pop %v1824
        %v1826 = vadd.f32 %v1823, 1.0
        %v1827 = vadd.f32 %v1825, 1.0
        %v1828 = vrcp.pop %v1826
        %v1829 = vmul.f32 1.0, %v1828
        %v1830 = vrcp.pop %v1827
        %v1831 = vmul.f32 1.0, %v1830
        %v1832 = vlaneseq
        %v1833 = vshrl.u32 %v1832, 7
        %v1834 = vsub.s32 0, %v1833
        %v1835 = vrot.slane %v1829, %v1834
        %1837 = vbcast.lane.b32.xlu0 %v1835, 256
        %v1838 = vpop.permute.xlu0 %1837
        %s1840 = sor.u32 256, 8
        %1841 = vbcast.lane.b32.xlu0 %v1835, %s1840
        %v1842 = vpop.permute.xlu0 %1841
        %v1843 = vlaneseq
        %v1844 = vshrl.u32 %v1843, 7
        %v1845 = vsub.s32 1, %v1844
        %v1846 = vrot.slane %v1829, %v1845
        %1848 = vbcast.lane.b32.xlu0 %v1846, 256
        %v1849 = vpop.permute.xlu0 %1848
        %s1851 = sor.u32 256, 8
        %1852 = vbcast.lane.b32.xlu0 %v1846, %s1851
        %v1853 = vpop.permute.xlu0 %1852
        %v1854 = vlaneseq
        %v1855 = vshrl.u32 %v1854, 7
        %v1856 = vsub.s32 2, %v1855
        %v1857 = vrot.slane %v1829, %v1856
        %1859 = vbcast.lane.b32.xlu0 %v1857, 256
        %v1860 = vpop.permute.xlu0 %1859
        %s1862 = sor.u32 256, 8
        %1863 = vbcast.lane.b32.xlu0 %v1857, %s1862
        %v1864 = vpop.permute.xlu0 %1863
        %v1865 = vlaneseq
        %v1866 = vshrl.u32 %v1865, 7
        %v1867 = vsub.s32 3, %v1866
        %v1868 = vrot.slane %v1829, %v1867
        %1870 = vbcast.lane.b32.xlu0 %v1868, 256
        %v1871 = vpop.permute.xlu0 %1870
        %s1873 = sor.u32 256, 8
        %1874 = vbcast.lane.b32.xlu0 %v1868, %s1873
        %v1875 = vpop.permute.xlu0 %1874
        %v1876 = vlaneseq
        %v1877 = vshrl.u32 %v1876, 7
        %v1878 = vsub.s32 4, %v1877
        %v1879 = vrot.slane %v1829, %v1878
        %1881 = vbcast.lane.b32.xlu0 %v1879, 256
        %v1882 = vpop.permute.xlu0 %1881
        %s1884 = sor.u32 256, 8
        %1885 = vbcast.lane.b32.xlu0 %v1879, %s1884
        %v1886 = vpop.permute.xlu0 %1885
        %v1887 = vlaneseq
        %v1888 = vshrl.u32 %v1887, 7
        %v1889 = vsub.s32 5, %v1888
        %v1890 = vrot.slane %v1829, %v1889
        %1892 = vbcast.lane.b32.xlu0 %v1890, 256
        %v1893 = vpop.permute.xlu0 %1892
        %s1895 = sor.u32 256, 8
        %1896 = vbcast.lane.b32.xlu0 %v1890, %s1895
        %v1897 = vpop.permute.xlu0 %1896
        %v1898 = vlaneseq
        %v1899 = vshrl.u32 %v1898, 7
        %v1900 = vsub.s32 6, %v1899
        %v1901 = vrot.slane %v1829, %v1900
        %1903 = vbcast.lane.b32.xlu0 %v1901, 256
        %v1904 = vpop.permute.xlu0 %1903
        %s1906 = sor.u32 256, 8
        %1907 = vbcast.lane.b32.xlu0 %v1901, %s1906
        %v1908 = vpop.permute.xlu0 %1907
        %v1909 = vlaneseq
        %v1910 = vshrl.u32 %v1909, 7
        %v1911 = vsub.s32 7, %v1910
        %v1912 = vrot.slane %v1829, %v1911
        %1914 = vbcast.lane.b32.xlu0 %v1912, 256
        %v1915 = vpop.permute.xlu0 %1914
        %s1917 = sor.u32 256, 8
        %1918 = vbcast.lane.b32.xlu0 %v1912, %s1917
        %v1919 = vpop.permute.xlu0 %1918
        %v1920 = vlaneseq
        %v1921 = vshrl.u32 %v1920, 7
        %v1922 = vsub.s32 0, %v1921
        %v1923 = vrot.slane %v1831, %v1922
        %1925 = vbcast.lane.b32.xlu0 %v1923, 256
        %v1926 = vpop.permute.xlu0 %1925
        %s1928 = sor.u32 256, 8
        %1929 = vbcast.lane.b32.xlu0 %v1923, %s1928
        %v1930 = vpop.permute.xlu0 %1929
        %v1931 = vlaneseq
        %v1932 = vshrl.u32 %v1931, 7
        %v1933 = vsub.s32 1, %v1932
        %v1934 = vrot.slane %v1831, %v1933
        %1936 = vbcast.lane.b32.xlu0 %v1934, 256
        %v1937 = vpop.permute.xlu0 %1936
        %s1939 = sor.u32 256, 8
        %1940 = vbcast.lane.b32.xlu0 %v1934, %s1939
        %v1941 = vpop.permute.xlu0 %1940
        %v1942 = vlaneseq
        %v1943 = vshrl.u32 %v1942, 7
        %v1944 = vsub.s32 2, %v1943
        %v1945 = vrot.slane %v1831, %v1944
        %1947 = vbcast.lane.b32.xlu0 %v1945, 256
        %v1948 = vpop.permute.xlu0 %1947
        %s1950 = sor.u32 256, 8
        %1951 = vbcast.lane.b32.xlu0 %v1945, %s1950
        %v1952 = vpop.permute.xlu0 %1951
        %v1953 = vlaneseq
        %v1954 = vshrl.u32 %v1953, 7
        %v1955 = vsub.s32 3, %v1954
        %v1956 = vrot.slane %v1831, %v1955
        %1958 = vbcast.lane.b32.xlu0 %v1956, 256
        %v1959 = vpop.permute.xlu0 %1958
        %s1961 = sor.u32 256, 8
        %1962 = vbcast.lane.b32.xlu0 %v1956, %s1961
        %v1963 = vpop.permute.xlu0 %1962
        %v1964 = vlaneseq
        %v1965 = vshrl.u32 %v1964, 7
        %v1966 = vsub.s32 4, %v1965
        %v1967 = vrot.slane %v1831, %v1966
        %1969 = vbcast.lane.b32.xlu0 %v1967, 256
        %v1970 = vpop.permute.xlu0 %1969
        %s1972 = sor.u32 256, 8
        %1973 = vbcast.lane.b32.xlu0 %v1967, %s1972
        %v1974 = vpop.permute.xlu0 %1973
        %v1975 = vlaneseq
        %v1976 = vshrl.u32 %v1975, 7
        %v1977 = vsub.s32 5, %v1976
        %v1978 = vrot.slane %v1831, %v1977
        %1980 = vbcast.lane.b32.xlu0 %v1978, 256
        %v1981 = vpop.permute.xlu0 %1980
        %s1983 = sor.u32 256, 8
        %1984 = vbcast.lane.b32.xlu0 %v1978, %s1983
        %v1985 = vpop.permute.xlu0 %1984
        %v1986 = vlaneseq
        %v1987 = vshrl.u32 %v1986, 7
        %v1988 = vsub.s32 6, %v1987
        %v1989 = vrot.slane %v1831, %v1988
        %1991 = vbcast.lane.b32.xlu0 %v1989, 256
        %v1992 = vpop.permute.xlu0 %1991
        %s1994 = sor.u32 256, 8
        %1995 = vbcast.lane.b32.xlu0 %v1989, %s1994
        %v1996 = vpop.permute.xlu0 %1995
        %v1997 = vlaneseq
        %v1998 = vshrl.u32 %v1997, 7
        %v1999 = vsub.s32 7, %v1998
        %v2000 = vrot.slane %v1831, %v1999
        %2002 = vbcast.lane.b32.xlu0 %v2000, 256
        %v2003 = vpop.permute.xlu0 %2002
        %s2005 = sor.u32 256, 8
        %2006 = vbcast.lane.b32.xlu0 %v2000, %s2005
        %v2007 = vpop.permute.xlu0 %2006
        %v2008 = vmul.f32 %v270, %v1838
        %v2009 = vmul.f32 %v271, %v1842
        %v2010 = vmul.f32 %v272, %v1849
        %v2011 = vmul.f32 %v273, %v1853
        %v2012 = vmul.f32 %v274, %v1860
        %v2013 = vmul.f32 %v275, %v1864
        %v2014 = vmul.f32 %v276, %v1871
        %v2015 = vmul.f32 %v277, %v1875
        %v2016 = vmul.f32 %v278, %v1882
        %v2017 = vmul.f32 %v279, %v1886
        %v2018 = vmul.f32 %v280, %v1893
        %v2019 = vmul.f32 %v281, %v1897
        %v2020 = vmul.f32 %v282, %v1904
        %v2021 = vmul.f32 %v283, %v1908
        %v2022 = vmul.f32 %v284, %v1915
        %v2023 = vmul.f32 %v285, %v1919
        %v2024 = vmul.f32 %v286, %v1926
        %v2025 = vmul.f32 %v287, %v1930
        %v2026 = vmul.f32 %v288, %v1937
        %v2027 = vmul.f32 %v289, %v1941
        %v2028 = vmul.f32 %v290, %v1948
        %v2029 = vmul.f32 %v291, %v1952
        %v2030 = vmul.f32 %v292, %v1959
        %v2031 = vmul.f32 %v293, %v1963
        %v2032 = vmul.f32 %v294, %v1970
        %v2033 = vmul.f32 %v295, %v1974
        %v2034 = vmul.f32 %v296, %v1981
        %v2035 = vmul.f32 %v297, %v1985
        %v2036 = vmul.f32 %v298, %v1992
        %v2037 = vmul.f32 %v299, %v1996
        %v2038 = vmul.f32 %v300, %v2003
        %v2039 = vmul.f32 %v301, %v2007
        %2040 = vst [vmem:[%s198] sm:$0xff] %v2008
        %2041 = vst [vmem:[%s198 + $0x8] sm:$0xff] %v2009
        %2042 = vst [vmem:[%s198 + $0x10] sm:$0xff] %v2010
        %2043 = vst [vmem:[%s198 + $0x18] sm:$0xff] %v2011
        %2044 = vst [vmem:[%s198 + $0x20] sm:$0xff] %v2012
        %2045 = vst [vmem:[%s198 + $0x28] sm:$0xff] %v2013
        %2046 = vst [vmem:[%s198 + $0x30] sm:$0xff] %v2014
        %2047 = vst [vmem:[%s198 + $0x38] sm:$0xff] %v2015
        %2048 = vst [vmem:[%s198 + $0x40] sm:$0xff] %v2016
        %2049 = vst [vmem:[%s198 + $0x48] sm:$0xff] %v2017
        %2050 = vst [vmem:[%s198 + $0x50] sm:$0xff] %v2018
        %2051 = vst [vmem:[%s198 + $0x58] sm:$0xff] %v2019
        %2052 = vst [vmem:[%s198 + $0x60] sm:$0xff] %v2020
        %2053 = vst [vmem:[%s198 + $0x68] sm:$0xff] %v2021
        %2054 = vst [vmem:[%s198 + $0x70] sm:$0xff] %v2022
        %2055 = vst [vmem:[%s198 + $0x78] sm:$0xff] %v2023
        %2056 = vst [vmem:[%s198 + $0x80] sm:$0xff] %v2024
        %2057 = vst [vmem:[%s198 + $0x88] sm:$0xff] %v2025
        %2058 = vst [vmem:[%s198 + $0x90] sm:$0xff] %v2026
        %2059 = vst [vmem:[%s198 + $0x98] sm:$0xff] %v2027
        %2060 = vst [vmem:[%s198 + $0xa0] sm:$0xff] %v2028
        %2061 = vst [vmem:[%s198 + $0xa8] sm:$0xff] %v2029
        %2062 = vst [vmem:[%s198 + $0xb0] sm:$0xff] %v2030
        %2063 = vst [vmem:[%s198 + $0xb8] sm:$0xff] %v2031
        %2064 = vst [vmem:[%s198 + $0xc0] sm:$0xff] %v2032
        %2065 = vst [vmem:[%s198 + $0xc8] sm:$0xff] %v2033
        %2066 = vst [vmem:[%s198 + $0xd0] sm:$0xff] %v2034
        %2067 = vst [vmem:[%s198 + $0xd8] sm:$0xff] %v2035
        %2068 = vst [vmem:[%s198 + $0xe0] sm:$0xff] %v2036
        %2069 = vst [vmem:[%s198 + $0xe8] sm:$0xff] %v2037
        %2070 = vst [vmem:[%s198 + $0xf0] sm:$0xff] %v2038
        %2071 = vst [vmem:[%s198 + $0xf8] sm:$0xff] %v2039
        %p2072 = scmp.lt.s32.totalorder %s15, 1
        %s2073 = scalar_select %p2072, %s15, 1
        %s2074 = smul.addr %s2073, 32
        %s2075 = smul.addr %s2074, 8
        %s2076 = scalar_lea.vmem %s3, %s2075
        // Predicated region
        $region37: #{_lambda_.5} parent=31 // pred_check
          %p2077 = pneg %p106
        $region38: #{_lambda_.5} parent=31 // pred_check_branch
          %2079 = sbr.rel (%p2077) target = $region40
        $region39: #{_lambda_.5} parent=31 // pred_region
          _
        $region40: #{_lambda_.5} parent=31 // pred_fallthru
          _
      $region32: #{_lambda_.5} parent=5 // pred_fallthru
        _
      %p2080 = scmp.le.s32.totalorder 2, %s10
      // Predicated region
      $region41: #{_lambda_.5} parent=5 // pred_check
        %p2081 = pneg %p2080
      $region42: #{_lambda_.5} parent=5 // pred_check_branch
        %2083 = sbr.rel (%p2081) target = $region44
      $region43: #{_lambda_.5} parent=5 // pred_region
        %s2084 = ssub.s32 %s10, 2
        // Predicated region
        $region45: #{_lambda_.5} parent=43 // pred_check
          %p2085 = pneg %p112
        $region46: #{_lambda_.5} parent=43 // pred_check_branch
          %2087 = sbr.rel (%p2085) target = $region48
        $region47: #{_lambda_.5} parent=43 // pred_region
          %p2088 = scmp.lt.s32.totalorder %s16, 1
          %s2089 = scalar_select %p2088, %s16, 1
          %s2090 = smul.addr %s2089, 32
          %s2091 = smul.addr %s2090, 8
          %s2092 = scalar_lea.vmem %s3, %s2091
        $region48: #{_lambda_.5} parent=43 // pred_fallthru
          _
      $region44: #{_lambda_.5} parent=5 // pred_fallthru
        _
    $region6: #{_lambda_.5} parent=1 // loop_footer
      %s14 = sadd.s32 1, %s10
    $region7: #{_lambda_.5} parent=1 // loop_footer_branch
      %9 = sbr.rel target = $region3
    $region8: #{_lambda_.5} parent=1 // loop_exit
      _
    %2093 = vsyncpa [#allocation5], 1
    %s2094 = scalar_lea.sflag [#allocation5], 1
    %2095 = vsyncpa %s2094, 1

</llo_original>
